<compile_context>
chip_gen: v7x
topology: tpu7x:2x2x1
jax: 0.10.0
libtpu: 0.0.40
codegen_flags: <defaults>
</compile_context>

<pallas_src>
import functools
import math

import jax
import jax.numpy as jnp
from jax.experimental import pallas as pl
from jax.experimental.pallas import tpu as pltpu

_SQRT2 = math.sqrt(2.0)
_LN_EPS = 1e-5       # torch.nn.LayerNorm default
_NEG_INF = -1e30     # additive mask for off-group attention positions


# ----------------------------------------------------------------------------
# in-kernel helpers
# ----------------------------------------------------------------------------
def _ln_core(x):
    """LayerNorm without the affine (affine folded into the following linear)."""
    mu = jnp.mean(x, axis=-1, keepdims=True)
    xc = x - mu
    var = jnp.mean(xc * xc, axis=-1, keepdims=True)
    return xc * jax.lax.rsqrt(var + _LN_EPS)


# ----------------------------------------------------------------------------
# the single fused Pallas kernel (whole encoder for one batch element)
# ----------------------------------------------------------------------------
def _fused_encoder_kernel(ego_ref, x_ref, mw_ref, mg_ref, *rest,
                          depth, heads, dh, dim):
    """rest = (flat weight refs..., out_ref).

    Token refs are (T, D) in spatial (row-major h*W + w) order; mw/mg are the
    additive window / grid group masks of shape (T, T).
    Weight order per block: stage1(wq,bq,wkv,bkv,wp,bp,w1,b1,w2,b2),
    stage2(same 10, g_post, b_post); then (wh, bh) for mlp_head.
    """
    out_ref = rest[-1]
    w_refs = rest[:-1]

    ego = ego_ref[...]                      # (T, D) f32 - k/v source, never updated
    x = x_ref[...]                          # (T, D) f32 - residual / query stream
    mask_win = mw_ref[...]                  # (T, T) f32
    mask_grid = mg_ref[...]

    # LN core of ego is shared by every k/v projection of every stage & block
    # (the per-stage LN affines are folded into wkv).
    ego_c = _ln_core(ego).astype(jnp.bfloat16)

    md = heads * dh
    idx = [0]

    def take(n):
        vals = w_refs[idx[0]: idx[0] + n]
        idx[0] += n
        return vals

    for _ in range(depth):
        for stage in (0, 1):                            # 0: window attn, 1: grid attn
            wq, bq, wkv, bkv, wp, bp, w1, b1, w2, b2 = [r[...] for r in take(10)]
            mask = mask_win if stage == 0 else mask_grid

            # Fused projections (LN affine + attention scale folded into wq/wkv).
            qh = jnp.dot(_ln_core(x).astype(jnp.bfloat16), wq,
                         preferred_element_type=jnp.float32) + bq       # (T, md)
            kvh = jnp.dot(ego_c, wkv,
                          preferred_element_type=jnp.float32) + bkv     # (T, 2*md)

            # Dense masked attention per head, accumulated straight through the
            # output projection slice (no concat, no per-window batching).
            acc = None
            for m in range(heads):
                qm = qh[:, m * dh:(m + 1) * dh].astype(jnp.bfloat16)            # (T, dh)
                km = kvh[:, m * dh:(m + 1) * dh].astype(jnp.bfloat16)           # (T, dh)
                vm = kvh[:, md + m * dh: md + (m + 1) * dh].astype(jnp.bfloat16)
                s = jax.lax.dot_general(qm, km, (((1,), (1,)), ((), ())),
                                        preferred_element_type=jnp.float32)     # (T, T)
                s = s + mask
                s = s - jnp.max(s, axis=-1, keepdims=True)
                e = jnp.exp(s)
                p = e * pl.reciprocal(jnp.sum(e, axis=-1, keepdims=True), approx=True)
                am = jnp.dot(p.astype(jnp.bfloat16), vm,
                             preferred_element_type=jnp.float32)                # (T, dh)
                contrib = jnp.dot(am.astype(jnp.bfloat16), wp[m * dh:(m + 1) * dh, :],
                                  preferred_element_type=jnp.float32)           # (T, D)
                acc = contrib if acc is None else acc + contrib
            z = x + acc + bp                                                    # proj + skip

            # Residual MLP: z + W2(GELU(W1(LN(z)))), prenorm affine folded into W1.
            h = jnp.dot(_ln_core(z).astype(jnp.bfloat16), w1,
                        preferred_element_type=jnp.float32) + b1
            h = 0.5 * h * (1.0 + jax.lax.erf(h / _SQRT2))                        # exact GELU
            z = z + jnp.dot(h.astype(jnp.bfloat16), w2,
                            preferred_element_type=jnp.float32) + b2

            if stage == 1:                                                       # post_norm
                g_post, b_post = [r[...] for r in take(2)]
                z = _ln_core(z) * g_post + b_post
            x = z

    # mlp_head: LayerNorm + Linear (LN affine folded into wh/bh) - fused here too.
    wh, bh = [r[...] for r in take(2)]
    out_ref[...] = jnp.dot(_ln_core(x).astype(jnp.bfloat16), wh,
                           preferred_element_type=jnp.float32) + bh


# ----------------------------------------------------------------------------
# wrapper: masks, single pallas_call, NCHW <-> token layout glue
# ----------------------------------------------------------------------------
def _make_group_masks(H, W, win):
    """Additive masks selecting the window / grid attention groups over spatial tokens."""
    xb, yb = H // win, W // win
    idx = jnp.arange(H * W, dtype=jnp.int32)
    h, w = idx // W, idx % W
    win_grp = (h // win) * yb + (w // win)      # 'b d (x w1) (y w2)': group = (x, y)
    grid_grp = (h % xb) * yb + (w % yb)         # 'b d (w1 x) (w2 y)': group = (x, y)
    mw = jnp.where(win_grp[:, None] == win_grp[None, :], 0.0, _NEG_INF).astype(jnp.float32)
    mg = jnp.where(grid_grp[:, None] == grid_grp[None, :], 0.0, _NEG_INF).astype(jnp.float32)
    return mw, mg


def cross_domain_fusion_encoder(ego_nchw, cav_nchw, flat_params, depth, win, heads, dh):
    B, D, H, W = ego_nchw.shape
    T = H * W
    ego = jnp.transpose(ego_nchw, (0, 2, 3, 1)).reshape(B, T, D).astype(jnp.float32)
    x = jnp.transpose(cav_nchw, (0, 2, 3, 1)).reshape(B, T, D).astype(jnp.float32)
    mask_win, mask_grid = _make_group_masks(H, W, win)

    tok_spec = pl.BlockSpec((None, T, D), lambda b: (b, 0, 0))
    mask_spec = pl.BlockSpec((T, T), lambda b: (0, 0))
    w_specs = [pl.BlockSpec(p.shape, lambda b: (0, 0)) for p in flat_params]

    kernel = functools.partial(_fused_encoder_kernel,
                               depth=depth, heads=heads, dh=dh, dim=D)
    y = pl.pallas_call(
        kernel,
        out_shape=jax.ShapeDtypeStruct((B, T, D), jnp.float32),
        grid=(B,),
        in_specs=[tok_spec, tok_spec, mask_spec, mask_spec] + w_specs,
        out_specs=tok_spec,
        compiler_params=pltpu.CompilerParams(dimension_semantics=("parallel",)),
    )(ego, x, mask_win, mask_grid, *flat_params)
    return jnp.transpose(y.reshape(B, H, W, D), (0, 3, 1, 2))           # NCHW


# ----------------------------------------------------------------------------
# parameter folding: LN affine (+ attention scale) folded into linear weights
# ----------------------------------------------------------------------------
def _fold_ln_linear(g, b_ln, w, b):
    # LN_affine(core) @ w + b  ==  core @ (diag(g) @ w) + (b_ln @ w + b)
    return g.reshape(-1, 1) * w, b_ln @ w + b


def _prep_stage(attn, ln_g, ln_b, mlp, scale, post=None):
    wq, bq = _fold_ln_linear(attn['g_q'], attn['b_q_ln'], attn['w_q'], attn['b_q'])
    wq, bq = wq * scale, bq * scale                     # fold attention scale into q
    wk, bk = _fold_ln_linear(attn['g_k'], attn['b_k_ln'], attn['w_k'], attn['b_k'])
    wv, bv = _fold_ln_linear(attn['g_v'], attn['b_v_ln'], attn['w_v'], attn['b_v'])
    wkv = jnp.concatenate([wk, wv], axis=1)
    bkv = jnp.concatenate([bk, bv], axis=1)
    w1, b1 = _fold_ln_linear(ln_g, ln_b, mlp[0], mlp[1])
    w2, b2 = mlp[2], mlp[3]
    ws = [wq.astype(jnp.bfloat16), bq,
          wkv.astype(jnp.bfloat16), bkv,
          attn['w_p'].astype(jnp.bfloat16), attn['b_p'],
          w1.astype(jnp.bfloat16), b1,
          w2.astype(jnp.bfloat16), b2]
    if post is not None:
        ws += [post[0], post[1]]                        # post_norm gain / bias (f32)
    return ws


def prepare_params(raw, dim_head):
    scale = dim_head ** (-0.5)
    flat = []
    for blk in raw['blocks']:
        g1, bln1 = blk['prenorm1']
        g2, bln2 = blk['prenorm2']
        flat += _prep_stage(blk['attn1'], g1, bln1, blk['mlp1'], scale)
        flat += _prep_stage(blk['attn2'], g2, bln2, blk['mlp2'], scale,
                            post=blk['postnorm'])
    gh, bh = raw['head_ln']
    wh, bwh = raw['head_lin']
    whf, bhf = _fold_ln_linear(gh, bh, wh, bwh)
    flat += [whf.astype(jnp.bfloat16), bhf]
    return tuple(flat)


# ----------------------------------------------------------------------------
# deterministic synthetic parameter init (shapes from the PyTorch __init__)
# ----------------------------------------------------------------------------
def _init_ln_params(key, d):
    kg, kb = jax.random.split(key)
    return (1.0 + 0.1 * jax.random.normal(kg, (1, d), jnp.float32),
            0.1 * jax.random.normal(kb, (1, d), jnp.float32))


def _init_lin_params(key, din, dout):
    kw, kb = jax.random.split(key)
    return (0.05 * jax.random.normal(kw, (din, dout), jnp.float32),
            0.05 * jax.random.normal(kb, (1, dout), jnp.float32))


def _init_attn_params(key, dim, heads, dh):
    ks = jax.random.split(key, 7)
    md = heads * dh
    gq, bqln = _init_ln_params(ks[0], dim)
    wq, bq = _init_lin_params(ks[1], dim, md)
    gk, bkln = _init_ln_params(ks[2], dim)
    wk, bk = _init_lin_params(ks[3], dim, md)
    gv, bvln = _init_ln_params(ks[4], dim)
    wv, bv = _init_lin_params(ks[5], dim, md)
    wp, bp = _init_lin_params(ks[6], md, dim)
    return dict(g_q=gq, b_q_ln=bqln, w_q=wq, b_q=bq,
                g_k=gk, b_k_ln=bkln, w_k=wk, b_k=bk,
                g_v=gv, b_v_ln=bvln, w_v=wv, b_v=bv,
                w_p=wp, b_p=bp)


def _init_block_params(key, dim, heads, dh):
    ks = jax.random.split(key, 9)
    return dict(
        attn1=_init_attn_params(ks[0], dim, heads, dh),
        attn2=_init_attn_params(ks[1], dim, heads, dh),
        prenorm1=_init_ln_params(ks[2], dim),
        mlp1=_init_lin_params(ks[3], dim, 2 * dim) + _init_lin_params(ks[4], 2 * dim, dim),
        prenorm2=_init_ln_params(ks[5], dim),
        mlp2=_init_lin_params(ks[6], dim, 2 * dim) + _init_lin_params(ks[7], 2 * dim, dim),
        postnorm=_init_ln_params(ks[8], dim),
    )
    # NOTE: self.feed_forward exists in the PyTorch __init__ but is never used
    # in forward(), so no parameters are created for it here.


def init_params(key, depth, dim, heads, dh):
    ks = jax.random.split(key, depth + 2)
    return dict(
        blocks=[_init_block_params(ks[i], dim, heads, dh) for i in range(depth)],
        head_ln=_init_ln_params(ks[depth], dim),
        head_lin=_init_lin_params(ks[depth + 1], dim, dim),
    )


# ----------------------------------------------------------------------------
if __name__ == "__main__":
    # args = {'depth': 2, 'input_dim': 32, 'heads': 2, 'dim_head': 16, 'window_size': 4}
    B, D, H, W = 2, 32, 8, 8
    depth, heads, dim_head, win = 2, 2, 16, 4

    key = jax.random.PRNGKey(0)
    k_ego, k_cav, k_par = jax.random.split(key, 3)
    ego_feature = jax.random.normal(k_ego, (B, D, H, W), jnp.float32)
    cav_feature = jax.random.normal(k_cav, (B, D, H, W), jnp.float32)
    raw_params = init_params(k_par, depth, D, heads, dim_head)
    prepared = prepare_params(raw_params, dim_head)

    fwd = jax.jit(lambda e, c, p: cross_domain_fusion_encoder(
        e, c, p, depth, win, heads, dim_head))
    out = jax.block_until_ready(fwd(ego_feature, cav_feature, prepared))

    assert out.shape == (B, D, H, W), out.shape
    assert bool(jnp.all(jnp.isfinite(out)))
    print("KERNEL_OK")
</pallas_src>

<mosaic_0001>
module attributes {stable_mosaic.version = 11 : i64} {
  func.func @_fused_encoder_kernel(%arg0: i32, %arg1: memref<1x64x32xf32, #tpu.memory_space<vmem>>, %arg2: memref<1x64x32xf32, #tpu.memory_space<vmem>>, %arg3: memref<64x64xf32, #tpu.memory_space<vmem>>, %arg4: memref<64x64xf32, #tpu.memory_space<vmem>>, %arg5: memref<32x32xbf16, #tpu.memory_space<vmem>>, %arg6: memref<1x32xf32, #tpu.memory_space<vmem>>, %arg7: memref<32x64xbf16, #tpu.memory_space<vmem>>, %arg8: memref<1x64xf32, #tpu.memory_space<vmem>>, %arg9: memref<32x32xbf16, #tpu.memory_space<vmem>>, %arg10: memref<1x32xf32, #tpu.memory_space<vmem>>, %arg11: memref<32x64xbf16, #tpu.memory_space<vmem>>, %arg12: memref<1x64xf32, #tpu.memory_space<vmem>>, %arg13: memref<64x32xbf16, #tpu.memory_space<vmem>>, %arg14: memref<1x32xf32, #tpu.memory_space<vmem>>, %arg15: memref<32x32xbf16, #tpu.memory_space<vmem>>, %arg16: memref<1x32xf32, #tpu.memory_space<vmem>>, %arg17: memref<32x64xbf16, #tpu.memory_space<vmem>>, %arg18: memref<1x64xf32, #tpu.memory_space<vmem>>, %arg19: memref<32x32xbf16, #tpu.memory_space<vmem>>, %arg20: memref<1x32xf32, #tpu.memory_space<vmem>>, %arg21: memref<32x64xbf16, #tpu.memory_space<vmem>>, %arg22: memref<1x64xf32, #tpu.memory_space<vmem>>, %arg23: memref<64x32xbf16, #tpu.memory_space<vmem>>, %arg24: memref<1x32xf32, #tpu.memory_space<vmem>>, %arg25: memref<1x32xf32, #tpu.memory_space<vmem>>, %arg26: memref<1x32xf32, #tpu.memory_space<vmem>>, %arg27: memref<32x32xbf16, #tpu.memory_space<vmem>>, %arg28: memref<1x32xf32, #tpu.memory_space<vmem>>, %arg29: memref<32x64xbf16, #tpu.memory_space<vmem>>, %arg30: memref<1x64xf32, #tpu.memory_space<vmem>>, %arg31: memref<32x32xbf16, #tpu.memory_space<vmem>>, %arg32: memref<1x32xf32, #tpu.memory_space<vmem>>, %arg33: memref<32x64xbf16, #tpu.memory_space<vmem>>, %arg34: memref<1x64xf32, #tpu.memory_space<vmem>>, %arg35: memref<64x32xbf16, #tpu.memory_space<vmem>>, %arg36: memref<1x32xf32, #tpu.memory_space<vmem>>, %arg37: memref<32x32xbf16, #tpu.memory_space<vmem>>, %arg38: memref<1x32xf32, #tpu.memory_space<vmem>>, %arg39: memref<32x64xbf16, #tpu.memory_space<vmem>>, %arg40: memref<1x64xf32, #tpu.memory_space<vmem>>, %arg41: memref<32x32xbf16, #tpu.memory_space<vmem>>, %arg42: memref<1x32xf32, #tpu.memory_space<vmem>>, %arg43: memref<32x64xbf16, #tpu.memory_space<vmem>>, %arg44: memref<1x64xf32, #tpu.memory_space<vmem>>, %arg45: memref<64x32xbf16, #tpu.memory_space<vmem>>, %arg46: memref<1x32xf32, #tpu.memory_space<vmem>>, %arg47: memref<1x32xf32, #tpu.memory_space<vmem>>, %arg48: memref<1x32xf32, #tpu.memory_space<vmem>>, %arg49: memref<32x32xbf16, #tpu.memory_space<vmem>>, %arg50: memref<1x32xf32, #tpu.memory_space<vmem>>, %arg51: memref<1x64x32xf32, #tpu.memory_space<vmem>>) attributes {dimension_semantics = [#tpu.dimension_semantics<parallel>], iteration_bounds = array<i64: 2>, scalar_prefetch = 0 : i64, scratch_operands = 0 : i64, tpu.core_type = #tpu.core_type<tc>, window_params = [{transform_indices = @transform_0, window_bounds = array<i64: 1, 64, 32>}, {transform_indices = @transform_1, window_bounds = array<i64: 1, 64, 32>}, {pipeline_mode = #tpu.pipeline_mode<synchronous>, transform_indices = @transform_2, window_bounds = array<i64: 64, 64>}, {pipeline_mode = #tpu.pipeline_mode<synchronous>, transform_indices = @transform_3, window_bounds = array<i64: 64, 64>}, {pipeline_mode = #tpu.pipeline_mode<synchronous>, transform_indices = @transform_4, window_bounds = array<i64: 32, 32>}, {pipeline_mode = #tpu.pipeline_mode<synchronous>, transform_indices = @transform_5, window_bounds = array<i64: 1, 32>}, {pipeline_mode = #tpu.pipeline_mode<synchronous>, transform_indices = @transform_6, window_bounds = array<i64: 32, 64>}, {pipeline_mode = #tpu.pipeline_mode<synchronous>, transform_indices = @transform_7, window_bounds = array<i64: 1, 64>}, {pipeline_mode = #tpu.pipeline_mode<synchronous>, transform_indices = @transform_8, window_bounds = array<i64: 32, 32>}, {pipeline_mode = #tpu.pipeline_mode<synchronous>, transform_indices = @transform_9, window_bounds = array<i64: 1, 32>}, {pipeline_mode = #tpu.pipeline_mode<synchronous>, transform_indices = @transform_10, window_bounds = array<i64: 32, 64>}, {pipeline_mode = #tpu.pipeline_mode<synchronous>, transform_indices = @transform_11, window_bounds = array<i64: 1, 64>}, {pipeline_mode = #tpu.pipeline_mode<synchronous>, transform_indices = @transform_12, window_bounds = array<i64: 64, 32>}, {pipeline_mode = #tpu.pipeline_mode<synchronous>, transform_indices = @transform_13, window_bounds = array<i64: 1, 32>}, {pipeline_mode = #tpu.pipeline_mode<synchronous>, transform_indices = @transform_14, window_bounds = array<i64: 32, 32>}, {pipeline_mode = #tpu.pipeline_mode<synchronous>, transform_indices = @transform_15, window_bounds = array<i64: 1, 32>}, {pipeline_mode = #tpu.pipeline_mode<synchronous>, transform_indices = @transform_16, window_bounds = array<i64: 32, 64>}, {pipeline_mode = #tpu.pipeline_mode<synchronous>, transform_indices = @transform_17, window_bounds = array<i64: 1, 64>}, {pipeline_mode = #tpu.pipeline_mode<synchronous>, transform_indices = @transform_18, window_bounds = array<i64: 32, 32>}, {pipeline_mode = #tpu.pipeline_mode<synchronous>, transform_indices = @transform_19, window_bounds = array<i64: 1, 32>}, {pipeline_mode = #tpu.pipeline_mode<synchronous>, transform_indices = @transform_20, window_bounds = array<i64: 32, 64>}, {pipeline_mode = #tpu.pipeline_mode<synchronous>, transform_indices = @transform_21, window_bounds = array<i64: 1, 64>}, {pipeline_mode = #tpu.pipeline_mode<synchronous>, transform_indices = @transform_22, window_bounds = array<i64: 64, 32>}, {pipeline_mode = #tpu.pipeline_mode<synchronous>, transform_indices = @transform_23, window_bounds = array<i64: 1, 32>}, {pipeline_mode = #tpu.pipeline_mode<synchronous>, transform_indices = @transform_24, window_bounds = array<i64: 1, 32>}, {pipeline_mode = #tpu.pipeline_mode<synchronous>, transform_indices = @transform_25, window_bounds = array<i64: 1, 32>}, {pipeline_mode = #tpu.pipeline_mode<synchronous>, transform_indices = @transform_26, window_bounds = array<i64: 32, 32>}, {pipeline_mode = #tpu.pipeline_mode<synchronous>, transform_indices = @transform_27, window_bounds = array<i64: 1, 32>}, {pipeline_mode = #tpu.pipeline_mode<synchronous>, transform_indices = @transform_28, window_bounds = array<i64: 32, 64>}, {pipeline_mode = #tpu.pipeline_mode<synchronous>, transform_indices = @transform_29, window_bounds = array<i64: 1, 64>}, {pipeline_mode = #tpu.pipeline_mode<synchronous>, transform_indices = @transform_30, window_bounds = array<i64: 32, 32>}, {pipeline_mode = #tpu.pipeline_mode<synchronous>, transform_indices = @transform_31, window_bounds = array<i64: 1, 32>}, {pipeline_mode = #tpu.pipeline_mode<synchronous>, transform_indices = @transform_32, window_bounds = array<i64: 32, 64>}, {pipeline_mode = #tpu.pipeline_mode<synchronous>, transform_indices = @transform_33, window_bounds = array<i64: 1, 64>}, {pipeline_mode = #tpu.pipeline_mode<synchronous>, transform_indices = @transform_34, window_bounds = array<i64: 64, 32>}, {pipeline_mode = #tpu.pipeline_mode<synchronous>, transform_indices = @transform_35, window_bounds = array<i64: 1, 32>}, {pipeline_mode = #tpu.pipeline_mode<synchronous>, transform_indices = @transform_36, window_bounds = array<i64: 32, 32>}, {pipeline_mode = #tpu.pipeline_mode<synchronous>, transform_indices = @transform_37, window_bounds = array<i64: 1, 32>}, {pipeline_mode = #tpu.pipeline_mode<synchronous>, transform_indices = @transform_38, window_bounds = array<i64: 32, 64>}, {pipeline_mode = #tpu.pipeline_mode<synchronous>, transform_indices = @transform_39, window_bounds = array<i64: 1, 64>}, {pipeline_mode = #tpu.pipeline_mode<synchronous>, transform_indices = @transform_40, window_bounds = array<i64: 32, 32>}, {pipeline_mode = #tpu.pipeline_mode<synchronous>, transform_indices = @transform_41, window_bounds = array<i64: 1, 32>}, {pipeline_mode = #tpu.pipeline_mode<synchronous>, transform_indices = @transform_42, window_bounds = array<i64: 32, 64>}, {pipeline_mode = #tpu.pipeline_mode<synchronous>, transform_indices = @transform_43, window_bounds = array<i64: 1, 64>}, {pipeline_mode = #tpu.pipeline_mode<synchronous>, transform_indices = @transform_44, window_bounds = array<i64: 64, 32>}, {pipeline_mode = #tpu.pipeline_mode<synchronous>, transform_indices = @transform_45, window_bounds = array<i64: 1, 32>}, {pipeline_mode = #tpu.pipeline_mode<synchronous>, transform_indices = @transform_46, window_bounds = array<i64: 1, 32>}, {pipeline_mode = #tpu.pipeline_mode<synchronous>, transform_indices = @transform_47, window_bounds = array<i64: 1, 32>}, {pipeline_mode = #tpu.pipeline_mode<synchronous>, transform_indices = @transform_48, window_bounds = array<i64: 32, 32>}, {pipeline_mode = #tpu.pipeline_mode<synchronous>, transform_indices = @transform_49, window_bounds = array<i64: 1, 32>}, {transform_indices = @transform_50, window_bounds = array<i64: 1, 64, 32>}]} {
    %c0 = arith.constant 0 : index
    %c0_0 = arith.constant 0 : index
    %c0_1 = arith.constant 0 : index
    %0 = vector.load %arg1[%c0, %c0_0, %c0_1] : memref<1x64x32xf32, #tpu.memory_space<vmem>>, vector<1x64x32xf32>
    %1 = vector.shape_cast %0 : vector<1x64x32xf32> to vector<64x32xf32>
    %c0_2 = arith.constant 0 : index
    %c0_3 = arith.constant 0 : index
    %c0_4 = arith.constant 0 : index
    %2 = vector.load %arg2[%c0_2, %c0_3, %c0_4] : memref<1x64x32xf32, #tpu.memory_space<vmem>>, vector<1x64x32xf32>
    %3 = vector.shape_cast %2 : vector<1x64x32xf32> to vector<64x32xf32>
    %c0_5 = arith.constant 0 : index
    %c0_6 = arith.constant 0 : index
    %4 = vector.load %arg3[%c0_5, %c0_6] : memref<64x64xf32, #tpu.memory_space<vmem>>, vector<64x64xf32>
    %c0_7 = arith.constant 0 : index
    %c0_8 = arith.constant 0 : index
    %5 = vector.load %arg4[%c0_7, %c0_8] : memref<64x64xf32, #tpu.memory_space<vmem>>, vector<64x64xf32>
    %cst = arith.constant dense<0.000000e+00> : vector<64xf32>
    %6 = vector.multi_reduction <add>, %1, %cst [1] : vector<64x32xf32> to vector<64xf32>
    %7 = vector.shape_cast %6 : vector<64xf32> to vector<64x1xf32>
    %cst_9 = arith.constant 3.200000e+01 : f32
    %8 = vector.broadcast %cst_9 : f32 to vector<64x1xf32>
    %9 = arith.divf %7, %8 : vector<64x1xf32>
    %10 = vector.broadcast %9 : vector<64x1xf32> to vector<64x32xf32>
    %11 = arith.subf %1, %10 : vector<64x32xf32>
    %12 = arith.mulf %11, %11 : vector<64x32xf32>
    %cst_10 = arith.constant dense<0.000000e+00> : vector<64xf32>
    %13 = vector.multi_reduction <add>, %12, %cst_10 [1] : vector<64x32xf32> to vector<64xf32>
    %14 = vector.shape_cast %13 : vector<64xf32> to vector<64x1xf32>
    %cst_11 = arith.constant 3.200000e+01 : f32
    %15 = vector.broadcast %cst_11 : f32 to vector<64x1xf32>
    %16 = arith.divf %14, %15 : vector<64x1xf32>
    %cst_12 = arith.constant 9.99999974E-6 : f32
    %17 = vector.broadcast %cst_12 : f32 to vector<64x1xf32>
    %18 = arith.addf %16, %17 : vector<64x1xf32>
    %19 = math.rsqrt %18 : vector<64x1xf32>
    %20 = vector.broadcast %19 : vector<64x1xf32> to vector<64x32xf32>
    %21 = arith.mulf %11, %20 : vector<64x32xf32>
    %22 = arith.truncf %21 : vector<64x32xf32> to vector<64x32xbf16>
    %c0_13 = arith.constant 0 : index
    %c0_14 = arith.constant 0 : index
    %23 = vector.load %arg5[%c0_13, %c0_14] : memref<32x32xbf16, #tpu.memory_space<vmem>>, vector<32x32xbf16>
    %c0_15 = arith.constant 0 : index
    %c0_16 = arith.constant 0 : index
    %24 = vector.load %arg6[%c0_15, %c0_16] : memref<1x32xf32, #tpu.memory_space<vmem>>, vector<1x32xf32>
    %c0_17 = arith.constant 0 : index
    %c0_18 = arith.constant 0 : index
    %25 = vector.load %arg7[%c0_17, %c0_18] : memref<32x64xbf16, #tpu.memory_space<vmem>>, vector<32x64xbf16>
    %c0_19 = arith.constant 0 : index
    %c0_20 = arith.constant 0 : index
    %26 = vector.load %arg8[%c0_19, %c0_20] : memref<1x64xf32, #tpu.memory_space<vmem>>, vector<1x64xf32>
    %c0_21 = arith.constant 0 : index
    %c0_22 = arith.constant 0 : index
    %27 = vector.load %arg9[%c0_21, %c0_22] : memref<32x32xbf16, #tpu.memory_space<vmem>>, vector<32x32xbf16>
    %c0_23 = arith.constant 0 : index
    %c0_24 = arith.constant 0 : index
    %28 = vector.load %arg10[%c0_23, %c0_24] : memref<1x32xf32, #tpu.memory_space<vmem>>, vector<1x32xf32>
    %c0_25 = arith.constant 0 : index
    %c0_26 = arith.constant 0 : index
    %29 = vector.load %arg11[%c0_25, %c0_26] : memref<32x64xbf16, #tpu.memory_space<vmem>>, vector<32x64xbf16>
    %c0_27 = arith.constant 0 : index
    %c0_28 = arith.constant 0 : index
    %30 = vector.load %arg12[%c0_27, %c0_28] : memref<1x64xf32, #tpu.memory_space<vmem>>, vector<1x64xf32>
    %c0_29 = arith.constant 0 : index
    %c0_30 = arith.constant 0 : index
    %31 = vector.load %arg13[%c0_29, %c0_30] : memref<64x32xbf16, #tpu.memory_space<vmem>>, vector<64x32xbf16>
    %c0_31 = arith.constant 0 : index
    %c0_32 = arith.constant 0 : index
    %32 = vector.load %arg14[%c0_31, %c0_32] : memref<1x32xf32, #tpu.memory_space<vmem>>, vector<1x32xf32>
    %cst_33 = arith.constant dense<0.000000e+00> : vector<64xf32>
    %33 = vector.multi_reduction <add>, %3, %cst_33 [1] : vector<64x32xf32> to vector<64xf32>
    %34 = vector.shape_cast %33 : vector<64xf32> to vector<64x1xf32>
    %cst_34 = arith.constant 3.200000e+01 : f32
    %35 = vector.broadcast %cst_34 : f32 to vector<64x1xf32>
    %36 = arith.divf %34, %35 : vector<64x1xf32>
    %37 = vector.broadcast %36 : vector<64x1xf32> to vector<64x32xf32>
    %38 = arith.subf %3, %37 : vector<64x32xf32>
    %39 = arith.mulf %38, %38 : vector<64x32xf32>
    %cst_35 = arith.constant dense<0.000000e+00> : vector<64xf32>
    %40 = vector.multi_reduction <add>, %39, %cst_35 [1] : vector<64x32xf32> to vector<64xf32>
    %41 = vector.shape_cast %40 : vector<64xf32> to vector<64x1xf32>
    %cst_36 = arith.constant 3.200000e+01 : f32
    %42 = vector.broadcast %cst_36 : f32 to vector<64x1xf32>
    %43 = arith.divf %41, %42 : vector<64x1xf32>
    %cst_37 = arith.constant 9.99999974E-6 : f32
    %44 = vector.broadcast %cst_37 : f32 to vector<64x1xf32>
    %45 = arith.addf %43, %44 : vector<64x1xf32>
    %46 = math.rsqrt %45 : vector<64x1xf32>
    %47 = vector.broadcast %46 : vector<64x1xf32> to vector<64x32xf32>
    %48 = arith.mulf %38, %47 : vector<64x32xf32>
    %49 = arith.truncf %48 : vector<64x32xf32> to vector<64x32xbf16>
    %cst_38 = arith.constant dense<0.000000e+00> : vector<64x32xf32>
    %50 = tpu.matmul %49, %23, %cst_38 {dimension_numbers = #tpu.dot_dimension_numbers<[1], [0], [0], [1], [0, 0, 1, 1], [], []>} : vector<64x32xbf16>, vector<32x32xbf16>, vector<64x32xf32> -> vector<64x32xf32>
    %51 = vector.broadcast %24 : vector<1x32xf32> to vector<64x32xf32>
    %52 = arith.addf %50, %51 : vector<64x32xf32>
    %cst_39 = arith.constant dense<0.000000e+00> : vector<64x64xf32>
    %53 = tpu.matmul %22, %25, %cst_39 {dimension_numbers = #tpu.dot_dimension_numbers<[1], [0], [0], [1], [0, 0, 1, 1], [], []>} : vector<64x32xbf16>, vector<32x64xbf16>, vector<64x64xf32> -> vector<64x64xf32>
    %54 = vector.broadcast %26 : vector<1x64xf32> to vector<64x64xf32>
    %55 = arith.addf %53, %54 : vector<64x64xf32>
    %56 = vector.extract_strided_slice %52 {offsets = [0, 0], sizes = [64, 16], strides = [1, 1]} : vector<64x32xf32> to vector<64x16xf32>
    %57 = arith.truncf %56 : vector<64x16xf32> to vector<64x16xbf16>
    %58 = vector.extract_strided_slice %55 {offsets = [0, 0], sizes = [64, 16], strides = [1, 1]} : vector<64x64xf32> to vector<64x16xf32>
    %59 = arith.truncf %58 : vector<64x16xf32> to vector<64x16xbf16>
    %60 = vector.extract_strided_slice %55 {offsets = [0, 32], sizes = [64, 16], strides = [1, 1]} : vector<64x64xf32> to vector<64x16xf32>
    %61 = arith.truncf %60 : vector<64x16xf32> to vector<64x16xbf16>
    %cst_40 = arith.constant dense<0.000000e+00> : vector<64x64xf32>
    %62 = tpu.matmul %57, %59, %cst_40 {dimension_numbers = #tpu.dot_dimension_numbers<[1], [1], [0], [0], [0, 0, 1, 0], [], []>} : vector<64x16xbf16>, vector<64x16xbf16>, vector<64x64xf32> -> vector<64x64xf32>
    %63 = arith.addf %62, %4 : vector<64x64xf32>
    %cst_41 = arith.constant dense<0xFF800000> : vector<64xf32>
    %64 = vector.multi_reduction <maximumf>, %63, %cst_41 [1] : vector<64x64xf32> to vector<64xf32>
    %65 = vector.shape_cast %64 : vector<64xf32> to vector<64x1xf32>
    %66 = vector.broadcast %65 : vector<64x1xf32> to vector<64x64xf32>
    %67 = arith.subf %63, %66 : vector<64x64xf32>
    %68 = math.exp %67 : vector<64x64xf32>
    %cst_42 = arith.constant dense<0.000000e+00> : vector<64xf32>
    %69 = vector.multi_reduction <add>, %68, %cst_42 [1] : vector<64x64xf32> to vector<64xf32>
    %70 = vector.shape_cast %69 : vector<64xf32> to vector<64x1xf32>
    %71 = tpu.reciprocal %70 {approx = true} : vector<64x1xf32> -> vector<64x1xf32>
    %72 = vector.broadcast %71 : vector<64x1xf32> to vector<64x64xf32>
    %73 = arith.mulf %68, %72 : vector<64x64xf32>
    %74 = arith.truncf %73 : vector<64x64xf32> to vector<64x64xbf16>
    %cst_43 = arith.constant dense<0.000000e+00> : vector<64x16xf32>
    %75 = tpu.matmul %74, %61, %cst_43 {dimension_numbers = #tpu.dot_dimension_numbers<[1], [0], [0], [1], [0, 0, 1, 1], [], []>} : vector<64x64xbf16>, vector<64x16xbf16>, vector<64x16xf32> -> vector<64x16xf32>
    %76 = arith.truncf %75 : vector<64x16xf32> to vector<64x16xbf16>
    %77 = vector.extract_strided_slice %27 {offsets = [0, 0], sizes = [16, 32], strides = [1, 1]} : vector<32x32xbf16> to vector<16x32xbf16>
    %cst_44 = arith.constant dense<0.000000e+00> : vector<64x32xf32>
    %78 = tpu.matmul %76, %77, %cst_44 {dimension_numbers = #tpu.dot_dimension_numbers<[1], [0], [0], [1], [0, 0, 1, 1], [], []>} : vector<64x16xbf16>, vector<16x32xbf16>, vector<64x32xf32> -> vector<64x32xf32>
    %79 = vector.extract_strided_slice %52 {offsets = [0, 16], sizes = [64, 16], strides = [1, 1]} : vector<64x32xf32> to vector<64x16xf32>
    %80 = arith.truncf %79 : vector<64x16xf32> to vector<64x16xbf16>
    %81 = vector.extract_strided_slice %55 {offsets = [0, 16], sizes = [64, 16], strides = [1, 1]} : vector<64x64xf32> to vector<64x16xf32>
    %82 = arith.truncf %81 : vector<64x16xf32> to vector<64x16xbf16>
    %83 = vector.extract_strided_slice %55 {offsets = [0, 48], sizes = [64, 16], strides = [1, 1]} : vector<64x64xf32> to vector<64x16xf32>
    %84 = arith.truncf %83 : vector<64x16xf32> to vector<64x16xbf16>
    %cst_45 = arith.constant dense<0.000000e+00> : vector<64x64xf32>
    %85 = tpu.matmul %80, %82, %cst_45 {dimension_numbers = #tpu.dot_dimension_numbers<[1], [1], [0], [0], [0, 0, 1, 0], [], []>} : vector<64x16xbf16>, vector<64x16xbf16>, vector<64x64xf32> -> vector<64x64xf32>
    %86 = arith.addf %85, %4 : vector<64x64xf32>
    %cst_46 = arith.constant dense<0xFF800000> : vector<64xf32>
    %87 = vector.multi_reduction <maximumf>, %86, %cst_46 [1] : vector<64x64xf32> to vector<64xf32>
    %88 = vector.shape_cast %87 : vector<64xf32> to vector<64x1xf32>
    %89 = vector.broadcast %88 : vector<64x1xf32> to vector<64x64xf32>
    %90 = arith.subf %86, %89 : vector<64x64xf32>
    %91 = math.exp %90 : vector<64x64xf32>
    %cst_47 = arith.constant dense<0.000000e+00> : vector<64xf32>
    %92 = vector.multi_reduction <add>, %91, %cst_47 [1] : vector<64x64xf32> to vector<64xf32>
    %93 = vector.shape_cast %92 : vector<64xf32> to vector<64x1xf32>
    %94 = tpu.reciprocal %93 {approx = true} : vector<64x1xf32> -> vector<64x1xf32>
    %95 = vector.broadcast %94 : vector<64x1xf32> to vector<64x64xf32>
    %96 = arith.mulf %91, %95 : vector<64x64xf32>
    %97 = arith.truncf %96 : vector<64x64xf32> to vector<64x64xbf16>
    %cst_48 = arith.constant dense<0.000000e+00> : vector<64x16xf32>
    %98 = tpu.matmul %97, %84, %cst_48 {dimension_numbers = #tpu.dot_dimension_numbers<[1], [0], [0], [1], [0, 0, 1, 1], [], []>} : vector<64x64xbf16>, vector<64x16xbf16>, vector<64x16xf32> -> vector<64x16xf32>
    %99 = arith.truncf %98 : vector<64x16xf32> to vector<64x16xbf16>
    %100 = vector.extract_strided_slice %27 {offsets = [16, 0], sizes = [16, 32], strides = [1, 1]} : vector<32x32xbf16> to vector<16x32xbf16>
    %cst_49 = arith.constant dense<0.000000e+00> : vector<64x32xf32>
    %101 = tpu.matmul %99, %100, %cst_49 {dimension_numbers = #tpu.dot_dimension_numbers<[1], [0], [0], [1], [0, 0, 1, 1], [], []>} : vector<64x16xbf16>, vector<16x32xbf16>, vector<64x32xf32> -> vector<64x32xf32>
    %102 = arith.addf %78, %101 : vector<64x32xf32>
    %103 = arith.addf %3, %102 : vector<64x32xf32>
    %104 = vector.broadcast %28 : vector<1x32xf32> to vector<64x32xf32>
    %105 = arith.addf %103, %104 : vector<64x32xf32>
    %cst_50 = arith.constant dense<0.000000e+00> : vector<64xf32>
    %106 = vector.multi_reduction <add>, %105, %cst_50 [1] : vector<64x32xf32> to vector<64xf32>
    %107 = vector.shape_cast %106 : vector<64xf32> to vector<64x1xf32>
    %cst_51 = arith.constant 3.200000e+01 : f32
    %108 = vector.broadcast %cst_51 : f32 to vector<64x1xf32>
    %109 = arith.divf %107, %108 : vector<64x1xf32>
    %110 = vector.broadcast %109 : vector<64x1xf32> to vector<64x32xf32>
    %111 = arith.subf %105, %110 : vector<64x32xf32>
    %112 = arith.mulf %111, %111 : vector<64x32xf32>
    %cst_52 = arith.constant dense<0.000000e+00> : vector<64xf32>
    %113 = vector.multi_reduction <add>, %112, %cst_52 [1] : vector<64x32xf32> to vector<64xf32>
    %114 = vector.shape_cast %113 : vector<64xf32> to vector<64x1xf32>
    %cst_53 = arith.constant 3.200000e+01 : f32
    %115 = vector.broadcast %cst_53 : f32 to vector<64x1xf32>
    %116 = arith.divf %114, %115 : vector<64x1xf32>
    %cst_54 = arith.constant 9.99999974E-6 : f32
    %117 = vector.broadcast %cst_54 : f32 to vector<64x1xf32>
    %118 = arith.addf %116, %117 : vector<64x1xf32>
    %119 = math.rsqrt %118 : vector<64x1xf32>
    %120 = vector.broadcast %119 : vector<64x1xf32> to vector<64x32xf32>
    %121 = arith.mulf %111, %120 : vector<64x32xf32>
    %122 = arith.truncf %121 : vector<64x32xf32> to vector<64x32xbf16>
    %cst_55 = arith.constant dense<0.000000e+00> : vector<64x64xf32>
    %123 = tpu.matmul %122, %29, %cst_55 {dimension_numbers = #tpu.dot_dimension_numbers<[1], [0], [0], [1], [0, 0, 1, 1], [], []>} : vector<64x32xbf16>, vector<32x64xbf16>, vector<64x64xf32> -> vector<64x64xf32>
    %124 = vector.broadcast %30 : vector<1x64xf32> to vector<64x64xf32>
    %125 = arith.addf %123, %124 : vector<64x64xf32>
    %cst_56 = arith.constant 5.000000e-01 : f32
    %126 = vector.broadcast %cst_56 : f32 to vector<64x64xf32>
    %127 = arith.mulf %126, %125 : vector<64x64xf32>
    %cst_57 = arith.constant 1.41421354 : f32
    %128 = vector.broadcast %cst_57 : f32 to vector<64x64xf32>
    %129 = arith.divf %125, %128 : vector<64x64xf32>
    %130 = math.erf %129 : vector<64x64xf32>
    %cst_58 = arith.constant 1.000000e+00 : f32
    %131 = vector.broadcast %cst_58 : f32 to vector<64x64xf32>
    %132 = arith.addf %131, %130 : vector<64x64xf32>
    %133 = arith.mulf %127, %132 : vector<64x64xf32>
    %134 = arith.truncf %133 : vector<64x64xf32> to vector<64x64xbf16>
    %cst_59 = arith.constant dense<0.000000e+00> : vector<64x32xf32>
    %135 = tpu.matmul %134, %31, %cst_59 {dimension_numbers = #tpu.dot_dimension_numbers<[1], [0], [0], [1], [0, 0, 1, 1], [], []>} : vector<64x64xbf16>, vector<64x32xbf16>, vector<64x32xf32> -> vector<64x32xf32>
    %136 = arith.addf %105, %135 : vector<64x32xf32>
    %137 = vector.broadcast %32 : vector<1x32xf32> to vector<64x32xf32>
    %138 = arith.addf %136, %137 : vector<64x32xf32>
    %c0_60 = arith.constant 0 : index
    %c0_61 = arith.constant 0 : index
    %139 = vector.load %arg15[%c0_60, %c0_61] : memref<32x32xbf16, #tpu.memory_space<vmem>>, vector<32x32xbf16>
    %c0_62 = arith.constant 0 : index
    %c0_63 = arith.constant 0 : index
    %140 = vector.load %arg16[%c0_62, %c0_63] : memref<1x32xf32, #tpu.memory_space<vmem>>, vector<1x32xf32>
    %c0_64 = arith.constant 0 : index
    %c0_65 = arith.constant 0 : index
    %141 = vector.load %arg17[%c0_64, %c0_65] : memref<32x64xbf16, #tpu.memory_space<vmem>>, vector<32x64xbf16>
    %c0_66 = arith.constant 0 : index
    %c0_67 = arith.constant 0 : index
    %142 = vector.load %arg18[%c0_66, %c0_67] : memref<1x64xf32, #tpu.memory_space<vmem>>, vector<1x64xf32>
    %c0_68 = arith.constant 0 : index
    %c0_69 = arith.constant 0 : index
    %143 = vector.load %arg19[%c0_68, %c0_69] : memref<32x32xbf16, #tpu.memory_space<vmem>>, vector<32x32xbf16>
    %c0_70 = arith.constant 0 : index
    %c0_71 = arith.constant 0 : index
    %144 = vector.load %arg20[%c0_70, %c0_71] : memref<1x32xf32, #tpu.memory_space<vmem>>, vector<1x32xf32>
    %c0_72 = arith.constant 0 : index
    %c0_73 = arith.constant 0 : index
    %145 = vector.load %arg21[%c0_72, %c0_73] : memref<32x64xbf16, #tpu.memory_space<vmem>>, vector<32x64xbf16>
    %c0_74 = arith.constant 0 : index
    %c0_75 = arith.constant 0 : index
    %146 = vector.load %arg22[%c0_74, %c0_75] : memref<1x64xf32, #tpu.memory_space<vmem>>, vector<1x64xf32>
    %c0_76 = arith.constant 0 : index
    %c0_77 = arith.constant 0 : index
    %147 = vector.load %arg23[%c0_76, %c0_77] : memref<64x32xbf16, #tpu.memory_space<vmem>>, vector<64x32xbf16>
    %c0_78 = arith.constant 0 : index
    %c0_79 = arith.constant 0 : index
    %148 = vector.load %arg24[%c0_78, %c0_79] : memref<1x32xf32, #tpu.memory_space<vmem>>, vector<1x32xf32>
    %cst_80 = arith.constant dense<0.000000e+00> : vector<64xf32>
    %149 = vector.multi_reduction <add>, %138, %cst_80 [1] : vector<64x32xf32> to vector<64xf32>
    %150 = vector.shape_cast %149 : vector<64xf32> to vector<64x1xf32>
    %cst_81 = arith.constant 3.200000e+01 : f32
    %151 = vector.broadcast %cst_81 : f32 to vector<64x1xf32>
    %152 = arith.divf %150, %151 : vector<64x1xf32>
    %153 = vector.broadcast %152 : vector<64x1xf32> to vector<64x32xf32>
    %154 = arith.subf %138, %153 : vector<64x32xf32>
    %155 = arith.mulf %154, %154 : vector<64x32xf32>
    %cst_82 = arith.constant dense<0.000000e+00> : vector<64xf32>
    %156 = vector.multi_reduction <add>, %155, %cst_82 [1] : vector<64x32xf32> to vector<64xf32>
    %157 = vector.shape_cast %156 : vector<64xf32> to vector<64x1xf32>
    %cst_83 = arith.constant 3.200000e+01 : f32
    %158 = vector.broadcast %cst_83 : f32 to vector<64x1xf32>
    %159 = arith.divf %157, %158 : vector<64x1xf32>
    %cst_84 = arith.constant 9.99999974E-6 : f32
    %160 = vector.broadcast %cst_84 : f32 to vector<64x1xf32>
    %161 = arith.addf %159, %160 : vector<64x1xf32>
    %162 = math.rsqrt %161 : vector<64x1xf32>
    %163 = vector.broadcast %162 : vector<64x1xf32> to vector<64x32xf32>
    %164 = arith.mulf %154, %163 : vector<64x32xf32>
    %165 = arith.truncf %164 : vector<64x32xf32> to vector<64x32xbf16>
    %cst_85 = arith.constant dense<0.000000e+00> : vector<64x32xf32>
    %166 = tpu.matmul %165, %139, %cst_85 {dimension_numbers = #tpu.dot_dimension_numbers<[1], [0], [0], [1], [0, 0, 1, 1], [], []>} : vector<64x32xbf16>, vector<32x32xbf16>, vector<64x32xf32> -> vector<64x32xf32>
    %167 = vector.broadcast %140 : vector<1x32xf32> to vector<64x32xf32>
    %168 = arith.addf %166, %167 : vector<64x32xf32>
    %cst_86 = arith.constant dense<0.000000e+00> : vector<64x64xf32>
    %169 = tpu.matmul %22, %141, %cst_86 {dimension_numbers = #tpu.dot_dimension_numbers<[1], [0], [0], [1], [0, 0, 1, 1], [], []>} : vector<64x32xbf16>, vector<32x64xbf16>, vector<64x64xf32> -> vector<64x64xf32>
    %170 = vector.broadcast %142 : vector<1x64xf32> to vector<64x64xf32>
    %171 = arith.addf %169, %170 : vector<64x64xf32>
    %172 = vector.extract_strided_slice %168 {offsets = [0, 0], sizes = [64, 16], strides = [1, 1]} : vector<64x32xf32> to vector<64x16xf32>
    %173 = arith.truncf %172 : vector<64x16xf32> to vector<64x16xbf16>
    %174 = vector.extract_strided_slice %171 {offsets = [0, 0], sizes = [64, 16], strides = [1, 1]} : vector<64x64xf32> to vector<64x16xf32>
    %175 = arith.truncf %174 : vector<64x16xf32> to vector<64x16xbf16>
    %176 = vector.extract_strided_slice %171 {offsets = [0, 32], sizes = [64, 16], strides = [1, 1]} : vector<64x64xf32> to vector<64x16xf32>
    %177 = arith.truncf %176 : vector<64x16xf32> to vector<64x16xbf16>
    %cst_87 = arith.constant dense<0.000000e+00> : vector<64x64xf32>
    %178 = tpu.matmul %173, %175, %cst_87 {dimension_numbers = #tpu.dot_dimension_numbers<[1], [1], [0], [0], [0, 0, 1, 0], [], []>} : vector<64x16xbf16>, vector<64x16xbf16>, vector<64x64xf32> -> vector<64x64xf32>
    %179 = arith.addf %178, %5 : vector<64x64xf32>
    %cst_88 = arith.constant dense<0xFF800000> : vector<64xf32>
    %180 = vector.multi_reduction <maximumf>, %179, %cst_88 [1] : vector<64x64xf32> to vector<64xf32>
    %181 = vector.shape_cast %180 : vector<64xf32> to vector<64x1xf32>
    %182 = vector.broadcast %181 : vector<64x1xf32> to vector<64x64xf32>
    %183 = arith.subf %179, %182 : vector<64x64xf32>
    %184 = math.exp %183 : vector<64x64xf32>
    %cst_89 = arith.constant dense<0.000000e+00> : vector<64xf32>
    %185 = vector.multi_reduction <add>, %184, %cst_89 [1] : vector<64x64xf32> to vector<64xf32>
    %186 = vector.shape_cast %185 : vector<64xf32> to vector<64x1xf32>
    %187 = tpu.reciprocal %186 {approx = true} : vector<64x1xf32> -> vector<64x1xf32>
    %188 = vector.broadcast %187 : vector<64x1xf32> to vector<64x64xf32>
    %189 = arith.mulf %184, %188 : vector<64x64xf32>
    %190 = arith.truncf %189 : vector<64x64xf32> to vector<64x64xbf16>
    %cst_90 = arith.constant dense<0.000000e+00> : vector<64x16xf32>
    %191 = tpu.matmul %190, %177, %cst_90 {dimension_numbers = #tpu.dot_dimension_numbers<[1], [0], [0], [1], [0, 0, 1, 1], [], []>} : vector<64x64xbf16>, vector<64x16xbf16>, vector<64x16xf32> -> vector<64x16xf32>
    %192 = arith.truncf %191 : vector<64x16xf32> to vector<64x16xbf16>
    %193 = vector.extract_strided_slice %143 {offsets = [0, 0], sizes = [16, 32], strides = [1, 1]} : vector<32x32xbf16> to vector<16x32xbf16>
    %cst_91 = arith.constant dense<0.000000e+00> : vector<64x32xf32>
    %194 = tpu.matmul %192, %193, %cst_91 {dimension_numbers = #tpu.dot_dimension_numbers<[1], [0], [0], [1], [0, 0, 1, 1], [], []>} : vector<64x16xbf16>, vector<16x32xbf16>, vector<64x32xf32> -> vector<64x32xf32>
    %195 = vector.extract_strided_slice %168 {offsets = [0, 16], sizes = [64, 16], strides = [1, 1]} : vector<64x32xf32> to vector<64x16xf32>
    %196 = arith.truncf %195 : vector<64x16xf32> to vector<64x16xbf16>
    %197 = vector.extract_strided_slice %171 {offsets = [0, 16], sizes = [64, 16], strides = [1, 1]} : vector<64x64xf32> to vector<64x16xf32>
    %198 = arith.truncf %197 : vector<64x16xf32> to vector<64x16xbf16>
    %199 = vector.extract_strided_slice %171 {offsets = [0, 48], sizes = [64, 16], strides = [1, 1]} : vector<64x64xf32> to vector<64x16xf32>
    %200 = arith.truncf %199 : vector<64x16xf32> to vector<64x16xbf16>
    %cst_92 = arith.constant dense<0.000000e+00> : vector<64x64xf32>
    %201 = tpu.matmul %196, %198, %cst_92 {dimension_numbers = #tpu.dot_dimension_numbers<[1], [1], [0], [0], [0, 0, 1, 0], [], []>} : vector<64x16xbf16>, vector<64x16xbf16>, vector<64x64xf32> -> vector<64x64xf32>
    %202 = arith.addf %201, %5 : vector<64x64xf32>
    %cst_93 = arith.constant dense<0xFF800000> : vector<64xf32>
    %203 = vector.multi_reduction <maximumf>, %202, %cst_93 [1] : vector<64x64xf32> to vector<64xf32>
    %204 = vector.shape_cast %203 : vector<64xf32> to vector<64x1xf32>
    %205 = vector.broadcast %204 : vector<64x1xf32> to vector<64x64xf32>
    %206 = arith.subf %202, %205 : vector<64x64xf32>
    %207 = math.exp %206 : vector<64x64xf32>
    %cst_94 = arith.constant dense<0.000000e+00> : vector<64xf32>
    %208 = vector.multi_reduction <add>, %207, %cst_94 [1] : vector<64x64xf32> to vector<64xf32>
    %209 = vector.shape_cast %208 : vector<64xf32> to vector<64x1xf32>
    %210 = tpu.reciprocal %209 {approx = true} : vector<64x1xf32> -> vector<64x1xf32>
    %211 = vector.broadcast %210 : vector<64x1xf32> to vector<64x64xf32>
    %212 = arith.mulf %207, %211 : vector<64x64xf32>
    %213 = arith.truncf %212 : vector<64x64xf32> to vector<64x64xbf16>
    %cst_95 = arith.constant dense<0.000000e+00> : vector<64x16xf32>
    %214 = tpu.matmul %213, %200, %cst_95 {dimension_numbers = #tpu.dot_dimension_numbers<[1], [0], [0], [1], [0, 0, 1, 1], [], []>} : vector<64x64xbf16>, vector<64x16xbf16>, vector<64x16xf32> -> vector<64x16xf32>
    %215 = arith.truncf %214 : vector<64x16xf32> to vector<64x16xbf16>
    %216 = vector.extract_strided_slice %143 {offsets = [16, 0], sizes = [16, 32], strides = [1, 1]} : vector<32x32xbf16> to vector<16x32xbf16>
    %cst_96 = arith.constant dense<0.000000e+00> : vector<64x32xf32>
    %217 = tpu.matmul %215, %216, %cst_96 {dimension_numbers = #tpu.dot_dimension_numbers<[1], [0], [0], [1], [0, 0, 1, 1], [], []>} : vector<64x16xbf16>, vector<16x32xbf16>, vector<64x32xf32> -> vector<64x32xf32>
    %218 = arith.addf %194, %217 : vector<64x32xf32>
    %219 = arith.addf %138, %218 : vector<64x32xf32>
    %220 = vector.broadcast %144 : vector<1x32xf32> to vector<64x32xf32>
    %221 = arith.addf %219, %220 : vector<64x32xf32>
    %cst_97 = arith.constant dense<0.000000e+00> : vector<64xf32>
    %222 = vector.multi_reduction <add>, %221, %cst_97 [1] : vector<64x32xf32> to vector<64xf32>
    %223 = vector.shape_cast %222 : vector<64xf32> to vector<64x1xf32>
    %cst_98 = arith.constant 3.200000e+01 : f32
    %224 = vector.broadcast %cst_98 : f32 to vector<64x1xf32>
    %225 = arith.divf %223, %224 : vector<64x1xf32>
    %226 = vector.broadcast %225 : vector<64x1xf32> to vector<64x32xf32>
    %227 = arith.subf %221, %226 : vector<64x32xf32>
    %228 = arith.mulf %227, %227 : vector<64x32xf32>
    %cst_99 = arith.constant dense<0.000000e+00> : vector<64xf32>
    %229 = vector.multi_reduction <add>, %228, %cst_99 [1] : vector<64x32xf32> to vector<64xf32>
    %230 = vector.shape_cast %229 : vector<64xf32> to vector<64x1xf32>
    %cst_100 = arith.constant 3.200000e+01 : f32
    %231 = vector.broadcast %cst_100 : f32 to vector<64x1xf32>
    %232 = arith.divf %230, %231 : vector<64x1xf32>
    %cst_101 = arith.constant 9.99999974E-6 : f32
    %233 = vector.broadcast %cst_101 : f32 to vector<64x1xf32>
    %234 = arith.addf %232, %233 : vector<64x1xf32>
    %235 = math.rsqrt %234 : vector<64x1xf32>
    %236 = vector.broadcast %235 : vector<64x1xf32> to vector<64x32xf32>
    %237 = arith.mulf %227, %236 : vector<64x32xf32>
    %238 = arith.truncf %237 : vector<64x32xf32> to vector<64x32xbf16>
    %cst_102 = arith.constant dense<0.000000e+00> : vector<64x64xf32>
    %239 = tpu.matmul %238, %145, %cst_102 {dimension_numbers = #tpu.dot_dimension_numbers<[1], [0], [0], [1], [0, 0, 1, 1], [], []>} : vector<64x32xbf16>, vector<32x64xbf16>, vector<64x64xf32> -> vector<64x64xf32>
    %240 = vector.broadcast %146 : vector<1x64xf32> to vector<64x64xf32>
    %241 = arith.addf %239, %240 : vector<64x64xf32>
    %cst_103 = arith.constant 5.000000e-01 : f32
    %242 = vector.broadcast %cst_103 : f32 to vector<64x64xf32>
    %243 = arith.mulf %242, %241 : vector<64x64xf32>
    %cst_104 = arith.constant 1.41421354 : f32
    %244 = vector.broadcast %cst_104 : f32 to vector<64x64xf32>
    %245 = arith.divf %241, %244 : vector<64x64xf32>
    %246 = math.erf %245 : vector<64x64xf32>
    %cst_105 = arith.constant 1.000000e+00 : f32
    %247 = vector.broadcast %cst_105 : f32 to vector<64x64xf32>
    %248 = arith.addf %247, %246 : vector<64x64xf32>
    %249 = arith.mulf %243, %248 : vector<64x64xf32>
    %250 = arith.truncf %249 : vector<64x64xf32> to vector<64x64xbf16>
    %cst_106 = arith.constant dense<0.000000e+00> : vector<64x32xf32>
    %251 = tpu.matmul %250, %147, %cst_106 {dimension_numbers = #tpu.dot_dimension_numbers<[1], [0], [0], [1], [0, 0, 1, 1], [], []>} : vector<64x64xbf16>, vector<64x32xbf16>, vector<64x32xf32> -> vector<64x32xf32>
    %252 = arith.addf %221, %251 : vector<64x32xf32>
    %253 = vector.broadcast %148 : vector<1x32xf32> to vector<64x32xf32>
    %254 = arith.addf %252, %253 : vector<64x32xf32>
    %c0_107 = arith.constant 0 : index
    %c0_108 = arith.constant 0 : index
    %255 = vector.load %arg25[%c0_107, %c0_108] : memref<1x32xf32, #tpu.memory_space<vmem>>, vector<1x32xf32>
    %c0_109 = arith.constant 0 : index
    %c0_110 = arith.constant 0 : index
    %256 = vector.load %arg26[%c0_109, %c0_110] : memref<1x32xf32, #tpu.memory_space<vmem>>, vector<1x32xf32>
    %cst_111 = arith.constant dense<0.000000e+00> : vector<64xf32>
    %257 = vector.multi_reduction <add>, %254, %cst_111 [1] : vector<64x32xf32> to vector<64xf32>
    %258 = vector.shape_cast %257 : vector<64xf32> to vector<64x1xf32>
    %cst_112 = arith.constant 3.200000e+01 : f32
    %259 = vector.broadcast %cst_112 : f32 to vector<64x1xf32>
    %260 = arith.divf %258, %259 : vector<64x1xf32>
    %261 = vector.broadcast %260 : vector<64x1xf32> to vector<64x32xf32>
    %262 = arith.subf %254, %261 : vector<64x32xf32>
    %263 = arith.mulf %262, %262 : vector<64x32xf32>
    %cst_113 = arith.constant dense<0.000000e+00> : vector<64xf32>
    %264 = vector.multi_reduction <add>, %263, %cst_113 [1] : vector<64x32xf32> to vector<64xf32>
    %265 = vector.shape_cast %264 : vector<64xf32> to vector<64x1xf32>
    %cst_114 = arith.constant 3.200000e+01 : f32
    %266 = vector.broadcast %cst_114 : f32 to vector<64x1xf32>
    %267 = arith.divf %265, %266 : vector<64x1xf32>
    %cst_115 = arith.constant 9.99999974E-6 : f32
    %268 = vector.broadcast %cst_115 : f32 to vector<64x1xf32>
    %269 = arith.addf %267, %268 : vector<64x1xf32>
    %270 = math.rsqrt %269 : vector<64x1xf32>
    %271 = vector.broadcast %270 : vector<64x1xf32> to vector<64x32xf32>
    %272 = arith.mulf %262, %271 : vector<64x32xf32>
    %273 = vector.broadcast %255 : vector<1x32xf32> to vector<64x32xf32>
    %274 = arith.mulf %272, %273 : vector<64x32xf32>
    %275 = vector.broadcast %256 : vector<1x32xf32> to vector<64x32xf32>
    %276 = arith.addf %274, %275 : vector<64x32xf32>
    %c0_116 = arith.constant 0 : index
    %c0_117 = arith.constant 0 : index
    %277 = vector.load %arg27[%c0_116, %c0_117] : memref<32x32xbf16, #tpu.memory_space<vmem>>, vector<32x32xbf16>
    %c0_118 = arith.constant 0 : index
    %c0_119 = arith.constant 0 : index
    %278 = vector.load %arg28[%c0_118, %c0_119] : memref<1x32xf32, #tpu.memory_space<vmem>>, vector<1x32xf32>
    %c0_120 = arith.constant 0 : index
    %c0_121 = arith.constant 0 : index
    %279 = vector.load %arg29[%c0_120, %c0_121] : memref<32x64xbf16, #tpu.memory_space<vmem>>, vector<32x64xbf16>
    %c0_122 = arith.constant 0 : index
    %c0_123 = arith.constant 0 : index
    %280 = vector.load %arg30[%c0_122, %c0_123] : memref<1x64xf32, #tpu.memory_space<vmem>>, vector<1x64xf32>
    %c0_124 = arith.constant 0 : index
    %c0_125 = arith.constant 0 : index
    %281 = vector.load %arg31[%c0_124, %c0_125] : memref<32x32xbf16, #tpu.memory_space<vmem>>, vector<32x32xbf16>
    %c0_126 = arith.constant 0 : index
    %c0_127 = arith.constant 0 : index
    %282 = vector.load %arg32[%c0_126, %c0_127] : memref<1x32xf32, #tpu.memory_space<vmem>>, vector<1x32xf32>
    %c0_128 = arith.constant 0 : index
    %c0_129 = arith.constant 0 : index
    %283 = vector.load %arg33[%c0_128, %c0_129] : memref<32x64xbf16, #tpu.memory_space<vmem>>, vector<32x64xbf16>
    %c0_130 = arith.constant 0 : index
    %c0_131 = arith.constant 0 : index
    %284 = vector.load %arg34[%c0_130, %c0_131] : memref<1x64xf32, #tpu.memory_space<vmem>>, vector<1x64xf32>
    %c0_132 = arith.constant 0 : index
    %c0_133 = arith.constant 0 : index
    %285 = vector.load %arg35[%c0_132, %c0_133] : memref<64x32xbf16, #tpu.memory_space<vmem>>, vector<64x32xbf16>
    %c0_134 = arith.constant 0 : index
    %c0_135 = arith.constant 0 : index
    %286 = vector.load %arg36[%c0_134, %c0_135] : memref<1x32xf32, #tpu.memory_space<vmem>>, vector<1x32xf32>
    %cst_136 = arith.constant dense<0.000000e+00> : vector<64xf32>
    %287 = vector.multi_reduction <add>, %276, %cst_136 [1] : vector<64x32xf32> to vector<64xf32>
    %288 = vector.shape_cast %287 : vector<64xf32> to vector<64x1xf32>
    %cst_137 = arith.constant 3.200000e+01 : f32
    %289 = vector.broadcast %cst_137 : f32 to vector<64x1xf32>
    %290 = arith.divf %288, %289 : vector<64x1xf32>
    %291 = vector.broadcast %290 : vector<64x1xf32> to vector<64x32xf32>
    %292 = arith.subf %276, %291 : vector<64x32xf32>
    %293 = arith.mulf %292, %292 : vector<64x32xf32>
    %cst_138 = arith.constant dense<0.000000e+00> : vector<64xf32>
    %294 = vector.multi_reduction <add>, %293, %cst_138 [1] : vector<64x32xf32> to vector<64xf32>
    %295 = vector.shape_cast %294 : vector<64xf32> to vector<64x1xf32>
    %cst_139 = arith.constant 3.200000e+01 : f32
    %296 = vector.broadcast %cst_139 : f32 to vector<64x1xf32>
    %297 = arith.divf %295, %296 : vector<64x1xf32>
    %cst_140 = arith.constant 9.99999974E-6 : f32
    %298 = vector.broadcast %cst_140 : f32 to vector<64x1xf32>
    %299 = arith.addf %297, %298 : vector<64x1xf32>
    %300 = math.rsqrt %299 : vector<64x1xf32>
    %301 = vector.broadcast %300 : vector<64x1xf32> to vector<64x32xf32>
    %302 = arith.mulf %292, %301 : vector<64x32xf32>
    %303 = arith.truncf %302 : vector<64x32xf32> to vector<64x32xbf16>
    %cst_141 = arith.constant dense<0.000000e+00> : vector<64x32xf32>
    %304 = tpu.matmul %303, %277, %cst_141 {dimension_numbers = #tpu.dot_dimension_numbers<[1], [0], [0], [1], [0, 0, 1, 1], [], []>} : vector<64x32xbf16>, vector<32x32xbf16>, vector<64x32xf32> -> vector<64x32xf32>
    %305 = vector.broadcast %278 : vector<1x32xf32> to vector<64x32xf32>
    %306 = arith.addf %304, %305 : vector<64x32xf32>
    %cst_142 = arith.constant dense<0.000000e+00> : vector<64x64xf32>
    %307 = tpu.matmul %22, %279, %cst_142 {dimension_numbers = #tpu.dot_dimension_numbers<[1], [0], [0], [1], [0, 0, 1, 1], [], []>} : vector<64x32xbf16>, vector<32x64xbf16>, vector<64x64xf32> -> vector<64x64xf32>
    %308 = vector.broadcast %280 : vector<1x64xf32> to vector<64x64xf32>
    %309 = arith.addf %307, %308 : vector<64x64xf32>
    %310 = vector.extract_strided_slice %306 {offsets = [0, 0], sizes = [64, 16], strides = [1, 1]} : vector<64x32xf32> to vector<64x16xf32>
    %311 = arith.truncf %310 : vector<64x16xf32> to vector<64x16xbf16>
    %312 = vector.extract_strided_slice %309 {offsets = [0, 0], sizes = [64, 16], strides = [1, 1]} : vector<64x64xf32> to vector<64x16xf32>
    %313 = arith.truncf %312 : vector<64x16xf32> to vector<64x16xbf16>
    %314 = vector.extract_strided_slice %309 {offsets = [0, 32], sizes = [64, 16], strides = [1, 1]} : vector<64x64xf32> to vector<64x16xf32>
    %315 = arith.truncf %314 : vector<64x16xf32> to vector<64x16xbf16>
    %cst_143 = arith.constant dense<0.000000e+00> : vector<64x64xf32>
    %316 = tpu.matmul %311, %313, %cst_143 {dimension_numbers = #tpu.dot_dimension_numbers<[1], [1], [0], [0], [0, 0, 1, 0], [], []>} : vector<64x16xbf16>, vector<64x16xbf16>, vector<64x64xf32> -> vector<64x64xf32>
    %317 = arith.addf %316, %4 : vector<64x64xf32>
    %cst_144 = arith.constant dense<0xFF800000> : vector<64xf32>
    %318 = vector.multi_reduction <maximumf>, %317, %cst_144 [1] : vector<64x64xf32> to vector<64xf32>
    %319 = vector.shape_cast %318 : vector<64xf32> to vector<64x1xf32>
    %320 = vector.broadcast %319 : vector<64x1xf32> to vector<64x64xf32>
    %321 = arith.subf %317, %320 : vector<64x64xf32>
    %322 = math.exp %321 : vector<64x64xf32>
    %cst_145 = arith.constant dense<0.000000e+00> : vector<64xf32>
    %323 = vector.multi_reduction <add>, %322, %cst_145 [1] : vector<64x64xf32> to vector<64xf32>
    %324 = vector.shape_cast %323 : vector<64xf32> to vector<64x1xf32>
    %325 = tpu.reciprocal %324 {approx = true} : vector<64x1xf32> -> vector<64x1xf32>
    %326 = vector.broadcast %325 : vector<64x1xf32> to vector<64x64xf32>
    %327 = arith.mulf %322, %326 : vector<64x64xf32>
    %328 = arith.truncf %327 : vector<64x64xf32> to vector<64x64xbf16>
    %cst_146 = arith.constant dense<0.000000e+00> : vector<64x16xf32>
    %329 = tpu.matmul %328, %315, %cst_146 {dimension_numbers = #tpu.dot_dimension_numbers<[1], [0], [0], [1], [0, 0, 1, 1], [], []>} : vector<64x64xbf16>, vector<64x16xbf16>, vector<64x16xf32> -> vector<64x16xf32>
    %330 = arith.truncf %329 : vector<64x16xf32> to vector<64x16xbf16>
    %331 = vector.extract_strided_slice %281 {offsets = [0, 0], sizes = [16, 32], strides = [1, 1]} : vector<32x32xbf16> to vector<16x32xbf16>
    %cst_147 = arith.constant dense<0.000000e+00> : vector<64x32xf32>
    %332 = tpu.matmul %330, %331, %cst_147 {dimension_numbers = #tpu.dot_dimension_numbers<[1], [0], [0], [1], [0, 0, 1, 1], [], []>} : vector<64x16xbf16>, vector<16x32xbf16>, vector<64x32xf32> -> vector<64x32xf32>
    %333 = vector.extract_strided_slice %306 {offsets = [0, 16], sizes = [64, 16], strides = [1, 1]} : vector<64x32xf32> to vector<64x16xf32>
    %334 = arith.truncf %333 : vector<64x16xf32> to vector<64x16xbf16>
    %335 = vector.extract_strided_slice %309 {offsets = [0, 16], sizes = [64, 16], strides = [1, 1]} : vector<64x64xf32> to vector<64x16xf32>
    %336 = arith.truncf %335 : vector<64x16xf32> to vector<64x16xbf16>
    %337 = vector.extract_strided_slice %309 {offsets = [0, 48], sizes = [64, 16], strides = [1, 1]} : vector<64x64xf32> to vector<64x16xf32>
    %338 = arith.truncf %337 : vector<64x16xf32> to vector<64x16xbf16>
    %cst_148 = arith.constant dense<0.000000e+00> : vector<64x64xf32>
    %339 = tpu.matmul %334, %336, %cst_148 {dimension_numbers = #tpu.dot_dimension_numbers<[1], [1], [0], [0], [0, 0, 1, 0], [], []>} : vector<64x16xbf16>, vector<64x16xbf16>, vector<64x64xf32> -> vector<64x64xf32>
    %340 = arith.addf %339, %4 : vector<64x64xf32>
    %cst_149 = arith.constant dense<0xFF800000> : vector<64xf32>
    %341 = vector.multi_reduction <maximumf>, %340, %cst_149 [1] : vector<64x64xf32> to vector<64xf32>
    %342 = vector.shape_cast %341 : vector<64xf32> to vector<64x1xf32>
    %343 = vector.broadcast %342 : vector<64x1xf32> to vector<64x64xf32>
    %344 = arith.subf %340, %343 : vector<64x64xf32>
    %345 = math.exp %344 : vector<64x64xf32>
    %cst_150 = arith.constant dense<0.000000e+00> : vector<64xf32>
    %346 = vector.multi_reduction <add>, %345, %cst_150 [1] : vector<64x64xf32> to vector<64xf32>
    %347 = vector.shape_cast %346 : vector<64xf32> to vector<64x1xf32>
    %348 = tpu.reciprocal %347 {approx = true} : vector<64x1xf32> -> vector<64x1xf32>
    %349 = vector.broadcast %348 : vector<64x1xf32> to vector<64x64xf32>
    %350 = arith.mulf %345, %349 : vector<64x64xf32>
    %351 = arith.truncf %350 : vector<64x64xf32> to vector<64x64xbf16>
    %cst_151 = arith.constant dense<0.000000e+00> : vector<64x16xf32>
    %352 = tpu.matmul %351, %338, %cst_151 {dimension_numbers = #tpu.dot_dimension_numbers<[1], [0], [0], [1], [0, 0, 1, 1], [], []>} : vector<64x64xbf16>, vector<64x16xbf16>, vector<64x16xf32> -> vector<64x16xf32>
    %353 = arith.truncf %352 : vector<64x16xf32> to vector<64x16xbf16>
    %354 = vector.extract_strided_slice %281 {offsets = [16, 0], sizes = [16, 32], strides = [1, 1]} : vector<32x32xbf16> to vector<16x32xbf16>
    %cst_152 = arith.constant dense<0.000000e+00> : vector<64x32xf32>
    %355 = tpu.matmul %353, %354, %cst_152 {dimension_numbers = #tpu.dot_dimension_numbers<[1], [0], [0], [1], [0, 0, 1, 1], [], []>} : vector<64x16xbf16>, vector<16x32xbf16>, vector<64x32xf32> -> vector<64x32xf32>
    %356 = arith.addf %332, %355 : vector<64x32xf32>
    %357 = arith.addf %276, %356 : vector<64x32xf32>
    %358 = vector.broadcast %282 : vector<1x32xf32> to vector<64x32xf32>
    %359 = arith.addf %357, %358 : vector<64x32xf32>
    %cst_153 = arith.constant dense<0.000000e+00> : vector<64xf32>
    %360 = vector.multi_reduction <add>, %359, %cst_153 [1] : vector<64x32xf32> to vector<64xf32>
    %361 = vector.shape_cast %360 : vector<64xf32> to vector<64x1xf32>
    %cst_154 = arith.constant 3.200000e+01 : f32
    %362 = vector.broadcast %cst_154 : f32 to vector<64x1xf32>
    %363 = arith.divf %361, %362 : vector<64x1xf32>
    %364 = vector.broadcast %363 : vector<64x1xf32> to vector<64x32xf32>
    %365 = arith.subf %359, %364 : vector<64x32xf32>
    %366 = arith.mulf %365, %365 : vector<64x32xf32>
    %cst_155 = arith.constant dense<0.000000e+00> : vector<64xf32>
    %367 = vector.multi_reduction <add>, %366, %cst_155 [1] : vector<64x32xf32> to vector<64xf32>
    %368 = vector.shape_cast %367 : vector<64xf32> to vector<64x1xf32>
    %cst_156 = arith.constant 3.200000e+01 : f32
    %369 = vector.broadcast %cst_156 : f32 to vector<64x1xf32>
    %370 = arith.divf %368, %369 : vector<64x1xf32>
    %cst_157 = arith.constant 9.99999974E-6 : f32
    %371 = vector.broadcast %cst_157 : f32 to vector<64x1xf32>
    %372 = arith.addf %370, %371 : vector<64x1xf32>
    %373 = math.rsqrt %372 : vector<64x1xf32>
    %374 = vector.broadcast %373 : vector<64x1xf32> to vector<64x32xf32>
    %375 = arith.mulf %365, %374 : vector<64x32xf32>
    %376 = arith.truncf %375 : vector<64x32xf32> to vector<64x32xbf16>
    %cst_158 = arith.constant dense<0.000000e+00> : vector<64x64xf32>
    %377 = tpu.matmul %376, %283, %cst_158 {dimension_numbers = #tpu.dot_dimension_numbers<[1], [0], [0], [1], [0, 0, 1, 1], [], []>} : vector<64x32xbf16>, vector<32x64xbf16>, vector<64x64xf32> -> vector<64x64xf32>
    %378 = vector.broadcast %284 : vector<1x64xf32> to vector<64x64xf32>
    %379 = arith.addf %377, %378 : vector<64x64xf32>
    %cst_159 = arith.constant 5.000000e-01 : f32
    %380 = vector.broadcast %cst_159 : f32 to vector<64x64xf32>
    %381 = arith.mulf %380, %379 : vector<64x64xf32>
    %cst_160 = arith.constant 1.41421354 : f32
    %382 = vector.broadcast %cst_160 : f32 to vector<64x64xf32>
    %383 = arith.divf %379, %382 : vector<64x64xf32>
    %384 = math.erf %383 : vector<64x64xf32>
    %cst_161 = arith.constant 1.000000e+00 : f32
    %385 = vector.broadcast %cst_161 : f32 to vector<64x64xf32>
    %386 = arith.addf %385, %384 : vector<64x64xf32>
    %387 = arith.mulf %381, %386 : vector<64x64xf32>
    %388 = arith.truncf %387 : vector<64x64xf32> to vector<64x64xbf16>
    %cst_162 = arith.constant dense<0.000000e+00> : vector<64x32xf32>
    %389 = tpu.matmul %388, %285, %cst_162 {dimension_numbers = #tpu.dot_dimension_numbers<[1], [0], [0], [1], [0, 0, 1, 1], [], []>} : vector<64x64xbf16>, vector<64x32xbf16>, vector<64x32xf32> -> vector<64x32xf32>
    %390 = arith.addf %359, %389 : vector<64x32xf32>
    %391 = vector.broadcast %286 : vector<1x32xf32> to vector<64x32xf32>
    %392 = arith.addf %390, %391 : vector<64x32xf32>
    %c0_163 = arith.constant 0 : index
    %c0_164 = arith.constant 0 : index
    %393 = vector.load %arg37[%c0_163, %c0_164] : memref<32x32xbf16, #tpu.memory_space<vmem>>, vector<32x32xbf16>
    %c0_165 = arith.constant 0 : index
    %c0_166 = arith.constant 0 : index
    %394 = vector.load %arg38[%c0_165, %c0_166] : memref<1x32xf32, #tpu.memory_space<vmem>>, vector<1x32xf32>
    %c0_167 = arith.constant 0 : index
    %c0_168 = arith.constant 0 : index
    %395 = vector.load %arg39[%c0_167, %c0_168] : memref<32x64xbf16, #tpu.memory_space<vmem>>, vector<32x64xbf16>
    %c0_169 = arith.constant 0 : index
    %c0_170 = arith.constant 0 : index
    %396 = vector.load %arg40[%c0_169, %c0_170] : memref<1x64xf32, #tpu.memory_space<vmem>>, vector<1x64xf32>
    %c0_171 = arith.constant 0 : index
    %c0_172 = arith.constant 0 : index
    %397 = vector.load %arg41[%c0_171, %c0_172] : memref<32x32xbf16, #tpu.memory_space<vmem>>, vector<32x32xbf16>
    %c0_173 = arith.constant 0 : index
    %c0_174 = arith.constant 0 : index
    %398 = vector.load %arg42[%c0_173, %c0_174] : memref<1x32xf32, #tpu.memory_space<vmem>>, vector<1x32xf32>
    %c0_175 = arith.constant 0 : index
    %c0_176 = arith.constant 0 : index
    %399 = vector.load %arg43[%c0_175, %c0_176] : memref<32x64xbf16, #tpu.memory_space<vmem>>, vector<32x64xbf16>
    %c0_177 = arith.constant 0 : index
    %c0_178 = arith.constant 0 : index
    %400 = vector.load %arg44[%c0_177, %c0_178] : memref<1x64xf32, #tpu.memory_space<vmem>>, vector<1x64xf32>
    %c0_179 = arith.constant 0 : index
    %c0_180 = arith.constant 0 : index
    %401 = vector.load %arg45[%c0_179, %c0_180] : memref<64x32xbf16, #tpu.memory_space<vmem>>, vector<64x32xbf16>
    %c0_181 = arith.constant 0 : index
    %c0_182 = arith.constant 0 : index
    %402 = vector.load %arg46[%c0_181, %c0_182] : memref<1x32xf32, #tpu.memory_space<vmem>>, vector<1x32xf32>
    %cst_183 = arith.constant dense<0.000000e+00> : vector<64xf32>
    %403 = vector.multi_reduction <add>, %392, %cst_183 [1] : vector<64x32xf32> to vector<64xf32>
    %404 = vector.shape_cast %403 : vector<64xf32> to vector<64x1xf32>
    %cst_184 = arith.constant 3.200000e+01 : f32
    %405 = vector.broadcast %cst_184 : f32 to vector<64x1xf32>
    %406 = arith.divf %404, %405 : vector<64x1xf32>
    %407 = vector.broadcast %406 : vector<64x1xf32> to vector<64x32xf32>
    %408 = arith.subf %392, %407 : vector<64x32xf32>
    %409 = arith.mulf %408, %408 : vector<64x32xf32>
    %cst_185 = arith.constant dense<0.000000e+00> : vector<64xf32>
    %410 = vector.multi_reduction <add>, %409, %cst_185 [1] : vector<64x32xf32> to vector<64xf32>
    %411 = vector.shape_cast %410 : vector<64xf32> to vector<64x1xf32>
    %cst_186 = arith.constant 3.200000e+01 : f32
    %412 = vector.broadcast %cst_186 : f32 to vector<64x1xf32>
    %413 = arith.divf %411, %412 : vector<64x1xf32>
    %cst_187 = arith.constant 9.99999974E-6 : f32
    %414 = vector.broadcast %cst_187 : f32 to vector<64x1xf32>
    %415 = arith.addf %413, %414 : vector<64x1xf32>
    %416 = math.rsqrt %415 : vector<64x1xf32>
    %417 = vector.broadcast %416 : vector<64x1xf32> to vector<64x32xf32>
    %418 = arith.mulf %408, %417 : vector<64x32xf32>
    %419 = arith.truncf %418 : vector<64x32xf32> to vector<64x32xbf16>
    %cst_188 = arith.constant dense<0.000000e+00> : vector<64x32xf32>
    %420 = tpu.matmul %419, %393, %cst_188 {dimension_numbers = #tpu.dot_dimension_numbers<[1], [0], [0], [1], [0, 0, 1, 1], [], []>} : vector<64x32xbf16>, vector<32x32xbf16>, vector<64x32xf32> -> vector<64x32xf32>
    %421 = vector.broadcast %394 : vector<1x32xf32> to vector<64x32xf32>
    %422 = arith.addf %420, %421 : vector<64x32xf32>
    %cst_189 = arith.constant dense<0.000000e+00> : vector<64x64xf32>
    %423 = tpu.matmul %22, %395, %cst_189 {dimension_numbers = #tpu.dot_dimension_numbers<[1], [0], [0], [1], [0, 0, 1, 1], [], []>} : vector<64x32xbf16>, vector<32x64xbf16>, vector<64x64xf32> -> vector<64x64xf32>
    %424 = vector.broadcast %396 : vector<1x64xf32> to vector<64x64xf32>
    %425 = arith.addf %423, %424 : vector<64x64xf32>
    %426 = vector.extract_strided_slice %422 {offsets = [0, 0], sizes = [64, 16], strides = [1, 1]} : vector<64x32xf32> to vector<64x16xf32>
    %427 = arith.truncf %426 : vector<64x16xf32> to vector<64x16xbf16>
    %428 = vector.extract_strided_slice %425 {offsets = [0, 0], sizes = [64, 16], strides = [1, 1]} : vector<64x64xf32> to vector<64x16xf32>
    %429 = arith.truncf %428 : vector<64x16xf32> to vector<64x16xbf16>
    %430 = vector.extract_strided_slice %425 {offsets = [0, 32], sizes = [64, 16], strides = [1, 1]} : vector<64x64xf32> to vector<64x16xf32>
    %431 = arith.truncf %430 : vector<64x16xf32> to vector<64x16xbf16>
    %cst_190 = arith.constant dense<0.000000e+00> : vector<64x64xf32>
    %432 = tpu.matmul %427, %429, %cst_190 {dimension_numbers = #tpu.dot_dimension_numbers<[1], [1], [0], [0], [0, 0, 1, 0], [], []>} : vector<64x16xbf16>, vector<64x16xbf16>, vector<64x64xf32> -> vector<64x64xf32>
    %433 = arith.addf %432, %5 : vector<64x64xf32>
    %cst_191 = arith.constant dense<0xFF800000> : vector<64xf32>
    %434 = vector.multi_reduction <maximumf>, %433, %cst_191 [1] : vector<64x64xf32> to vector<64xf32>
    %435 = vector.shape_cast %434 : vector<64xf32> to vector<64x1xf32>
    %436 = vector.broadcast %435 : vector<64x1xf32> to vector<64x64xf32>
    %437 = arith.subf %433, %436 : vector<64x64xf32>
    %438 = math.exp %437 : vector<64x64xf32>
    %cst_192 = arith.constant dense<0.000000e+00> : vector<64xf32>
    %439 = vector.multi_reduction <add>, %438, %cst_192 [1] : vector<64x64xf32> to vector<64xf32>
    %440 = vector.shape_cast %439 : vector<64xf32> to vector<64x1xf32>
    %441 = tpu.reciprocal %440 {approx = true} : vector<64x1xf32> -> vector<64x1xf32>
    %442 = vector.broadcast %441 : vector<64x1xf32> to vector<64x64xf32>
    %443 = arith.mulf %438, %442 : vector<64x64xf32>
    %444 = arith.truncf %443 : vector<64x64xf32> to vector<64x64xbf16>
    %cst_193 = arith.constant dense<0.000000e+00> : vector<64x16xf32>
    %445 = tpu.matmul %444, %431, %cst_193 {dimension_numbers = #tpu.dot_dimension_numbers<[1], [0], [0], [1], [0, 0, 1, 1], [], []>} : vector<64x64xbf16>, vector<64x16xbf16>, vector<64x16xf32> -> vector<64x16xf32>
    %446 = arith.truncf %445 : vector<64x16xf32> to vector<64x16xbf16>
    %447 = vector.extract_strided_slice %397 {offsets = [0, 0], sizes = [16, 32], strides = [1, 1]} : vector<32x32xbf16> to vector<16x32xbf16>
    %cst_194 = arith.constant dense<0.000000e+00> : vector<64x32xf32>
    %448 = tpu.matmul %446, %447, %cst_194 {dimension_numbers = #tpu.dot_dimension_numbers<[1], [0], [0], [1], [0, 0, 1, 1], [], []>} : vector<64x16xbf16>, vector<16x32xbf16>, vector<64x32xf32> -> vector<64x32xf32>
    %449 = vector.extract_strided_slice %422 {offsets = [0, 16], sizes = [64, 16], strides = [1, 1]} : vector<64x32xf32> to vector<64x16xf32>
    %450 = arith.truncf %449 : vector<64x16xf32> to vector<64x16xbf16>
    %451 = vector.extract_strided_slice %425 {offsets = [0, 16], sizes = [64, 16], strides = [1, 1]} : vector<64x64xf32> to vector<64x16xf32>
    %452 = arith.truncf %451 : vector<64x16xf32> to vector<64x16xbf16>
    %453 = vector.extract_strided_slice %425 {offsets = [0, 48], sizes = [64, 16], strides = [1, 1]} : vector<64x64xf32> to vector<64x16xf32>
    %454 = arith.truncf %453 : vector<64x16xf32> to vector<64x16xbf16>
    %cst_195 = arith.constant dense<0.000000e+00> : vector<64x64xf32>
    %455 = tpu.matmul %450, %452, %cst_195 {dimension_numbers = #tpu.dot_dimension_numbers<[1], [1], [0], [0], [0, 0, 1, 0], [], []>} : vector<64x16xbf16>, vector<64x16xbf16>, vector<64x64xf32> -> vector<64x64xf32>
    %456 = arith.addf %455, %5 : vector<64x64xf32>
    %cst_196 = arith.constant dense<0xFF800000> : vector<64xf32>
    %457 = vector.multi_reduction <maximumf>, %456, %cst_196 [1] : vector<64x64xf32> to vector<64xf32>
    %458 = vector.shape_cast %457 : vector<64xf32> to vector<64x1xf32>
    %459 = vector.broadcast %458 : vector<64x1xf32> to vector<64x64xf32>
    %460 = arith.subf %456, %459 : vector<64x64xf32>
    %461 = math.exp %460 : vector<64x64xf32>
    %cst_197 = arith.constant dense<0.000000e+00> : vector<64xf32>
    %462 = vector.multi_reduction <add>, %461, %cst_197 [1] : vector<64x64xf32> to vector<64xf32>
    %463 = vector.shape_cast %462 : vector<64xf32> to vector<64x1xf32>
    %464 = tpu.reciprocal %463 {approx = true} : vector<64x1xf32> -> vector<64x1xf32>
    %465 = vector.broadcast %464 : vector<64x1xf32> to vector<64x64xf32>
    %466 = arith.mulf %461, %465 : vector<64x64xf32>
    %467 = arith.truncf %466 : vector<64x64xf32> to vector<64x64xbf16>
    %cst_198 = arith.constant dense<0.000000e+00> : vector<64x16xf32>
    %468 = tpu.matmul %467, %454, %cst_198 {dimension_numbers = #tpu.dot_dimension_numbers<[1], [0], [0], [1], [0, 0, 1, 1], [], []>} : vector<64x64xbf16>, vector<64x16xbf16>, vector<64x16xf32> -> vector<64x16xf32>
    %469 = arith.truncf %468 : vector<64x16xf32> to vector<64x16xbf16>
    %470 = vector.extract_strided_slice %397 {offsets = [16, 0], sizes = [16, 32], strides = [1, 1]} : vector<32x32xbf16> to vector<16x32xbf16>
    %cst_199 = arith.constant dense<0.000000e+00> : vector<64x32xf32>
    %471 = tpu.matmul %469, %470, %cst_199 {dimension_numbers = #tpu.dot_dimension_numbers<[1], [0], [0], [1], [0, 0, 1, 1], [], []>} : vector<64x16xbf16>, vector<16x32xbf16>, vector<64x32xf32> -> vector<64x32xf32>
    %472 = arith.addf %448, %471 : vector<64x32xf32>
    %473 = arith.addf %392, %472 : vector<64x32xf32>
    %474 = vector.broadcast %398 : vector<1x32xf32> to vector<64x32xf32>
    %475 = arith.addf %473, %474 : vector<64x32xf32>
    %cst_200 = arith.constant dense<0.000000e+00> : vector<64xf32>
    %476 = vector.multi_reduction <add>, %475, %cst_200 [1] : vector<64x32xf32> to vector<64xf32>
    %477 = vector.shape_cast %476 : vector<64xf32> to vector<64x1xf32>
    %cst_201 = arith.constant 3.200000e+01 : f32
    %478 = vector.broadcast %cst_201 : f32 to vector<64x1xf32>
    %479 = arith.divf %477, %478 : vector<64x1xf32>
    %480 = vector.broadcast %479 : vector<64x1xf32> to vector<64x32xf32>
    %481 = arith.subf %475, %480 : vector<64x32xf32>
    %482 = arith.mulf %481, %481 : vector<64x32xf32>
    %cst_202 = arith.constant dense<0.000000e+00> : vector<64xf32>
    %483 = vector.multi_reduction <add>, %482, %cst_202 [1] : vector<64x32xf32> to vector<64xf32>
    %484 = vector.shape_cast %483 : vector<64xf32> to vector<64x1xf32>
    %cst_203 = arith.constant 3.200000e+01 : f32
    %485 = vector.broadcast %cst_203 : f32 to vector<64x1xf32>
    %486 = arith.divf %484, %485 : vector<64x1xf32>
    %cst_204 = arith.constant 9.99999974E-6 : f32
    %487 = vector.broadcast %cst_204 : f32 to vector<64x1xf32>
    %488 = arith.addf %486, %487 : vector<64x1xf32>
    %489 = math.rsqrt %488 : vector<64x1xf32>
    %490 = vector.broadcast %489 : vector<64x1xf32> to vector<64x32xf32>
    %491 = arith.mulf %481, %490 : vector<64x32xf32>
    %492 = arith.truncf %491 : vector<64x32xf32> to vector<64x32xbf16>
    %cst_205 = arith.constant dense<0.000000e+00> : vector<64x64xf32>
    %493 = tpu.matmul %492, %399, %cst_205 {dimension_numbers = #tpu.dot_dimension_numbers<[1], [0], [0], [1], [0, 0, 1, 1], [], []>} : vector<64x32xbf16>, vector<32x64xbf16>, vector<64x64xf32> -> vector<64x64xf32>
    %494 = vector.broadcast %400 : vector<1x64xf32> to vector<64x64xf32>
    %495 = arith.addf %493, %494 : vector<64x64xf32>
    %cst_206 = arith.constant 5.000000e-01 : f32
    %496 = vector.broadcast %cst_206 : f32 to vector<64x64xf32>
    %497 = arith.mulf %496, %495 : vector<64x64xf32>
    %cst_207 = arith.constant 1.41421354 : f32
    %498 = vector.broadcast %cst_207 : f32 to vector<64x64xf32>
    %499 = arith.divf %495, %498 : vector<64x64xf32>
    %500 = math.erf %499 : vector<64x64xf32>
    %cst_208 = arith.constant 1.000000e+00 : f32
    %501 = vector.broadcast %cst_208 : f32 to vector<64x64xf32>
    %502 = arith.addf %501, %500 : vector<64x64xf32>
    %503 = arith.mulf %497, %502 : vector<64x64xf32>
    %504 = arith.truncf %503 : vector<64x64xf32> to vector<64x64xbf16>
    %cst_209 = arith.constant dense<0.000000e+00> : vector<64x32xf32>
    %505 = tpu.matmul %504, %401, %cst_209 {dimension_numbers = #tpu.dot_dimension_numbers<[1], [0], [0], [1], [0, 0, 1, 1], [], []>} : vector<64x64xbf16>, vector<64x32xbf16>, vector<64x32xf32> -> vector<64x32xf32>
    %506 = arith.addf %475, %505 : vector<64x32xf32>
    %507 = vector.broadcast %402 : vector<1x32xf32> to vector<64x32xf32>
    %508 = arith.addf %506, %507 : vector<64x32xf32>
    %c0_210 = arith.constant 0 : index
    %c0_211 = arith.constant 0 : index
    %509 = vector.load %arg47[%c0_210, %c0_211] : memref<1x32xf32, #tpu.memory_space<vmem>>, vector<1x32xf32>
    %c0_212 = arith.constant 0 : index
    %c0_213 = arith.constant 0 : index
    %510 = vector.load %arg48[%c0_212, %c0_213] : memref<1x32xf32, #tpu.memory_space<vmem>>, vector<1x32xf32>
    %cst_214 = arith.constant dense<0.000000e+00> : vector<64xf32>
    %511 = vector.multi_reduction <add>, %508, %cst_214 [1] : vector<64x32xf32> to vector<64xf32>
    %512 = vector.shape_cast %511 : vector<64xf32> to vector<64x1xf32>
    %cst_215 = arith.constant 3.200000e+01 : f32
    %513 = vector.broadcast %cst_215 : f32 to vector<64x1xf32>
    %514 = arith.divf %512, %513 : vector<64x1xf32>
    %515 = vector.broadcast %514 : vector<64x1xf32> to vector<64x32xf32>
    %516 = arith.subf %508, %515 : vector<64x32xf32>
    %517 = arith.mulf %516, %516 : vector<64x32xf32>
    %cst_216 = arith.constant dense<0.000000e+00> : vector<64xf32>
    %518 = vector.multi_reduction <add>, %517, %cst_216 [1] : vector<64x32xf32> to vector<64xf32>
    %519 = vector.shape_cast %518 : vector<64xf32> to vector<64x1xf32>
    %cst_217 = arith.constant 3.200000e+01 : f32
    %520 = vector.broadcast %cst_217 : f32 to vector<64x1xf32>
    %521 = arith.divf %519, %520 : vector<64x1xf32>
    %cst_218 = arith.constant 9.99999974E-6 : f32
    %522 = vector.broadcast %cst_218 : f32 to vector<64x1xf32>
    %523 = arith.addf %521, %522 : vector<64x1xf32>
    %524 = math.rsqrt %523 : vector<64x1xf32>
    %525 = vector.broadcast %524 : vector<64x1xf32> to vector<64x32xf32>
    %526 = arith.mulf %516, %525 : vector<64x32xf32>
    %527 = vector.broadcast %509 : vector<1x32xf32> to vector<64x32xf32>
    %528 = arith.mulf %526, %527 : vector<64x32xf32>
    %529 = vector.broadcast %510 : vector<1x32xf32> to vector<64x32xf32>
    %530 = arith.addf %528, %529 : vector<64x32xf32>
    %c0_219 = arith.constant 0 : index
    %c0_220 = arith.constant 0 : index
    %531 = vector.load %arg49[%c0_219, %c0_220] : memref<32x32xbf16, #tpu.memory_space<vmem>>, vector<32x32xbf16>
    %c0_221 = arith.constant 0 : index
    %c0_222 = arith.constant 0 : index
    %532 = vector.load %arg50[%c0_221, %c0_222] : memref<1x32xf32, #tpu.memory_space<vmem>>, vector<1x32xf32>
    %cst_223 = arith.constant dense<0.000000e+00> : vector<64xf32>
    %533 = vector.multi_reduction <add>, %530, %cst_223 [1] : vector<64x32xf32> to vector<64xf32>
    %534 = vector.shape_cast %533 : vector<64xf32> to vector<64x1xf32>
    %cst_224 = arith.constant 3.200000e+01 : f32
    %535 = vector.broadcast %cst_224 : f32 to vector<64x1xf32>
    %536 = arith.divf %534, %535 : vector<64x1xf32>
    %537 = vector.broadcast %536 : vector<64x1xf32> to vector<64x32xf32>
    %538 = arith.subf %530, %537 : vector<64x32xf32>
    %539 = arith.mulf %538, %538 : vector<64x32xf32>
    %cst_225 = arith.constant dense<0.000000e+00> : vector<64xf32>
    %540 = vector.multi_reduction <add>, %539, %cst_225 [1] : vector<64x32xf32> to vector<64xf32>
    %541 = vector.shape_cast %540 : vector<64xf32> to vector<64x1xf32>
    %cst_226 = arith.constant 3.200000e+01 : f32
    %542 = vector.broadcast %cst_226 : f32 to vector<64x1xf32>
    %543 = arith.divf %541, %542 : vector<64x1xf32>
    %cst_227 = arith.constant 9.99999974E-6 : f32
    %544 = vector.broadcast %cst_227 : f32 to vector<64x1xf32>
    %545 = arith.addf %543, %544 : vector<64x1xf32>
    %546 = math.rsqrt %545 : vector<64x1xf32>
    %547 = vector.broadcast %546 : vector<64x1xf32> to vector<64x32xf32>
    %548 = arith.mulf %538, %547 : vector<64x32xf32>
    %549 = arith.truncf %548 : vector<64x32xf32> to vector<64x32xbf16>
    %cst_228 = arith.constant dense<0.000000e+00> : vector<64x32xf32>
    %550 = tpu.matmul %549, %531, %cst_228 {dimension_numbers = #tpu.dot_dimension_numbers<[1], [0], [0], [1], [0, 0, 1, 1], [], []>} : vector<64x32xbf16>, vector<32x32xbf16>, vector<64x32xf32> -> vector<64x32xf32>
    %551 = vector.broadcast %532 : vector<1x32xf32> to vector<64x32xf32>
    %552 = arith.addf %550, %551 : vector<64x32xf32>
    %c0_229 = arith.constant 0 : index
    %c0_230 = arith.constant 0 : index
    %c0_231 = arith.constant 0 : index
    %553 = vector.load %arg51[%c0_229, %c0_230, %c0_231] : memref<1x64x32xf32, #tpu.memory_space<vmem>>, vector<1x64x32xf32>
    %554 = vector.shape_cast %553 : vector<1x64x32xf32> to vector<64x32xf32>
    %555 = vector.shape_cast %552 : vector<64x32xf32> to vector<1x64x32xf32>
    tpu.vector_store %arg51[%c0_229, %c0_230, %c0_231], %555 {strides = array<i32>} : memref<1x64x32xf32, #tpu.memory_space<vmem>>, vector<1x64x32xf32>,
    return
  }
  func.func @transform_0(%arg0: i32) -> (i32, i32, i32) {
    %c0_i32 = arith.constant 0 : i32
    %c0_i32_0 = arith.constant 0 : i32
    %c0_i32_1 = arith.constant 0 : i32
    return %arg0, %c0_i32, %c0_i32_0 : i32, i32, i32
  }
  func.func @transform_1(%arg0: i32) -> (i32, i32, i32) {
    %c0_i32 = arith.constant 0 : i32
    %c0_i32_0 = arith.constant 0 : i32
    %c0_i32_1 = arith.constant 0 : i32
    return %arg0, %c0_i32, %c0_i32_0 : i32, i32, i32
  }
  func.func @transform_2(%arg0: i32) -> (i32, i32) {
    %c0_i32 = arith.constant 0 : i32
    %c0_i32_0 = arith.constant 0 : i32
    %c0_i32_1 = arith.constant 0 : i32
    return %c0_i32, %c0_i32_0 : i32, i32
  }
  func.func @transform_3(%arg0: i32) -> (i32, i32) {
    %c0_i32 = arith.constant 0 : i32
    %c0_i32_0 = arith.constant 0 : i32
    %c0_i32_1 = arith.constant 0 : i32
    return %c0_i32, %c0_i32_0 : i32, i32
  }
  func.func @transform_4(%arg0: i32) -> (i32, i32) {
    %c0_i32 = arith.constant 0 : i32
    %c0_i32_0 = arith.constant 0 : i32
    %c0_i32_1 = arith.constant 0 : i32
    return %c0_i32, %c0_i32_0 : i32, i32
  }
  func.func @transform_5(%arg0: i32) -> (i32, i32) {
    %c0_i32 = arith.constant 0 : i32
    %c0_i32_0 = arith.constant 0 : i32
    %c0_i32_1 = arith.constant 0 : i32
    return %c0_i32, %c0_i32_0 : i32, i32
  }
  func.func @transform_6(%arg0: i32) -> (i32, i32) {
    %c0_i32 = arith.constant 0 : i32
    %c0_i32_0 = arith.constant 0 : i32
    %c0_i32_1 = arith.constant 0 : i32
    return %c0_i32, %c0_i32_0 : i32, i32
  }
  func.func @transform_7(%arg0: i32) -> (i32, i32) {
    %c0_i32 = arith.constant 0 : i32
    %c0_i32_0 = arith.constant 0 : i32
    %c0_i32_1 = arith.constant 0 : i32
    return %c0_i32, %c0_i32_0 : i32, i32
  }
  func.func @transform_8(%arg0: i32) -> (i32, i32) {
    %c0_i32 = arith.constant 0 : i32
    %c0_i32_0 = arith.constant 0 : i32
    %c0_i32_1 = arith.constant 0 : i32
    return %c0_i32, %c0_i32_0 : i32, i32
  }
  func.func @transform_9(%arg0: i32) -> (i32, i32) {
    %c0_i32 = arith.constant 0 : i32
    %c0_i32_0 = arith.constant 0 : i32
    %c0_i32_1 = arith.constant 0 : i32
    return %c0_i32, %c0_i32_0 : i32, i32
  }
  func.func @transform_10(%arg0: i32) -> (i32, i32) {
    %c0_i32 = arith.constant 0 : i32
    %c0_i32_0 = arith.constant 0 : i32
    %c0_i32_1 = arith.constant 0 : i32
    return %c0_i32, %c0_i32_0 : i32, i32
  }
  func.func @transform_11(%arg0: i32) -> (i32, i32) {
    %c0_i32 = arith.constant 0 : i32
    %c0_i32_0 = arith.constant 0 : i32
    %c0_i32_1 = arith.constant 0 : i32
    return %c0_i32, %c0_i32_0 : i32, i32
  }
  func.func @transform_12(%arg0: i32) -> (i32, i32) {
    %c0_i32 = arith.constant 0 : i32
    %c0_i32_0 = arith.constant 0 : i32
    %c0_i32_1 = arith.constant 0 : i32
    return %c0_i32, %c0_i32_0 : i32, i32
  }
  func.func @transform_13(%arg0: i32) -> (i32, i32) {
    %c0_i32 = arith.constant 0 : i32
    %c0_i32_0 = arith.constant 0 : i32
    %c0_i32_1 = arith.constant 0 : i32
    return %c0_i32, %c0_i32_0 : i32, i32
  }
  func.func @transform_14(%arg0: i32) -> (i32, i32) {
    %c0_i32 = arith.constant 0 : i32
    %c0_i32_0 = arith.constant 0 : i32
    %c0_i32_1 = arith.constant 0 : i32
    return %c0_i32, %c0_i32_0 : i32, i32
  }
  func.func @transform_15(%arg0: i32) -> (i32, i32) {
    %c0_i32 = arith.constant 0 : i32
    %c0_i32_0 = arith.constant 0 : i32
    %c0_i32_1 = arith.constant 0 : i32
    return %c0_i32, %c0_i32_0 : i32, i32
  }
  func.func @transform_16(%arg0: i32) -> (i32, i32) {
    %c0_i32 = arith.constant 0 : i32
    %c0_i32_0 = arith.constant 0 : i32
    %c0_i32_1 = arith.constant 0 : i32
    return %c0_i32, %c0_i32_0 : i32, i32
  }
  func.func @transform_17(%arg0: i32) -> (i32, i32) {
    %c0_i32 = arith.constant 0 : i32
    %c0_i32_0 = arith.constant 0 : i32
    %c0_i32_1 = arith.constant 0 : i32
    return %c0_i32, %c0_i32_0 : i32, i32
  }
  func.func @transform_18(%arg0: i32) -> (i32, i32) {
    %c0_i32 = arith.constant 0 : i32
    %c0_i32_0 = arith.constant 0 : i32
    %c0_i32_1 = arith.constant 0 : i32
    return %c0_i32, %c0_i32_0 : i32, i32
  }
  func.func @transform_19(%arg0: i32) -> (i32, i32) {
    %c0_i32 = arith.constant 0 : i32
    %c0_i32_0 = arith.constant 0 : i32
    %c0_i32_1 = arith.constant 0 : i32
    return %c0_i32, %c0_i32_0 : i32, i32
  }
  func.func @transform_20(%arg0: i32) -> (i32, i32) {
    %c0_i32 = arith.constant 0 : i32
    %c0_i32_0 = arith.constant 0 : i32
    %c0_i32_1 = arith.constant 0 : i32
    return %c0_i32, %c0_i32_0 : i32, i32
  }
  func.func @transform_21(%arg0: i32) -> (i32, i32) {
    %c0_i32 = arith.constant 0 : i32
    %c0_i32_0 = arith.constant 0 : i32
    %c0_i32_1 = arith.constant 0 : i32
    return %c0_i32, %c0_i32_0 : i32, i32
  }
  func.func @transform_22(%arg0: i32) -> (i32, i32) {
    %c0_i32 = arith.constant 0 : i32
    %c0_i32_0 = arith.constant 0 : i32
    %c0_i32_1 = arith.constant 0 : i32
    return %c0_i32, %c0_i32_0 : i32, i32
  }
  func.func @transform_23(%arg0: i32) -> (i32, i32) {
    %c0_i32 = arith.constant 0 : i32
    %c0_i32_0 = arith.constant 0 : i32
    %c0_i32_1 = arith.constant 0 : i32
    return %c0_i32, %c0_i32_0 : i32, i32
  }
  func.func @transform_24(%arg0: i32) -> (i32, i32) {
    %c0_i32 = arith.constant 0 : i32
    %c0_i32_0 = arith.constant 0 : i32
    %c0_i32_1 = arith.constant 0 : i32
    return %c0_i32, %c0_i32_0 : i32, i32
  }
  func.func @transform_25(%arg0: i32) -> (i32, i32) {
    %c0_i32 = arith.constant 0 : i32
    %c0_i32_0 = arith.constant 0 : i32
    %c0_i32_1 = arith.constant 0 : i32
    return %c0_i32, %c0_i32_0 : i32, i32
  }
  func.func @transform_26(%arg0: i32) -> (i32, i32) {
    %c0_i32 = arith.constant 0 : i32
    %c0_i32_0 = arith.constant 0 : i32
    %c0_i32_1 = arith.constant 0 : i32
    return %c0_i32, %c0_i32_0 : i32, i32
  }
  func.func @transform_27(%arg0: i32) -> (i32, i32) {
    %c0_i32 = arith.constant 0 : i32
    %c0_i32_0 = arith.constant 0 : i32
    %c0_i32_1 = arith.constant 0 : i32
    return %c0_i32, %c0_i32_0 : i32, i32
  }
  func.func @transform_28(%arg0: i32) -> (i32, i32) {
    %c0_i32 = arith.constant 0 : i32
    %c0_i32_0 = arith.constant 0 : i32
    %c0_i32_1 = arith.constant 0 : i32
    return %c0_i32, %c0_i32_0 : i32, i32
  }
  func.func @transform_29(%arg0: i32) -> (i32, i32) {
    %c0_i32 = arith.constant 0 : i32
    %c0_i32_0 = arith.constant 0 : i32
    %c0_i32_1 = arith.constant 0 : i32
    return %c0_i32, %c0_i32_0 : i32, i32
  }
  func.func @transform_30(%arg0: i32) -> (i32, i32) {
    %c0_i32 = arith.constant 0 : i32
    %c0_i32_0 = arith.constant 0 : i32
    %c0_i32_1 = arith.constant 0 : i32
    return %c0_i32, %c0_i32_0 : i32, i32
  }
  func.func @transform_31(%arg0: i32) -> (i32, i32) {
    %c0_i32 = arith.constant 0 : i32
    %c0_i32_0 = arith.constant 0 : i32
    %c0_i32_1 = arith.constant 0 : i32
    return %c0_i32, %c0_i32_0 : i32, i32
  }
  func.func @transform_32(%arg0: i32) -> (i32, i32) {
    %c0_i32 = arith.constant 0 : i32
    %c0_i32_0 = arith.constant 0 : i32
    %c0_i32_1 = arith.constant 0 : i32
    return %c0_i32, %c0_i32_0 : i32, i32
  }
  func.func @transform_33(%arg0: i32) -> (i32, i32) {
    %c0_i32 = arith.constant 0 : i32
    %c0_i32_0 = arith.constant 0 : i32
    %c0_i32_1 = arith.constant 0 : i32
    return %c0_i32, %c0_i32_0 : i32, i32
  }
  func.func @transform_34(%arg0: i32) -> (i32, i32) {
    %c0_i32 = arith.constant 0 : i32
    %c0_i32_0 = arith.constant 0 : i32
    %c0_i32_1 = arith.constant 0 : i32
    return %c0_i32, %c0_i32_0 : i32, i32
  }
  func.func @transform_35(%arg0: i32) -> (i32, i32) {
    %c0_i32 = arith.constant 0 : i32
    %c0_i32_0 = arith.constant 0 : i32
    %c0_i32_1 = arith.constant 0 : i32
    return %c0_i32, %c0_i32_0 : i32, i32
  }
  func.func @transform_36(%arg0: i32) -> (i32, i32) {
    %c0_i32 = arith.constant 0 : i32
    %c0_i32_0 = arith.constant 0 : i32
    %c0_i32_1 = arith.constant 0 : i32
    return %c0_i32, %c0_i32_0 : i32, i32
  }
  func.func @transform_37(%arg0: i32) -> (i32, i32) {
    %c0_i32 = arith.constant 0 : i32
    %c0_i32_0 = arith.constant 0 : i32
    %c0_i32_1 = arith.constant 0 : i32
    return %c0_i32, %c0_i32_0 : i32, i32
  }
  func.func @transform_38(%arg0: i32) -> (i32, i32) {
    %c0_i32 = arith.constant 0 : i32
    %c0_i32_0 = arith.constant 0 : i32
    %c0_i32_1 = arith.constant 0 : i32
    return %c0_i32, %c0_i32_0 : i32, i32
  }
  func.func @transform_39(%arg0: i32) -> (i32, i32) {
    %c0_i32 = arith.constant 0 : i32
    %c0_i32_0 = arith.constant 0 : i32
    %c0_i32_1 = arith.constant 0 : i32
    return %c0_i32, %c0_i32_0 : i32, i32
  }
  func.func @transform_40(%arg0: i32) -> (i32, i32) {
    %c0_i32 = arith.constant 0 : i32
    %c0_i32_0 = arith.constant 0 : i32
    %c0_i32_1 = arith.constant 0 : i32
    return %c0_i32, %c0_i32_0 : i32, i32
  }
  func.func @transform_41(%arg0: i32) -> (i32, i32) {
    %c0_i32 = arith.constant 0 : i32
    %c0_i32_0 = arith.constant 0 : i32
    %c0_i32_1 = arith.constant 0 : i32
    return %c0_i32, %c0_i32_0 : i32, i32
  }
  func.func @transform_42(%arg0: i32) -> (i32, i32) {
    %c0_i32 = arith.constant 0 : i32
    %c0_i32_0 = arith.constant 0 : i32
    %c0_i32_1 = arith.constant 0 : i32
    return %c0_i32, %c0_i32_0 : i32, i32
  }
  func.func @transform_43(%arg0: i32) -> (i32, i32) {
    %c0_i32 = arith.constant 0 : i32
    %c0_i32_0 = arith.constant 0 : i32
    %c0_i32_1 = arith.constant 0 : i32
    return %c0_i32, %c0_i32_0 : i32, i32
  }
  func.func @transform_44(%arg0: i32) -> (i32, i32) {
    %c0_i32 = arith.constant 0 : i32
    %c0_i32_0 = arith.constant 0 : i32
    %c0_i32_1 = arith.constant 0 : i32
    return %c0_i32, %c0_i32_0 : i32, i32
  }
  func.func @transform_45(%arg0: i32) -> (i32, i32) {
    %c0_i32 = arith.constant 0 : i32
    %c0_i32_0 = arith.constant 0 : i32
    %c0_i32_1 = arith.constant 0 : i32
    return %c0_i32, %c0_i32_0 : i32, i32
  }
  func.func @transform_46(%arg0: i32) -> (i32, i32) {
    %c0_i32 = arith.constant 0 : i32
    %c0_i32_0 = arith.constant 0 : i32
    %c0_i32_1 = arith.constant 0 : i32
    return %c0_i32, %c0_i32_0 : i32, i32
  }
  func.func @transform_47(%arg0: i32) -> (i32, i32) {
    %c0_i32 = arith.constant 0 : i32
    %c0_i32_0 = arith.constant 0 : i32
    %c0_i32_1 = arith.constant 0 : i32
    return %c0_i32, %c0_i32_0 : i32, i32
  }
  func.func @transform_48(%arg0: i32) -> (i32, i32) {
    %c0_i32 = arith.constant 0 : i32
    %c0_i32_0 = arith.constant 0 : i32
    %c0_i32_1 = arith.constant 0 : i32
    return %c0_i32, %c0_i32_0 : i32, i32
  }
  func.func @transform_49(%arg0: i32) -> (i32, i32) {
    %c0_i32 = arith.constant 0 : i32
    %c0_i32_0 = arith.constant 0 : i32
    %c0_i32_1 = arith.constant 0 : i32
    return %c0_i32, %c0_i32_0 : i32, i32
  }
  func.func @transform_50(%arg0: i32) -> (i32, i32, i32) {
    %c0_i32 = arith.constant 0 : i32
    %c0_i32_0 = arith.constant 0 : i32
    %c0_i32_1 = arith.constant 0 : i32
    return %arg0, %c0_i32, %c0_i32_0 : i32, i32, i32
  }
}

</mosaic_0001>

<llo_original>
// kernel: _lambda_.1
$region0: #{_lambda_.1}
  #allocation0 [shape = 'u32[]', space=smem, size = 0x4, offset = 0x4, fixed_abs, tag = 'smem constant byte address 0x4 - core index']
  #allocation1 [shape = 'u32[144,128]{1,0:T(1,128)}', space=vmem, size = 0x12000, scoped, tag = 'internal scratch']
  %s0 = inlined_call_operand.smem [shape: u32[51], index: -1, kind: input, shape index: {}]
  %s1 = sld [smem:[%s0]]
  %s2 = scalar_lea.smem %s0, 1
  %s3 = sld [smem:[%s2]]
  %s4 = scalar_lea.smem %s0, 2
  %s5 = sld [smem:[%s4]]
  %s6 = scalar_lea.smem %s0, 3
  %s7 = sld [smem:[%s6]]
  %s8 = scalar_lea.smem %s0, 4
  %s9 = sld [smem:[%s8]]
  %s10 = scalar_lea.smem %s0, 5
  %s11 = sld [smem:[%s10]]
  %s12 = scalar_lea.smem %s0, 6
  %s13 = sld [smem:[%s12]]
  %s14 = scalar_lea.smem %s0, 7
  %s15 = sld [smem:[%s14]]
  %s16 = scalar_lea.smem %s0, 8
  %s17 = sld [smem:[%s16]]
  %s18 = scalar_lea.smem %s0, 9
  %s19 = sld [smem:[%s18]]
  %s20 = scalar_lea.smem %s0, 10
  %s21 = sld [smem:[%s20]]
  %s22 = scalar_lea.smem %s0, 11
  %s23 = sld [smem:[%s22]]
  %s24 = scalar_lea.smem %s0, 12
  %s25 = sld [smem:[%s24]]
  %s26 = scalar_lea.smem %s0, 13
  %s27 = sld [smem:[%s26]]
  %s28 = scalar_lea.smem %s0, 14
  %s29 = sld [smem:[%s28]]
  %s30 = scalar_lea.smem %s0, 15
  %s31 = sld [smem:[%s30]]
  %s32 = scalar_lea.smem %s0, 16
  %s33 = sld [smem:[%s32]]
  %s34 = scalar_lea.smem %s0, 17
  %s35 = sld [smem:[%s34]]
  %s36 = scalar_lea.smem %s0, 18
  %s37 = sld [smem:[%s36]]
  %s38 = scalar_lea.smem %s0, 19
  %s39 = sld [smem:[%s38]]
  %s40 = scalar_lea.smem %s0, 20
  %s41 = sld [smem:[%s40]]
  %s42 = scalar_lea.smem %s0, 21
  %s43 = sld [smem:[%s42]]
  %s44 = scalar_lea.smem %s0, 22
  %s45 = sld [smem:[%s44]]
  %s46 = scalar_lea.smem %s0, 23
  %s47 = sld [smem:[%s46]]
  %s48 = scalar_lea.smem %s0, 24
  %s49 = sld [smem:[%s48]]
  %s50 = scalar_lea.smem %s0, 25
  %s51 = sld [smem:[%s50]]
  %s52 = scalar_lea.smem %s0, 26
  %s53 = sld [smem:[%s52]]
  %s54 = scalar_lea.smem %s0, 27
  %s55 = sld [smem:[%s54]]
  %s56 = scalar_lea.smem %s0, 28
  %s57 = sld [smem:[%s56]]
  %s58 = scalar_lea.smem %s0, 29
  %s59 = sld [smem:[%s58]]
  %s60 = scalar_lea.smem %s0, 30
  %s61 = sld [smem:[%s60]]
  %s62 = scalar_lea.smem %s0, 31
  %s63 = sld [smem:[%s62]]
  %s64 = scalar_lea.smem %s0, 32
  %s65 = sld [smem:[%s64]]
  %s66 = scalar_lea.smem %s0, 33
  %s67 = sld [smem:[%s66]]
  %s68 = scalar_lea.smem %s0, 34
  %s69 = sld [smem:[%s68]]
  %s70 = scalar_lea.smem %s0, 35
  %s71 = sld [smem:[%s70]]
  %s72 = scalar_lea.smem %s0, 36
  %s73 = sld [smem:[%s72]]
  %s74 = scalar_lea.smem %s0, 37
  %s75 = sld [smem:[%s74]]
  %s76 = scalar_lea.smem %s0, 38
  %s77 = sld [smem:[%s76]]
  %s78 = scalar_lea.smem %s0, 39
  %s79 = sld [smem:[%s78]]
  %s80 = scalar_lea.smem %s0, 40
  %s81 = sld [smem:[%s80]]
  %s82 = scalar_lea.smem %s0, 41
  %s83 = sld [smem:[%s82]]
  %s84 = scalar_lea.smem %s0, 42
  %s85 = sld [smem:[%s84]]
  %s86 = scalar_lea.smem %s0, 43
  %s87 = sld [smem:[%s86]]
  %s88 = scalar_lea.smem %s0, 44
  %s89 = sld [smem:[%s88]]
  %s90 = scalar_lea.smem %s0, 45
  %s91 = sld [smem:[%s90]]
  %s92 = scalar_lea.smem %s0, 46
  %s93 = sld [smem:[%s92]]
  %s94 = scalar_lea.smem %s0, 47
  %s95 = sld [smem:[%s94]]
  %s96 = scalar_lea.smem %s0, 48
  %s97 = sld [smem:[%s96]]
  %s98 = scalar_lea.smem %s0, 49
  %s99 = sld [smem:[%s98]]
  %s100 = scalar_lea.smem %s0, 50
  %s101 = sld [smem:[%s100]]
  %s102 = sld [smem:[#allocation0]]
  $region329: #{_lambda_.1} parent=0
    _
  %s104 = ssub.s32 1, %s102
  %s105 = scalar_select 0, %s104, %s102
  $region1: #{_lambda_.1} parent=0
    #allocation2 [shape = 'u8[512]{0}', space=vmem, size = 0x400, scoped, tag = 'input window, operand 5, single buffered']
    #allocation3 [shape = 's32[2]{0}', space=sflag, size = 0x8, scoped, tag = 'scoped memory for _lambda_.1']
    #allocation4 [shape = 's32[2]{0}', space=sflag, size = 0x8, scoped, tag = 'scoped memory for _lambda_.1']
    #allocation5 [shape = 'u8[512]{0}', space=vmem, size = 0x400, scoped, tag = 'input window, operand 7, single buffered']
    #allocation6 [shape = 's32[1]{0}', space=sflag, size = 0x4, scoped, tag = 'scoped memory for _lambda_.1']
    #allocation7 [shape = 'u8[512]{0}', space=vmem, size = 0x400, scoped, tag = 'input window, operand 9, single buffered']
    #allocation8 [shape = 'u8[512]{0}', space=vmem, size = 0x400, scoped, tag = 'input window, operand 11, single buffered']
    #allocation9 [shape = 's32[1]{0}', space=sflag, size = 0x4, scoped, tag = 'scoped memory for _lambda_.1']
    #allocation10 [shape = 'u8[512]{0}', space=vmem, size = 0x400, scoped, tag = 'input window, operand 13, single buffered']
    #allocation11 [shape = 'u8[512]{0}', space=vmem, size = 0x400, scoped, tag = 'input window, operand 17, single buffered']
    #allocation12 [shape = 's32[1]{0}', space=sflag, size = 0x4, scoped, tag = 'scoped memory for _lambda_.1']
    #allocation13 [shape = 'u8[512]{0}', space=vmem, size = 0x400, scoped, tag = 'input window, operand 19, single buffered']
    #allocation14 [shape = 'u8[512]{0}', space=vmem, size = 0x400, scoped, tag = 'input window, operand 21, single buffered']
    #allocation15 [shape = 's32[1]{0}', space=sflag, size = 0x4, scoped, tag = 'scoped memory for _lambda_.1']
    #allocation16 [shape = 'u8[512]{0}', space=vmem, size = 0x400, scoped, tag = 'input window, operand 23, single buffered']
    #allocation17 [shape = 'u8[512]{0}', space=vmem, size = 0x400, scoped, tag = 'input window, operand 24, single buffered']
    #allocation18 [shape = 's32[1]{0}', space=sflag, size = 0x4, scoped, tag = 'scoped memory for _lambda_.1']
    #allocation19 [shape = 'u8[512]{0}', space=vmem, size = 0x400, scoped, tag = 'input window, operand 25, single buffered']
    #allocation20 [shape = 'u8[512]{0}', space=vmem, size = 0x400, scoped, tag = 'input window, operand 27, single buffered']
    #allocation21 [shape = 's32[1]{0}', space=sflag, size = 0x4, scoped, tag = 'scoped memory for _lambda_.1']
    #allocation22 [shape = 'u8[512]{0}', space=vmem, size = 0x400, scoped, tag = 'input window, operand 29, single buffered']
    #allocation23 [shape = 'u8[512]{0}', space=vmem, size = 0x400, scoped, tag = 'input window, operand 31, single buffered']
    #allocation24 [shape = 's32[1]{0}', space=sflag, size = 0x4, scoped, tag = 'scoped memory for _lambda_.1']
    #allocation25 [shape = 'u8[512]{0}', space=vmem, size = 0x400, scoped, tag = 'input window, operand 33, single buffered']
    #allocation26 [shape = 'u8[512]{0}', space=vmem, size = 0x400, scoped, tag = 'input window, operand 35, single buffered']
    #allocation27 [shape = 's32[1]{0}', space=sflag, size = 0x4, scoped, tag = 'scoped memory for _lambda_.1']
    #allocation28 [shape = 'u8[512]{0}', space=vmem, size = 0x400, scoped, tag = 'input window, operand 37, single buffered']
    #allocation29 [shape = 'u8[512]{0}', space=vmem, size = 0x400, scoped, tag = 'input window, operand 39, single buffered']
    #allocation30 [shape = 's32[1]{0}', space=sflag, size = 0x4, scoped, tag = 'scoped memory for _lambda_.1']
    #allocation31 [shape = 'u8[8192]{0}', space=vmem, size = 0x2000, scoped, tag = 'input window, operand 40, single buffered']
    #allocation32 [shape = 'u8[512]{0}', space=vmem, size = 0x400, scoped, tag = 'input window, operand 41, single buffered']
    #allocation33 [shape = 's32[1]{0}', space=sflag, size = 0x4, scoped, tag = 'scoped memory for _lambda_.1']
    #allocation34 [shape = 'u8[512]{0}', space=vmem, size = 0x400, scoped, tag = 'input window, operand 43, single buffered']
    #allocation35 [shape = 'u8[512]{0}', space=vmem, size = 0x400, scoped, tag = 'input window, operand 45, single buffered']
    #allocation36 [shape = 's32[1]{0}', space=sflag, size = 0x4, scoped, tag = 'scoped memory for _lambda_.1']
    #allocation37 [shape = 'u8[512]{0}', space=vmem, size = 0x400, scoped, tag = 'input window, operand 46, single buffered']
    #allocation38 [shape = 'u8[512]{0}', space=vmem, size = 0x400, scoped, tag = 'input window, operand 47, single buffered']
    #allocation39 [shape = 's32[1]{0}', space=sflag, size = 0x4, scoped, tag = 'scoped memory for _lambda_.1']
    #allocation40 [shape = 'u8[65536]{0}', space=vmem, size = 0x10000, scoped, tag = 'output window, operand 0']
    %106 = vsyncpa [#allocation3], 0
    %107 = vsyncpa [#allocation6], 0
    %108 = vsyncpa [#allocation9], 0
    %109 = vsyncpa [#allocation12], 0
    %110 = vsyncpa [#allocation15], 0
    %111 = vsyncpa [#allocation18], 0
    %112 = vsyncpa [#allocation21], 0
    %113 = vsyncpa [#allocation24], 0
    %114 = vsyncpa [#allocation27], 0
    %115 = vsyncpa [#allocation30], 0
    %116 = vsyncpa [#allocation33], 0
    %117 = vsyncpa [#allocation36], 0
    %118 = vsyncpa [#allocation39], 0
    %119 = vsyncpa [#allocation4], 0
    %s120 = scalar_lea.sflag [#allocation4], 1
    %121 = vsyncpa %s120, 0
    loop: start=0, step=1, limit=4
    $region2: #{_lambda_.1} parent=1 // loop_pre_header
      _
    $region3: #{_lambda_.1} parent=1 // loop_header
      %s123 = sphi 0, %s127
      %p124 = scmp.ge.s32.totalorder %s123, 4
      %s133 = sphi 0, %s135
      %s136 = sphi 0, %s133
      %s137 = sphi 0, %s136
      %s153 = sphi 0, %s137
      %s159 = sphi 0, %s161
      %s162 = sphi 0, %s159
      %s163 = sphi 0, %s162
      %s179 = sphi 0, %s163
      %s183 = sphi 0, %s183
      %s185 = sphi 0, %s183
      %s186 = sphi 0, %s185
      %s200 = sphi 0, %s186
      %s204 = sphi 0, %s204
      %s206 = sphi 0, %s204
      %s207 = sphi 0, %s206
      %s221 = sphi 0, %s207
      %s225 = sphi 0, %s225
      %s227 = sphi 0, %s225
      %s228 = sphi 0, %s227
      %s242 = sphi 0, %s228
      %s246 = sphi 0, %s246
      %s248 = sphi 0, %s246
      %s249 = sphi 0, %s248
      %s263 = sphi 0, %s249
      %s267 = sphi 0, %s267
      %s269 = sphi 0, %s267
      %s270 = sphi 0, %s269
      %s284 = sphi 0, %s270
      %s288 = sphi 0, %s288
      %s290 = sphi 0, %s288
      %s291 = sphi 0, %s290
      %s305 = sphi 0, %s291
      %s309 = sphi 0, %s309
      %s311 = sphi 0, %s309
      %s312 = sphi 0, %s311
      %s326 = sphi 0, %s312
      %s330 = sphi 0, %s330
      %s332 = sphi 0, %s330
      %s333 = sphi 0, %s332
      %s347 = sphi 0, %s333
      %s351 = sphi 0, %s351
      %s353 = sphi 0, %s351
      %s354 = sphi 0, %s353
      %s368 = sphi 0, %s354
      %s372 = sphi 0, %s372
      %s374 = sphi 0, %s372
      %s375 = sphi 0, %s374
      %s389 = sphi 0, %s375
      %s393 = sphi 0, %s393
      %s395 = sphi 0, %s393
      %s396 = sphi 0, %s395
      %s410 = sphi 0, %s396
      %s414 = sphi 0, %s414
      %s416 = sphi 0, %s414
      %s417 = sphi 0, %s416
      %s431 = sphi 0, %s417
      %s435 = sphi 0, %s435
      %s437 = sphi 0, %s435
      %s438 = sphi 0, %s437
      %s452 = sphi 0, %s438
      %s456 = sphi 0, %s456
      %s458 = sphi 0, %s456
      %s459 = sphi 0, %s458
      %s473 = sphi 0, %s459
      %s477 = sphi 0, %s477
      %s479 = sphi 0, %s477
      %s480 = sphi 0, %s479
      %s494 = sphi 0, %s480
      %s498 = sphi 0, %s498
      %s500 = sphi 0, %s498
      %s501 = sphi 0, %s500
      %s515 = sphi 0, %s501
      %s519 = sphi 0, %s519
      %s521 = sphi 0, %s519
      %s522 = sphi 0, %s521
      %s536 = sphi 0, %s522
      %s540 = sphi 0, %s540
      %s542 = sphi 0, %s540
      %s543 = sphi 0, %s542
      %s557 = sphi 0, %s543
      %s561 = sphi 0, %s561
      %s563 = sphi 0, %s561
      %s564 = sphi 0, %s563
      %s578 = sphi 0, %s564
      %s582 = sphi 0, %s582
      %s584 = sphi 0, %s582
      %s585 = sphi 0, %s584
      %s599 = sphi 0, %s585
      %s603 = sphi 0, %s603
      %s605 = sphi 0, %s603
      %s606 = sphi 0, %s605
      %s620 = sphi 0, %s606
      %s624 = sphi 0, %s624
      %s626 = sphi 0, %s624
      %s627 = sphi 0, %s626
      %s641 = sphi 0, %s627
      %s645 = sphi 0, %s645
      %s647 = sphi 0, %s645
      %s648 = sphi 0, %s647
      %s662 = sphi 0, %s648
      %s666 = sphi 0, %s666
      %s668 = sphi 0, %s666
      %s669 = sphi 0, %s668
      %s683 = sphi 0, %s669
      %s687 = sphi 0, %s687
      %s689 = sphi 0, %s687
      %s690 = sphi 0, %s689
      %s704 = sphi 0, %s690
      %s708 = sphi 0, %s708
      %s710 = sphi 0, %s708
      %s711 = sphi 0, %s710
      %s725 = sphi 0, %s711
      %s729 = sphi 0, %s729
      %s731 = sphi 0, %s729
      %s732 = sphi 0, %s731
      %s746 = sphi 0, %s732
      %s750 = sphi 0, %s750
      %s752 = sphi 0, %s750
      %s753 = sphi 0, %s752
      %s767 = sphi 0, %s753
      %s771 = sphi 0, %s771
      %s773 = sphi 0, %s771
      %s774 = sphi 0, %s773
      %s788 = sphi 0, %s774
      %s792 = sphi 0, %s792
      %s794 = sphi 0, %s792
      %s795 = sphi 0, %s794
      %s809 = sphi 0, %s795
      %s813 = sphi 0, %s813
      %s815 = sphi 0, %s813
      %s816 = sphi 0, %s815
      %s830 = sphi 0, %s816
      %s834 = sphi 0, %s834
      %s836 = sphi 0, %s834
      %s837 = sphi 0, %s836
      %s851 = sphi 0, %s837
      %s855 = sphi 0, %s855
      %s857 = sphi 0, %s855
      %s858 = sphi 0, %s857
      %s872 = sphi 0, %s858
      %s876 = sphi 0, %s876
      %s878 = sphi 0, %s876
      %s879 = sphi 0, %s878
      %s893 = sphi 0, %s879
      %s897 = sphi 0, %s897
      %s899 = sphi 0, %s897
      %s900 = sphi 0, %s899
      %s914 = sphi 0, %s900
      %s918 = sphi 0, %s918
      %s920 = sphi 0, %s918
      %s921 = sphi 0, %s920
      %s935 = sphi 0, %s921
      %s939 = sphi 0, %s939
      %s941 = sphi 0, %s939
      %s942 = sphi 0, %s941
      %s956 = sphi 0, %s942
      %s960 = sphi 0, %s960
      %s962 = sphi 0, %s960
      %s963 = sphi 0, %s962
      %s977 = sphi 0, %s963
      %s981 = sphi 0, %s981
      %s983 = sphi 0, %s981
      %s984 = sphi 0, %s983
      %s998 = sphi 0, %s984
      %s1002 = sphi 0, %s1002
      %s1004 = sphi 0, %s1002
      %s1005 = sphi 0, %s1004
      %s1019 = sphi 0, %s1005
      %s1023 = sphi 0, %s1023
      %s1025 = sphi 0, %s1023
      %s1026 = sphi 0, %s1025
      %s1040 = sphi 0, %s1026
      %s1044 = sphi 0, %s1044
      %s1046 = sphi 0, %s1044
      %s1047 = sphi 0, %s1046
      %s1061 = sphi 0, %s1047
      %s1065 = sphi 0, %s1065
      %s1067 = sphi 0, %s1065
      %s1068 = sphi 0, %s1067
      %s1082 = sphi 0, %s1068
      %s1086 = sphi 0, %s1086
      %s1088 = sphi 0, %s1086
      %s1089 = sphi 0, %s1088
      %s1103 = sphi 0, %s1089
      %s1107 = sphi 0, %s1107
      %s1109 = sphi 0, %s1107
      %s1110 = sphi 0, %s1109
      %s1124 = sphi 0, %s1110
      %s1128 = sphi 0, %s1128
      %s1130 = sphi 0, %s1128
      %s1131 = sphi 0, %s1130
      %s1145 = sphi 0, %s1131
      %s1149 = sphi 0, %s1149
      %s1151 = sphi 0, %s1149
      %s1152 = sphi 0, %s1151
      %s1166 = sphi 0, %s1152
      %s1170 = sphi 0, %s1170
      %s1172 = sphi 0, %s1170
      %s1173 = sphi 0, %s1172
      %s1187 = sphi 0, %s1173
      %s1193 = sphi 0, %s1195
      %s1196 = sphi 0, %s1193
      %s1197 = sphi 0, %s1196
      %s1213 = sphi 0, %s1197
    $region4: #{_lambda_.1} parent=1 // loop_header_branch
      %126 = sbr.rel (%p124) target = $region8
    $region5: #{_lambda_.1} parent=1 // loop_body
      %s128 = ssub.s32 %s123, 1
      %s129 = ssub.s32 %s123, 2
      %s130 = sadd.s32 %s123, 1
      %s131 = ssub.s32 %s123, %s130
      %p132 = scmp.eq.s32.totalorder %s131, 0
      %s134 = sadd.s32 %s133, 1
      %s135 = scalar_select %p132, %s133, %s134
      %p138 = pneg %p132
      %p139 = scmp.eq.s32.totalorder %s123, 1
      %p140 = por %p138, %p139
      %p141 = scmp.ne.s32.totalorder %s133, %s136
      %p142 = scmp.eq.s32.totalorder %s123, 0
      %p143 = por %p141, %p142
      %p144 = scmp.ne.s32.totalorder %s133, %s136
      %p145 = scmp.eq.s32.totalorder %s128, 1
      %p146 = por %p144, %p145
      %p147 = scmp.ne.s32.totalorder %s136, %s137
      %p148 = scmp.eq.s32.totalorder %s128, 0
      %p149 = por %p147, %p148
      %p150 = scmp.ne.s32.totalorder %s136, %s137
      %p151 = scmp.eq.s32.totalorder %s129, 1
      %p152 = por %p150, %p151
      %p154 = scmp.ne.s32.totalorder %s137, %s153
      %p155 = scmp.eq.s32.totalorder %s129, 0
      %p156 = por %p154, %p155
      %s157 = ssub.s32 %s123, %s130
      %p158 = scmp.eq.s32.totalorder %s157, 0
      %s160 = sadd.s32 %s159, 1
      %s161 = scalar_select %p158, %s159, %s160
      %p164 = pneg %p158
      %p165 = scmp.eq.s32.totalorder %s123, 1
      %p166 = por %p164, %p165
      %p167 = scmp.ne.s32.totalorder %s159, %s162
      %p168 = scmp.eq.s32.totalorder %s123, 0
      %p169 = por %p167, %p168
      %p170 = scmp.ne.s32.totalorder %s159, %s162
      %p171 = scmp.eq.s32.totalorder %s128, 1
      %p172 = por %p170, %p171
      %p173 = scmp.ne.s32.totalorder %s162, %s163
      %p174 = scmp.eq.s32.totalorder %s128, 0
      %p175 = por %p173, %p174
      %p176 = scmp.ne.s32.totalorder %s162, %s163
      %p177 = scmp.eq.s32.totalorder %s129, 1
      %p178 = por %p176, %p177
      %p180 = scmp.ne.s32.totalorder %s163, %s179
      %p181 = scmp.eq.s32.totalorder %s129, 0
      %p182 = por %p180, %p181
      %s184 = sadd.s32 %s183, 1
      %p187 = scmp.eq.s32.totalorder %s123, 1
      %p188 = scmp.ne.s32.totalorder %s183, %s185
      %p189 = scmp.eq.s32.totalorder %s123, 0
      %p190 = por %p188, %p189
      %p191 = scmp.ne.s32.totalorder %s183, %s185
      %p192 = scmp.eq.s32.totalorder %s128, 1
      %p193 = por %p191, %p192
      %p194 = scmp.ne.s32.totalorder %s185, %s186
      %p195 = scmp.eq.s32.totalorder %s128, 0
      %p196 = por %p194, %p195
      %p197 = scmp.ne.s32.totalorder %s185, %s186
      %p198 = scmp.eq.s32.totalorder %s129, 1
      %p199 = por %p197, %p198
      %p201 = scmp.ne.s32.totalorder %s186, %s200
      %p202 = scmp.eq.s32.totalorder %s129, 0
      %p203 = por %p201, %p202
      %s205 = sadd.s32 %s204, 1
      %p208 = scmp.eq.s32.totalorder %s123, 1
      %p209 = scmp.ne.s32.totalorder %s204, %s206
      %p210 = scmp.eq.s32.totalorder %s123, 0
      %p211 = por %p209, %p210
      %p212 = scmp.ne.s32.totalorder %s204, %s206
      %p213 = scmp.eq.s32.totalorder %s128, 1
      %p214 = por %p212, %p213
      %p215 = scmp.ne.s32.totalorder %s206, %s207
      %p216 = scmp.eq.s32.totalorder %s128, 0
      %p217 = por %p215, %p216
      %p218 = scmp.ne.s32.totalorder %s206, %s207
      %p219 = scmp.eq.s32.totalorder %s129, 1
      %p220 = por %p218, %p219
      %p222 = scmp.ne.s32.totalorder %s207, %s221
      %p223 = scmp.eq.s32.totalorder %s129, 0
      %p224 = por %p222, %p223
      %s226 = sadd.s32 %s225, 1
      %p229 = scmp.eq.s32.totalorder %s123, 1
      %p230 = scmp.ne.s32.totalorder %s225, %s227
      %p231 = scmp.eq.s32.totalorder %s123, 0
      %p232 = por %p230, %p231
      %p233 = scmp.ne.s32.totalorder %s225, %s227
      %p234 = scmp.eq.s32.totalorder %s128, 1
      %p235 = por %p233, %p234
      %p236 = scmp.ne.s32.totalorder %s227, %s228
      %p237 = scmp.eq.s32.totalorder %s128, 0
      %p238 = por %p236, %p237
      %p239 = scmp.ne.s32.totalorder %s227, %s228
      %p240 = scmp.eq.s32.totalorder %s129, 1
      %p241 = por %p239, %p240
      %p243 = scmp.ne.s32.totalorder %s228, %s242
      %p244 = scmp.eq.s32.totalorder %s129, 0
      %p245 = por %p243, %p244
      %s247 = sadd.s32 %s246, 1
      %p250 = scmp.eq.s32.totalorder %s123, 1
      %p251 = scmp.ne.s32.totalorder %s246, %s248
      %p252 = scmp.eq.s32.totalorder %s123, 0
      %p253 = por %p251, %p252
      %p254 = scmp.ne.s32.totalorder %s246, %s248
      %p255 = scmp.eq.s32.totalorder %s128, 1
      %p256 = por %p254, %p255
      %p257 = scmp.ne.s32.totalorder %s248, %s249
      %p258 = scmp.eq.s32.totalorder %s128, 0
      %p259 = por %p257, %p258
      %p260 = scmp.ne.s32.totalorder %s248, %s249
      %p261 = scmp.eq.s32.totalorder %s129, 1
      %p262 = por %p260, %p261
      %p264 = scmp.ne.s32.totalorder %s249, %s263
      %p265 = scmp.eq.s32.totalorder %s129, 0
      %p266 = por %p264, %p265
      %s268 = sadd.s32 %s267, 1
      %p271 = scmp.eq.s32.totalorder %s123, 1
      %p272 = scmp.ne.s32.totalorder %s267, %s269
      %p273 = scmp.eq.s32.totalorder %s123, 0
      %p274 = por %p272, %p273
      %p275 = scmp.ne.s32.totalorder %s267, %s269
      %p276 = scmp.eq.s32.totalorder %s128, 1
      %p277 = por %p275, %p276
      %p278 = scmp.ne.s32.totalorder %s269, %s270
      %p279 = scmp.eq.s32.totalorder %s128, 0
      %p280 = por %p278, %p279
      %p281 = scmp.ne.s32.totalorder %s269, %s270
      %p282 = scmp.eq.s32.totalorder %s129, 1
      %p283 = por %p281, %p282
      %p285 = scmp.ne.s32.totalorder %s270, %s284
      %p286 = scmp.eq.s32.totalorder %s129, 0
      %p287 = por %p285, %p286
      %s289 = sadd.s32 %s288, 1
      %p292 = scmp.eq.s32.totalorder %s123, 1
      %p293 = scmp.ne.s32.totalorder %s288, %s290
      %p294 = scmp.eq.s32.totalorder %s123, 0
      %p295 = por %p293, %p294
      %p296 = scmp.ne.s32.totalorder %s288, %s290
      %p297 = scmp.eq.s32.totalorder %s128, 1
      %p298 = por %p296, %p297
      %p299 = scmp.ne.s32.totalorder %s290, %s291
      %p300 = scmp.eq.s32.totalorder %s128, 0
      %p301 = por %p299, %p300
      %p302 = scmp.ne.s32.totalorder %s290, %s291
      %p303 = scmp.eq.s32.totalorder %s129, 1
      %p304 = por %p302, %p303
      %p306 = scmp.ne.s32.totalorder %s291, %s305
      %p307 = scmp.eq.s32.totalorder %s129, 0
      %p308 = por %p306, %p307
      %s310 = sadd.s32 %s309, 1
      %p313 = scmp.eq.s32.totalorder %s123, 1
      %p314 = scmp.ne.s32.totalorder %s309, %s311
      %p315 = scmp.eq.s32.totalorder %s123, 0
      %p316 = por %p314, %p315
      %p317 = scmp.ne.s32.totalorder %s309, %s311
      %p318 = scmp.eq.s32.totalorder %s128, 1
      %p319 = por %p317, %p318
      %p320 = scmp.ne.s32.totalorder %s311, %s312
      %p321 = scmp.eq.s32.totalorder %s128, 0
      %p322 = por %p320, %p321
      %p323 = scmp.ne.s32.totalorder %s311, %s312
      %p324 = scmp.eq.s32.totalorder %s129, 1
      %p325 = por %p323, %p324
      %p327 = scmp.ne.s32.totalorder %s312, %s326
      %p328 = scmp.eq.s32.totalorder %s129, 0
      %p329 = por %p327, %p328
      %s331 = sadd.s32 %s330, 1
      %p334 = scmp.eq.s32.totalorder %s123, 1
      %p335 = scmp.ne.s32.totalorder %s330, %s332
      %p336 = scmp.eq.s32.totalorder %s123, 0
      %p337 = por %p335, %p336
      %p338 = scmp.ne.s32.totalorder %s330, %s332
      %p339 = scmp.eq.s32.totalorder %s128, 1
      %p340 = por %p338, %p339
      %p341 = scmp.ne.s32.totalorder %s332, %s333
      %p342 = scmp.eq.s32.totalorder %s128, 0
      %p343 = por %p341, %p342
      %p344 = scmp.ne.s32.totalorder %s332, %s333
      %p345 = scmp.eq.s32.totalorder %s129, 1
      %p346 = por %p344, %p345
      %p348 = scmp.ne.s32.totalorder %s333, %s347
      %p349 = scmp.eq.s32.totalorder %s129, 0
      %p350 = por %p348, %p349
      %s352 = sadd.s32 %s351, 1
      %p355 = scmp.eq.s32.totalorder %s123, 1
      %p356 = scmp.ne.s32.totalorder %s351, %s353
      %p357 = scmp.eq.s32.totalorder %s123, 0
      %p358 = por %p356, %p357
      %p359 = scmp.ne.s32.totalorder %s351, %s353
      %p360 = scmp.eq.s32.totalorder %s128, 1
      %p361 = por %p359, %p360
      %p362 = scmp.ne.s32.totalorder %s353, %s354
      %p363 = scmp.eq.s32.totalorder %s128, 0
      %p364 = por %p362, %p363
      %p365 = scmp.ne.s32.totalorder %s353, %s354
      %p366 = scmp.eq.s32.totalorder %s129, 1
      %p367 = por %p365, %p366
      %p369 = scmp.ne.s32.totalorder %s354, %s368
      %p370 = scmp.eq.s32.totalorder %s129, 0
      %p371 = por %p369, %p370
      %s373 = sadd.s32 %s372, 1
      %p376 = scmp.eq.s32.totalorder %s123, 1
      %p377 = scmp.ne.s32.totalorder %s372, %s374
      %p378 = scmp.eq.s32.totalorder %s123, 0
      %p379 = por %p377, %p378
      %p380 = scmp.ne.s32.totalorder %s372, %s374
      %p381 = scmp.eq.s32.totalorder %s128, 1
      %p382 = por %p380, %p381
      %p383 = scmp.ne.s32.totalorder %s374, %s375
      %p384 = scmp.eq.s32.totalorder %s128, 0
      %p385 = por %p383, %p384
      %p386 = scmp.ne.s32.totalorder %s374, %s375
      %p387 = scmp.eq.s32.totalorder %s129, 1
      %p388 = por %p386, %p387
      %p390 = scmp.ne.s32.totalorder %s375, %s389
      %p391 = scmp.eq.s32.totalorder %s129, 0
      %p392 = por %p390, %p391
      %s394 = sadd.s32 %s393, 1
      %p397 = scmp.eq.s32.totalorder %s123, 1
      %p398 = scmp.ne.s32.totalorder %s393, %s395
      %p399 = scmp.eq.s32.totalorder %s123, 0
      %p400 = por %p398, %p399
      %p401 = scmp.ne.s32.totalorder %s393, %s395
      %p402 = scmp.eq.s32.totalorder %s128, 1
      %p403 = por %p401, %p402
      %p404 = scmp.ne.s32.totalorder %s395, %s396
      %p405 = scmp.eq.s32.totalorder %s128, 0
      %p406 = por %p404, %p405
      %p407 = scmp.ne.s32.totalorder %s395, %s396
      %p408 = scmp.eq.s32.totalorder %s129, 1
      %p409 = por %p407, %p408
      %p411 = scmp.ne.s32.totalorder %s396, %s410
      %p412 = scmp.eq.s32.totalorder %s129, 0
      %p413 = por %p411, %p412
      %s415 = sadd.s32 %s414, 1
      %p418 = scmp.eq.s32.totalorder %s123, 1
      %p419 = scmp.ne.s32.totalorder %s414, %s416
      %p420 = scmp.eq.s32.totalorder %s123, 0
      %p421 = por %p419, %p420
      %p422 = scmp.ne.s32.totalorder %s414, %s416
      %p423 = scmp.eq.s32.totalorder %s128, 1
      %p424 = por %p422, %p423
      %p425 = scmp.ne.s32.totalorder %s416, %s417
      %p426 = scmp.eq.s32.totalorder %s128, 0
      %p427 = por %p425, %p426
      %p428 = scmp.ne.s32.totalorder %s416, %s417
      %p429 = scmp.eq.s32.totalorder %s129, 1
      %p430 = por %p428, %p429
      %p432 = scmp.ne.s32.totalorder %s417, %s431
      %p433 = scmp.eq.s32.totalorder %s129, 0
      %p434 = por %p432, %p433
      %s436 = sadd.s32 %s435, 1
      %p439 = scmp.eq.s32.totalorder %s123, 1
      %p440 = scmp.ne.s32.totalorder %s435, %s437
      %p441 = scmp.eq.s32.totalorder %s123, 0
      %p442 = por %p440, %p441
      %p443 = scmp.ne.s32.totalorder %s435, %s437
      %p444 = scmp.eq.s32.totalorder %s128, 1
      %p445 = por %p443, %p444
      %p446 = scmp.ne.s32.totalorder %s437, %s438
      %p447 = scmp.eq.s32.totalorder %s128, 0
      %p448 = por %p446, %p447
      %p449 = scmp.ne.s32.totalorder %s437, %s438
      %p450 = scmp.eq.s32.totalorder %s129, 1
      %p451 = por %p449, %p450
      %p453 = scmp.ne.s32.totalorder %s438, %s452
      %p454 = scmp.eq.s32.totalorder %s129, 0
      %p455 = por %p453, %p454
      %s457 = sadd.s32 %s456, 1
      %p460 = scmp.eq.s32.totalorder %s123, 1
      %p461 = scmp.ne.s32.totalorder %s456, %s458
      %p462 = scmp.eq.s32.totalorder %s123, 0
      %p463 = por %p461, %p462
      %p464 = scmp.ne.s32.totalorder %s456, %s458
      %p465 = scmp.eq.s32.totalorder %s128, 1
      %p466 = por %p464, %p465
      %p467 = scmp.ne.s32.totalorder %s458, %s459
      %p468 = scmp.eq.s32.totalorder %s128, 0
      %p469 = por %p467, %p468
      %p470 = scmp.ne.s32.totalorder %s458, %s459
      %p471 = scmp.eq.s32.totalorder %s129, 1
      %p472 = por %p470, %p471
      %p474 = scmp.ne.s32.totalorder %s459, %s473
      %p475 = scmp.eq.s32.totalorder %s129, 0
      %p476 = por %p474, %p475
      %s478 = sadd.s32 %s477, 1
      %p481 = scmp.eq.s32.totalorder %s123, 1
      %p482 = scmp.ne.s32.totalorder %s477, %s479
      %p483 = scmp.eq.s32.totalorder %s123, 0
      %p484 = por %p482, %p483
      %p485 = scmp.ne.s32.totalorder %s477, %s479
      %p486 = scmp.eq.s32.totalorder %s128, 1
      %p487 = por %p485, %p486
      %p488 = scmp.ne.s32.totalorder %s479, %s480
      %p489 = scmp.eq.s32.totalorder %s128, 0
      %p490 = por %p488, %p489
      %p491 = scmp.ne.s32.totalorder %s479, %s480
      %p492 = scmp.eq.s32.totalorder %s129, 1
      %p493 = por %p491, %p492
      %p495 = scmp.ne.s32.totalorder %s480, %s494
      %p496 = scmp.eq.s32.totalorder %s129, 0
      %p497 = por %p495, %p496
      %s499 = sadd.s32 %s498, 1
      %p502 = scmp.eq.s32.totalorder %s123, 1
      %p503 = scmp.ne.s32.totalorder %s498, %s500
      %p504 = scmp.eq.s32.totalorder %s123, 0
      %p505 = por %p503, %p504
      %p506 = scmp.ne.s32.totalorder %s498, %s500
      %p507 = scmp.eq.s32.totalorder %s128, 1
      %p508 = por %p506, %p507
      %p509 = scmp.ne.s32.totalorder %s500, %s501
      %p510 = scmp.eq.s32.totalorder %s128, 0
      %p511 = por %p509, %p510
      %p512 = scmp.ne.s32.totalorder %s500, %s501
      %p513 = scmp.eq.s32.totalorder %s129, 1
      %p514 = por %p512, %p513
      %p516 = scmp.ne.s32.totalorder %s501, %s515
      %p517 = scmp.eq.s32.totalorder %s129, 0
      %p518 = por %p516, %p517
      %s520 = sadd.s32 %s519, 1
      %p523 = scmp.eq.s32.totalorder %s123, 1
      %p524 = scmp.ne.s32.totalorder %s519, %s521
      %p525 = scmp.eq.s32.totalorder %s123, 0
      %p526 = por %p524, %p525
      %p527 = scmp.ne.s32.totalorder %s519, %s521
      %p528 = scmp.eq.s32.totalorder %s128, 1
      %p529 = por %p527, %p528
      %p530 = scmp.ne.s32.totalorder %s521, %s522
      %p531 = scmp.eq.s32.totalorder %s128, 0
      %p532 = por %p530, %p531
      %p533 = scmp.ne.s32.totalorder %s521, %s522
      %p534 = scmp.eq.s32.totalorder %s129, 1
      %p535 = por %p533, %p534
      %p537 = scmp.ne.s32.totalorder %s522, %s536
      %p538 = scmp.eq.s32.totalorder %s129, 0
      %p539 = por %p537, %p538
      %s541 = sadd.s32 %s540, 1
      %p544 = scmp.eq.s32.totalorder %s123, 1
      %p545 = scmp.ne.s32.totalorder %s540, %s542
      %p546 = scmp.eq.s32.totalorder %s123, 0
      %p547 = por %p545, %p546
      %p548 = scmp.ne.s32.totalorder %s540, %s542
      %p549 = scmp.eq.s32.totalorder %s128, 1
      %p550 = por %p548, %p549
      %p551 = scmp.ne.s32.totalorder %s542, %s543
      %p552 = scmp.eq.s32.totalorder %s128, 0
      %p553 = por %p551, %p552
      %p554 = scmp.ne.s32.totalorder %s542, %s543
      %p555 = scmp.eq.s32.totalorder %s129, 1
      %p556 = por %p554, %p555
      %p558 = scmp.ne.s32.totalorder %s543, %s557
      %p559 = scmp.eq.s32.totalorder %s129, 0
      %p560 = por %p558, %p559
      %s562 = sadd.s32 %s561, 1
      %p565 = scmp.eq.s32.totalorder %s123, 1
      %p566 = scmp.ne.s32.totalorder %s561, %s563
      %p567 = scmp.eq.s32.totalorder %s123, 0
      %p568 = por %p566, %p567
      %p569 = scmp.ne.s32.totalorder %s561, %s563
      %p570 = scmp.eq.s32.totalorder %s128, 1
      %p571 = por %p569, %p570
      %p572 = scmp.ne.s32.totalorder %s563, %s564
      %p573 = scmp.eq.s32.totalorder %s128, 0
      %p574 = por %p572, %p573
      %p575 = scmp.ne.s32.totalorder %s563, %s564
      %p576 = scmp.eq.s32.totalorder %s129, 1
      %p577 = por %p575, %p576
      %p579 = scmp.ne.s32.totalorder %s564, %s578
      %p580 = scmp.eq.s32.totalorder %s129, 0
      %p581 = por %p579, %p580
      %s583 = sadd.s32 %s582, 1
      %p586 = scmp.eq.s32.totalorder %s123, 1
      %p587 = scmp.ne.s32.totalorder %s582, %s584
      %p588 = scmp.eq.s32.totalorder %s123, 0
      %p589 = por %p587, %p588
      %p590 = scmp.ne.s32.totalorder %s582, %s584
      %p591 = scmp.eq.s32.totalorder %s128, 1
      %p592 = por %p590, %p591
      %p593 = scmp.ne.s32.totalorder %s584, %s585
      %p594 = scmp.eq.s32.totalorder %s128, 0
      %p595 = por %p593, %p594
      %p596 = scmp.ne.s32.totalorder %s584, %s585
      %p597 = scmp.eq.s32.totalorder %s129, 1
      %p598 = por %p596, %p597
      %p600 = scmp.ne.s32.totalorder %s585, %s599
      %p601 = scmp.eq.s32.totalorder %s129, 0
      %p602 = por %p600, %p601
      %s604 = sadd.s32 %s603, 1
      %p607 = scmp.eq.s32.totalorder %s123, 1
      %p608 = scmp.ne.s32.totalorder %s603, %s605
      %p609 = scmp.eq.s32.totalorder %s123, 0
      %p610 = por %p608, %p609
      %p611 = scmp.ne.s32.totalorder %s603, %s605
      %p612 = scmp.eq.s32.totalorder %s128, 1
      %p613 = por %p611, %p612
      %p614 = scmp.ne.s32.totalorder %s605, %s606
      %p615 = scmp.eq.s32.totalorder %s128, 0
      %p616 = por %p614, %p615
      %p617 = scmp.ne.s32.totalorder %s605, %s606
      %p618 = scmp.eq.s32.totalorder %s129, 1
      %p619 = por %p617, %p618
      %p621 = scmp.ne.s32.totalorder %s606, %s620
      %p622 = scmp.eq.s32.totalorder %s129, 0
      %p623 = por %p621, %p622
      %s625 = sadd.s32 %s624, 1
      %p628 = scmp.eq.s32.totalorder %s123, 1
      %p629 = scmp.ne.s32.totalorder %s624, %s626
      %p630 = scmp.eq.s32.totalorder %s123, 0
      %p631 = por %p629, %p630
      %p632 = scmp.ne.s32.totalorder %s624, %s626
      %p633 = scmp.eq.s32.totalorder %s128, 1
      %p634 = por %p632, %p633
      %p635 = scmp.ne.s32.totalorder %s626, %s627
      %p636 = scmp.eq.s32.totalorder %s128, 0
      %p637 = por %p635, %p636
      %p638 = scmp.ne.s32.totalorder %s626, %s627
      %p639 = scmp.eq.s32.totalorder %s129, 1
      %p640 = por %p638, %p639
      %p642 = scmp.ne.s32.totalorder %s627, %s641
      %p643 = scmp.eq.s32.totalorder %s129, 0
      %p644 = por %p642, %p643
      %s646 = sadd.s32 %s645, 1
      %p649 = scmp.eq.s32.totalorder %s123, 1
      %p650 = scmp.ne.s32.totalorder %s645, %s647
      %p651 = scmp.eq.s32.totalorder %s123, 0
      %p652 = por %p650, %p651
      %p653 = scmp.ne.s32.totalorder %s645, %s647
      %p654 = scmp.eq.s32.totalorder %s128, 1
      %p655 = por %p653, %p654
      %p656 = scmp.ne.s32.totalorder %s647, %s648
      %p657 = scmp.eq.s32.totalorder %s128, 0
      %p658 = por %p656, %p657
      %p659 = scmp.ne.s32.totalorder %s647, %s648
      %p660 = scmp.eq.s32.totalorder %s129, 1
      %p661 = por %p659, %p660
      %p663 = scmp.ne.s32.totalorder %s648, %s662
      %p664 = scmp.eq.s32.totalorder %s129, 0
      %p665 = por %p663, %p664
      %s667 = sadd.s32 %s666, 1
      %p670 = scmp.eq.s32.totalorder %s123, 1
      %p671 = scmp.ne.s32.totalorder %s666, %s668
      %p672 = scmp.eq.s32.totalorder %s123, 0
      %p673 = por %p671, %p672
      %p674 = scmp.ne.s32.totalorder %s666, %s668
      %p675 = scmp.eq.s32.totalorder %s128, 1
      %p676 = por %p674, %p675
      %p677 = scmp.ne.s32.totalorder %s668, %s669
      %p678 = scmp.eq.s32.totalorder %s128, 0
      %p679 = por %p677, %p678
      %p680 = scmp.ne.s32.totalorder %s668, %s669
      %p681 = scmp.eq.s32.totalorder %s129, 1
      %p682 = por %p680, %p681
      %p684 = scmp.ne.s32.totalorder %s669, %s683
      %p685 = scmp.eq.s32.totalorder %s129, 0
      %p686 = por %p684, %p685
      %s688 = sadd.s32 %s687, 1
      %p691 = scmp.eq.s32.totalorder %s123, 1
      %p692 = scmp.ne.s32.totalorder %s687, %s689
      %p693 = scmp.eq.s32.totalorder %s123, 0
      %p694 = por %p692, %p693
      %p695 = scmp.ne.s32.totalorder %s687, %s689
      %p696 = scmp.eq.s32.totalorder %s128, 1
      %p697 = por %p695, %p696
      %p698 = scmp.ne.s32.totalorder %s689, %s690
      %p699 = scmp.eq.s32.totalorder %s128, 0
      %p700 = por %p698, %p699
      %p701 = scmp.ne.s32.totalorder %s689, %s690
      %p702 = scmp.eq.s32.totalorder %s129, 1
      %p703 = por %p701, %p702
      %p705 = scmp.ne.s32.totalorder %s690, %s704
      %p706 = scmp.eq.s32.totalorder %s129, 0
      %p707 = por %p705, %p706
      %s709 = sadd.s32 %s708, 1
      %p712 = scmp.eq.s32.totalorder %s123, 1
      %p713 = scmp.ne.s32.totalorder %s708, %s710
      %p714 = scmp.eq.s32.totalorder %s123, 0
      %p715 = por %p713, %p714
      %p716 = scmp.ne.s32.totalorder %s708, %s710
      %p717 = scmp.eq.s32.totalorder %s128, 1
      %p718 = por %p716, %p717
      %p719 = scmp.ne.s32.totalorder %s710, %s711
      %p720 = scmp.eq.s32.totalorder %s128, 0
      %p721 = por %p719, %p720
      %p722 = scmp.ne.s32.totalorder %s710, %s711
      %p723 = scmp.eq.s32.totalorder %s129, 1
      %p724 = por %p722, %p723
      %p726 = scmp.ne.s32.totalorder %s711, %s725
      %p727 = scmp.eq.s32.totalorder %s129, 0
      %p728 = por %p726, %p727
      %s730 = sadd.s32 %s729, 1
      %p733 = scmp.eq.s32.totalorder %s123, 1
      %p734 = scmp.ne.s32.totalorder %s729, %s731
      %p735 = scmp.eq.s32.totalorder %s123, 0
      %p736 = por %p734, %p735
      %p737 = scmp.ne.s32.totalorder %s729, %s731
      %p738 = scmp.eq.s32.totalorder %s128, 1
      %p739 = por %p737, %p738
      %p740 = scmp.ne.s32.totalorder %s731, %s732
      %p741 = scmp.eq.s32.totalorder %s128, 0
      %p742 = por %p740, %p741
      %p743 = scmp.ne.s32.totalorder %s731, %s732
      %p744 = scmp.eq.s32.totalorder %s129, 1
      %p745 = por %p743, %p744
      %p747 = scmp.ne.s32.totalorder %s732, %s746
      %p748 = scmp.eq.s32.totalorder %s129, 0
      %p749 = por %p747, %p748
      %s751 = sadd.s32 %s750, 1
      %p754 = scmp.eq.s32.totalorder %s123, 1
      %p755 = scmp.ne.s32.totalorder %s750, %s752
      %p756 = scmp.eq.s32.totalorder %s123, 0
      %p757 = por %p755, %p756
      %p758 = scmp.ne.s32.totalorder %s750, %s752
      %p759 = scmp.eq.s32.totalorder %s128, 1
      %p760 = por %p758, %p759
      %p761 = scmp.ne.s32.totalorder %s752, %s753
      %p762 = scmp.eq.s32.totalorder %s128, 0
      %p763 = por %p761, %p762
      %p764 = scmp.ne.s32.totalorder %s752, %s753
      %p765 = scmp.eq.s32.totalorder %s129, 1
      %p766 = por %p764, %p765
      %p768 = scmp.ne.s32.totalorder %s753, %s767
      %p769 = scmp.eq.s32.totalorder %s129, 0
      %p770 = por %p768, %p769
      %s772 = sadd.s32 %s771, 1
      %p775 = scmp.eq.s32.totalorder %s123, 1
      %p776 = scmp.ne.s32.totalorder %s771, %s773
      %p777 = scmp.eq.s32.totalorder %s123, 0
      %p778 = por %p776, %p777
      %p779 = scmp.ne.s32.totalorder %s771, %s773
      %p780 = scmp.eq.s32.totalorder %s128, 1
      %p781 = por %p779, %p780
      %p782 = scmp.ne.s32.totalorder %s773, %s774
      %p783 = scmp.eq.s32.totalorder %s128, 0
      %p784 = por %p782, %p783
      %p785 = scmp.ne.s32.totalorder %s773, %s774
      %p786 = scmp.eq.s32.totalorder %s129, 1
      %p787 = por %p785, %p786
      %p789 = scmp.ne.s32.totalorder %s774, %s788
      %p790 = scmp.eq.s32.totalorder %s129, 0
      %p791 = por %p789, %p790
      %s793 = sadd.s32 %s792, 1
      %p796 = scmp.eq.s32.totalorder %s123, 1
      %p797 = scmp.ne.s32.totalorder %s792, %s794
      %p798 = scmp.eq.s32.totalorder %s123, 0
      %p799 = por %p797, %p798
      %p800 = scmp.ne.s32.totalorder %s792, %s794
      %p801 = scmp.eq.s32.totalorder %s128, 1
      %p802 = por %p800, %p801
      %p803 = scmp.ne.s32.totalorder %s794, %s795
      %p804 = scmp.eq.s32.totalorder %s128, 0
      %p805 = por %p803, %p804
      %p806 = scmp.ne.s32.totalorder %s794, %s795
      %p807 = scmp.eq.s32.totalorder %s129, 1
      %p808 = por %p806, %p807
      %p810 = scmp.ne.s32.totalorder %s795, %s809
      %p811 = scmp.eq.s32.totalorder %s129, 0
      %p812 = por %p810, %p811
      %s814 = sadd.s32 %s813, 1
      %p817 = scmp.eq.s32.totalorder %s123, 1
      %p818 = scmp.ne.s32.totalorder %s813, %s815
      %p819 = scmp.eq.s32.totalorder %s123, 0
      %p820 = por %p818, %p819
      %p821 = scmp.ne.s32.totalorder %s813, %s815
      %p822 = scmp.eq.s32.totalorder %s128, 1
      %p823 = por %p821, %p822
      %p824 = scmp.ne.s32.totalorder %s815, %s816
      %p825 = scmp.eq.s32.totalorder %s128, 0
      %p826 = por %p824, %p825
      %p827 = scmp.ne.s32.totalorder %s815, %s816
      %p828 = scmp.eq.s32.totalorder %s129, 1
      %p829 = por %p827, %p828
      %p831 = scmp.ne.s32.totalorder %s816, %s830
      %p832 = scmp.eq.s32.totalorder %s129, 0
      %p833 = por %p831, %p832
      %s835 = sadd.s32 %s834, 1
      %p838 = scmp.eq.s32.totalorder %s123, 1
      %p839 = scmp.ne.s32.totalorder %s834, %s836
      %p840 = scmp.eq.s32.totalorder %s123, 0
      %p841 = por %p839, %p840
      %p842 = scmp.ne.s32.totalorder %s834, %s836
      %p843 = scmp.eq.s32.totalorder %s128, 1
      %p844 = por %p842, %p843
      %p845 = scmp.ne.s32.totalorder %s836, %s837
      %p846 = scmp.eq.s32.totalorder %s128, 0
      %p847 = por %p845, %p846
      %p848 = scmp.ne.s32.totalorder %s836, %s837
      %p849 = scmp.eq.s32.totalorder %s129, 1
      %p850 = por %p848, %p849
      %p852 = scmp.ne.s32.totalorder %s837, %s851
      %p853 = scmp.eq.s32.totalorder %s129, 0
      %p854 = por %p852, %p853
      %s856 = sadd.s32 %s855, 1
      %p859 = scmp.eq.s32.totalorder %s123, 1
      %p860 = scmp.ne.s32.totalorder %s855, %s857
      %p861 = scmp.eq.s32.totalorder %s123, 0
      %p862 = por %p860, %p861
      %p863 = scmp.ne.s32.totalorder %s855, %s857
      %p864 = scmp.eq.s32.totalorder %s128, 1
      %p865 = por %p863, %p864
      %p866 = scmp.ne.s32.totalorder %s857, %s858
      %p867 = scmp.eq.s32.totalorder %s128, 0
      %p868 = por %p866, %p867
      %p869 = scmp.ne.s32.totalorder %s857, %s858
      %p870 = scmp.eq.s32.totalorder %s129, 1
      %p871 = por %p869, %p870
      %p873 = scmp.ne.s32.totalorder %s858, %s872
      %p874 = scmp.eq.s32.totalorder %s129, 0
      %p875 = por %p873, %p874
      %s877 = sadd.s32 %s876, 1
      %p880 = scmp.eq.s32.totalorder %s123, 1
      %p881 = scmp.ne.s32.totalorder %s876, %s878
      %p882 = scmp.eq.s32.totalorder %s123, 0
      %p883 = por %p881, %p882
      %p884 = scmp.ne.s32.totalorder %s876, %s878
      %p885 = scmp.eq.s32.totalorder %s128, 1
      %p886 = por %p884, %p885
      %p887 = scmp.ne.s32.totalorder %s878, %s879
      %p888 = scmp.eq.s32.totalorder %s128, 0
      %p889 = por %p887, %p888
      %p890 = scmp.ne.s32.totalorder %s878, %s879
      %p891 = scmp.eq.s32.totalorder %s129, 1
      %p892 = por %p890, %p891
      %p894 = scmp.ne.s32.totalorder %s879, %s893
      %p895 = scmp.eq.s32.totalorder %s129, 0
      %p896 = por %p894, %p895
      %s898 = sadd.s32 %s897, 1
      %p901 = scmp.eq.s32.totalorder %s123, 1
      %p902 = scmp.ne.s32.totalorder %s897, %s899
      %p903 = scmp.eq.s32.totalorder %s123, 0
      %p904 = por %p902, %p903
      %p905 = scmp.ne.s32.totalorder %s897, %s899
      %p906 = scmp.eq.s32.totalorder %s128, 1
      %p907 = por %p905, %p906
      %p908 = scmp.ne.s32.totalorder %s899, %s900
      %p909 = scmp.eq.s32.totalorder %s128, 0
      %p910 = por %p908, %p909
      %p911 = scmp.ne.s32.totalorder %s899, %s900
      %p912 = scmp.eq.s32.totalorder %s129, 1
      %p913 = por %p911, %p912
      %p915 = scmp.ne.s32.totalorder %s900, %s914
      %p916 = scmp.eq.s32.totalorder %s129, 0
      %p917 = por %p915, %p916
      %s919 = sadd.s32 %s918, 1
      %p922 = scmp.eq.s32.totalorder %s123, 1
      %p923 = scmp.ne.s32.totalorder %s918, %s920
      %p924 = scmp.eq.s32.totalorder %s123, 0
      %p925 = por %p923, %p924
      %p926 = scmp.ne.s32.totalorder %s918, %s920
      %p927 = scmp.eq.s32.totalorder %s128, 1
      %p928 = por %p926, %p927
      %p929 = scmp.ne.s32.totalorder %s920, %s921
      %p930 = scmp.eq.s32.totalorder %s128, 0
      %p931 = por %p929, %p930
      %p932 = scmp.ne.s32.totalorder %s920, %s921
      %p933 = scmp.eq.s32.totalorder %s129, 1
      %p934 = por %p932, %p933
      %p936 = scmp.ne.s32.totalorder %s921, %s935
      %p937 = scmp.eq.s32.totalorder %s129, 0
      %p938 = por %p936, %p937
      %s940 = sadd.s32 %s939, 1
      %p943 = scmp.eq.s32.totalorder %s123, 1
      %p944 = scmp.ne.s32.totalorder %s939, %s941
      %p945 = scmp.eq.s32.totalorder %s123, 0
      %p946 = por %p944, %p945
      %p947 = scmp.ne.s32.totalorder %s939, %s941
      %p948 = scmp.eq.s32.totalorder %s128, 1
      %p949 = por %p947, %p948
      %p950 = scmp.ne.s32.totalorder %s941, %s942
      %p951 = scmp.eq.s32.totalorder %s128, 0
      %p952 = por %p950, %p951
      %p953 = scmp.ne.s32.totalorder %s941, %s942
      %p954 = scmp.eq.s32.totalorder %s129, 1
      %p955 = por %p953, %p954
      %p957 = scmp.ne.s32.totalorder %s942, %s956
      %p958 = scmp.eq.s32.totalorder %s129, 0
      %p959 = por %p957, %p958
      %s961 = sadd.s32 %s960, 1
      %p964 = scmp.eq.s32.totalorder %s123, 1
      %p965 = scmp.ne.s32.totalorder %s960, %s962
      %p966 = scmp.eq.s32.totalorder %s123, 0
      %p967 = por %p965, %p966
      %p968 = scmp.ne.s32.totalorder %s960, %s962
      %p969 = scmp.eq.s32.totalorder %s128, 1
      %p970 = por %p968, %p969
      %p971 = scmp.ne.s32.totalorder %s962, %s963
      %p972 = scmp.eq.s32.totalorder %s128, 0
      %p973 = por %p971, %p972
      %p974 = scmp.ne.s32.totalorder %s962, %s963
      %p975 = scmp.eq.s32.totalorder %s129, 1
      %p976 = por %p974, %p975
      %p978 = scmp.ne.s32.totalorder %s963, %s977
      %p979 = scmp.eq.s32.totalorder %s129, 0
      %p980 = por %p978, %p979
      %s982 = sadd.s32 %s981, 1
      %p985 = scmp.eq.s32.totalorder %s123, 1
      %p986 = scmp.ne.s32.totalorder %s981, %s983
      %p987 = scmp.eq.s32.totalorder %s123, 0
      %p988 = por %p986, %p987
      %p989 = scmp.ne.s32.totalorder %s981, %s983
      %p990 = scmp.eq.s32.totalorder %s128, 1
      %p991 = por %p989, %p990
      %p992 = scmp.ne.s32.totalorder %s983, %s984
      %p993 = scmp.eq.s32.totalorder %s128, 0
      %p994 = por %p992, %p993
      %p995 = scmp.ne.s32.totalorder %s983, %s984
      %p996 = scmp.eq.s32.totalorder %s129, 1
      %p997 = por %p995, %p996
      %p999 = scmp.ne.s32.totalorder %s984, %s998
      %p1000 = scmp.eq.s32.totalorder %s129, 0
      %p1001 = por %p999, %p1000
      %s1003 = sadd.s32 %s1002, 1
      %p1006 = scmp.eq.s32.totalorder %s123, 1
      %p1007 = scmp.ne.s32.totalorder %s1002, %s1004
      %p1008 = scmp.eq.s32.totalorder %s123, 0
      %p1009 = por %p1007, %p1008
      %p1010 = scmp.ne.s32.totalorder %s1002, %s1004
      %p1011 = scmp.eq.s32.totalorder %s128, 1
      %p1012 = por %p1010, %p1011
      %p1013 = scmp.ne.s32.totalorder %s1004, %s1005
      %p1014 = scmp.eq.s32.totalorder %s128, 0
      %p1015 = por %p1013, %p1014
      %p1016 = scmp.ne.s32.totalorder %s1004, %s1005
      %p1017 = scmp.eq.s32.totalorder %s129, 1
      %p1018 = por %p1016, %p1017
      %p1020 = scmp.ne.s32.totalorder %s1005, %s1019
      %p1021 = scmp.eq.s32.totalorder %s129, 0
      %p1022 = por %p1020, %p1021
      %s1024 = sadd.s32 %s1023, 1
      %p1027 = scmp.eq.s32.totalorder %s123, 1
      %p1028 = scmp.ne.s32.totalorder %s1023, %s1025
      %p1029 = scmp.eq.s32.totalorder %s123, 0
      %p1030 = por %p1028, %p1029
      %p1031 = scmp.ne.s32.totalorder %s1023, %s1025
      %p1032 = scmp.eq.s32.totalorder %s128, 1
      %p1033 = por %p1031, %p1032
      %p1034 = scmp.ne.s32.totalorder %s1025, %s1026
      %p1035 = scmp.eq.s32.totalorder %s128, 0
      %p1036 = por %p1034, %p1035
      %p1037 = scmp.ne.s32.totalorder %s1025, %s1026
      %p1038 = scmp.eq.s32.totalorder %s129, 1
      %p1039 = por %p1037, %p1038
      %p1041 = scmp.ne.s32.totalorder %s1026, %s1040
      %p1042 = scmp.eq.s32.totalorder %s129, 0
      %p1043 = por %p1041, %p1042
      %s1045 = sadd.s32 %s1044, 1
      %p1048 = scmp.eq.s32.totalorder %s123, 1
      %p1049 = scmp.ne.s32.totalorder %s1044, %s1046
      %p1050 = scmp.eq.s32.totalorder %s123, 0
      %p1051 = por %p1049, %p1050
      %p1052 = scmp.ne.s32.totalorder %s1044, %s1046
      %p1053 = scmp.eq.s32.totalorder %s128, 1
      %p1054 = por %p1052, %p1053
      %p1055 = scmp.ne.s32.totalorder %s1046, %s1047
      %p1056 = scmp.eq.s32.totalorder %s128, 0
      %p1057 = por %p1055, %p1056
      %p1058 = scmp.ne.s32.totalorder %s1046, %s1047
      %p1059 = scmp.eq.s32.totalorder %s129, 1
      %p1060 = por %p1058, %p1059
      %p1062 = scmp.ne.s32.totalorder %s1047, %s1061
      %p1063 = scmp.eq.s32.totalorder %s129, 0
      %p1064 = por %p1062, %p1063
      %s1066 = sadd.s32 %s1065, 1
      %p1069 = scmp.eq.s32.totalorder %s123, 1
      %p1070 = scmp.ne.s32.totalorder %s1065, %s1067
      %p1071 = scmp.eq.s32.totalorder %s123, 0
      %p1072 = por %p1070, %p1071
      %p1073 = scmp.ne.s32.totalorder %s1065, %s1067
      %p1074 = scmp.eq.s32.totalorder %s128, 1
      %p1075 = por %p1073, %p1074
      %p1076 = scmp.ne.s32.totalorder %s1067, %s1068
      %p1077 = scmp.eq.s32.totalorder %s128, 0
      %p1078 = por %p1076, %p1077
      %p1079 = scmp.ne.s32.totalorder %s1067, %s1068
      %p1080 = scmp.eq.s32.totalorder %s129, 1
      %p1081 = por %p1079, %p1080
      %p1083 = scmp.ne.s32.totalorder %s1068, %s1082
      %p1084 = scmp.eq.s32.totalorder %s129, 0
      %p1085 = por %p1083, %p1084
      %s1087 = sadd.s32 %s1086, 1
      %p1090 = scmp.eq.s32.totalorder %s123, 1
      %p1091 = scmp.ne.s32.totalorder %s1086, %s1088
      %p1092 = scmp.eq.s32.totalorder %s123, 0
      %p1093 = por %p1091, %p1092
      %p1094 = scmp.ne.s32.totalorder %s1086, %s1088
      %p1095 = scmp.eq.s32.totalorder %s128, 1
      %p1096 = por %p1094, %p1095
      %p1097 = scmp.ne.s32.totalorder %s1088, %s1089
      %p1098 = scmp.eq.s32.totalorder %s128, 0
      %p1099 = por %p1097, %p1098
      %p1100 = scmp.ne.s32.totalorder %s1088, %s1089
      %p1101 = scmp.eq.s32.totalorder %s129, 1
      %p1102 = por %p1100, %p1101
      %p1104 = scmp.ne.s32.totalorder %s1089, %s1103
      %p1105 = scmp.eq.s32.totalorder %s129, 0
      %p1106 = por %p1104, %p1105
      %s1108 = sadd.s32 %s1107, 1
      %p1111 = scmp.eq.s32.totalorder %s123, 1
      %p1112 = scmp.ne.s32.totalorder %s1107, %s1109
      %p1113 = scmp.eq.s32.totalorder %s123, 0
      %p1114 = por %p1112, %p1113
      %p1115 = scmp.ne.s32.totalorder %s1107, %s1109
      %p1116 = scmp.eq.s32.totalorder %s128, 1
      %p1117 = por %p1115, %p1116
      %p1118 = scmp.ne.s32.totalorder %s1109, %s1110
      %p1119 = scmp.eq.s32.totalorder %s128, 0
      %p1120 = por %p1118, %p1119
      %p1121 = scmp.ne.s32.totalorder %s1109, %s1110
      %p1122 = scmp.eq.s32.totalorder %s129, 1
      %p1123 = por %p1121, %p1122
      %p1125 = scmp.ne.s32.totalorder %s1110, %s1124
      %p1126 = scmp.eq.s32.totalorder %s129, 0
      %p1127 = por %p1125, %p1126
      %s1129 = sadd.s32 %s1128, 1
      %p1132 = scmp.eq.s32.totalorder %s123, 1
      %p1133 = scmp.ne.s32.totalorder %s1128, %s1130
      %p1134 = scmp.eq.s32.totalorder %s123, 0
      %p1135 = por %p1133, %p1134
      %p1136 = scmp.ne.s32.totalorder %s1128, %s1130
      %p1137 = scmp.eq.s32.totalorder %s128, 1
      %p1138 = por %p1136, %p1137
      %p1139 = scmp.ne.s32.totalorder %s1130, %s1131
      %p1140 = scmp.eq.s32.totalorder %s128, 0
      %p1141 = por %p1139, %p1140
      %p1142 = scmp.ne.s32.totalorder %s1130, %s1131
      %p1143 = scmp.eq.s32.totalorder %s129, 1
      %p1144 = por %p1142, %p1143
      %p1146 = scmp.ne.s32.totalorder %s1131, %s1145
      %p1147 = scmp.eq.s32.totalorder %s129, 0
      %p1148 = por %p1146, %p1147
      %s1150 = sadd.s32 %s1149, 1
      %p1153 = scmp.eq.s32.totalorder %s123, 1
      %p1154 = scmp.ne.s32.totalorder %s1149, %s1151
      %p1155 = scmp.eq.s32.totalorder %s123, 0
      %p1156 = por %p1154, %p1155
      %p1157 = scmp.ne.s32.totalorder %s1149, %s1151
      %p1158 = scmp.eq.s32.totalorder %s128, 1
      %p1159 = por %p1157, %p1158
      %p1160 = scmp.ne.s32.totalorder %s1151, %s1152
      %p1161 = scmp.eq.s32.totalorder %s128, 0
      %p1162 = por %p1160, %p1161
      %p1163 = scmp.ne.s32.totalorder %s1151, %s1152
      %p1164 = scmp.eq.s32.totalorder %s129, 1
      %p1165 = por %p1163, %p1164
      %p1167 = scmp.ne.s32.totalorder %s1152, %s1166
      %p1168 = scmp.eq.s32.totalorder %s129, 0
      %p1169 = por %p1167, %p1168
      %s1171 = sadd.s32 %s1170, 1
      %p1174 = scmp.eq.s32.totalorder %s123, 1
      %p1175 = scmp.ne.s32.totalorder %s1170, %s1172
      %p1176 = scmp.eq.s32.totalorder %s123, 0
      %p1177 = por %p1175, %p1176
      %p1178 = scmp.ne.s32.totalorder %s1170, %s1172
      %p1179 = scmp.eq.s32.totalorder %s128, 1
      %p1180 = por %p1178, %p1179
      %p1181 = scmp.ne.s32.totalorder %s1172, %s1173
      %p1182 = scmp.eq.s32.totalorder %s128, 0
      %p1183 = por %p1181, %p1182
      %p1184 = scmp.ne.s32.totalorder %s1172, %s1173
      %p1185 = scmp.eq.s32.totalorder %s129, 1
      %p1186 = por %p1184, %p1185
      %p1188 = scmp.ne.s32.totalorder %s1173, %s1187
      %p1189 = scmp.eq.s32.totalorder %s129, 0
      %p1190 = por %p1188, %p1189
      %s1191 = ssub.s32 %s123, %s130
      %p1192 = scmp.eq.s32.totalorder %s1191, 0
      %s1194 = sadd.s32 %s1193, 1
      %s1195 = scalar_select %p1192, %s1193, %s1194
      %p1198 = pneg %p1192
      %p1199 = scmp.eq.s32.totalorder %s123, 1
      %p1200 = por %p1198, %p1199
      %p1201 = scmp.ne.s32.totalorder %s1193, %s1196
      %p1202 = scmp.eq.s32.totalorder %s123, 0
      %p1203 = por %p1201, %p1202
      %p1204 = scmp.ne.s32.totalorder %s1193, %s1196
      %p1205 = scmp.eq.s32.totalorder %s128, 1
      %p1206 = por %p1204, %p1205
      %p1207 = scmp.ne.s32.totalorder %s1196, %s1197
      %p1208 = scmp.eq.s32.totalorder %s128, 0
      %p1209 = por %p1207, %p1208
      %p1210 = scmp.ne.s32.totalorder %s1196, %s1197
      %p1211 = scmp.eq.s32.totalorder %s129, 1
      %p1212 = por %p1210, %p1211
      %p1214 = scmp.ne.s32.totalorder %s1197, %s1213
      %p1215 = scmp.eq.s32.totalorder %s129, 0
      %p1216 = por %p1214, %p1215
      %p1217 = scmp.le.s32.totalorder 1, %s123
      %p1218 = scmp.lt.s32.totalorder %s123, 3
      %p1219 = pnand %p1217, %p1218
      %p1220 = pneg %p1219
      // Predicated region
      $region9: #{_lambda_.1} parent=5 // pred_check
        _
      $region10: #{_lambda_.1} parent=5 // pred_check_branch
        %1222 = sbr.rel (%p1219) target = $region12
      $region11: #{_lambda_.1} parent=5 // pred_region
        %s1223 = ssub.s32 %s123, 1
        // Predicated region
        $region13: #{_lambda_.1} parent=11 // pred_check
          %p1224 = pneg %p196
        $region14: #{_lambda_.1} parent=11 // pred_check_branch
          %1226 = sbr.rel (%p1224) target = $region16
        $region15: #{_lambda_.1} parent=11 // pred_region
          _
        $region16: #{_lambda_.1} parent=11 // pred_fallthru
          _
        // Predicated region
        $region17: #{_lambda_.1} parent=11 // pred_check
          %p1227 = pneg %p217
        $region18: #{_lambda_.1} parent=11 // pred_check_branch
          %1229 = sbr.rel (%p1227) target = $region20
        $region19: #{_lambda_.1} parent=11 // pred_region
          _
        $region20: #{_lambda_.1} parent=11 // pred_fallthru
          _
        // Predicated region
        $region21: #{_lambda_.1} parent=11 // pred_check
          %p1230 = pneg %p238
        $region22: #{_lambda_.1} parent=11 // pred_check_branch
          %1232 = sbr.rel (%p1230) target = $region24
        $region23: #{_lambda_.1} parent=11 // pred_region
          _
        $region24: #{_lambda_.1} parent=11 // pred_fallthru
          _
        // Predicated region
        $region25: #{_lambda_.1} parent=11 // pred_check
          %p1233 = pneg %p259
        $region26: #{_lambda_.1} parent=11 // pred_check_branch
          %1235 = sbr.rel (%p1233) target = $region28
        $region27: #{_lambda_.1} parent=11 // pred_region
          %s1237 = ssub.s32 16, 16
          %1238 = vsyncadd [#allocation3], %s1237
          %s1240 = sshll.u32 [#allocation2], 4
          %s1241 = int_to_ptr.vmem [resolvable:$true] %s1240
          %1243 = dma.hbm_to_vmem [thread:$0]  %s11, 16, %s1241, [#allocation3]
        $region28: #{_lambda_.1} parent=11 // pred_fallthru
          _
        // Predicated region
        $region29: #{_lambda_.1} parent=11 // pred_check
          %p1244 = pneg %p280
        $region30: #{_lambda_.1} parent=11 // pred_check_branch
          %1246 = sbr.rel (%p1244) target = $region32
        $region31: #{_lambda_.1} parent=11 // pred_region
          _
        $region32: #{_lambda_.1} parent=11 // pred_fallthru
          _
        // Predicated region
        $region33: #{_lambda_.1} parent=11 // pred_check
          %p1247 = pneg %p301
        $region34: #{_lambda_.1} parent=11 // pred_check_branch
          %1249 = sbr.rel (%p1247) target = $region36
        $region35: #{_lambda_.1} parent=11 // pred_region
          %s1251 = ssub.s32 16, 16
          %1252 = vsyncadd [#allocation6], %s1251
          %s1254 = sshll.u32 [#allocation5], 4
          %s1255 = int_to_ptr.vmem [resolvable:$true] %s1254
          %1257 = dma.hbm_to_vmem [thread:$0]  %s15, 16, %s1255, [#allocation6]
        $region36: #{_lambda_.1} parent=11 // pred_fallthru
          _
        // Predicated region
        $region37: #{_lambda_.1} parent=11 // pred_check
          %p1258 = pneg %p322
        $region38: #{_lambda_.1} parent=11 // pred_check_branch
          %1260 = sbr.rel (%p1258) target = $region40
        $region39: #{_lambda_.1} parent=11 // pred_region
          _
        $region40: #{_lambda_.1} parent=11 // pred_fallthru
          _
        // Predicated region
        $region41: #{_lambda_.1} parent=11 // pred_check
          %p1261 = pneg %p343
        $region42: #{_lambda_.1} parent=11 // pred_check_branch
          %1263 = sbr.rel (%p1261) target = $region44
        $region43: #{_lambda_.1} parent=11 // pred_region
          %s1265 = ssub.s32 16, 16
          %1266 = vsyncadd [#allocation6], %s1265
          %s1268 = sshll.u32 [#allocation7], 4
          %s1269 = int_to_ptr.vmem [resolvable:$true] %s1268
          %1271 = dma.hbm_to_vmem [thread:$0]  %s19, 16, %s1269, [#allocation6]
        $region44: #{_lambda_.1} parent=11 // pred_fallthru
          _
        // Predicated region
        $region45: #{_lambda_.1} parent=11 // pred_check
          %p1272 = pneg %p364
        $region46: #{_lambda_.1} parent=11 // pred_check_branch
          %1274 = sbr.rel (%p1272) target = $region48
        $region47: #{_lambda_.1} parent=11 // pred_region
          _
        $region48: #{_lambda_.1} parent=11 // pred_fallthru
          _
        // Predicated region
        $region49: #{_lambda_.1} parent=11 // pred_check
          %p1275 = pneg %p385
        $region50: #{_lambda_.1} parent=11 // pred_check_branch
          %1277 = sbr.rel (%p1275) target = $region52
        $region51: #{_lambda_.1} parent=11 // pred_region
          %s1279 = ssub.s32 16, 16
          %1280 = vsyncadd [#allocation9], %s1279
          %s1282 = sshll.u32 [#allocation8], 4
          %s1283 = int_to_ptr.vmem [resolvable:$true] %s1282
          %1285 = dma.hbm_to_vmem [thread:$0]  %s23, 16, %s1283, [#allocation9]
        $region52: #{_lambda_.1} parent=11 // pred_fallthru
          _
        // Predicated region
        $region53: #{_lambda_.1} parent=11 // pred_check
          %p1286 = pneg %p406
        $region54: #{_lambda_.1} parent=11 // pred_check_branch
          %1288 = sbr.rel (%p1286) target = $region56
        $region55: #{_lambda_.1} parent=11 // pred_region
          _
        $region56: #{_lambda_.1} parent=11 // pred_fallthru
          _
        // Predicated region
        $region57: #{_lambda_.1} parent=11 // pred_check
          %p1289 = pneg %p427
        $region58: #{_lambda_.1} parent=11 // pred_check_branch
          %1291 = sbr.rel (%p1289) target = $region60
        $region59: #{_lambda_.1} parent=11 // pred_region
          %s1293 = ssub.s32 16, 16
          %1294 = vsyncadd [#allocation9], %s1293
          %s1296 = sshll.u32 [#allocation10], 4
          %s1297 = int_to_ptr.vmem [resolvable:$true] %s1296
          %1299 = dma.hbm_to_vmem [thread:$0]  %s27, 16, %s1297, [#allocation9]
        $region60: #{_lambda_.1} parent=11 // pred_fallthru
          _
        // Predicated region
        $region61: #{_lambda_.1} parent=11 // pred_check
          %p1300 = pneg %p448
        $region62: #{_lambda_.1} parent=11 // pred_check_branch
          %1302 = sbr.rel (%p1300) target = $region64
        $region63: #{_lambda_.1} parent=11 // pred_region
          _
        $region64: #{_lambda_.1} parent=11 // pred_fallthru
          _
        // Predicated region
        $region65: #{_lambda_.1} parent=11 // pred_check
          %p1303 = pneg %p469
        $region66: #{_lambda_.1} parent=11 // pred_check_branch
          %1305 = sbr.rel (%p1303) target = $region68
        $region67: #{_lambda_.1} parent=11 // pred_region
          _
        $region68: #{_lambda_.1} parent=11 // pred_fallthru
          _
        // Predicated region
        $region69: #{_lambda_.1} parent=11 // pred_check
          %p1306 = pneg %p490
        $region70: #{_lambda_.1} parent=11 // pred_check_branch
          %1308 = sbr.rel (%p1306) target = $region72
        $region71: #{_lambda_.1} parent=11 // pred_region
          _
        $region72: #{_lambda_.1} parent=11 // pred_fallthru
          _
        // Predicated region
        $region73: #{_lambda_.1} parent=11 // pred_check
          %p1309 = pneg %p511
        $region74: #{_lambda_.1} parent=11 // pred_check_branch
          %1311 = sbr.rel (%p1309) target = $region76
        $region75: #{_lambda_.1} parent=11 // pred_region
          %s1313 = ssub.s32 16, 16
          %1314 = vsyncadd [#allocation12], %s1313
          %s1316 = sshll.u32 [#allocation11], 4
          %s1317 = int_to_ptr.vmem [resolvable:$true] %s1316
          %1319 = dma.hbm_to_vmem [thread:$0]  %s35, 16, %s1317, [#allocation12]
        $region76: #{_lambda_.1} parent=11 // pred_fallthru
          _
        // Predicated region
        $region77: #{_lambda_.1} parent=11 // pred_check
          %p1320 = pneg %p532
        $region78: #{_lambda_.1} parent=11 // pred_check_branch
          %1322 = sbr.rel (%p1320) target = $region80
        $region79: #{_lambda_.1} parent=11 // pred_region
          _
        $region80: #{_lambda_.1} parent=11 // pred_fallthru
          _
        // Predicated region
        $region81: #{_lambda_.1} parent=11 // pred_check
          %p1323 = pneg %p553
        $region82: #{_lambda_.1} parent=11 // pred_check_branch
          %1325 = sbr.rel (%p1323) target = $region84
        $region83: #{_lambda_.1} parent=11 // pred_region
          %s1327 = ssub.s32 16, 16
          %1328 = vsyncadd [#allocation12], %s1327
          %s1330 = sshll.u32 [#allocation13], 4
          %s1331 = int_to_ptr.vmem [resolvable:$true] %s1330
          %1333 = dma.hbm_to_vmem [thread:$0]  %s39, 16, %s1331, [#allocation12]
        $region84: #{_lambda_.1} parent=11 // pred_fallthru
          _
        // Predicated region
        $region85: #{_lambda_.1} parent=11 // pred_check
          %p1334 = pneg %p574
        $region86: #{_lambda_.1} parent=11 // pred_check_branch
          %1336 = sbr.rel (%p1334) target = $region88
        $region87: #{_lambda_.1} parent=11 // pred_region
          _
        $region88: #{_lambda_.1} parent=11 // pred_fallthru
          _
        // Predicated region
        $region89: #{_lambda_.1} parent=11 // pred_check
          %p1337 = pneg %p595
        $region90: #{_lambda_.1} parent=11 // pred_check_branch
          %1339 = sbr.rel (%p1337) target = $region92
        $region91: #{_lambda_.1} parent=11 // pred_region
          %s1341 = ssub.s32 16, 16
          %1342 = vsyncadd [#allocation15], %s1341
          %s1344 = sshll.u32 [#allocation14], 4
          %s1345 = int_to_ptr.vmem [resolvable:$true] %s1344
          %1347 = dma.hbm_to_vmem [thread:$0]  %s43, 16, %s1345, [#allocation15]
        $region92: #{_lambda_.1} parent=11 // pred_fallthru
          _
        // Predicated region
        $region93: #{_lambda_.1} parent=11 // pred_check
          %p1348 = pneg %p616
        $region94: #{_lambda_.1} parent=11 // pred_check_branch
          %1350 = sbr.rel (%p1348) target = $region96
        $region95: #{_lambda_.1} parent=11 // pred_region
          _
        $region96: #{_lambda_.1} parent=11 // pred_fallthru
          _
        // Predicated region
        $region97: #{_lambda_.1} parent=11 // pred_check
          %p1351 = pneg %p637
        $region98: #{_lambda_.1} parent=11 // pred_check_branch
          %1353 = sbr.rel (%p1351) target = $region100
        $region99: #{_lambda_.1} parent=11 // pred_region
          %s1355 = ssub.s32 16, 16
          %1356 = vsyncadd [#allocation15], %s1355
          %s1358 = sshll.u32 [#allocation16], 4
          %s1359 = int_to_ptr.vmem [resolvable:$true] %s1358
          %1361 = dma.hbm_to_vmem [thread:$0]  %s47, 16, %s1359, [#allocation15]
        $region100: #{_lambda_.1} parent=11 // pred_fallthru
          _
        // Predicated region
        $region101: #{_lambda_.1} parent=11 // pred_check
          %p1362 = pneg %p658
        $region102: #{_lambda_.1} parent=11 // pred_check_branch
          %1364 = sbr.rel (%p1362) target = $region104
        $region103: #{_lambda_.1} parent=11 // pred_region
          %s1366 = ssub.s32 16, 16
          %1367 = vsyncadd [#allocation18], %s1366
          %s1369 = sshll.u32 [#allocation17], 4
          %s1370 = int_to_ptr.vmem [resolvable:$true] %s1369
          %1372 = dma.hbm_to_vmem [thread:$0]  %s49, 16, %s1370, [#allocation18]
        $region104: #{_lambda_.1} parent=11 // pred_fallthru
          _
        // Predicated region
        $region105: #{_lambda_.1} parent=11 // pred_check
          %p1373 = pneg %p679
        $region106: #{_lambda_.1} parent=11 // pred_check_branch
          %1375 = sbr.rel (%p1373) target = $region108
        $region107: #{_lambda_.1} parent=11 // pred_region
          %s1377 = ssub.s32 16, 16
          %1378 = vsyncadd [#allocation18], %s1377
          %s1380 = sshll.u32 [#allocation19], 4
          %s1381 = int_to_ptr.vmem [resolvable:$true] %s1380
          %1383 = dma.hbm_to_vmem [thread:$0]  %s51, 16, %s1381, [#allocation18]
        $region108: #{_lambda_.1} parent=11 // pred_fallthru
          _
        // Predicated region
        $region109: #{_lambda_.1} parent=11 // pred_check
          %p1384 = pneg %p700
        $region110: #{_lambda_.1} parent=11 // pred_check_branch
          %1386 = sbr.rel (%p1384) target = $region112
        $region111: #{_lambda_.1} parent=11 // pred_region
          _
        $region112: #{_lambda_.1} parent=11 // pred_fallthru
          _
        // Predicated region
        $region113: #{_lambda_.1} parent=11 // pred_check
          %p1387 = pneg %p721
        $region114: #{_lambda_.1} parent=11 // pred_check_branch
          %1389 = sbr.rel (%p1387) target = $region116
        $region115: #{_lambda_.1} parent=11 // pred_region
          %s1391 = ssub.s32 16, 16
          %1392 = vsyncadd [#allocation21], %s1391
          %s1394 = sshll.u32 [#allocation20], 4
          %s1395 = int_to_ptr.vmem [resolvable:$true] %s1394
          %1397 = dma.hbm_to_vmem [thread:$0]  %s55, 16, %s1395, [#allocation21]
        $region116: #{_lambda_.1} parent=11 // pred_fallthru
          _
        // Predicated region
        $region117: #{_lambda_.1} parent=11 // pred_check
          %p1398 = pneg %p742
        $region118: #{_lambda_.1} parent=11 // pred_check_branch
          %1400 = sbr.rel (%p1398) target = $region120
        $region119: #{_lambda_.1} parent=11 // pred_region
          _
        $region120: #{_lambda_.1} parent=11 // pred_fallthru
          _
        // Predicated region
        $region121: #{_lambda_.1} parent=11 // pred_check
          %p1401 = pneg %p763
        $region122: #{_lambda_.1} parent=11 // pred_check_branch
          %1403 = sbr.rel (%p1401) target = $region124
        $region123: #{_lambda_.1} parent=11 // pred_region
          %s1405 = ssub.s32 16, 16
          %1406 = vsyncadd [#allocation21], %s1405
          %s1408 = sshll.u32 [#allocation22], 4
          %s1409 = int_to_ptr.vmem [resolvable:$true] %s1408
          %1411 = dma.hbm_to_vmem [thread:$0]  %s59, 16, %s1409, [#allocation21]
        $region124: #{_lambda_.1} parent=11 // pred_fallthru
          _
        // Predicated region
        $region125: #{_lambda_.1} parent=11 // pred_check
          %p1412 = pneg %p784
        $region126: #{_lambda_.1} parent=11 // pred_check_branch
          %1414 = sbr.rel (%p1412) target = $region128
        $region127: #{_lambda_.1} parent=11 // pred_region
          _
        $region128: #{_lambda_.1} parent=11 // pred_fallthru
          _
        // Predicated region
        $region129: #{_lambda_.1} parent=11 // pred_check
          %p1415 = pneg %p805
        $region130: #{_lambda_.1} parent=11 // pred_check_branch
          %1417 = sbr.rel (%p1415) target = $region132
        $region131: #{_lambda_.1} parent=11 // pred_region
          %s1419 = ssub.s32 16, 16
          %1420 = vsyncadd [#allocation24], %s1419
          %s1422 = sshll.u32 [#allocation23], 4
          %s1423 = int_to_ptr.vmem [resolvable:$true] %s1422
          %1425 = dma.hbm_to_vmem [thread:$0]  %s63, 16, %s1423, [#allocation24]
        $region132: #{_lambda_.1} parent=11 // pred_fallthru
          _
        // Predicated region
        $region133: #{_lambda_.1} parent=11 // pred_check
          %p1426 = pneg %p826
        $region134: #{_lambda_.1} parent=11 // pred_check_branch
          %1428 = sbr.rel (%p1426) target = $region136
        $region135: #{_lambda_.1} parent=11 // pred_region
          _
        $region136: #{_lambda_.1} parent=11 // pred_fallthru
          _
        // Predicated region
        $region137: #{_lambda_.1} parent=11 // pred_check
          %p1429 = pneg %p847
        $region138: #{_lambda_.1} parent=11 // pred_check_branch
          %1431 = sbr.rel (%p1429) target = $region140
        $region139: #{_lambda_.1} parent=11 // pred_region
          %s1433 = ssub.s32 16, 16
          %1434 = vsyncadd [#allocation24], %s1433
          %s1436 = sshll.u32 [#allocation25], 4
          %s1437 = int_to_ptr.vmem [resolvable:$true] %s1436
          %1439 = dma.hbm_to_vmem [thread:$0]  %s67, 16, %s1437, [#allocation24]
        $region140: #{_lambda_.1} parent=11 // pred_fallthru
          _
        // Predicated region
        $region141: #{_lambda_.1} parent=11 // pred_check
          %p1440 = pneg %p868
        $region142: #{_lambda_.1} parent=11 // pred_check_branch
          %1442 = sbr.rel (%p1440) target = $region144
        $region143: #{_lambda_.1} parent=11 // pred_region
          _
        $region144: #{_lambda_.1} parent=11 // pred_fallthru
          _
        // Predicated region
        $region145: #{_lambda_.1} parent=11 // pred_check
          %p1443 = pneg %p889
        $region146: #{_lambda_.1} parent=11 // pred_check_branch
          %1445 = sbr.rel (%p1443) target = $region148
        $region147: #{_lambda_.1} parent=11 // pred_region
          %s1447 = ssub.s32 16, 16
          %1448 = vsyncadd [#allocation27], %s1447
          %s1450 = sshll.u32 [#allocation26], 4
          %s1451 = int_to_ptr.vmem [resolvable:$true] %s1450
          %1453 = dma.hbm_to_vmem [thread:$0]  %s71, 16, %s1451, [#allocation27]
        $region148: #{_lambda_.1} parent=11 // pred_fallthru
          _
        // Predicated region
        $region149: #{_lambda_.1} parent=11 // pred_check
          %p1454 = pneg %p910
        $region150: #{_lambda_.1} parent=11 // pred_check_branch
          %1456 = sbr.rel (%p1454) target = $region152
        $region151: #{_lambda_.1} parent=11 // pred_region
          _
        $region152: #{_lambda_.1} parent=11 // pred_fallthru
          _
        // Predicated region
        $region153: #{_lambda_.1} parent=11 // pred_check
          %p1457 = pneg %p931
        $region154: #{_lambda_.1} parent=11 // pred_check_branch
          %1459 = sbr.rel (%p1457) target = $region156
        $region155: #{_lambda_.1} parent=11 // pred_region
          %s1461 = ssub.s32 16, 16
          %1462 = vsyncadd [#allocation27], %s1461
          %s1464 = sshll.u32 [#allocation28], 4
          %s1465 = int_to_ptr.vmem [resolvable:$true] %s1464
          %1467 = dma.hbm_to_vmem [thread:$0]  %s75, 16, %s1465, [#allocation27]
        $region156: #{_lambda_.1} parent=11 // pred_fallthru
          _
        // Predicated region
        $region157: #{_lambda_.1} parent=11 // pred_check
          %p1468 = pneg %p952
        $region158: #{_lambda_.1} parent=11 // pred_check_branch
          %1470 = sbr.rel (%p1468) target = $region160
        $region159: #{_lambda_.1} parent=11 // pred_region
          _
        $region160: #{_lambda_.1} parent=11 // pred_fallthru
          _
        // Predicated region
        $region161: #{_lambda_.1} parent=11 // pred_check
          %p1471 = pneg %p973
        $region162: #{_lambda_.1} parent=11 // pred_check_branch
          %1473 = sbr.rel (%p1471) target = $region164
        $region163: #{_lambda_.1} parent=11 // pred_region
          %s1475 = ssub.s32 16, 16
          %1476 = vsyncadd [#allocation30], %s1475
          %s1478 = sshll.u32 [#allocation29], 4
          %s1479 = int_to_ptr.vmem [resolvable:$true] %s1478
          %1481 = dma.hbm_to_vmem [thread:$0]  %s79, 16, %s1479, [#allocation30]
        $region164: #{_lambda_.1} parent=11 // pred_fallthru
          _
        // Predicated region
        $region165: #{_lambda_.1} parent=11 // pred_check
          %p1482 = pneg %p994
        $region166: #{_lambda_.1} parent=11 // pred_check_branch
          %1484 = sbr.rel (%p1482) target = $region168
        $region167: #{_lambda_.1} parent=11 // pred_region
          %s1486 = ssub.s32 256, 256
          %1487 = vsyncadd [#allocation30], %s1486
          %s1488 = sshll.u32 [#allocation31], 4
          %s1489 = int_to_ptr.vmem [resolvable:$true] %s1488
          %1494 = dma.hbm_to_vmem [thread:$0]  %s81, 256, %s1489, [#allocation30], 64, 64, 4
        $region168: #{_lambda_.1} parent=11 // pred_fallthru
          _
        // Predicated region
        $region169: #{_lambda_.1} parent=11 // pred_check
          %p1495 = pneg %p1015
        $region170: #{_lambda_.1} parent=11 // pred_check_branch
          %1497 = sbr.rel (%p1495) target = $region172
        $region171: #{_lambda_.1} parent=11 // pred_region
          %s1499 = ssub.s32 16, 16
          %1500 = vsyncadd [#allocation33], %s1499
          %s1502 = sshll.u32 [#allocation32], 4
          %s1503 = int_to_ptr.vmem [resolvable:$true] %s1502
          %1505 = dma.hbm_to_vmem [thread:$0]  %s83, 16, %s1503, [#allocation33]
        $region172: #{_lambda_.1} parent=11 // pred_fallthru
          _
        // Predicated region
        $region173: #{_lambda_.1} parent=11 // pred_check
          %p1506 = pneg %p1036
        $region174: #{_lambda_.1} parent=11 // pred_check_branch
          %1508 = sbr.rel (%p1506) target = $region176
        $region175: #{_lambda_.1} parent=11 // pred_region
          _
        $region176: #{_lambda_.1} parent=11 // pred_fallthru
          _
        // Predicated region
        $region177: #{_lambda_.1} parent=11 // pred_check
          %p1509 = pneg %p1057
        $region178: #{_lambda_.1} parent=11 // pred_check_branch
          %1511 = sbr.rel (%p1509) target = $region180
        $region179: #{_lambda_.1} parent=11 // pred_region
          %s1513 = ssub.s32 16, 16
          %1514 = vsyncadd [#allocation33], %s1513
          %s1516 = sshll.u32 [#allocation34], 4
          %s1517 = int_to_ptr.vmem [resolvable:$true] %s1516
          %1519 = dma.hbm_to_vmem [thread:$0]  %s87, 16, %s1517, [#allocation33]
        $region180: #{_lambda_.1} parent=11 // pred_fallthru
          _
        // Predicated region
        $region181: #{_lambda_.1} parent=11 // pred_check
          %p1520 = pneg %p1078
        $region182: #{_lambda_.1} parent=11 // pred_check_branch
          %1522 = sbr.rel (%p1520) target = $region184
        $region183: #{_lambda_.1} parent=11 // pred_region
          _
        $region184: #{_lambda_.1} parent=11 // pred_fallthru
          _
        // Predicated region
        $region185: #{_lambda_.1} parent=11 // pred_check
          %p1523 = pneg %p1099
        $region186: #{_lambda_.1} parent=11 // pred_check_branch
          %1525 = sbr.rel (%p1523) target = $region188
        $region187: #{_lambda_.1} parent=11 // pred_region
          %s1527 = ssub.s32 16, 16
          %1528 = vsyncadd [#allocation36], %s1527
          %s1530 = sshll.u32 [#allocation35], 4
          %s1531 = int_to_ptr.vmem [resolvable:$true] %s1530
          %1533 = dma.hbm_to_vmem [thread:$0]  %s91, 16, %s1531, [#allocation36]
        $region188: #{_lambda_.1} parent=11 // pred_fallthru
          _
        // Predicated region
        $region189: #{_lambda_.1} parent=11 // pred_check
          %p1534 = pneg %p1120
        $region190: #{_lambda_.1} parent=11 // pred_check_branch
          %1536 = sbr.rel (%p1534) target = $region192
        $region191: #{_lambda_.1} parent=11 // pred_region
          %s1538 = ssub.s32 16, 16
          %1539 = vsyncadd [#allocation36], %s1538
          %s1541 = sshll.u32 [#allocation37], 4
          %s1542 = int_to_ptr.vmem [resolvable:$true] %s1541
          %1544 = dma.hbm_to_vmem [thread:$0]  %s93, 16, %s1542, [#allocation36]
        $region192: #{_lambda_.1} parent=11 // pred_fallthru
          _
        // Predicated region
        $region193: #{_lambda_.1} parent=11 // pred_check
          %p1545 = pneg %p1141
        $region194: #{_lambda_.1} parent=11 // pred_check_branch
          %1547 = sbr.rel (%p1545) target = $region196
        $region195: #{_lambda_.1} parent=11 // pred_region
          %s1549 = ssub.s32 16, 16
          %1550 = vsyncadd [#allocation39], %s1549
          %s1552 = sshll.u32 [#allocation38], 4
          %s1553 = int_to_ptr.vmem [resolvable:$true] %s1552
          %1555 = dma.hbm_to_vmem [thread:$0]  %s95, 16, %s1553, [#allocation39]
        $region196: #{_lambda_.1} parent=11 // pred_fallthru
          _
        // Predicated region
        $region197: #{_lambda_.1} parent=11 // pred_check
          %p1556 = pneg %p1162
        $region198: #{_lambda_.1} parent=11 // pred_check_branch
          %1558 = sbr.rel (%p1556) target = $region200
        $region199: #{_lambda_.1} parent=11 // pred_region
          _
        $region200: #{_lambda_.1} parent=11 // pred_fallthru
          _
        // Predicated region
        $region201: #{_lambda_.1} parent=11 // pred_check
          %p1559 = pneg %p1183
        $region202: #{_lambda_.1} parent=11 // pred_check_branch
          %1561 = sbr.rel (%p1559) target = $region204
        $region203: #{_lambda_.1} parent=11 // pred_region
          _
        $region204: #{_lambda_.1} parent=11 // pred_fallthru
          _
      $region12: #{_lambda_.1} parent=5 // pred_fallthru
        _
      %p1562 = scmp.lt.s32.totalorder %s123, 2
      // Predicated region
      $region205: #{_lambda_.1} parent=5 // pred_check
        %p1563 = pneg %p1562
      $region206: #{_lambda_.1} parent=5 // pred_check_branch
        %1565 = sbr.rel (%p1563) target = $region208
      $region207: #{_lambda_.1} parent=5 // pred_region
        // Predicated region
        $region209: #{_lambda_.1} parent=207 // pred_check
          %p1566 = pneg %p143
        $region210: #{_lambda_.1} parent=207 // pred_check_branch
          %1568 = sbr.rel (%p1566) target = $region212
        $region211: #{_lambda_.1} parent=207 // pred_region
          %p1569 = scmp.lt.s32.totalorder %s123, 1
          %s1570 = scalar_select %p1569, %s123, 1
          %s1571 = smul.addr %s1570, 8
          %s1572 = smul.addr %s1571, 8
          %s1573 = scalar_lea.vmem %s1, %s1572
        $region212: #{_lambda_.1} parent=207 // pred_fallthru
          _
        // Predicated region
        $region213: #{_lambda_.1} parent=207 // pred_check
          %p1574 = pneg %p169
        $region214: #{_lambda_.1} parent=207 // pred_check_branch
          %1576 = sbr.rel (%p1574) target = $region216
        $region215: #{_lambda_.1} parent=207 // pred_region
          %p1577 = scmp.lt.s32.totalorder %s123, 1
          %s1578 = scalar_select %p1577, %s123, 1
          %s1579 = smul.addr %s1578, 8
          %s1580 = smul.addr %s1579, 8
          %s1581 = scalar_lea.vmem %s3, %s1580
        $region216: #{_lambda_.1} parent=207 // pred_fallthru
          _
      $region208: #{_lambda_.1} parent=5 // pred_fallthru
        _
      %p1582 = scmp.le.s32.totalorder 1, %s123
      %p1583 = scmp.lt.s32.totalorder %s123, 3
      %p1584 = pnand %p1582, %p1583
      %p1585 = pneg %p1584
      // Predicated region
      $region217: #{_lambda_.1} parent=5 // pred_check
        _
      $region218: #{_lambda_.1} parent=5 // pred_check_branch
        %1587 = sbr.rel (%p1584) target = $region220
      $region219: #{_lambda_.1} parent=5 // pred_region
        %s1588 = ssub.s32 %s123, 1
        // Predicated region
        $region221: #{_lambda_.1} parent=219 // pred_check
          %p1589 = pneg %p259
        $region222: #{_lambda_.1} parent=219 // pred_check_branch
          %1591 = sbr.rel (%p1589) target = $region224
        $region223: #{_lambda_.1} parent=219 // pred_region
          %1592 = dma.done [#allocation3], 16
        $region224: #{_lambda_.1} parent=219 // pred_fallthru
          _
        // Predicated region
        $region225: #{_lambda_.1} parent=219 // pred_check
          %p1593 = pneg %p301
        $region226: #{_lambda_.1} parent=219 // pred_check_branch
          %1595 = sbr.rel (%p1593) target = $region228
        $region227: #{_lambda_.1} parent=219 // pred_region
          %1596 = dma.done [#allocation6], 16
        $region228: #{_lambda_.1} parent=219 // pred_fallthru
          _
        // Predicated region
        $region229: #{_lambda_.1} parent=219 // pred_check
          %p1597 = pneg %p343
        $region230: #{_lambda_.1} parent=219 // pred_check_branch
          %1599 = sbr.rel (%p1597) target = $region232
        $region231: #{_lambda_.1} parent=219 // pred_region
          %1600 = dma.done [#allocation6], 16
        $region232: #{_lambda_.1} parent=219 // pred_fallthru
          _
        // Predicated region
        $region233: #{_lambda_.1} parent=219 // pred_check
          %p1601 = pneg %p385
        $region234: #{_lambda_.1} parent=219 // pred_check_branch
          %1603 = sbr.rel (%p1601) target = $region236
        $region235: #{_lambda_.1} parent=219 // pred_region
          %1604 = dma.done [#allocation9], 16
        $region236: #{_lambda_.1} parent=219 // pred_fallthru
          _
        // Predicated region
        $region237: #{_lambda_.1} parent=219 // pred_check
          %p1605 = pneg %p427
        $region238: #{_lambda_.1} parent=219 // pred_check_branch
          %1607 = sbr.rel (%p1605) target = $region240
        $region239: #{_lambda_.1} parent=219 // pred_region
          %1608 = dma.done [#allocation9], 16
        $region240: #{_lambda_.1} parent=219 // pred_fallthru
          _
        // Predicated region
        $region241: #{_lambda_.1} parent=219 // pred_check
          %p1609 = pneg %p511
        $region242: #{_lambda_.1} parent=219 // pred_check_branch
          %1611 = sbr.rel (%p1609) target = $region244
        $region243: #{_lambda_.1} parent=219 // pred_region
          %1612 = dma.done [#allocation12], 16
        $region244: #{_lambda_.1} parent=219 // pred_fallthru
          _
        // Predicated region
        $region245: #{_lambda_.1} parent=219 // pred_check
          %p1613 = pneg %p553
        $region246: #{_lambda_.1} parent=219 // pred_check_branch
          %1615 = sbr.rel (%p1613) target = $region248
        $region247: #{_lambda_.1} parent=219 // pred_region
          %1616 = dma.done [#allocation12], 16
        $region248: #{_lambda_.1} parent=219 // pred_fallthru
          _
        // Predicated region
        $region249: #{_lambda_.1} parent=219 // pred_check
          %p1617 = pneg %p595
        $region250: #{_lambda_.1} parent=219 // pred_check_branch
          %1619 = sbr.rel (%p1617) target = $region252
        $region251: #{_lambda_.1} parent=219 // pred_region
          %1620 = dma.done [#allocation15], 16
        $region252: #{_lambda_.1} parent=219 // pred_fallthru
          _
        // Predicated region
        $region253: #{_lambda_.1} parent=219 // pred_check
          %p1621 = pneg %p637
        $region254: #{_lambda_.1} parent=219 // pred_check_branch
          %1623 = sbr.rel (%p1621) target = $region256
        $region255: #{_lambda_.1} parent=219 // pred_region
          %1624 = dma.done [#allocation15], 16
        $region256: #{_lambda_.1} parent=219 // pred_fallthru
          _
        // Predicated region
        $region257: #{_lambda_.1} parent=219 // pred_check
          %p1625 = pneg %p658
        $region258: #{_lambda_.1} parent=219 // pred_check_branch
          %1627 = sbr.rel (%p1625) target = $region260
        $region259: #{_lambda_.1} parent=219 // pred_region
          %1628 = dma.done [#allocation18], 16
        $region260: #{_lambda_.1} parent=219 // pred_fallthru
          _
        // Predicated region
        $region261: #{_lambda_.1} parent=219 // pred_check
          %p1629 = pneg %p679
        $region262: #{_lambda_.1} parent=219 // pred_check_branch
          %1631 = sbr.rel (%p1629) target = $region264
        $region263: #{_lambda_.1} parent=219 // pred_region
          %1632 = dma.done [#allocation18], 16
        $region264: #{_lambda_.1} parent=219 // pred_fallthru
          _
        // Predicated region
        $region265: #{_lambda_.1} parent=219 // pred_check
          %p1633 = pneg %p721
        $region266: #{_lambda_.1} parent=219 // pred_check_branch
          %1635 = sbr.rel (%p1633) target = $region268
        $region267: #{_lambda_.1} parent=219 // pred_region
          %1636 = dma.done [#allocation21], 16
        $region268: #{_lambda_.1} parent=219 // pred_fallthru
          _
        // Predicated region
        $region269: #{_lambda_.1} parent=219 // pred_check
          %p1637 = pneg %p763
        $region270: #{_lambda_.1} parent=219 // pred_check_branch
          %1639 = sbr.rel (%p1637) target = $region272
        $region271: #{_lambda_.1} parent=219 // pred_region
          %1640 = dma.done [#allocation21], 16
        $region272: #{_lambda_.1} parent=219 // pred_fallthru
          _
        // Predicated region
        $region273: #{_lambda_.1} parent=219 // pred_check
          %p1641 = pneg %p805
        $region274: #{_lambda_.1} parent=219 // pred_check_branch
          %1643 = sbr.rel (%p1641) target = $region276
        $region275: #{_lambda_.1} parent=219 // pred_region
          %1644 = dma.done [#allocation24], 16
        $region276: #{_lambda_.1} parent=219 // pred_fallthru
          _
        // Predicated region
        $region277: #{_lambda_.1} parent=219 // pred_check
          %p1645 = pneg %p847
        $region278: #{_lambda_.1} parent=219 // pred_check_branch
          %1647 = sbr.rel (%p1645) target = $region280
        $region279: #{_lambda_.1} parent=219 // pred_region
          %1648 = dma.done [#allocation24], 16
        $region280: #{_lambda_.1} parent=219 // pred_fallthru
          _
        // Predicated region
        $region281: #{_lambda_.1} parent=219 // pred_check
          %p1649 = pneg %p889
        $region282: #{_lambda_.1} parent=219 // pred_check_branch
          %1651 = sbr.rel (%p1649) target = $region284
        $region283: #{_lambda_.1} parent=219 // pred_region
          %1652 = dma.done [#allocation27], 16
        $region284: #{_lambda_.1} parent=219 // pred_fallthru
          _
        // Predicated region
        $region285: #{_lambda_.1} parent=219 // pred_check
          %p1653 = pneg %p931
        $region286: #{_lambda_.1} parent=219 // pred_check_branch
          %1655 = sbr.rel (%p1653) target = $region288
        $region287: #{_lambda_.1} parent=219 // pred_region
          %1656 = dma.done [#allocation27], 16
        $region288: #{_lambda_.1} parent=219 // pred_fallthru
          _
        // Predicated region
        $region289: #{_lambda_.1} parent=219 // pred_check
          %p1657 = pneg %p973
        $region290: #{_lambda_.1} parent=219 // pred_check_branch
          %1659 = sbr.rel (%p1657) target = $region292
        $region291: #{_lambda_.1} parent=219 // pred_region
          %1660 = dma.done [#allocation30], 16
        $region292: #{_lambda_.1} parent=219 // pred_fallthru
          _
        // Predicated region
        $region293: #{_lambda_.1} parent=219 // pred_check
          %p1661 = pneg %p994
        $region294: #{_lambda_.1} parent=219 // pred_check_branch
          %1663 = sbr.rel (%p1661) target = $region296
        $region295: #{_lambda_.1} parent=219 // pred_region
          %1664 = dma.done [#allocation30], 256
        $region296: #{_lambda_.1} parent=219 // pred_fallthru
          _
        // Predicated region
        $region297: #{_lambda_.1} parent=219 // pred_check
          %p1665 = pneg %p1015
        $region298: #{_lambda_.1} parent=219 // pred_check_branch
          %1667 = sbr.rel (%p1665) target = $region300
        $region299: #{_lambda_.1} parent=219 // pred_region
          %1668 = dma.done [#allocation33], 16
        $region300: #{_lambda_.1} parent=219 // pred_fallthru
          _
        // Predicated region
        $region301: #{_lambda_.1} parent=219 // pred_check
          %p1669 = pneg %p1057
        $region302: #{_lambda_.1} parent=219 // pred_check_branch
          %1671 = sbr.rel (%p1669) target = $region304
        $region303: #{_lambda_.1} parent=219 // pred_region
          %1672 = dma.done [#allocation33], 16
        $region304: #{_lambda_.1} parent=219 // pred_fallthru
          _
        // Predicated region
        $region305: #{_lambda_.1} parent=219 // pred_check
          %p1673 = pneg %p1099
        $region306: #{_lambda_.1} parent=219 // pred_check_branch
          %1675 = sbr.rel (%p1673) target = $region308
        $region307: #{_lambda_.1} parent=219 // pred_region
          %1676 = dma.done [#allocation36], 16
        $region308: #{_lambda_.1} parent=219 // pred_fallthru
          _
        // Predicated region
        $region309: #{_lambda_.1} parent=219 // pred_check
          %p1677 = pneg %p1120
        $region310: #{_lambda_.1} parent=219 // pred_check_branch
          %1679 = sbr.rel (%p1677) target = $region312
        $region311: #{_lambda_.1} parent=219 // pred_region
          %1680 = dma.done [#allocation36], 16
        $region312: #{_lambda_.1} parent=219 // pred_fallthru
          _
        // Predicated region
        $region313: #{_lambda_.1} parent=219 // pred_check
          %p1681 = pneg %p1141
        $region314: #{_lambda_.1} parent=219 // pred_check_branch
          %1683 = sbr.rel (%p1681) target = $region316
        $region315: #{_lambda_.1} parent=219 // pred_region
          %1684 = dma.done [#allocation39], 16
        $region316: #{_lambda_.1} parent=219 // pred_fallthru
          _
        %p1685 = scmp.lt.s32.totalorder %s128, 1
        %s1686 = scalar_select %p1685, %s128, 1
        %s1687 = smul.addr %s1686, 8
        %s1688 = smul.addr %s1687, 8
        %s1689 = scalar_lea.vmem %s1, %s1688
        %p1690 = pneg %p149
        %p1691 = pneg %p146
        %p1692 = scmp.lt.s32.totalorder %s128, 1
        %s1693 = scalar_select %p1692, %s128, 1
        %s1694 = smul.addr %s1693, 8
        %s1695 = smul.addr %s1694, 8
        %s1696 = scalar_lea.vmem %s3, %s1695
        %p1697 = pneg %p175
        %p1698 = pneg %p172
        %p1699 = pneg %p196
        %p1700 = pneg %p193
        %p1701 = pneg %p217
        %p1702 = pneg %p214
        %p1703 = pneg %p238
        %p1704 = pneg %p235
        %p1705 = pneg %p259
        %p1706 = pneg %p256
        %p1707 = pneg %p280
        %p1708 = pneg %p277
        %p1709 = pneg %p301
        %p1710 = pneg %p298
        %p1711 = pneg %p322
        %p1712 = pneg %p319
        %p1713 = pneg %p343
        %p1714 = pneg %p340
        %p1715 = pneg %p364
        %p1716 = pneg %p361
        %p1717 = pneg %p385
        %p1718 = pneg %p382
        %p1719 = pneg %p406
        %p1720 = pneg %p403
        %p1721 = pneg %p427
        %p1722 = pneg %p424
        %p1723 = pneg %p448
        %p1724 = pneg %p445
        %p1725 = pneg %p469
        %p1726 = pneg %p466
        %p1727 = pneg %p490
        %p1728 = pneg %p487
        %p1729 = pneg %p511
        %p1730 = pneg %p508
        %p1731 = pneg %p532
        %p1732 = pneg %p529
        %p1733 = pneg %p553
        %p1734 = pneg %p550
        %p1735 = pneg %p574
        %p1736 = pneg %p571
        %p1737 = pneg %p595
        %p1738 = pneg %p592
        %p1739 = pneg %p616
        %p1740 = pneg %p613
        %p1741 = pneg %p637
        %p1742 = pneg %p634
        %p1743 = pneg %p658
        %p1744 = pneg %p655
        %p1745 = pneg %p679
        %p1746 = pneg %p676
        %p1747 = pneg %p700
        %p1748 = pneg %p697
        %p1749 = pneg %p721
        %p1750 = pneg %p718
        %p1751 = pneg %p742
        %p1752 = pneg %p739
        %p1753 = pneg %p763
        %p1754 = pneg %p760
        %p1755 = pneg %p784
        %p1756 = pneg %p781
        %p1757 = pneg %p805
        %p1758 = pneg %p802
        %p1759 = pneg %p826
        %p1760 = pneg %p823
        %p1761 = pneg %p847
        %p1762 = pneg %p844
        %p1763 = pneg %p868
        %p1764 = pneg %p865
        %p1765 = pneg %p889
        %p1766 = pneg %p886
        %p1767 = pneg %p910
        %p1768 = pneg %p907
        %p1769 = pneg %p931
        %p1770 = pneg %p928
        %p1771 = pneg %p952
        %p1772 = pneg %p949
        %p1773 = pneg %p973
        %p1774 = pneg %p970
        %p1775 = pneg %p994
        %p1776 = pneg %p991
        %p1777 = pneg %p1015
        %p1778 = pneg %p1012
        %p1779 = pneg %p1036
        %p1780 = pneg %p1033
        %p1781 = pneg %p1057
        %p1782 = pneg %p1054
        %p1783 = pneg %p1078
        %p1784 = pneg %p1075
        %p1785 = pneg %p1099
        %p1786 = pneg %p1096
        %p1787 = pneg %p1120
        %p1788 = pneg %p1117
        %p1789 = pneg %p1141
        %p1790 = pneg %p1138
        %p1791 = pneg %p1162
        %p1792 = pneg %p1159
        %p1793 = pneg %p1183
        %p1794 = pneg %p1180
        %p1795 = pneg %p1209
        %p1796 = pneg %p1206
        %s1797 = sand.u32 %s1196, 1
        %s1798 = scalar_lea.sflag [#allocation4], %s1797
        %s1799 = sand.u32 %s1196, 1
        %s1800 = smul.addr %s1799, 64
        %s1801 = scalar_lea.vmem [#allocation40], %s1800
        %p1802 = scmp.lt.s32.totalorder %s128, 1
        %s1803 = scalar_select %p1802, %s128, 1
        %s1804 = smul.addr %s1803, 8
        %s1805 = smul.addr %s1804, 8
        %s1806 = scalar_lea.vmem %s1, %s1805
        %p1807 = scmp.lt.s32.totalorder %s128, 1
        %s1808 = scalar_select %p1807, %s128, 1
        %s1809 = smul.addr %s1808, 8
        %s1810 = smul.addr %s1809, 8
        %s1811 = scalar_lea.vmem %s3, %s1810
        %v1813 = vld [vmem:[%s1806] sm:$0xff]
        %v1814 = vld [vmem:[%s1806 + $0x8] sm:$0xff]
        %v1815 = vld [vmem:[%s1806 + $0x10] sm:$0xff]
        %v1816 = vld [vmem:[%s1806 + $0x18] sm:$0xff]
        %v1817 = vld [vmem:[%s1806 + $0x20] sm:$0xff]
        %v1818 = vld [vmem:[%s1806 + $0x28] sm:$0xff]
        %v1819 = vld [vmem:[%s1806 + $0x30] sm:$0xff]
        %v1820 = vld [vmem:[%s1806 + $0x38] sm:$0xff]
        %v1821 = vld [vmem:[%s1811] sm:$0xff]
        %v1822 = vld [vmem:[%s1811 + $0x8] sm:$0xff]
        %v1823 = vld [vmem:[%s1811 + $0x10] sm:$0xff]
        %v1824 = vld [vmem:[%s1811 + $0x18] sm:$0xff]
        %v1825 = vld [vmem:[%s1811 + $0x20] sm:$0xff]
        %v1826 = vld [vmem:[%s1811 + $0x28] sm:$0xff]
        %v1827 = vld [vmem:[%s1811 + $0x30] sm:$0xff]
        %v1828 = vld [vmem:[%s1811 + $0x38] sm:$0xff]
        %v1829 = vld [vmem:[%s5] sm:$0xff]
        %v1830 = vld [vmem:[%s5 + $0x8] sm:$0xff]
        %v1831 = vld [vmem:[%s5 + $0x10] sm:$0xff]
        %v1832 = vld [vmem:[%s5 + $0x18] sm:$0xff]
        %v1833 = vld [vmem:[%s5 + $0x20] sm:$0xff]
        %v1834 = vld [vmem:[%s5 + $0x28] sm:$0xff]
        %v1835 = vld [vmem:[%s5 + $0x30] sm:$0xff]
        %v1836 = vld [vmem:[%s5 + $0x38] sm:$0xff]
        %v1837 = vld [vmem:[%s7] sm:$0xff]
        %v1838 = vld [vmem:[%s7 + $0x8] sm:$0xff]
        %v1839 = vld [vmem:[%s7 + $0x10] sm:$0xff]
        %v1840 = vld [vmem:[%s7 + $0x18] sm:$0xff]
        %v1841 = vld [vmem:[%s7 + $0x20] sm:$0xff]
        %v1842 = vld [vmem:[%s7 + $0x28] sm:$0xff]
        %v1843 = vld [vmem:[%s7 + $0x30] sm:$0xff]
        %v1844 = vld [vmem:[%s7 + $0x38] sm:$0xff]
        %vm1845 = vcmask 261120
        %v1846 = vsel %vm1845, %v1813, 0.0
        %1847 = vadd.xlane.f32.xlu0 %v1846
        %v1848 = vpop.xlane.xlu0 %1847
        %v1849 = vsel %vm1845, %v1814, 0.0
        %1850 = vadd.xlane.f32.xlu0 %v1849
        %v1851 = vpop.xlane.xlu0 %1850
        %v1852 = vsel %vm1845, %v1815, 0.0
        %1853 = vadd.xlane.f32.xlu0 %v1852
        %v1854 = vpop.xlane.xlu0 %1853
        %v1855 = vsel %vm1845, %v1816, 0.0
        %1856 = vadd.xlane.f32.xlu0 %v1855
        %v1857 = vpop.xlane.xlu0 %1856
        %v1858 = vsel %vm1845, %v1817, 0.0
        %1859 = vadd.xlane.f32.xlu0 %v1858
        %v1860 = vpop.xlane.xlu0 %1859
        %v1861 = vsel %vm1845, %v1818, 0.0
        %1862 = vadd.xlane.f32.xlu0 %v1861
        %v1863 = vpop.xlane.xlu0 %1862
        %v1864 = vsel %vm1845, %v1819, 0.0
        %1865 = vadd.xlane.f32.xlu0 %v1864
        %v1866 = vpop.xlane.xlu0 %1865
        %v1867 = vsel %vm1845, %v1820, 0.0
        %1868 = vadd.xlane.f32.xlu0 %v1867
        %v1869 = vpop.xlane.xlu0 %1868
        %v1870 = vrcp.pop 32.0
        %v1871 = vmul.f32 %v1848, %v1870
        %v1872 = vmul.f32 %v1851, %v1870
        %v1873 = vmul.f32 %v1854, %v1870
        %v1874 = vmul.f32 %v1857, %v1870
        %v1875 = vmul.f32 %v1860, %v1870
        %v1876 = vmul.f32 %v1863, %v1870
        %v1877 = vmul.f32 %v1866, %v1870
        %v1878 = vmul.f32 %v1869, %v1870
        %v1879 = vsub.f32 %v1813, %v1871
        %v1880 = vsub.f32 %v1814, %v1872
        %v1881 = vsub.f32 %v1815, %v1873
        %v1882 = vsub.f32 %v1816, %v1874
        %v1883 = vsub.f32 %v1817, %v1875
        %v1884 = vsub.f32 %v1818, %v1876
        %v1885 = vsub.f32 %v1819, %v1877
        %v1886 = vsub.f32 %v1820, %v1878
        %v1887 = vmul.f32 %v1879, %v1879
        %v1888 = vmul.f32 %v1880, %v1880
        %v1889 = vmul.f32 %v1881, %v1881
        %v1890 = vmul.f32 %v1882, %v1882
        %v1891 = vmul.f32 %v1883, %v1883
        %v1892 = vmul.f32 %v1884, %v1884
        %v1893 = vmul.f32 %v1885, %v1885
        %v1894 = vmul.f32 %v1886, %v1886
        %v1895 = vsel %vm1845, %v1887, 0.0
        %1896 = vadd.xlane.f32.xlu0 %v1895
        %v1897 = vpop.xlane.xlu0 %1896
        %v1898 = vsel %vm1845, %v1888, 0.0
        %1899 = vadd.xlane.f32.xlu0 %v1898
        %v1900 = vpop.xlane.xlu0 %1899
        %v1901 = vsel %vm1845, %v1889, 0.0
        %1902 = vadd.xlane.f32.xlu0 %v1901
        %v1903 = vpop.xlane.xlu0 %1902
        %v1904 = vsel %vm1845, %v1890, 0.0
        %1905 = vadd.xlane.f32.xlu0 %v1904
        %v1906 = vpop.xlane.xlu0 %1905
        %v1907 = vsel %vm1845, %v1891, 0.0
        %1908 = vadd.xlane.f32.xlu0 %v1907
        %v1909 = vpop.xlane.xlu0 %1908
        %v1910 = vsel %vm1845, %v1892, 0.0
        %1911 = vadd.xlane.f32.xlu0 %v1910
        %v1912 = vpop.xlane.xlu0 %1911
        %v1913 = vsel %vm1845, %v1893, 0.0
        %1914 = vadd.xlane.f32.xlu0 %v1913
        %v1915 = vpop.xlane.xlu0 %1914
        %v1916 = vsel %vm1845, %v1894, 0.0
        %1917 = vadd.xlane.f32.xlu0 %v1916
        %v1918 = vpop.xlane.xlu0 %1917
        %v1919 = vmul.f32 %v1897, %v1870
        %v1920 = vmul.f32 %v1900, %v1870
        %v1921 = vmul.f32 %v1903, %v1870
        %v1922 = vmul.f32 %v1906, %v1870
        %v1923 = vmul.f32 %v1909, %v1870
        %v1924 = vmul.f32 %v1912, %v1870
        %v1925 = vmul.f32 %v1915, %v1870
        %v1926 = vmul.f32 %v1918, %v1870
        %v1927 = vadd.f32 %v1919, 1e-05
        %v1928 = vadd.f32 %v1920, 1e-05
        %v1929 = vadd.f32 %v1921, 1e-05
        %v1930 = vadd.f32 %v1922, 1e-05
        %v1931 = vadd.f32 %v1923, 1e-05
        %v1932 = vadd.f32 %v1924, 1e-05
        %v1933 = vadd.f32 %v1925, 1e-05
        %v1934 = vadd.f32 %v1926, 1e-05
        %v1935 = vrsqrt.pop %v1927
        %v1936 = vrsqrt.pop %v1928
        %v1937 = vrsqrt.pop %v1929
        %v1938 = vrsqrt.pop %v1930
        %v1939 = vrsqrt.pop %v1931
        %v1940 = vrsqrt.pop %v1932
        %v1941 = vrsqrt.pop %v1933
        %v1942 = vrsqrt.pop %v1934
        %v1943 = vmul.f32 %v1879, %v1935
        %v1944 = vmul.f32 %v1880, %v1936
        %v1945 = vmul.f32 %v1881, %v1937
        %v1946 = vmul.f32 %v1882, %v1938
        %v1947 = vmul.f32 %v1883, %v1939
        %v1948 = vmul.f32 %v1884, %v1940
        %v1949 = vmul.f32 %v1885, %v1941
        %v1950 = vmul.f32 %v1886, %v1942
        %v1951 = vpack.c.bf16 %v1944, %v1943
        %v1952 = vpack.c.bf16 %v1946, %v1945
        %v1953 = vpack.c.bf16 %v1948, %v1947
        %v1954 = vpack.c.bf16 %v1950, %v1949
        %v1955 = vld [vmem:[%s9] sm:$0xf]
        %v1956 = vld [vmem:[%s9 + $0x4] sm:$0xf]
        %v1957 = vld [vmem:[%s9 + $0x8] sm:$0xf]
        %v1958 = vld [vmem:[%s9 + $0xc] sm:$0xf]
        %v1959 = vld [vmem:[#allocation2] sm:$0x1]
        %v1960 = vld [vmem:[%s13] sm:$0xf]
        %v1961 = vld [vmem:[%s13 + $0x4] sm:$0xf]
        %v1962 = vld [vmem:[%s13 + $0x8] sm:$0xf]
        %v1963 = vld [vmem:[%s13 + $0xc] sm:$0xf]
        %v1964 = vld [vmem:[#allocation5] sm:$0x1]
        %v1965 = vld [vmem:[%s17] sm:$0xf]
        %v1966 = vld [vmem:[%s17 + $0x4] sm:$0xf]
        %v1967 = vld [vmem:[%s17 + $0x8] sm:$0xf]
        %v1968 = vld [vmem:[%s17 + $0xc] sm:$0xf]
        %v1969 = vld [vmem:[#allocation7] sm:$0x1]
        %v1970 = vld [vmem:[%s21] sm:$0xf]
        %v1971 = vld [vmem:[%s21 + $0x4] sm:$0xf]
        %v1972 = vld [vmem:[%s21 + $0x8] sm:$0xf]
        %v1973 = vld [vmem:[%s21 + $0xc] sm:$0xf]
        %v1974 = vld [vmem:[#allocation8] sm:$0x1]
        %v1975 = vld [vmem:[%s25] sm:$0xf]
        %v1976 = vld [vmem:[%s25 + $0x4] sm:$0xf]
        %v1977 = vld [vmem:[%s25 + $0x8] sm:$0xf]
        %v1978 = vld [vmem:[%s25 + $0xc] sm:$0xf]
        %v1979 = vld [vmem:[%s25 + $0x10] sm:$0xf]
        %v1980 = vld [vmem:[%s25 + $0x14] sm:$0xf]
        %v1981 = vld [vmem:[%s25 + $0x18] sm:$0xf]
        %v1982 = vld [vmem:[%s25 + $0x1c] sm:$0xf]
        %v1983 = vld [vmem:[#allocation10] sm:$0x1]
        %v1984 = vsel %vm1845, %v1821, 0.0
        %1985 = vadd.xlane.f32.xlu0 %v1984
        %v1986 = vpop.xlane.xlu0 %1985
        %v1987 = vsel %vm1845, %v1822, 0.0
        %1988 = vadd.xlane.f32.xlu0 %v1987
        %v1989 = vpop.xlane.xlu0 %1988
        %v1990 = vsel %vm1845, %v1823, 0.0
        %1991 = vadd.xlane.f32.xlu0 %v1990
        %v1992 = vpop.xlane.xlu0 %1991
        %v1993 = vsel %vm1845, %v1824, 0.0
        %1994 = vadd.xlane.f32.xlu0 %v1993
        %v1995 = vpop.xlane.xlu0 %1994
        %v1996 = vsel %vm1845, %v1825, 0.0
        %1997 = vadd.xlane.f32.xlu0 %v1996
        %v1998 = vpop.xlane.xlu0 %1997
        %v1999 = vsel %vm1845, %v1826, 0.0
        %2000 = vadd.xlane.f32.xlu0 %v1999
        %v2001 = vpop.xlane.xlu0 %2000
        %v2002 = vsel %vm1845, %v1827, 0.0
        %2003 = vadd.xlane.f32.xlu0 %v2002
        %v2004 = vpop.xlane.xlu0 %2003
        %v2005 = vsel %vm1845, %v1828, 0.0
        %2006 = vadd.xlane.f32.xlu0 %v2005
        %v2007 = vpop.xlane.xlu0 %2006
        %v2008 = vmul.f32 %v1986, %v1870
        %v2009 = vmul.f32 %v1989, %v1870
        %v2010 = vmul.f32 %v1992, %v1870
        %v2011 = vmul.f32 %v1995, %v1870
        %v2012 = vmul.f32 %v1998, %v1870
        %v2013 = vmul.f32 %v2001, %v1870
        %v2014 = vmul.f32 %v2004, %v1870
        %v2015 = vmul.f32 %v2007, %v1870
        %v2016 = vsub.f32 %v1821, %v2008
        %v2017 = vsub.f32 %v1822, %v2009
        %v2018 = vsub.f32 %v1823, %v2010
        %v2019 = vsub.f32 %v1824, %v2011
        %v2020 = vsub.f32 %v1825, %v2012
        %v2021 = vsub.f32 %v1826, %v2013
        %v2022 = vsub.f32 %v1827, %v2014
        %v2023 = vsub.f32 %v1828, %v2015
        %v2024 = vmul.f32 %v2016, %v2016
        %v2025 = vmul.f32 %v2017, %v2017
        %v2026 = vmul.f32 %v2018, %v2018
        %v2027 = vmul.f32 %v2019, %v2019
        %v2028 = vmul.f32 %v2020, %v2020
        %v2029 = vmul.f32 %v2021, %v2021
        %v2030 = vmul.f32 %v2022, %v2022
        %v2031 = vmul.f32 %v2023, %v2023
        %v2032 = vsel %vm1845, %v2024, 0.0
        %2033 = vadd.xlane.f32.xlu0 %v2032
        %v2034 = vpop.xlane.xlu0 %2033
        %v2035 = vsel %vm1845, %v2025, 0.0
        %2036 = vadd.xlane.f32.xlu0 %v2035
        %v2037 = vpop.xlane.xlu0 %2036
        %v2038 = vsel %vm1845, %v2026, 0.0
        %2039 = vadd.xlane.f32.xlu0 %v2038
        %v2040 = vpop.xlane.xlu0 %2039
        %v2041 = vsel %vm1845, %v2027, 0.0
        %2042 = vadd.xlane.f32.xlu0 %v2041
        %v2043 = vpop.xlane.xlu0 %2042
        %v2044 = vsel %vm1845, %v2028, 0.0
        %2045 = vadd.xlane.f32.xlu0 %v2044
        %v2046 = vpop.xlane.xlu0 %2045
        %v2047 = vsel %vm1845, %v2029, 0.0
        %2048 = vadd.xlane.f32.xlu0 %v2047
        %v2049 = vpop.xlane.xlu0 %2048
        %v2050 = vsel %vm1845, %v2030, 0.0
        %2051 = vadd.xlane.f32.xlu0 %v2050
        %v2052 = vpop.xlane.xlu0 %2051
        %v2053 = vsel %vm1845, %v2031, 0.0
        %2054 = vadd.xlane.f32.xlu0 %v2053
        %v2055 = vpop.xlane.xlu0 %2054
        %v2056 = vmul.f32 %v2034, %v1870
        %v2057 = vmul.f32 %v2037, %v1870
        %v2058 = vmul.f32 %v2040, %v1870
        %v2059 = vmul.f32 %v2043, %v1870
        %v2060 = vmul.f32 %v2046, %v1870
        %v2061 = vmul.f32 %v2049, %v1870
        %v2062 = vmul.f32 %v2052, %v1870
        %v2063 = vmul.f32 %v2055, %v1870
        %v2064 = vadd.f32 %v2056, 1e-05
        %v2065 = vadd.f32 %v2057, 1e-05
        %v2066 = vadd.f32 %v2058, 1e-05
        %v2067 = vadd.f32 %v2059, 1e-05
        %v2068 = vadd.f32 %v2060, 1e-05
        %v2069 = vadd.f32 %v2061, 1e-05
        %v2070 = vadd.f32 %v2062, 1e-05
        %v2071 = vadd.f32 %v2063, 1e-05
        %v2072 = vrsqrt.pop %v2064
        %v2073 = vrsqrt.pop %v2065
        %v2074 = vrsqrt.pop %v2066
        %v2075 = vrsqrt.pop %v2067
        %v2076 = vrsqrt.pop %v2068
        %v2077 = vrsqrt.pop %v2069
        %v2078 = vrsqrt.pop %v2070
        %v2079 = vrsqrt.pop %v2071
        %v2080 = vmul.f32 %v2016, %v2072
        %v2081 = vmul.f32 %v2017, %v2073
        %v2082 = vmul.f32 %v2018, %v2074
        %v2083 = vmul.f32 %v2019, %v2075
        %v2084 = vmul.f32 %v2020, %v2076
        %v2085 = vmul.f32 %v2021, %v2077
        %v2086 = vmul.f32 %v2022, %v2078
        %v2087 = vmul.f32 %v2023, %v2079
        %v2088 = vpack.c.bf16 %v2081, %v2080
        %v2089 = vpack.c.bf16 %v2083, %v2082
        %v2090 = vpack.c.bf16 %v2085, %v2084
        %v2091 = vpack.c.bf16 %v2087, %v2086
        %v2093 = vlaneseq
        %v2094 = vshrl.u32 %v2093, 7
        %v2095 = vsub.s32 0, %v2094
        %v2096 = vrot.slane %v1959, %v2095
        %v2102 = vunpack.c.l.b16 %v1955
        %v2103 = vunpack.c.l.b16 %v1956
        %v2104 = vunpack.c.l.b16 %v1957
        %v2105 = vunpack.c.l.b16 %v1958
        %v2106 = vpack.c.b16 %v2103, %v2102
        %v2107 = vpack.c.b16 %v2105, %v2104
        %v2111 = vsel %vm1845, %v2088, 0
        %v2114 = vsel %vm1845, %v2089, 0
        %v2117 = vsel %vm1845, %v2090, 0
        %v2120 = vsel %vm1845, %v2091, 0
        %2122 = vmatprep.subr.bf16.mxu0 0
        %2123 = vmatpush1.bf16.msra.mxu0 %v2106
        %2124 = vmatprep.subr.bf16.mxu0 0
        %2125 = vmatpush1.bf16.msra.mxu0 %v2107
        %2126 = vmatprep.subr.bf16.mxu0 0
        %2127 = vmatpush1.bf16.msra.mxu0 0
        %2128 = vmatprep.subr.bf16.mxu0 0
        %2129 = vmatpush1.bf16.msra.mxu0 0
        %2130 = vmatprep.subr.bf16.mxu0 0
        %2131 = vmatpush1.bf16.msra.mxu0 0
        %2132 = vmatprep.subr.bf16.mxu0 0
        %2133 = vmatpush1.bf16.msra.mxu0 0
        %2134 = vmatprep.subr.bf16.mxu0 0
        %2135 = vmatpush1.bf16.msra.mxu0 0
        %2136 = vmatprep.subr.bf16.mxu0 0
        %2137 = vmatpush1.bf16.msra.mxu0 0
        %2138 = vmatprep.subr.bf16.mxu0 0
        %2139 = vmatpush1.bf16.msra.mxu0 0
        %2140 = vmatprep.subr.bf16.mxu0 0
        %2141 = vmatpush1.bf16.msra.mxu0 0
        %2142 = vmatprep.subr.bf16.mxu0 0
        %2143 = vmatpush1.bf16.msra.mxu0 0
        %2144 = vmatprep.subr.bf16.mxu0 0
        %2145 = vmatpush1.bf16.msra.mxu0 0
        %2146 = vmatprep.subr.bf16.mxu0 0
        %2147 = vmatpush1.bf16.msra.mxu0 0
        %2148 = vmatprep.subr.bf16.mxu0 0
        %2149 = vmatpush1.bf16.msra.mxu0 0
        %2150 = vmatprep.subr.bf16.mxu0 0
        %2151 = vmatpush1.bf16.msra.mxu0 0
        %2152 = vmatprep.subr.bf16.mxu0 0
        %2153 = vmatpush1.bf16.msra.mxu0 0
        %2154 = vmatprep.mubr.bf16.mxu0 0
        %2155 = vmatmul.mubr.bf16.gmra.mrb[0].mxu0 %v2111
        %v2156 = vpop.f32.mrb[0].mxu0
        %v2157 = vadd.f32 %v2096, %v2156
        %v2158 = vpop.f32.mrb[0].mxu0
        %v2159 = vpop.f32.mrb[0].mxu0
        %v2160 = vadd.f32 %v2096, %v2159
        %v2161 = vpop.f32.mrb[0].mxu0
        %2162 = vmatprep.mubr.bf16.mxu0 0
        %2163 = vmatmul.mubr.bf16.gmra.mrb[0].mxu0 %v2114
        %v2164 = vpop.f32.mrb[0].mxu0
        %v2165 = vadd.f32 %v2096, %v2164
        %v2166 = vpop.f32.mrb[0].mxu0
        %v2167 = vpop.f32.mrb[0].mxu0
        %v2168 = vadd.f32 %v2096, %v2167
        %v2169 = vpop.f32.mrb[0].mxu0
        %2170 = vmatprep.mubr.bf16.mxu0 0
        %2171 = vmatmul.mubr.bf16.gmra.mrb[0].mxu0 %v2117
        %v2172 = vpop.f32.mrb[0].mxu0
        %v2173 = vadd.f32 %v2096, %v2172
        %v2174 = vpop.f32.mrb[0].mxu0
        %v2175 = vpop.f32.mrb[0].mxu0
        %v2176 = vadd.f32 %v2096, %v2175
        %v2177 = vpop.f32.mrb[0].mxu0
        %2178 = vmatprep.mubr.bf16.mxu0 0
        %2179 = vmatmul.mubr.bf16.gmra.mrb[0].mxu0 %v2120
        %v2180 = vpop.f32.mrb[0].mxu0
        %v2181 = vadd.f32 %v2096, %v2180
        %v2182 = vpop.f32.mrb[0].mxu0
        %v2183 = vpop.f32.mrb[0].mxu0
        %v2184 = vadd.f32 %v2096, %v2183
        %v2185 = vpop.f32.mrb[0].mxu0
        %2186 = vdwg.mxu0
        %v2188 = vlaneseq
        %v2189 = vshrl.u32 %v2188, 7
        %v2190 = vsub.s32 0, %v2189
        %v2191 = vrot.slane %v1964, %v2190
        %v2197 = vunpack.c.l.b16 %v1960
        %v2198 = vunpack.c.l.b16 %v1961
        %v2199 = vunpack.c.l.b16 %v1962
        %v2200 = vunpack.c.l.b16 %v1963
        %v2201 = vpack.c.b16 %v2198, %v2197
        %v2202 = vpack.c.b16 %v2200, %v2199
        %v2206 = vsel %vm1845, %v1951, 0
        %v2209 = vsel %vm1845, %v1952, 0
        %v2212 = vsel %vm1845, %v1953, 0
        %v2215 = vsel %vm1845, %v1954, 0
        %2217 = vmatprep.subr.bf16.mxu0 0
        %2218 = vmatpush1.bf16.msra.mxu0 %v2201
        %2219 = vmatprep.subr.bf16.mxu0 0
        %2220 = vmatpush1.bf16.msra.mxu0 %v2202
        %2221 = vmatprep.subr.bf16.mxu0 0
        %2222 = vmatpush1.bf16.msra.mxu0 0
        %2223 = vmatprep.subr.bf16.mxu0 0
        %2224 = vmatpush1.bf16.msra.mxu0 0
        %2225 = vmatprep.subr.bf16.mxu0 0
        %2226 = vmatpush1.bf16.msra.mxu0 0
        %2227 = vmatprep.subr.bf16.mxu0 0
        %2228 = vmatpush1.bf16.msra.mxu0 0
        %2229 = vmatprep.subr.bf16.mxu0 0
        %2230 = vmatpush1.bf16.msra.mxu0 0
        %2231 = vmatprep.subr.bf16.mxu0 0
        %2232 = vmatpush1.bf16.msra.mxu0 0
        %2233 = vmatprep.subr.bf16.mxu0 0
        %2234 = vmatpush1.bf16.msra.mxu0 0
        %2235 = vmatprep.subr.bf16.mxu0 0
        %2236 = vmatpush1.bf16.msra.mxu0 0
        %2237 = vmatprep.subr.bf16.mxu0 0
        %2238 = vmatpush1.bf16.msra.mxu0 0
        %2239 = vmatprep.subr.bf16.mxu0 0
        %2240 = vmatpush1.bf16.msra.mxu0 0
        %2241 = vmatprep.subr.bf16.mxu0 0
        %2242 = vmatpush1.bf16.msra.mxu0 0
        %2243 = vmatprep.subr.bf16.mxu0 0
        %2244 = vmatpush1.bf16.msra.mxu0 0
        %2245 = vmatprep.subr.bf16.mxu0 0
        %2246 = vmatpush1.bf16.msra.mxu0 0
        %2247 = vmatprep.subr.bf16.mxu0 0
        %2248 = vmatpush1.bf16.msra.mxu0 0
        %2249 = vmatprep.mubr.bf16.mxu0 0
        %2250 = vmatmul.mubr.bf16.gmra.mrb[0].mxu0 %v2206
        %v2251 = vpop.f32.mrb[0].mxu0
        %v2252 = vadd.f32 %v2191, %v2251
        %v2253 = vpop.f32.mrb[0].mxu0
        %v2254 = vpop.f32.mrb[0].mxu0
        %v2255 = vadd.f32 %v2191, %v2254
        %v2256 = vpop.f32.mrb[0].mxu0
        %2257 = vmatprep.mubr.bf16.mxu0 0
        %2258 = vmatmul.mubr.bf16.gmra.mrb[0].mxu0 %v2209
        %v2259 = vpop.f32.mrb[0].mxu0
        %v2260 = vadd.f32 %v2191, %v2259
        %v2261 = vpop.f32.mrb[0].mxu0
        %v2262 = vpop.f32.mrb[0].mxu0
        %v2263 = vadd.f32 %v2191, %v2262
        %v2264 = vpop.f32.mrb[0].mxu0
        %2265 = vmatprep.mubr.bf16.mxu0 0
        %2266 = vmatmul.mubr.bf16.gmra.mrb[0].mxu0 %v2212
        %v2267 = vpop.f32.mrb[0].mxu0
        %v2268 = vadd.f32 %v2191, %v2267
        %v2269 = vpop.f32.mrb[0].mxu0
        %v2270 = vpop.f32.mrb[0].mxu0
        %v2271 = vadd.f32 %v2191, %v2270
        %v2272 = vpop.f32.mrb[0].mxu0
        %2273 = vmatprep.mubr.bf16.mxu0 0
        %2274 = vmatmul.mubr.bf16.gmra.mrb[0].mxu0 %v2215
        %v2275 = vpop.f32.mrb[0].mxu0
        %v2276 = vadd.f32 %v2191, %v2275
        %v2277 = vpop.f32.mrb[0].mxu0
        %v2278 = vpop.f32.mrb[0].mxu0
        %v2279 = vadd.f32 %v2191, %v2278
        %v2280 = vpop.f32.mrb[0].mxu0
        %2281 = vdwg.mxu0
        %v2282 = vpack.c.bf16 %v2160, %v2157
        %v2283 = vpack.c.bf16 %v2168, %v2165
        %v2284 = vpack.c.bf16 %v2176, %v2173
        %v2285 = vpack.c.bf16 %v2184, %v2181
        %v2286 = vpack.c.bf16 %v2255, %v2252
        %v2287 = vpack.c.bf16 %v2263, %v2260
        %v2288 = vpack.c.bf16 %v2271, %v2268
        %v2289 = vpack.c.bf16 %v2279, %v2276
        %vm2290 = vcmask 130048
        %v2292 = vsel %vm2290, %v2282, 0
        %v2295 = vsel %vm2290, %v2283, 0
        %v2298 = vsel %vm2290, %v2284, 0
        %v2301 = vsel %vm2290, %v2285, 0
        %v2304 = vsel %vm2290, %v2286, 0
        %v2307 = vsel %vm2290, %v2287, 0
        %v2310 = vsel %vm2290, %v2288, 0
        %v2313 = vsel %vm2290, %v2289, 0
        %2315 = vmatprep.subr.bf16.mxu0 0
        %2316 = vmatpush1.bf16.xpose.msra.mxu0 %v2304
        %2317 = vmatprep.subr.bf16.mxu0 0
        %2318 = vmatpush1.bf16.xpose.msra.mxu0 %v2307
        %2319 = vmatprep.subr.bf16.mxu0 0
        %2320 = vmatpush1.bf16.xpose.msra.mxu0 %v2310
        %2321 = vmatprep.subr.bf16.mxu0 0
        %2322 = vmatpush1.bf16.xpose.msra.mxu0 %v2313
        %2323 = vmatprep.subr.bf16.mxu0 0
        %2324 = vmatpush1.bf16.xpose.msra.mxu0 0
        %2325 = vmatprep.subr.bf16.mxu0 0
        %2326 = vmatpush1.bf16.xpose.msra.mxu0 0
        %2327 = vmatprep.subr.bf16.mxu0 0
        %2328 = vmatpush1.bf16.xpose.msra.mxu0 0
        %2329 = vmatprep.subr.bf16.mxu0 0
        %2330 = vmatpush1.bf16.xpose.msra.mxu0 0
        %2331 = vmatprep.subr.bf16.mxu0 0
        %2332 = vmatpush1.bf16.xpose.msra.mxu0 0
        %2333 = vmatprep.subr.bf16.mxu0 0
        %2334 = vmatpush1.bf16.xpose.msra.mxu0 0
        %2335 = vmatprep.subr.bf16.mxu0 0
        %2336 = vmatpush1.bf16.xpose.msra.mxu0 0
        %2337 = vmatprep.subr.bf16.mxu0 0
        %2338 = vmatpush1.bf16.xpose.msra.mxu0 0
        %2339 = vmatprep.subr.bf16.mxu0 0
        %2340 = vmatpush1.bf16.xpose.msra.mxu0 0
        %2341 = vmatprep.subr.bf16.mxu0 0
        %2342 = vmatpush1.bf16.xpose.msra.mxu0 0
        %2343 = vmatprep.subr.bf16.mxu0 0
        %2344 = vmatpush1.bf16.xpose.msra.mxu0 0
        %2345 = vmatprep.subr.bf16.mxu0 0
        %2346 = vmatpush1.bf16.xpose.msra.mxu0 0
        %2347 = vmatprep.mubr.bf16.mxu0 0
        %2348 = vmatmul.mubr.bf16.gmra.mrb[0].mxu0 %v2292
        %v2349 = vpop.f32.mrb[0].mxu0
        %v2350 = vadd.f32 %v1829, %v2349
        %v2351 = vpop.f32.mrb[0].mxu0
        %v2352 = vpop.f32.mrb[0].mxu0
        %v2353 = vadd.f32 %v1830, %v2352
        %v2354 = vpop.f32.mrb[0].mxu0
        %2355 = vmatprep.mubr.bf16.mxu0 0
        %2356 = vmatmul.mubr.bf16.gmra.mrb[0].mxu0 %v2295
        %v2357 = vpop.f32.mrb[0].mxu0
        %v2358 = vadd.f32 %v1831, %v2357
        %v2359 = vpop.f32.mrb[0].mxu0
        %v2360 = vpop.f32.mrb[0].mxu0
        %v2361 = vadd.f32 %v1832, %v2360
        %v2362 = vpop.f32.mrb[0].mxu0
        %2363 = vmatprep.mubr.bf16.mxu0 0
        %2364 = vmatmul.mubr.bf16.gmra.mrb[0].mxu0 %v2298
        %v2365 = vpop.f32.mrb[0].mxu0
        %v2366 = vadd.f32 %v1833, %v2365
        %v2367 = vpop.f32.mrb[0].mxu0
        %v2368 = vpop.f32.mrb[0].mxu0
        %v2369 = vadd.f32 %v1834, %v2368
        %v2370 = vpop.f32.mrb[0].mxu0
        %2371 = vmatprep.mubr.bf16.mxu0 0
        %2372 = vmatmul.mubr.bf16.gmra.mrb[0].mxu0 %v2301
        %v2373 = vpop.f32.mrb[0].mxu0
        %v2374 = vadd.f32 %v1835, %v2373
        %v2375 = vpop.f32.mrb[0].mxu0
        %v2376 = vpop.f32.mrb[0].mxu0
        %v2377 = vadd.f32 %v1836, %v2376
        %v2378 = vpop.f32.mrb[0].mxu0
        %2379 = vdwg.mxu0
        %vm2380 = vcmask 523264
        %v2381 = vsel %vm2380, %v2350, -inf
        %2382 = vmax.xlane.f32.xlu0 %v2381
        %v2383 = vpop.xlane.xlu0 %2382
        %v2384 = vsel %vm2380, %v2353, -inf
        %2385 = vmax.xlane.f32.xlu0 %v2384
        %v2386 = vpop.xlane.xlu0 %2385
        %v2387 = vsel %vm2380, %v2358, -inf
        %2388 = vmax.xlane.f32.xlu0 %v2387
        %v2389 = vpop.xlane.xlu0 %2388
        %v2390 = vsel %vm2380, %v2361, -inf
        %2391 = vmax.xlane.f32.xlu0 %v2390
        %v2392 = vpop.xlane.xlu0 %2391
        %v2393 = vsel %vm2380, %v2366, -inf
        %2394 = vmax.xlane.f32.xlu0 %v2393
        %v2395 = vpop.xlane.xlu0 %2394
        %v2396 = vsel %vm2380, %v2369, -inf
        %2397 = vmax.xlane.f32.xlu0 %v2396
        %v2398 = vpop.xlane.xlu0 %2397
        %v2399 = vsel %vm2380, %v2374, -inf
        %2400 = vmax.xlane.f32.xlu0 %v2399
        %v2401 = vpop.xlane.xlu0 %2400
        %v2402 = vsel %vm2380, %v2377, -inf
        %2403 = vmax.xlane.f32.xlu0 %v2402
        %v2404 = vpop.xlane.xlu0 %2403
        %v2405 = vsub.f32 %v2350, %v2383
        %v2406 = vsub.f32 %v2353, %v2386
        %v2407 = vsub.f32 %v2358, %v2389
        %v2408 = vsub.f32 %v2361, %v2392
        %v2409 = vsub.f32 %v2366, %v2395
        %v2410 = vsub.f32 %v2369, %v2398
        %v2411 = vsub.f32 %v2374, %v2401
        %v2412 = vsub.f32 %v2377, %v2404
        %v2413 = vmul.f32 %v2405, 1.442695
        %v2414 = vpow.pop %v2413
        %v2415 = vmul.f32 %v2406, 1.442695
        %v2416 = vpow.pop %v2415
        %v2417 = vmul.f32 %v2407, 1.442695
        %v2418 = vpow.pop %v2417
        %v2419 = vmul.f32 %v2408, 1.442695
        %v2420 = vpow.pop %v2419
        %v2421 = vmul.f32 %v2409, 1.442695
        %v2422 = vpow.pop %v2421
        %v2423 = vmul.f32 %v2410, 1.442695
        %v2424 = vpow.pop %v2423
        %v2425 = vmul.f32 %v2411, 1.442695
        %v2426 = vpow.pop %v2425
        %v2427 = vmul.f32 %v2412, 1.442695
        %v2428 = vpow.pop %v2427
        %v2429 = vsel %vm2380, %v2414, 0.0
        %2430 = vadd.xlane.f32.xlu0 %v2429
        %v2431 = vpop.xlane.xlu0 %2430
        %v2432 = vsel %vm2380, %v2416, 0.0
        %2433 = vadd.xlane.f32.xlu0 %v2432
        %v2434 = vpop.xlane.xlu0 %2433
        %v2435 = vsel %vm2380, %v2418, 0.0
        %2436 = vadd.xlane.f32.xlu0 %v2435
        %v2437 = vpop.xlane.xlu0 %2436
        %v2438 = vsel %vm2380, %v2420, 0.0
        %2439 = vadd.xlane.f32.xlu0 %v2438
        %v2440 = vpop.xlane.xlu0 %2439
        %v2441 = vsel %vm2380, %v2422, 0.0
        %2442 = vadd.xlane.f32.xlu0 %v2441
        %v2443 = vpop.xlane.xlu0 %2442
        %v2444 = vsel %vm2380, %v2424, 0.0
        %2445 = vadd.xlane.f32.xlu0 %v2444
        %v2446 = vpop.xlane.xlu0 %2445
        %v2447 = vsel %vm2380, %v2426, 0.0
        %2448 = vadd.xlane.f32.xlu0 %v2447
        %v2449 = vpop.xlane.xlu0 %2448
        %v2450 = vsel %vm2380, %v2428, 0.0
        %2451 = vadd.xlane.f32.xlu0 %v2450
        %v2452 = vpop.xlane.xlu0 %2451
        %v2453 = vrcp.pop %v2431
        %v2454 = vrcp.pop %v2434
        %v2455 = vrcp.pop %v2437
        %v2456 = vrcp.pop %v2440
        %v2457 = vrcp.pop %v2443
        %v2458 = vrcp.pop %v2446
        %v2459 = vrcp.pop %v2449
        %v2460 = vrcp.pop %v2452
        %v2461 = vmul.f32 %v2414, %v2453
        %v2462 = vmul.f32 %v2416, %v2454
        %v2463 = vmul.f32 %v2418, %v2455
        %v2464 = vmul.f32 %v2420, %v2456
        %v2465 = vmul.f32 %v2422, %v2457
        %v2466 = vmul.f32 %v2424, %v2458
        %v2467 = vmul.f32 %v2426, %v2459
        %v2468 = vmul.f32 %v2428, %v2460
        %v2469 = vpack.c.bf16 %v2462, %v2461
        %v2470 = vpack.c.bf16 %v2464, %v2463
        %v2471 = vpack.c.bf16 %v2466, %v2465
        %v2472 = vpack.c.bf16 %v2468, %v2467
        %2477 = vrot.lane.b32.xlu0 %v2286, 96
        %v2478 = vpop.permute.xlu0 %2477
        %2479 = vrot.lane.b32.xlu0 %v2287, 96
        %v2480 = vpop.permute.xlu0 %2479
        %2481 = vrot.lane.b32.xlu0 %v2288, 96
        %v2482 = vpop.permute.xlu0 %2481
        %2483 = vrot.lane.b32.xlu0 %v2289, 96
        %v2484 = vpop.permute.xlu0 %2483
        %v2490 = vsel %vm2380, %v2469, 0
        %v2493 = vsel %vm2380, %v2470, 0
        %v2496 = vsel %vm2380, %v2471, 0
        %v2499 = vsel %vm2380, %v2472, 0
        %2501 = vmatprep.subr.bf16.mxu0 0
        %2502 = vmatpush1.bf16.msra.mxu0 %v2478
        %2503 = vmatprep.subr.bf16.mxu0 0
        %2504 = vmatpush1.bf16.msra.mxu0 %v2480
        %2505 = vmatprep.subr.bf16.mxu0 0
        %2506 = vmatpush1.bf16.msra.mxu0 %v2482
        %2507 = vmatprep.subr.bf16.mxu0 0
        %2508 = vmatpush1.bf16.msra.mxu0 %v2484
        %2509 = vmatprep.subr.bf16.mxu0 0
        %2510 = vmatpush1.bf16.msra.mxu0 0
        %2511 = vmatprep.subr.bf16.mxu0 0
        %2512 = vmatpush1.bf16.msra.mxu0 0
        %2513 = vmatprep.subr.bf16.mxu0 0
        %2514 = vmatpush1.bf16.msra.mxu0 0
        %2515 = vmatprep.subr.bf16.mxu0 0
        %2516 = vmatpush1.bf16.msra.mxu0 0
        %2517 = vmatprep.subr.bf16.mxu0 0
        %2518 = vmatpush1.bf16.msra.mxu0 0
        %2519 = vmatprep.subr.bf16.mxu0 0
        %2520 = vmatpush1.bf16.msra.mxu0 0
        %2521 = vmatprep.subr.bf16.mxu0 0
        %2522 = vmatpush1.bf16.msra.mxu0 0
        %2523 = vmatprep.subr.bf16.mxu0 0
        %2524 = vmatpush1.bf16.msra.mxu0 0
        %2525 = vmatprep.subr.bf16.mxu0 0
        %2526 = vmatpush1.bf16.msra.mxu0 0
        %2527 = vmatprep.subr.bf16.mxu0 0
        %2528 = vmatpush1.bf16.msra.mxu0 0
        %2529 = vmatprep.subr.bf16.mxu0 0
        %2530 = vmatpush1.bf16.msra.mxu0 0
        %2531 = vmatprep.subr.bf16.mxu0 0
        %2532 = vmatpush1.bf16.msra.mxu0 0
        %2533 = vmatprep.mubr.bf16.mxu0 0
        %2534 = vmatmul.mubr.bf16.gmra.mrb[0].mxu0 %v2490
        %v2535 = vpop.f32.mrb[0].mxu0
        %v2536 = vadd.f32 0.0, %v2535
        %v2537 = vpop.f32.mrb[0].mxu0
        %v2538 = vpop.f32.mrb[0].mxu0
        %v2539 = vadd.f32 0.0, %v2538
        %v2540 = vpop.f32.mrb[0].mxu0
        %2541 = vmatprep.mubr.bf16.mxu0 0
        %2542 = vmatmul.mubr.bf16.gmra.mrb[0].mxu0 %v2493
        %v2543 = vpop.f32.mrb[0].mxu0
        %v2544 = vadd.f32 0.0, %v2543
        %v2545 = vpop.f32.mrb[0].mxu0
        %v2546 = vpop.f32.mrb[0].mxu0
        %v2547 = vadd.f32 0.0, %v2546
        %v2548 = vpop.f32.mrb[0].mxu0
        %2549 = vmatprep.mubr.bf16.mxu0 0
        %2550 = vmatmul.mubr.bf16.gmra.mrb[0].mxu0 %v2496
        %v2551 = vpop.f32.mrb[0].mxu0
        %v2552 = vadd.f32 0.0, %v2551
        %v2553 = vpop.f32.mrb[0].mxu0
        %v2554 = vpop.f32.mrb[0].mxu0
        %v2555 = vadd.f32 0.0, %v2554
        %v2556 = vpop.f32.mrb[0].mxu0
        %2557 = vmatprep.mubr.bf16.mxu0 0
        %2558 = vmatmul.mubr.bf16.gmra.mrb[0].mxu0 %v2499
        %v2559 = vpop.f32.mrb[0].mxu0
        %v2560 = vadd.f32 0.0, %v2559
        %v2561 = vpop.f32.mrb[0].mxu0
        %v2562 = vpop.f32.mrb[0].mxu0
        %v2563 = vadd.f32 0.0, %v2562
        %v2564 = vpop.f32.mrb[0].mxu0
        %2565 = vdwg.mxu0
        %v2566 = vpack.c.bf16 %v2539, %v2536
        %v2567 = vpack.c.bf16 %v2547, %v2544
        %v2568 = vpack.c.bf16 %v2555, %v2552
        %v2569 = vpack.c.bf16 %v2563, %v2560
        %2574 = vrot.lane.b32.xlu0 %v2282, 112
        %v2575 = vpop.permute.xlu0 %2574
        %2576 = vrot.lane.b32.xlu0 %v2283, 112
        %v2577 = vpop.permute.xlu0 %2576
        %2578 = vrot.lane.b32.xlu0 %v2284, 112
        %v2579 = vpop.permute.xlu0 %2578
        %2580 = vrot.lane.b32.xlu0 %v2285, 112
        %v2581 = vpop.permute.xlu0 %2580
        %2582 = vrot.lane.b32.xlu0 %v2286, 112
        %v2583 = vpop.permute.xlu0 %2582
        %2584 = vrot.lane.b32.xlu0 %v2287, 112
        %v2585 = vpop.permute.xlu0 %2584
        %2586 = vrot.lane.b32.xlu0 %v2288, 112
        %v2587 = vpop.permute.xlu0 %2586
        %2588 = vrot.lane.b32.xlu0 %v2289, 112
        %v2589 = vpop.permute.xlu0 %2588
        %v2591 = vsel %vm2290, %v2575, 0
        %v2594 = vsel %vm2290, %v2577, 0
        %v2597 = vsel %vm2290, %v2579, 0
        %v2600 = vsel %vm2290, %v2581, 0
        %v2603 = vsel %vm2290, %v2583, 0
        %v2606 = vsel %vm2290, %v2585, 0
        %v2609 = vsel %vm2290, %v2587, 0
        %v2612 = vsel %vm2290, %v2589, 0
        %2614 = vmatprep.subr.bf16.mxu0 0
        %2615 = vmatpush1.bf16.xpose.msra.mxu0 %v2603
        %2616 = vmatprep.subr.bf16.mxu0 0
        %2617 = vmatpush1.bf16.xpose.msra.mxu0 %v2606
        %2618 = vmatprep.subr.bf16.mxu0 0
        %2619 = vmatpush1.bf16.xpose.msra.mxu0 %v2609
        %2620 = vmatprep.subr.bf16.mxu0 0
        %2621 = vmatpush1.bf16.xpose.msra.mxu0 %v2612
        %2622 = vmatprep.subr.bf16.mxu0 0
        %2623 = vmatpush1.bf16.xpose.msra.mxu0 0
        %2624 = vmatprep.subr.bf16.mxu0 0
        %2625 = vmatpush1.bf16.xpose.msra.mxu0 0
        %2626 = vmatprep.subr.bf16.mxu0 0
        %2627 = vmatpush1.bf16.xpose.msra.mxu0 0
        %2628 = vmatprep.subr.bf16.mxu0 0
        %2629 = vmatpush1.bf16.xpose.msra.mxu0 0
        %2630 = vmatprep.subr.bf16.mxu0 0
        %2631 = vmatpush1.bf16.xpose.msra.mxu0 0
        %2632 = vmatprep.subr.bf16.mxu0 0
        %2633 = vmatpush1.bf16.xpose.msra.mxu0 0
        %2634 = vmatprep.subr.bf16.mxu0 0
        %2635 = vmatpush1.bf16.xpose.msra.mxu0 0
        %2636 = vmatprep.subr.bf16.mxu0 0
        %2637 = vmatpush1.bf16.xpose.msra.mxu0 0
        %2638 = vmatprep.subr.bf16.mxu0 0
        %2639 = vmatpush1.bf16.xpose.msra.mxu0 0
        %2640 = vmatprep.subr.bf16.mxu0 0
        %2641 = vmatpush1.bf16.xpose.msra.mxu0 0
        %2642 = vmatprep.subr.bf16.mxu0 0
        %2643 = vmatpush1.bf16.xpose.msra.mxu0 0
        %2644 = vmatprep.subr.bf16.mxu0 0
        %2645 = vmatpush1.bf16.xpose.msra.mxu0 0
        %2646 = vmatprep.mubr.bf16.mxu0 0
        %2647 = vmatmul.mubr.bf16.gmra.mrb[0].mxu0 %v2591
        %v2648 = vpop.f32.mrb[0].mxu0
        %v2649 = vadd.f32 %v1829, %v2648
        %v2650 = vpop.f32.mrb[0].mxu0
        %v2651 = vpop.f32.mrb[0].mxu0
        %v2652 = vadd.f32 %v1830, %v2651
        %v2653 = vpop.f32.mrb[0].mxu0
        %2654 = vmatprep.mubr.bf16.mxu0 0
        %2655 = vmatmul.mubr.bf16.gmra.mrb[0].mxu0 %v2594
        %v2656 = vpop.f32.mrb[0].mxu0
        %v2657 = vadd.f32 %v1831, %v2656
        %v2658 = vpop.f32.mrb[0].mxu0
        %v2659 = vpop.f32.mrb[0].mxu0
        %v2660 = vadd.f32 %v1832, %v2659
        %v2661 = vpop.f32.mrb[0].mxu0
        %2662 = vmatprep.mubr.bf16.mxu0 0
        %2663 = vmatmul.mubr.bf16.gmra.mrb[0].mxu0 %v2597
        %v2664 = vpop.f32.mrb[0].mxu0
        %v2665 = vadd.f32 %v1833, %v2664
        %v2666 = vpop.f32.mrb[0].mxu0
        %v2667 = vpop.f32.mrb[0].mxu0
        %v2668 = vadd.f32 %v1834, %v2667
        %v2669 = vpop.f32.mrb[0].mxu0
        %2670 = vmatprep.mubr.bf16.mxu0 0
        %2671 = vmatmul.mubr.bf16.gmra.mrb[0].mxu0 %v2600
        %v2672 = vpop.f32.mrb[0].mxu0
        %v2673 = vadd.f32 %v1835, %v2672
        %v2674 = vpop.f32.mrb[0].mxu0
        %v2675 = vpop.f32.mrb[0].mxu0
        %v2676 = vadd.f32 %v1836, %v2675
        %v2677 = vpop.f32.mrb[0].mxu0
        %2678 = vdwg.mxu0
        %v2679 = vsel %vm2380, %v2649, -inf
        %2680 = vmax.xlane.f32.xlu0 %v2679
        %v2681 = vpop.xlane.xlu0 %2680
        %v2682 = vsel %vm2380, %v2652, -inf
        %2683 = vmax.xlane.f32.xlu0 %v2682
        %v2684 = vpop.xlane.xlu0 %2683
        %v2685 = vsel %vm2380, %v2657, -inf
        %2686 = vmax.xlane.f32.xlu0 %v2685
        %v2687 = vpop.xlane.xlu0 %2686
        %v2688 = vsel %vm2380, %v2660, -inf
        %2689 = vmax.xlane.f32.xlu0 %v2688
        %v2690 = vpop.xlane.xlu0 %2689
        %v2691 = vsel %vm2380, %v2665, -inf
        %2692 = vmax.xlane.f32.xlu0 %v2691
        %v2693 = vpop.xlane.xlu0 %2692
        %v2694 = vsel %vm2380, %v2668, -inf
        %2695 = vmax.xlane.f32.xlu0 %v2694
        %v2696 = vpop.xlane.xlu0 %2695
        %v2697 = vsel %vm2380, %v2673, -inf
        %2698 = vmax.xlane.f32.xlu0 %v2697
        %v2699 = vpop.xlane.xlu0 %2698
        %v2700 = vsel %vm2380, %v2676, -inf
        %2701 = vmax.xlane.f32.xlu0 %v2700
        %v2702 = vpop.xlane.xlu0 %2701
        %v2703 = vsub.f32 %v2649, %v2681
        %v2704 = vsub.f32 %v2652, %v2684
        %v2705 = vsub.f32 %v2657, %v2687
        %v2706 = vsub.f32 %v2660, %v2690
        %v2707 = vsub.f32 %v2665, %v2693
        %v2708 = vsub.f32 %v2668, %v2696
        %v2709 = vsub.f32 %v2673, %v2699
        %v2710 = vsub.f32 %v2676, %v2702
        %v2711 = vmul.f32 %v2703, 1.442695
        %v2712 = vpow.pop %v2711
        %v2713 = vmul.f32 %v2704, 1.442695
        %v2714 = vpow.pop %v2713
        %v2715 = vmul.f32 %v2705, 1.442695
        %v2716 = vpow.pop %v2715
        %v2717 = vmul.f32 %v2706, 1.442695
        %v2718 = vpow.pop %v2717
        %v2719 = vmul.f32 %v2707, 1.442695
        %v2720 = vpow.pop %v2719
        %v2721 = vmul.f32 %v2708, 1.442695
        %v2722 = vpow.pop %v2721
        %v2723 = vmul.f32 %v2709, 1.442695
        %v2724 = vpow.pop %v2723
        %v2725 = vmul.f32 %v2710, 1.442695
        %v2726 = vpow.pop %v2725
        %v2727 = vsel %vm2380, %v2712, 0.0
        %2728 = vadd.xlane.f32.xlu0 %v2727
        %v2729 = vpop.xlane.xlu0 %2728
        %v2730 = vsel %vm2380, %v2714, 0.0
        %2731 = vadd.xlane.f32.xlu0 %v2730
        %v2732 = vpop.xlane.xlu0 %2731
        %v2733 = vsel %vm2380, %v2716, 0.0
        %2734 = vadd.xlane.f32.xlu0 %v2733
        %v2735 = vpop.xlane.xlu0 %2734
        %v2736 = vsel %vm2380, %v2718, 0.0
        %2737 = vadd.xlane.f32.xlu0 %v2736
        %v2738 = vpop.xlane.xlu0 %2737
        %v2739 = vsel %vm2380, %v2720, 0.0
        %2740 = vadd.xlane.f32.xlu0 %v2739
        %v2741 = vpop.xlane.xlu0 %2740
        %v2742 = vsel %vm2380, %v2722, 0.0
        %2743 = vadd.xlane.f32.xlu0 %v2742
        %v2744 = vpop.xlane.xlu0 %2743
        %v2745 = vsel %vm2380, %v2724, 0.0
        %2746 = vadd.xlane.f32.xlu0 %v2745
        %v2747 = vpop.xlane.xlu0 %2746
        %v2748 = vsel %vm2380, %v2726, 0.0
        %2749 = vadd.xlane.f32.xlu0 %v2748
        %v2750 = vpop.xlane.xlu0 %2749
        %v2751 = vrcp.pop %v2729
        %v2752 = vrcp.pop %v2732
        %v2753 = vrcp.pop %v2735
        %v2754 = vrcp.pop %v2738
        %v2755 = vrcp.pop %v2741
        %v2756 = vrcp.pop %v2744
        %v2757 = vrcp.pop %v2747
        %v2758 = vrcp.pop %v2750
        %v2759 = vmul.f32 %v2712, %v2751
        %v2760 = vmul.f32 %v2714, %v2752
        %v2761 = vmul.f32 %v2716, %v2753
        %v2762 = vmul.f32 %v2718, %v2754
        %v2763 = vmul.f32 %v2720, %v2755
        %v2764 = vmul.f32 %v2722, %v2756
        %v2765 = vmul.f32 %v2724, %v2757
        %v2766 = vmul.f32 %v2726, %v2758
        %v2767 = vpack.c.bf16 %v2760, %v2759
        %v2768 = vpack.c.bf16 %v2762, %v2761
        %v2769 = vpack.c.bf16 %v2764, %v2763
        %v2770 = vpack.c.bf16 %v2766, %v2765
        %2771 = vrot.lane.b32.xlu0 %v2286, 80
        %v2772 = vpop.permute.xlu0 %2771
        %2773 = vrot.lane.b32.xlu0 %v2287, 80
        %v2774 = vpop.permute.xlu0 %2773
        %2775 = vrot.lane.b32.xlu0 %v2288, 80
        %v2776 = vpop.permute.xlu0 %2775
        %2777 = vrot.lane.b32.xlu0 %v2289, 80
        %v2778 = vpop.permute.xlu0 %2777
        %v2784 = vsel %vm2380, %v2767, 0
        %v2787 = vsel %vm2380, %v2768, 0
        %v2790 = vsel %vm2380, %v2769, 0
        %v2793 = vsel %vm2380, %v2770, 0
        %2795 = vmatprep.subr.bf16.mxu0 0
        %2796 = vmatpush1.bf16.msra.mxu0 %v2772
        %2797 = vmatprep.subr.bf16.mxu0 0
        %2798 = vmatpush1.bf16.msra.mxu0 %v2774
        %2799 = vmatprep.subr.bf16.mxu0 0
        %2800 = vmatpush1.bf16.msra.mxu0 %v2776
        %2801 = vmatprep.subr.bf16.mxu0 0
        %2802 = vmatpush1.bf16.msra.mxu0 %v2778
        %2803 = vmatprep.subr.bf16.mxu0 0
        %2804 = vmatpush1.bf16.msra.mxu0 0
        %2805 = vmatprep.subr.bf16.mxu0 0
        %2806 = vmatpush1.bf16.msra.mxu0 0
        %2807 = vmatprep.subr.bf16.mxu0 0
        %2808 = vmatpush1.bf16.msra.mxu0 0
        %2809 = vmatprep.subr.bf16.mxu0 0
        %2810 = vmatpush1.bf16.msra.mxu0 0
        %2811 = vmatprep.subr.bf16.mxu0 0
        %2812 = vmatpush1.bf16.msra.mxu0 0
        %2813 = vmatprep.subr.bf16.mxu0 0
        %2814 = vmatpush1.bf16.msra.mxu0 0
        %2815 = vmatprep.subr.bf16.mxu0 0
        %2816 = vmatpush1.bf16.msra.mxu0 0
        %2817 = vmatprep.subr.bf16.mxu0 0
        %2818 = vmatpush1.bf16.msra.mxu0 0
        %2819 = vmatprep.subr.bf16.mxu0 0
        %2820 = vmatpush1.bf16.msra.mxu0 0
        %2821 = vmatprep.subr.bf16.mxu0 0
        %2822 = vmatpush1.bf16.msra.mxu0 0
        %2823 = vmatprep.subr.bf16.mxu0 0
        %2824 = vmatpush1.bf16.msra.mxu0 0
        %2825 = vmatprep.subr.bf16.mxu0 0
        %2826 = vmatpush1.bf16.msra.mxu0 0
        %2827 = vmatprep.mubr.bf16.mxu0 0
        %2828 = vmatmul.mubr.bf16.gmra.mrb[0].mxu0 %v2784
        %v2829 = vpop.f32.mrb[0].mxu0
        %v2830 = vadd.f32 0.0, %v2829
        %v2831 = vpop.f32.mrb[0].mxu0
        %v2832 = vpop.f32.mrb[0].mxu0
        %v2833 = vadd.f32 0.0, %v2832
        %v2834 = vpop.f32.mrb[0].mxu0
        %2835 = vmatprep.mubr.bf16.mxu0 0
        %2836 = vmatmul.mubr.bf16.gmra.mrb[0].mxu0 %v2787
        %v2837 = vpop.f32.mrb[0].mxu0
        %v2838 = vadd.f32 0.0, %v2837
        %v2839 = vpop.f32.mrb[0].mxu0
        %v2840 = vpop.f32.mrb[0].mxu0
        %v2841 = vadd.f32 0.0, %v2840
        %v2842 = vpop.f32.mrb[0].mxu0
        %2843 = vmatprep.mubr.bf16.mxu0 0
        %2844 = vmatmul.mubr.bf16.gmra.mrb[0].mxu0 %v2790
        %v2845 = vpop.f32.mrb[0].mxu0
        %v2846 = vadd.f32 0.0, %v2845
        %v2847 = vpop.f32.mrb[0].mxu0
        %v2848 = vpop.f32.mrb[0].mxu0
        %v2849 = vadd.f32 0.0, %v2848
        %v2850 = vpop.f32.mrb[0].mxu0
        %2851 = vmatprep.mubr.bf16.mxu0 0
        %2852 = vmatmul.mubr.bf16.gmra.mrb[0].mxu0 %v2793
        %v2853 = vpop.f32.mrb[0].mxu0
        %v2854 = vadd.f32 0.0, %v2853
        %v2855 = vpop.f32.mrb[0].mxu0
        %v2856 = vpop.f32.mrb[0].mxu0
        %v2857 = vadd.f32 0.0, %v2856
        %v2858 = vpop.f32.mrb[0].mxu0
        %2859 = vdwg.mxu0
        %v2860 = vpack.c.bf16 %v2833, %v2830
        %v2861 = vpack.c.bf16 %v2841, %v2838
        %v2862 = vpack.c.bf16 %v2849, %v2846
        %v2863 = vpack.c.bf16 %v2857, %v2854
        %v2866 = vunpack.c.l.b16 %v1967
        %v2867 = vunpack.c.l.b16 %v1968
        %v2868 = vpack.c.b16 %v2867, %v2866
        %v2871 = vsel %vm2290, %v2860, 0
        %v2874 = vsel %vm2290, %v2861, 0
        %v2877 = vsel %vm2290, %v2862, 0
        %v2880 = vsel %vm2290, %v2863, 0
        %2882 = vmatprep.subr.bf16.mxu0 0
        %2883 = vmatpush1.bf16.msra.mxu0 %v2868
        %2884 = vmatprep.subr.bf16.mxu0 0
        %2885 = vmatpush1.bf16.msra.mxu0 0
        %2886 = vmatprep.subr.bf16.mxu0 0
        %2887 = vmatpush1.bf16.msra.mxu0 0
        %2888 = vmatprep.subr.bf16.mxu0 0
        %2889 = vmatpush1.bf16.msra.mxu0 0
        %2890 = vmatprep.subr.bf16.mxu0 0
        %2891 = vmatpush1.bf16.msra.mxu0 0
        %2892 = vmatprep.subr.bf16.mxu0 0
        %2893 = vmatpush1.bf16.msra.mxu0 0
        %2894 = vmatprep.subr.bf16.mxu0 0
        %2895 = vmatpush1.bf16.msra.mxu0 0
        %2896 = vmatprep.subr.bf16.mxu0 0
        %2897 = vmatpush1.bf16.msra.mxu0 0
        %2898 = vmatprep.subr.bf16.mxu0 0
        %2899 = vmatpush1.bf16.msra.mxu0 0
        %2900 = vmatprep.subr.bf16.mxu0 0
        %2901 = vmatpush1.bf16.msra.mxu0 0
        %2902 = vmatprep.subr.bf16.mxu0 0
        %2903 = vmatpush1.bf16.msra.mxu0 0
        %2904 = vmatprep.subr.bf16.mxu0 0
        %2905 = vmatpush1.bf16.msra.mxu0 0
        %2906 = vmatprep.subr.bf16.mxu0 0
        %2907 = vmatpush1.bf16.msra.mxu0 0
        %2908 = vmatprep.subr.bf16.mxu0 0
        %2909 = vmatpush1.bf16.msra.mxu0 0
        %2910 = vmatprep.subr.bf16.mxu0 0
        %2911 = vmatpush1.bf16.msra.mxu0 0
        %2912 = vmatprep.subr.bf16.mxu0 0
        %2913 = vmatpush1.bf16.msra.mxu0 0
        %2914 = vmatprep.mubr.bf16.mxu0 0
        %2915 = vmatmul.mubr.bf16.gmra.mrb[0].mxu0 %v2871
        %v2916 = vpop.f32.mrb[0].mxu0
        %v2917 = vadd.f32 0.0, %v2916
        %v2918 = vpop.f32.mrb[0].mxu0
        %v2919 = vpop.f32.mrb[0].mxu0
        %v2920 = vadd.f32 0.0, %v2919
        %v2921 = vpop.f32.mrb[0].mxu0
        %2922 = vmatprep.mubr.bf16.mxu0 0
        %2923 = vmatmul.mubr.bf16.gmra.mrb[0].mxu0 %v2874
        %v2924 = vpop.f32.mrb[0].mxu0
        %v2925 = vadd.f32 0.0, %v2924
        %v2926 = vpop.f32.mrb[0].mxu0
        %v2927 = vpop.f32.mrb[0].mxu0
        %v2928 = vadd.f32 0.0, %v2927
        %v2929 = vpop.f32.mrb[0].mxu0
        %2930 = vmatprep.mubr.bf16.mxu0 0
        %2931 = vmatmul.mubr.bf16.gmra.mrb[0].mxu0 %v2877
        %v2932 = vpop.f32.mrb[0].mxu0
        %v2933 = vadd.f32 0.0, %v2932
        %v2934 = vpop.f32.mrb[0].mxu0
        %v2935 = vpop.f32.mrb[0].mxu0
        %v2936 = vadd.f32 0.0, %v2935
        %v2937 = vpop.f32.mrb[0].mxu0
        %2938 = vmatprep.mubr.bf16.mxu0 0
        %2939 = vmatmul.mubr.bf16.gmra.mrb[0].mxu0 %v2880
        %v2940 = vpop.f32.mrb[0].mxu0
        %v2941 = vadd.f32 0.0, %v2940
        %v2942 = vpop.f32.mrb[0].mxu0
        %v2943 = vpop.f32.mrb[0].mxu0
        %v2944 = vadd.f32 0.0, %v2943
        %v2945 = vpop.f32.mrb[0].mxu0
        %2946 = vdwg.mxu0
        %v2949 = vunpack.c.l.b16 %v1965
        %v2950 = vunpack.c.l.b16 %v1966
        %v2951 = vpack.c.b16 %v2950, %v2949
        %v2954 = vsel %vm2290, %v2566, 0
        %v2957 = vsel %vm2290, %v2567, 0
        %v2960 = vsel %vm2290, %v2568, 0
        %v2963 = vsel %vm2290, %v2569, 0
        %2965 = vmatprep.subr.bf16.mxu0 0
        %2966 = vmatpush1.bf16.msra.mxu0 %v2951
        %2967 = vmatprep.subr.bf16.mxu0 0
        %2968 = vmatpush1.bf16.msra.mxu0 0
        %2969 = vmatprep.subr.bf16.mxu0 0
        %2970 = vmatpush1.bf16.msra.mxu0 0
        %2971 = vmatprep.subr.bf16.mxu0 0
        %2972 = vmatpush1.bf16.msra.mxu0 0
        %2973 = vmatprep.subr.bf16.mxu0 0
        %2974 = vmatpush1.bf16.msra.mxu0 0
        %2975 = vmatprep.subr.bf16.mxu0 0
        %2976 = vmatpush1.bf16.msra.mxu0 0
        %2977 = vmatprep.subr.bf16.mxu0 0
        %2978 = vmatpush1.bf16.msra.mxu0 0
        %2979 = vmatprep.subr.bf16.mxu0 0
        %2980 = vmatpush1.bf16.msra.mxu0 0
        %2981 = vmatprep.subr.bf16.mxu0 0
        %2982 = vmatpush1.bf16.msra.mxu0 0
        %2983 = vmatprep.subr.bf16.mxu0 0
        %2984 = vmatpush1.bf16.msra.mxu0 0
        %2985 = vmatprep.subr.bf16.mxu0 0
        %2986 = vmatpush1.bf16.msra.mxu0 0
        %2987 = vmatprep.subr.bf16.mxu0 0
        %2988 = vmatpush1.bf16.msra.mxu0 0
        %2989 = vmatprep.subr.bf16.mxu0 0
        %2990 = vmatpush1.bf16.msra.mxu0 0
        %2991 = vmatprep.subr.bf16.mxu0 0
        %2992 = vmatpush1.bf16.msra.mxu0 0
        %2993 = vmatprep.subr.bf16.mxu0 0
        %2994 = vmatpush1.bf16.msra.mxu0 0
        %2995 = vmatprep.subr.bf16.mxu0 0
        %2996 = vmatpush1.bf16.msra.mxu0 0
        %2997 = vmatprep.mubr.bf16.mxu0 0
        %2998 = vmatmul.mubr.bf16.gmra.mrb[0].mxu0 %v2954
        %v2999 = vpop.f32.mrb[0].mxu0
        %v3000 = vadd.f32 %v2917, %v2999
        %v3001 = vpop.f32.mrb[0].mxu0
        %v3002 = vpop.f32.mrb[0].mxu0
        %v3003 = vadd.f32 %v2920, %v3002
        %v3004 = vpop.f32.mrb[0].mxu0
        %3005 = vmatprep.mubr.bf16.mxu0 0
        %3006 = vmatmul.mubr.bf16.gmra.mrb[0].mxu0 %v2957
        %v3007 = vpop.f32.mrb[0].mxu0
        %v3008 = vadd.f32 %v2925, %v3007
        %v3009 = vpop.f32.mrb[0].mxu0
        %v3010 = vpop.f32.mrb[0].mxu0
        %v3011 = vadd.f32 %v2928, %v3010
        %v3012 = vpop.f32.mrb[0].mxu0
        %3013 = vmatprep.mubr.bf16.mxu0 0
        %3014 = vmatmul.mubr.bf16.gmra.mrb[0].mxu0 %v2960
        %v3015 = vpop.f32.mrb[0].mxu0
        %v3016 = vadd.f32 %v2933, %v3015
        %v3017 = vpop.f32.mrb[0].mxu0
        %v3018 = vpop.f32.mrb[0].mxu0
        %v3019 = vadd.f32 %v2936, %v3018
        %v3020 = vpop.f32.mrb[0].mxu0
        %3021 = vmatprep.mubr.bf16.mxu0 0
        %3022 = vmatmul.mubr.bf16.gmra.mrb[0].mxu0 %v2963
        %v3023 = vpop.f32.mrb[0].mxu0
        %v3024 = vadd.f32 %v2941, %v3023
        %v3025 = vpop.f32.mrb[0].mxu0
        %v3026 = vpop.f32.mrb[0].mxu0
        %v3027 = vadd.f32 %v2944, %v3026
        %v3028 = vpop.f32.mrb[0].mxu0
        %3029 = vdwg.mxu0
        %v3030 = vadd.f32 %v1821, %v3000
        %v3031 = vadd.f32 %v1822, %v3003
        %v3032 = vadd.f32 %v1823, %v3008
        %v3033 = vadd.f32 %v1824, %v3011
        %v3034 = vadd.f32 %v1825, %v3016
        %v3035 = vadd.f32 %v1826, %v3019
        %v3036 = vadd.f32 %v1827, %v3024
        %v3037 = vadd.f32 %v1828, %v3027
        %v3039 = vlaneseq
        %v3040 = vshrl.u32 %v3039, 7
        %v3041 = vsub.s32 0, %v3040
        %v3042 = vrot.slane %v1969, %v3041
        %v3044 = vadd.f32 %v3030, %v3042
        %v3045 = vadd.f32 %v3031, %v3042
        %v3046 = vadd.f32 %v3032, %v3042
        %v3047 = vadd.f32 %v3033, %v3042
        %v3048 = vadd.f32 %v3034, %v3042
        %v3049 = vadd.f32 %v3035, %v3042
        %v3050 = vadd.f32 %v3036, %v3042
        %v3051 = vadd.f32 %v3037, %v3042
        %v3052 = vsel %vm1845, %v3044, 0.0
        %3053 = vadd.xlane.f32.xlu0 %v3052
        %v3054 = vpop.xlane.xlu0 %3053
        %v3055 = vsel %vm1845, %v3045, 0.0
        %3056 = vadd.xlane.f32.xlu0 %v3055
        %v3057 = vpop.xlane.xlu0 %3056
        %v3058 = vsel %vm1845, %v3046, 0.0
        %3059 = vadd.xlane.f32.xlu0 %v3058
        %v3060 = vpop.xlane.xlu0 %3059
        %v3061 = vsel %vm1845, %v3047, 0.0
        %3062 = vadd.xlane.f32.xlu0 %v3061
        %v3063 = vpop.xlane.xlu0 %3062
        %v3064 = vsel %vm1845, %v3048, 0.0
        %3065 = vadd.xlane.f32.xlu0 %v3064
        %v3066 = vpop.xlane.xlu0 %3065
        %v3067 = vsel %vm1845, %v3049, 0.0
        %3068 = vadd.xlane.f32.xlu0 %v3067
        %v3069 = vpop.xlane.xlu0 %3068
        %v3070 = vsel %vm1845, %v3050, 0.0
        %3071 = vadd.xlane.f32.xlu0 %v3070
        %v3072 = vpop.xlane.xlu0 %3071
        %v3073 = vsel %vm1845, %v3051, 0.0
        %3074 = vadd.xlane.f32.xlu0 %v3073
        %v3075 = vpop.xlane.xlu0 %3074
        %v3076 = vmul.f32 %v3054, %v1870
        %v3077 = vmul.f32 %v3057, %v1870
        %v3078 = vmul.f32 %v3060, %v1870
        %v3079 = vmul.f32 %v3063, %v1870
        %v3080 = vmul.f32 %v3066, %v1870
        %v3081 = vmul.f32 %v3069, %v1870
        %v3082 = vmul.f32 %v3072, %v1870
        %v3083 = vmul.f32 %v3075, %v1870
        %v3084 = vsub.f32 %v3044, %v3076
        %v3085 = vsub.f32 %v3045, %v3077
        %v3086 = vsub.f32 %v3046, %v3078
        %v3087 = vsub.f32 %v3047, %v3079
        %v3088 = vsub.f32 %v3048, %v3080
        %v3089 = vsub.f32 %v3049, %v3081
        %v3090 = vsub.f32 %v3050, %v3082
        %v3091 = vsub.f32 %v3051, %v3083
        %v3092 = vmul.f32 %v3084, %v3084
        %v3093 = vmul.f32 %v3085, %v3085
        %v3094 = vmul.f32 %v3086, %v3086
        %v3095 = vmul.f32 %v3087, %v3087
        %v3096 = vmul.f32 %v3088, %v3088
        %v3097 = vmul.f32 %v3089, %v3089
        %v3098 = vmul.f32 %v3090, %v3090
        %v3099 = vmul.f32 %v3091, %v3091
        %v3100 = vsel %vm1845, %v3092, 0.0
        %3101 = vadd.xlane.f32.xlu0 %v3100
        %v3102 = vpop.xlane.xlu0 %3101
        %v3103 = vsel %vm1845, %v3093, 0.0
        %3104 = vadd.xlane.f32.xlu0 %v3103
        %v3105 = vpop.xlane.xlu0 %3104
        %v3106 = vsel %vm1845, %v3094, 0.0
        %3107 = vadd.xlane.f32.xlu0 %v3106
        %v3108 = vpop.xlane.xlu0 %3107
        %v3109 = vsel %vm1845, %v3095, 0.0
        %3110 = vadd.xlane.f32.xlu0 %v3109
        %v3111 = vpop.xlane.xlu0 %3110
        %v3112 = vsel %vm1845, %v3096, 0.0
        %3113 = vadd.xlane.f32.xlu0 %v3112
        %v3114 = vpop.xlane.xlu0 %3113
        %v3115 = vsel %vm1845, %v3097, 0.0
        %3116 = vadd.xlane.f32.xlu0 %v3115
        %v3117 = vpop.xlane.xlu0 %3116
        %v3118 = vsel %vm1845, %v3098, 0.0
        %3119 = vadd.xlane.f32.xlu0 %v3118
        %v3120 = vpop.xlane.xlu0 %3119
        %v3121 = vsel %vm1845, %v3099, 0.0
        %3122 = vadd.xlane.f32.xlu0 %v3121
        %v3123 = vpop.xlane.xlu0 %3122
        %v3124 = vmul.f32 %v3102, %v1870
        %v3125 = vmul.f32 %v3105, %v1870
        %v3126 = vmul.f32 %v3108, %v1870
        %v3127 = vmul.f32 %v3111, %v1870
        %v3128 = vmul.f32 %v3114, %v1870
        %v3129 = vmul.f32 %v3117, %v1870
        %v3130 = vmul.f32 %v3120, %v1870
        %v3131 = vmul.f32 %v3123, %v1870
        %v3132 = vadd.f32 %v3124, 1e-05
        %v3133 = vadd.f32 %v3125, 1e-05
        %v3134 = vadd.f32 %v3126, 1e-05
        %v3135 = vadd.f32 %v3127, 1e-05
        %v3136 = vadd.f32 %v3128, 1e-05
        %v3137 = vadd.f32 %v3129, 1e-05
        %v3138 = vadd.f32 %v3130, 1e-05
        %v3139 = vadd.f32 %v3131, 1e-05
        %v3140 = vrsqrt.pop %v3132
        %v3141 = vrsqrt.pop %v3133
        %v3142 = vrsqrt.pop %v3134
        %v3143 = vrsqrt.pop %v3135
        %v3144 = vrsqrt.pop %v3136
        %v3145 = vrsqrt.pop %v3137
        %v3146 = vrsqrt.pop %v3138
        %v3147 = vrsqrt.pop %v3139
        %v3148 = vmul.f32 %v3084, %v3140
        %v3149 = vmul.f32 %v3085, %v3141
        %v3150 = vmul.f32 %v3086, %v3142
        %v3151 = vmul.f32 %v3087, %v3143
        %v3152 = vmul.f32 %v3088, %v3144
        %v3153 = vmul.f32 %v3089, %v3145
        %v3154 = vmul.f32 %v3090, %v3146
        %v3155 = vmul.f32 %v3091, %v3147
        %v3156 = vpack.c.bf16 %v3149, %v3148
        %v3157 = vpack.c.bf16 %v3151, %v3150
        %v3158 = vpack.c.bf16 %v3153, %v3152
        %v3159 = vpack.c.bf16 %v3155, %v3154
        %v3161 = vlaneseq
        %v3162 = vshrl.u32 %v3161, 7
        %v3163 = vsub.s32 0, %v3162
        %v3164 = vrot.slane %v1974, %v3163
        %v3170 = vunpack.c.l.b16 %v1970
        %v3171 = vunpack.c.l.b16 %v1971
        %v3172 = vunpack.c.l.b16 %v1972
        %v3173 = vunpack.c.l.b16 %v1973
        %v3174 = vpack.c.b16 %v3171, %v3170
        %v3175 = vpack.c.b16 %v3173, %v3172
        %v3179 = vsel %vm1845, %v3156, 0
        %v3182 = vsel %vm1845, %v3157, 0
        %v3185 = vsel %vm1845, %v3158, 0
        %v3188 = vsel %vm1845, %v3159, 0
        %3190 = vmatprep.subr.bf16.mxu0 0
        %3191 = vmatpush1.bf16.msra.mxu0 %v3174
        %3192 = vmatprep.subr.bf16.mxu0 0
        %3193 = vmatpush1.bf16.msra.mxu0 %v3175
        %3194 = vmatprep.subr.bf16.mxu0 0
        %3195 = vmatpush1.bf16.msra.mxu0 0
        %3196 = vmatprep.subr.bf16.mxu0 0
        %3197 = vmatpush1.bf16.msra.mxu0 0
        %3198 = vmatprep.subr.bf16.mxu0 0
        %3199 = vmatpush1.bf16.msra.mxu0 0
        %3200 = vmatprep.subr.bf16.mxu0 0
        %3201 = vmatpush1.bf16.msra.mxu0 0
        %3202 = vmatprep.subr.bf16.mxu0 0
        %3203 = vmatpush1.bf16.msra.mxu0 0
        %3204 = vmatprep.subr.bf16.mxu0 0
        %3205 = vmatpush1.bf16.msra.mxu0 0
        %3206 = vmatprep.subr.bf16.mxu0 0
        %3207 = vmatpush1.bf16.msra.mxu0 0
        %3208 = vmatprep.subr.bf16.mxu0 0
        %3209 = vmatpush1.bf16.msra.mxu0 0
        %3210 = vmatprep.subr.bf16.mxu0 0
        %3211 = vmatpush1.bf16.msra.mxu0 0
        %3212 = vmatprep.subr.bf16.mxu0 0
        %3213 = vmatpush1.bf16.msra.mxu0 0
        %3214 = vmatprep.subr.bf16.mxu0 0
        %3215 = vmatpush1.bf16.msra.mxu0 0
        %3216 = vmatprep.subr.bf16.mxu0 0
        %3217 = vmatpush1.bf16.msra.mxu0 0
        %3218 = vmatprep.subr.bf16.mxu0 0
        %3219 = vmatpush1.bf16.msra.mxu0 0
        %3220 = vmatprep.subr.bf16.mxu0 0
        %3221 = vmatpush1.bf16.msra.mxu0 0
        %3222 = vmatprep.mubr.bf16.mxu0 0
        %3223 = vmatmul.mubr.bf16.gmra.mrb[0].mxu0 %v3179
        %v3224 = vpop.f32.mrb[0].mxu0
        %v3225 = vadd.f32 %v3164, %v3224
        %v3226 = vpop.f32.mrb[0].mxu0
        %v3227 = vpop.f32.mrb[0].mxu0
        %v3228 = vadd.f32 %v3164, %v3227
        %v3229 = vpop.f32.mrb[0].mxu0
        %3230 = vmatprep.mubr.bf16.mxu0 0
        %3231 = vmatmul.mubr.bf16.gmra.mrb[0].mxu0 %v3182
        %v3232 = vpop.f32.mrb[0].mxu0
        %v3233 = vadd.f32 %v3164, %v3232
        %v3234 = vpop.f32.mrb[0].mxu0
        %v3235 = vpop.f32.mrb[0].mxu0
        %v3236 = vadd.f32 %v3164, %v3235
        %v3237 = vpop.f32.mrb[0].mxu0
        %3238 = vmatprep.mubr.bf16.mxu0 0
        %3239 = vmatmul.mubr.bf16.gmra.mrb[0].mxu0 %v3185
        %v3240 = vpop.f32.mrb[0].mxu0
        %v3241 = vadd.f32 %v3164, %v3240
        %v3242 = vpop.f32.mrb[0].mxu0
        %v3243 = vpop.f32.mrb[0].mxu0
        %v3244 = vadd.f32 %v3164, %v3243
        %v3245 = vpop.f32.mrb[0].mxu0
        %3246 = vmatprep.mubr.bf16.mxu0 0
        %3247 = vmatmul.mubr.bf16.gmra.mrb[0].mxu0 %v3188
        %v3248 = vpop.f32.mrb[0].mxu0
        %v3249 = vadd.f32 %v3164, %v3248
        %v3250 = vpop.f32.mrb[0].mxu0
        %v3251 = vpop.f32.mrb[0].mxu0
        %v3252 = vadd.f32 %v3164, %v3251
        %v3253 = vpop.f32.mrb[0].mxu0
        %3254 = vdwg.mxu0
        %v3255 = vmul.f32 %v3225, 0.5
        %v3256 = vmul.f32 %v3228, 0.5
        %v3257 = vmul.f32 %v3233, 0.5
        %v3258 = vmul.f32 %v3236, 0.5
        %v3259 = vmul.f32 %v3241, 0.5
        %v3260 = vmul.f32 %v3244, 0.5
        %v3261 = vmul.f32 %v3249, 0.5
        %v3262 = vmul.f32 %v3252, 0.5
        %v3263 = vrcp.pop 1.4142135
        %v3264 = vmul.f32 %v3225, %v3263
        %v3265 = vmul.f32 %v3228, %v3263
        %v3266 = vmul.f32 %v3233, %v3263
        %v3267 = vmul.f32 %v3236, %v3263
        %v3268 = vmul.f32 %v3241, %v3263
        %v3269 = vmul.f32 %v3244, %v3263
        %v3270 = vmul.f32 %v3249, %v3263
        %v3271 = vmul.f32 %v3252, %v3263
        %v3272 = verf.f32.pop %v3264
        %v3273 = verf.f32.pop %v3265
        %v3274 = verf.f32.pop %v3266
        %v3275 = verf.f32.pop %v3267
        %v3276 = verf.f32.pop %v3268
        %v3277 = verf.f32.pop %v3269
        %v3278 = verf.f32.pop %v3270
        %v3279 = verf.f32.pop %v3271
        %v3280 = vadd.f32 %v3272, 1.0
        %v3281 = vadd.f32 %v3273, 1.0
        %v3282 = vadd.f32 %v3274, 1.0
        %v3283 = vadd.f32 %v3275, 1.0
        %v3284 = vadd.f32 %v3276, 1.0
        %v3285 = vadd.f32 %v3277, 1.0
        %v3286 = vadd.f32 %v3278, 1.0
        %v3287 = vadd.f32 %v3279, 1.0
        %v3288 = vmul.f32 %v3255, %v3280
        %v3289 = vmul.f32 %v3256, %v3281
        %v3290 = vmul.f32 %v3257, %v3282
        %v3291 = vmul.f32 %v3258, %v3283
        %v3292 = vmul.f32 %v3259, %v3284
        %v3293 = vmul.f32 %v3260, %v3285
        %v3294 = vmul.f32 %v3261, %v3286
        %v3295 = vmul.f32 %v3262, %v3287
        %v3296 = vpack.c.bf16 %v3289, %v3288
        %v3297 = vpack.c.bf16 %v3291, %v3290
        %v3298 = vpack.c.bf16 %v3293, %v3292
        %v3299 = vpack.c.bf16 %v3295, %v3294
        %v3308 = vunpack.c.l.b16 %v1975
        %v3309 = vunpack.c.l.b16 %v1976
        %v3310 = vunpack.c.l.b16 %v1977
        %v3311 = vunpack.c.l.b16 %v1978
        %v3312 = vunpack.c.l.b16 %v1979
        %v3313 = vunpack.c.l.b16 %v1980
        %v3314 = vunpack.c.l.b16 %v1981
        %v3315 = vunpack.c.l.b16 %v1982
        %v3316 = vpack.c.b16 %v3309, %v3308
        %v3317 = vpack.c.b16 %v3311, %v3310
        %v3318 = vpack.c.b16 %v3313, %v3312
        %v3319 = vpack.c.b16 %v3315, %v3314
        %v3325 = vsel %vm2380, %v3296, 0
        %v3328 = vsel %vm2380, %v3297, 0
        %v3331 = vsel %vm2380, %v3298, 0
        %v3334 = vsel %vm2380, %v3299, 0
        %3336 = vmatprep.subr.bf16.mxu0 0
        %3337 = vmatpush1.bf16.msra.mxu0 %v3316
        %3338 = vmatprep.subr.bf16.mxu0 0
        %3339 = vmatpush1.bf16.msra.mxu0 %v3317
        %3340 = vmatprep.subr.bf16.mxu0 0
        %3341 = vmatpush1.bf16.msra.mxu0 %v3318
        %3342 = vmatprep.subr.bf16.mxu0 0
        %3343 = vmatpush1.bf16.msra.mxu0 %v3319
        %3344 = vmatprep.subr.bf16.mxu0 0
        %3345 = vmatpush1.bf16.msra.mxu0 0
        %3346 = vmatprep.subr.bf16.mxu0 0
        %3347 = vmatpush1.bf16.msra.mxu0 0
        %3348 = vmatprep.subr.bf16.mxu0 0
        %3349 = vmatpush1.bf16.msra.mxu0 0
        %3350 = vmatprep.subr.bf16.mxu0 0
        %3351 = vmatpush1.bf16.msra.mxu0 0
        %3352 = vmatprep.subr.bf16.mxu0 0
        %3353 = vmatpush1.bf16.msra.mxu0 0
        %3354 = vmatprep.subr.bf16.mxu0 0
        %3355 = vmatpush1.bf16.msra.mxu0 0
        %3356 = vmatprep.subr.bf16.mxu0 0
        %3357 = vmatpush1.bf16.msra.mxu0 0
        %3358 = vmatprep.subr.bf16.mxu0 0
        %3359 = vmatpush1.bf16.msra.mxu0 0
        %3360 = vmatprep.subr.bf16.mxu0 0
        %3361 = vmatpush1.bf16.msra.mxu0 0
        %3362 = vmatprep.subr.bf16.mxu0 0
        %3363 = vmatpush1.bf16.msra.mxu0 0
        %3364 = vmatprep.subr.bf16.mxu0 0
        %3365 = vmatpush1.bf16.msra.mxu0 0
        %3366 = vmatprep.subr.bf16.mxu0 0
        %3367 = vmatpush1.bf16.msra.mxu0 0
        %3368 = vmatprep.mubr.bf16.mxu0 0
        %3369 = vmatmul.mubr.bf16.gmra.mrb[0].mxu0 %v3325
        %v3370 = vpop.f32.mrb[0].mxu0
        %v3371 = vadd.f32 0.0, %v3370
        %v3372 = vpop.f32.mrb[0].mxu0
        %v3373 = vpop.f32.mrb[0].mxu0
        %v3374 = vadd.f32 0.0, %v3373
        %v3375 = vpop.f32.mrb[0].mxu0
        %3376 = vmatprep.mubr.bf16.mxu0 0
        %3377 = vmatmul.mubr.bf16.gmra.mrb[0].mxu0 %v3328
        %v3378 = vpop.f32.mrb[0].mxu0
        %v3379 = vadd.f32 0.0, %v3378
        %v3380 = vpop.f32.mrb[0].mxu0
        %v3381 = vpop.f32.mrb[0].mxu0
        %v3382 = vadd.f32 0.0, %v3381
        %v3383 = vpop.f32.mrb[0].mxu0
        %3384 = vmatprep.mubr.bf16.mxu0 0
        %3385 = vmatmul.mubr.bf16.gmra.mrb[0].mxu0 %v3331
        %v3386 = vpop.f32.mrb[0].mxu0
        %v3387 = vadd.f32 0.0, %v3386
        %v3388 = vpop.f32.mrb[0].mxu0
        %v3389 = vpop.f32.mrb[0].mxu0
        %v3390 = vadd.f32 0.0, %v3389
        %v3391 = vpop.f32.mrb[0].mxu0
        %3392 = vmatprep.mubr.bf16.mxu0 0
        %3393 = vmatmul.mubr.bf16.gmra.mrb[0].mxu0 %v3334
        %v3394 = vpop.f32.mrb[0].mxu0
        %v3395 = vadd.f32 0.0, %v3394
        %v3396 = vpop.f32.mrb[0].mxu0
        %v3397 = vpop.f32.mrb[0].mxu0
        %v3398 = vadd.f32 0.0, %v3397
        %v3399 = vpop.f32.mrb[0].mxu0
        %3400 = vdwg.mxu0
        %v3401 = vadd.f32 %v3044, %v3371
        %v3402 = vadd.f32 %v3045, %v3374
        %v3403 = vadd.f32 %v3046, %v3379
        %v3404 = vadd.f32 %v3047, %v3382
        %v3405 = vadd.f32 %v3048, %v3387
        %v3406 = vadd.f32 %v3049, %v3390
        %v3407 = vadd.f32 %v3050, %v3395
        %v3408 = vadd.f32 %v3051, %v3398
        %v3410 = vlaneseq
        %v3411 = vshrl.u32 %v3410, 7
        %v3412 = vsub.s32 0, %v3411
        %v3413 = vrot.slane %v1983, %v3412
        %v3415 = vadd.f32 %v3401, %v3413
        %v3416 = vadd.f32 %v3402, %v3413
        %v3417 = vadd.f32 %v3403, %v3413
        %v3418 = vadd.f32 %v3404, %v3413
        %v3419 = vadd.f32 %v3405, %v3413
        %v3420 = vadd.f32 %v3406, %v3413
        %v3421 = vadd.f32 %v3407, %v3413
        %v3422 = vadd.f32 %v3408, %v3413
        %v3423 = vld [vmem:[%s29] sm:$0xf]
        %v3424 = vld [vmem:[%s29 + $0x4] sm:$0xf]
        %v3425 = vld [vmem:[%s29 + $0x8] sm:$0xf]
        %v3426 = vld [vmem:[%s29 + $0xc] sm:$0xf]
        %v3427 = vld [vmem:[%s31] sm:$0x1]
        %v3428 = vld [vmem:[%s33] sm:$0xf]
        %v3429 = vld [vmem:[%s33 + $0x4] sm:$0xf]
        %v3430 = vld [vmem:[%s33 + $0x8] sm:$0xf]
        %v3431 = vld [vmem:[%s33 + $0xc] sm:$0xf]
        %v3432 = vld [vmem:[#allocation11] sm:$0x1]
        %v3433 = vld [vmem:[%s37] sm:$0xf]
        %v3434 = vld [vmem:[%s37 + $0x4] sm:$0xf]
        %v3435 = vld [vmem:[%s37 + $0x8] sm:$0xf]
        %v3436 = vld [vmem:[%s37 + $0xc] sm:$0xf]
        %v3437 = vld [vmem:[#allocation13] sm:$0x1]
        %v3438 = vld [vmem:[%s41] sm:$0xf]
        %v3439 = vld [vmem:[%s41 + $0x4] sm:$0xf]
        %v3440 = vld [vmem:[%s41 + $0x8] sm:$0xf]
        %v3441 = vld [vmem:[%s41 + $0xc] sm:$0xf]
        %v3442 = vld [vmem:[#allocation14] sm:$0x1]
        %v3443 = vld [vmem:[%s45] sm:$0xf]
        %v3444 = vld [vmem:[%s45 + $0x4] sm:$0xf]
        %v3445 = vld [vmem:[%s45 + $0x8] sm:$0xf]
        %v3446 = vld [vmem:[%s45 + $0xc] sm:$0xf]
        %v3447 = vld [vmem:[%s45 + $0x10] sm:$0xf]
        %v3448 = vld [vmem:[%s45 + $0x14] sm:$0xf]
        %v3449 = vld [vmem:[%s45 + $0x18] sm:$0xf]
        %v3450 = vld [vmem:[%s45 + $0x1c] sm:$0xf]
        %v3451 = vld [vmem:[#allocation16] sm:$0x1]
        %v3452 = vsel %vm1845, %v3415, 0.0
        %3453 = vadd.xlane.f32.xlu0 %v3452
        %v3454 = vpop.xlane.xlu0 %3453
        %v3455 = vsel %vm1845, %v3416, 0.0
        %3456 = vadd.xlane.f32.xlu0 %v3455
        %v3457 = vpop.xlane.xlu0 %3456
        %v3458 = vsel %vm1845, %v3417, 0.0
        %3459 = vadd.xlane.f32.xlu0 %v3458
        %v3460 = vpop.xlane.xlu0 %3459
        %v3461 = vsel %vm1845, %v3418, 0.0
        %3462 = vadd.xlane.f32.xlu0 %v3461
        %v3463 = vpop.xlane.xlu0 %3462
        %v3464 = vsel %vm1845, %v3419, 0.0
        %3465 = vadd.xlane.f32.xlu0 %v3464
        %v3466 = vpop.xlane.xlu0 %3465
        %v3467 = vsel %vm1845, %v3420, 0.0
        %3468 = vadd.xlane.f32.xlu0 %v3467
        %v3469 = vpop.xlane.xlu0 %3468
        %v3470 = vsel %vm1845, %v3421, 0.0
        %3471 = vadd.xlane.f32.xlu0 %v3470
        %v3472 = vpop.xlane.xlu0 %3471
        %v3473 = vsel %vm1845, %v3422, 0.0
        %3474 = vadd.xlane.f32.xlu0 %v3473
        %v3475 = vpop.xlane.xlu0 %3474
        %v3476 = vmul.f32 %v3454, %v1870
        %v3477 = vmul.f32 %v3457, %v1870
        %v3478 = vmul.f32 %v3460, %v1870
        %v3479 = vmul.f32 %v3463, %v1870
        %v3480 = vmul.f32 %v3466, %v1870
        %v3481 = vmul.f32 %v3469, %v1870
        %v3482 = vmul.f32 %v3472, %v1870
        %v3483 = vmul.f32 %v3475, %v1870
        %v3484 = vsub.f32 %v3415, %v3476
        %v3485 = vsub.f32 %v3416, %v3477
        %v3486 = vsub.f32 %v3417, %v3478
        %v3487 = vsub.f32 %v3418, %v3479
        %v3488 = vsub.f32 %v3419, %v3480
        %v3489 = vsub.f32 %v3420, %v3481
        %v3490 = vsub.f32 %v3421, %v3482
        %v3491 = vsub.f32 %v3422, %v3483
        %v3492 = vmul.f32 %v3484, %v3484
        %v3493 = vmul.f32 %v3485, %v3485
        %v3494 = vmul.f32 %v3486, %v3486
        %v3495 = vmul.f32 %v3487, %v3487
        %v3496 = vmul.f32 %v3488, %v3488
        %v3497 = vmul.f32 %v3489, %v3489
        %v3498 = vmul.f32 %v3490, %v3490
        %v3499 = vmul.f32 %v3491, %v3491
        %v3500 = vsel %vm1845, %v3492, 0.0
        %3501 = vadd.xlane.f32.xlu0 %v3500
        %v3502 = vpop.xlane.xlu0 %3501
        %v3503 = vsel %vm1845, %v3493, 0.0
        %3504 = vadd.xlane.f32.xlu0 %v3503
        %v3505 = vpop.xlane.xlu0 %3504
        %v3506 = vsel %vm1845, %v3494, 0.0
        %3507 = vadd.xlane.f32.xlu0 %v3506
        %v3508 = vpop.xlane.xlu0 %3507
        %v3509 = vsel %vm1845, %v3495, 0.0
        %3510 = vadd.xlane.f32.xlu0 %v3509
        %v3511 = vpop.xlane.xlu0 %3510
        %v3512 = vsel %vm1845, %v3496, 0.0
        %3513 = vadd.xlane.f32.xlu0 %v3512
        %v3514 = vpop.xlane.xlu0 %3513
        %v3515 = vsel %vm1845, %v3497, 0.0
        %3516 = vadd.xlane.f32.xlu0 %v3515
        %v3517 = vpop.xlane.xlu0 %3516
        %v3518 = vsel %vm1845, %v3498, 0.0
        %3519 = vadd.xlane.f32.xlu0 %v3518
        %v3520 = vpop.xlane.xlu0 %3519
        %v3521 = vsel %vm1845, %v3499, 0.0
        %3522 = vadd.xlane.f32.xlu0 %v3521
        %v3523 = vpop.xlane.xlu0 %3522
        %v3524 = vmul.f32 %v3502, %v1870
        %v3525 = vmul.f32 %v3505, %v1870
        %v3526 = vmul.f32 %v3508, %v1870
        %v3527 = vmul.f32 %v3511, %v1870
        %v3528 = vmul.f32 %v3514, %v1870
        %v3529 = vmul.f32 %v3517, %v1870
        %v3530 = vmul.f32 %v3520, %v1870
        %v3531 = vmul.f32 %v3523, %v1870
        %v3532 = vadd.f32 %v3524, 1e-05
        %v3533 = vadd.f32 %v3525, 1e-05
        %v3534 = vadd.f32 %v3526, 1e-05
        %v3535 = vadd.f32 %v3527, 1e-05
        %v3536 = vadd.f32 %v3528, 1e-05
        %v3537 = vadd.f32 %v3529, 1e-05
        %v3538 = vadd.f32 %v3530, 1e-05
        %v3539 = vadd.f32 %v3531, 1e-05
        %v3540 = vrsqrt.pop %v3532
        %v3541 = vrsqrt.pop %v3533
        %v3542 = vrsqrt.pop %v3534
        %v3543 = vrsqrt.pop %v3535
        %v3544 = vrsqrt.pop %v3536
        %v3545 = vrsqrt.pop %v3537
        %v3546 = vrsqrt.pop %v3538
        %v3547 = vrsqrt.pop %v3539
        %v3548 = vmul.f32 %v3484, %v3540
        %v3549 = vmul.f32 %v3485, %v3541
        %v3550 = vmul.f32 %v3486, %v3542
        %v3551 = vmul.f32 %v3487, %v3543
        %v3552 = vmul.f32 %v3488, %v3544
        %v3553 = vmul.f32 %v3489, %v3545
        %v3554 = vmul.f32 %v3490, %v3546
        %v3555 = vmul.f32 %v3491, %v3547
        %v3556 = vpack.c.bf16 %v3549, %v3548
        %v3557 = vpack.c.bf16 %v3551, %v3550
        %v3558 = vpack.c.bf16 %v3553, %v3552
        %v3559 = vpack.c.bf16 %v3555, %v3554
        %v3561 = vlaneseq
        %v3562 = vshrl.u32 %v3561, 7
        %v3563 = vsub.s32 0, %v3562
        %v3564 = vrot.slane %v3427, %v3563
        %v3570 = vunpack.c.l.b16 %v3423
        %v3571 = vunpack.c.l.b16 %v3424
        %v3572 = vunpack.c.l.b16 %v3425
        %v3573 = vunpack.c.l.b16 %v3426
        %v3574 = vpack.c.b16 %v3571, %v3570
        %v3575 = vpack.c.b16 %v3573, %v3572
        %v3579 = vsel %vm1845, %v3556, 0
        %v3582 = vsel %vm1845, %v3557, 0
        %v3585 = vsel %vm1845, %v3558, 0
        %v3588 = vsel %vm1845, %v3559, 0
        %3590 = vmatprep.subr.bf16.mxu0 0
        %3591 = vmatpush1.bf16.msra.mxu0 %v3574
        %3592 = vmatprep.subr.bf16.mxu0 0
        %3593 = vmatpush1.bf16.msra.mxu0 %v3575
        %3594 = vmatprep.subr.bf16.mxu0 0
        %3595 = vmatpush1.bf16.msra.mxu0 0
        %3596 = vmatprep.subr.bf16.mxu0 0
        %3597 = vmatpush1.bf16.msra.mxu0 0
        %3598 = vmatprep.subr.bf16.mxu0 0
        %3599 = vmatpush1.bf16.msra.mxu0 0
        %3600 = vmatprep.subr.bf16.mxu0 0
        %3601 = vmatpush1.bf16.msra.mxu0 0
        %3602 = vmatprep.subr.bf16.mxu0 0
        %3603 = vmatpush1.bf16.msra.mxu0 0
        %3604 = vmatprep.subr.bf16.mxu0 0
        %3605 = vmatpush1.bf16.msra.mxu0 0
        %3606 = vmatprep.subr.bf16.mxu0 0
        %3607 = vmatpush1.bf16.msra.mxu0 0
        %3608 = vmatprep.subr.bf16.mxu0 0
        %3609 = vmatpush1.bf16.msra.mxu0 0
        %3610 = vmatprep.subr.bf16.mxu0 0
        %3611 = vmatpush1.bf16.msra.mxu0 0
        %3612 = vmatprep.subr.bf16.mxu0 0
        %3613 = vmatpush1.bf16.msra.mxu0 0
        %3614 = vmatprep.subr.bf16.mxu0 0
        %3615 = vmatpush1.bf16.msra.mxu0 0
        %3616 = vmatprep.subr.bf16.mxu0 0
        %3617 = vmatpush1.bf16.msra.mxu0 0
        %3618 = vmatprep.subr.bf16.mxu0 0
        %3619 = vmatpush1.bf16.msra.mxu0 0
        %3620 = vmatprep.subr.bf16.mxu0 0
        %3621 = vmatpush1.bf16.msra.mxu0 0
        %3622 = vmatprep.mubr.bf16.mxu0 0
        %3623 = vmatmul.mubr.bf16.gmra.mrb[0].mxu0 %v3579
        %v3624 = vpop.f32.mrb[0].mxu0
        %v3625 = vadd.f32 %v3564, %v3624
        %v3626 = vpop.f32.mrb[0].mxu0
        %v3627 = vpop.f32.mrb[0].mxu0
        %v3628 = vadd.f32 %v3564, %v3627
        %v3629 = vpop.f32.mrb[0].mxu0
        %3630 = vmatprep.mubr.bf16.mxu0 0
        %3631 = vmatmul.mubr.bf16.gmra.mrb[0].mxu0 %v3582
        %v3632 = vpop.f32.mrb[0].mxu0
        %v3633 = vadd.f32 %v3564, %v3632
        %v3634 = vpop.f32.mrb[0].mxu0
        %v3635 = vpop.f32.mrb[0].mxu0
        %v3636 = vadd.f32 %v3564, %v3635
        %v3637 = vpop.f32.mrb[0].mxu0
        %3638 = vmatprep.mubr.bf16.mxu0 0
        %3639 = vmatmul.mubr.bf16.gmra.mrb[0].mxu0 %v3585
        %v3640 = vpop.f32.mrb[0].mxu0
        %v3641 = vadd.f32 %v3564, %v3640
        %v3642 = vpop.f32.mrb[0].mxu0
        %v3643 = vpop.f32.mrb[0].mxu0
        %v3644 = vadd.f32 %v3564, %v3643
        %v3645 = vpop.f32.mrb[0].mxu0
        %3646 = vmatprep.mubr.bf16.mxu0 0
        %3647 = vmatmul.mubr.bf16.gmra.mrb[0].mxu0 %v3588
        %v3648 = vpop.f32.mrb[0].mxu0
        %v3649 = vadd.f32 %v3564, %v3648
        %v3650 = vpop.f32.mrb[0].mxu0
        %v3651 = vpop.f32.mrb[0].mxu0
        %v3652 = vadd.f32 %v3564, %v3651
        %v3653 = vpop.f32.mrb[0].mxu0
        %3654 = vdwg.mxu0
        %v3656 = vlaneseq
        %v3657 = vshrl.u32 %v3656, 7
        %v3658 = vsub.s32 0, %v3657
        %v3659 = vrot.slane %v3432, %v3658
        %v3665 = vunpack.c.l.b16 %v3428
        %v3666 = vunpack.c.l.b16 %v3429
        %v3667 = vunpack.c.l.b16 %v3430
        %v3668 = vunpack.c.l.b16 %v3431
        %v3669 = vpack.c.b16 %v3666, %v3665
        %v3670 = vpack.c.b16 %v3668, %v3667
        %3673 = vmatprep.subr.bf16.mxu0 0
        %3674 = vmatpush1.bf16.msra.mxu0 %v3669
        %3675 = vmatprep.subr.bf16.mxu0 0
        %3676 = vmatpush1.bf16.msra.mxu0 %v3670
        %3677 = vmatprep.subr.bf16.mxu0 0
        %3678 = vmatpush1.bf16.msra.mxu0 0
        %3679 = vmatprep.subr.bf16.mxu0 0
        %3680 = vmatpush1.bf16.msra.mxu0 0
        %3681 = vmatprep.subr.bf16.mxu0 0
        %3682 = vmatpush1.bf16.msra.mxu0 0
        %3683 = vmatprep.subr.bf16.mxu0 0
        %3684 = vmatpush1.bf16.msra.mxu0 0
        %3685 = vmatprep.subr.bf16.mxu0 0
        %3686 = vmatpush1.bf16.msra.mxu0 0
        %3687 = vmatprep.subr.bf16.mxu0 0
        %3688 = vmatpush1.bf16.msra.mxu0 0
        %3689 = vmatprep.subr.bf16.mxu0 0
        %3690 = vmatpush1.bf16.msra.mxu0 0
        %3691 = vmatprep.subr.bf16.mxu0 0
        %3692 = vmatpush1.bf16.msra.mxu0 0
        %3693 = vmatprep.subr.bf16.mxu0 0
        %3694 = vmatpush1.bf16.msra.mxu0 0
        %3695 = vmatprep.subr.bf16.mxu0 0
        %3696 = vmatpush1.bf16.msra.mxu0 0
        %3697 = vmatprep.subr.bf16.mxu0 0
        %3698 = vmatpush1.bf16.msra.mxu0 0
        %3699 = vmatprep.subr.bf16.mxu0 0
        %3700 = vmatpush1.bf16.msra.mxu0 0
        %3701 = vmatprep.subr.bf16.mxu0 0
        %3702 = vmatpush1.bf16.msra.mxu0 0
        %3703 = vmatprep.subr.bf16.mxu0 0
        %3704 = vmatpush1.bf16.msra.mxu0 0
        %3705 = vmatprep.mubr.bf16.mxu0 0
        %3706 = vmatmul.mubr.bf16.gmra.mrb[0].mxu0 %v2206
        %v3707 = vpop.f32.mrb[0].mxu0
        %v3708 = vadd.f32 %v3659, %v3707
        %v3709 = vpop.f32.mrb[0].mxu0
        %v3710 = vpop.f32.mrb[0].mxu0
        %v3711 = vadd.f32 %v3659, %v3710
        %v3712 = vpop.f32.mrb[0].mxu0
        %3713 = vmatprep.mubr.bf16.mxu0 0
        %3714 = vmatmul.mubr.bf16.gmra.mrb[0].mxu0 %v2209
        %v3715 = vpop.f32.mrb[0].mxu0
        %v3716 = vadd.f32 %v3659, %v3715
        %v3717 = vpop.f32.mrb[0].mxu0
        %v3718 = vpop.f32.mrb[0].mxu0
        %v3719 = vadd.f32 %v3659, %v3718
        %v3720 = vpop.f32.mrb[0].mxu0
        %3721 = vmatprep.mubr.bf16.mxu0 0
        %3722 = vmatmul.mubr.bf16.gmra.mrb[0].mxu0 %v2212
        %v3723 = vpop.f32.mrb[0].mxu0
        %v3724 = vadd.f32 %v3659, %v3723
        %v3725 = vpop.f32.mrb[0].mxu0
        %v3726 = vpop.f32.mrb[0].mxu0
        %v3727 = vadd.f32 %v3659, %v3726
        %v3728 = vpop.f32.mrb[0].mxu0
        %3729 = vmatprep.mubr.bf16.mxu0 0
        %3730 = vmatmul.mubr.bf16.gmra.mrb[0].mxu0 %v2215
        %v3731 = vpop.f32.mrb[0].mxu0
        %v3732 = vadd.f32 %v3659, %v3731
        %v3733 = vpop.f32.mrb[0].mxu0
        %v3734 = vpop.f32.mrb[0].mxu0
        %v3735 = vadd.f32 %v3659, %v3734
        %v3736 = vpop.f32.mrb[0].mxu0
        %3737 = vdwg.mxu0
        %v3738 = vpack.c.bf16 %v3628, %v3625
        %v3739 = vpack.c.bf16 %v3636, %v3633
        %v3740 = vpack.c.bf16 %v3644, %v3641
        %v3741 = vpack.c.bf16 %v3652, %v3649
        %v3742 = vpack.c.bf16 %v3711, %v3708
        %v3743 = vpack.c.bf16 %v3719, %v3716
        %v3744 = vpack.c.bf16 %v3727, %v3724
        %v3745 = vpack.c.bf16 %v3735, %v3732
        %v3747 = vsel %vm2290, %v3738, 0
        %v3750 = vsel %vm2290, %v3739, 0
        %v3753 = vsel %vm2290, %v3740, 0
        %v3756 = vsel %vm2290, %v3741, 0
        %v3759 = vsel %vm2290, %v3742, 0
        %v3762 = vsel %vm2290, %v3743, 0
        %v3765 = vsel %vm2290, %v3744, 0
        %v3768 = vsel %vm2290, %v3745, 0
        %3770 = vmatprep.subr.bf16.mxu0 0
        %3771 = vmatpush1.bf16.xpose.msra.mxu0 %v3759
        %3772 = vmatprep.subr.bf16.mxu0 0
        %3773 = vmatpush1.bf16.xpose.msra.mxu0 %v3762
        %3774 = vmatprep.subr.bf16.mxu0 0
        %3775 = vmatpush1.bf16.xpose.msra.mxu0 %v3765
        %3776 = vmatprep.subr.bf16.mxu0 0
        %3777 = vmatpush1.bf16.xpose.msra.mxu0 %v3768
        %3778 = vmatprep.subr.bf16.mxu0 0
        %3779 = vmatpush1.bf16.xpose.msra.mxu0 0
        %3780 = vmatprep.subr.bf16.mxu0 0
        %3781 = vmatpush1.bf16.xpose.msra.mxu0 0
        %3782 = vmatprep.subr.bf16.mxu0 0
        %3783 = vmatpush1.bf16.xpose.msra.mxu0 0
        %3784 = vmatprep.subr.bf16.mxu0 0
        %3785 = vmatpush1.bf16.xpose.msra.mxu0 0
        %3786 = vmatprep.subr.bf16.mxu0 0
        %3787 = vmatpush1.bf16.xpose.msra.mxu0 0
        %3788 = vmatprep.subr.bf16.mxu0 0
        %3789 = vmatpush1.bf16.xpose.msra.mxu0 0
        %3790 = vmatprep.subr.bf16.mxu0 0
        %3791 = vmatpush1.bf16.xpose.msra.mxu0 0
        %3792 = vmatprep.subr.bf16.mxu0 0
        %3793 = vmatpush1.bf16.xpose.msra.mxu0 0
        %3794 = vmatprep.subr.bf16.mxu0 0
        %3795 = vmatpush1.bf16.xpose.msra.mxu0 0
        %3796 = vmatprep.subr.bf16.mxu0 0
        %3797 = vmatpush1.bf16.xpose.msra.mxu0 0
        %3798 = vmatprep.subr.bf16.mxu0 0
        %3799 = vmatpush1.bf16.xpose.msra.mxu0 0
        %3800 = vmatprep.subr.bf16.mxu0 0
        %3801 = vmatpush1.bf16.xpose.msra.mxu0 0
        %3802 = vmatprep.mubr.bf16.mxu0 0
        %3803 = vmatmul.mubr.bf16.gmra.mrb[0].mxu0 %v3747
        %v3804 = vpop.f32.mrb[0].mxu0
        %v3805 = vadd.f32 %v1837, %v3804
        %v3806 = vpop.f32.mrb[0].mxu0
        %v3807 = vpop.f32.mrb[0].mxu0
        %v3808 = vadd.f32 %v1838, %v3807
        %v3809 = vpop.f32.mrb[0].mxu0
        %3810 = vmatprep.mubr.bf16.mxu0 0
        %3811 = vmatmul.mubr.bf16.gmra.mrb[0].mxu0 %v3750
        %v3812 = vpop.f32.mrb[0].mxu0
        %v3813 = vadd.f32 %v1839, %v3812
        %v3814 = vpop.f32.mrb[0].mxu0
        %v3815 = vpop.f32.mrb[0].mxu0
        %v3816 = vadd.f32 %v1840, %v3815
        %v3817 = vpop.f32.mrb[0].mxu0
        %3818 = vmatprep.mubr.bf16.mxu0 0
        %3819 = vmatmul.mubr.bf16.gmra.mrb[0].mxu0 %v3753
        %v3820 = vpop.f32.mrb[0].mxu0
        %v3821 = vadd.f32 %v1841, %v3820
        %v3822 = vpop.f32.mrb[0].mxu0
        %v3823 = vpop.f32.mrb[0].mxu0
        %v3824 = vadd.f32 %v1842, %v3823
        %v3825 = vpop.f32.mrb[0].mxu0
        %3826 = vmatprep.mubr.bf16.mxu0 0
        %3827 = vmatmul.mubr.bf16.gmra.mrb[0].mxu0 %v3756
        %v3828 = vpop.f32.mrb[0].mxu0
        %v3829 = vadd.f32 %v1843, %v3828
        %v3830 = vpop.f32.mrb[0].mxu0
        %v3831 = vpop.f32.mrb[0].mxu0
        %v3832 = vadd.f32 %v1844, %v3831
        %v3833 = vpop.f32.mrb[0].mxu0
        %3834 = vdwg.mxu0
        %v3835 = vsel %vm2380, %v3805, -inf
        %3836 = vmax.xlane.f32.xlu0 %v3835
        %v3837 = vpop.xlane.xlu0 %3836
        %v3838 = vsel %vm2380, %v3808, -inf
        %3839 = vmax.xlane.f32.xlu0 %v3838
        %v3840 = vpop.xlane.xlu0 %3839
        %v3841 = vsel %vm2380, %v3813, -inf
        %3842 = vmax.xlane.f32.xlu0 %v3841
        %v3843 = vpop.xlane.xlu0 %3842
        %v3844 = vsel %vm2380, %v3816, -inf
        %3845 = vmax.xlane.f32.xlu0 %v3844
        %v3846 = vpop.xlane.xlu0 %3845
        %v3847 = vsel %vm2380, %v3821, -inf
        %3848 = vmax.xlane.f32.xlu0 %v3847
        %v3849 = vpop.xlane.xlu0 %3848
        %v3850 = vsel %vm2380, %v3824, -inf
        %3851 = vmax.xlane.f32.xlu0 %v3850
        %v3852 = vpop.xlane.xlu0 %3851
        %v3853 = vsel %vm2380, %v3829, -inf
        %3854 = vmax.xlane.f32.xlu0 %v3853
        %v3855 = vpop.xlane.xlu0 %3854
        %v3856 = vsel %vm2380, %v3832, -inf
        %3857 = vmax.xlane.f32.xlu0 %v3856
        %v3858 = vpop.xlane.xlu0 %3857
        %v3859 = vsub.f32 %v3805, %v3837
        %v3860 = vsub.f32 %v3808, %v3840
        %v3861 = vsub.f32 %v3813, %v3843
        %v3862 = vsub.f32 %v3816, %v3846
        %v3863 = vsub.f32 %v3821, %v3849
        %v3864 = vsub.f32 %v3824, %v3852
        %v3865 = vsub.f32 %v3829, %v3855
        %v3866 = vsub.f32 %v3832, %v3858
        %v3867 = vmul.f32 %v3859, 1.442695
        %v3868 = vpow.pop %v3867
        %v3869 = vmul.f32 %v3860, 1.442695
        %v3870 = vpow.pop %v3869
        %v3871 = vmul.f32 %v3861, 1.442695
        %v3872 = vpow.pop %v3871
        %v3873 = vmul.f32 %v3862, 1.442695
        %v3874 = vpow.pop %v3873
        %v3875 = vmul.f32 %v3863, 1.442695
        %v3876 = vpow.pop %v3875
        %v3877 = vmul.f32 %v3864, 1.442695
        %v3878 = vpow.pop %v3877
        %v3879 = vmul.f32 %v3865, 1.442695
        %v3880 = vpow.pop %v3879
        %v3881 = vmul.f32 %v3866, 1.442695
        %v3882 = vpow.pop %v3881
        %v3883 = vsel %vm2380, %v3868, 0.0
        %3884 = vadd.xlane.f32.xlu0 %v3883
        %v3885 = vpop.xlane.xlu0 %3884
        %v3886 = vsel %vm2380, %v3870, 0.0
        %3887 = vadd.xlane.f32.xlu0 %v3886
        %v3888 = vpop.xlane.xlu0 %3887
        %v3889 = vsel %vm2380, %v3872, 0.0
        %3890 = vadd.xlane.f32.xlu0 %v3889
        %v3891 = vpop.xlane.xlu0 %3890
        %v3892 = vsel %vm2380, %v3874, 0.0
        %3893 = vadd.xlane.f32.xlu0 %v3892
        %v3894 = vpop.xlane.xlu0 %3893
        %v3895 = vsel %vm2380, %v3876, 0.0
        %3896 = vadd.xlane.f32.xlu0 %v3895
        %v3897 = vpop.xlane.xlu0 %3896
        %v3898 = vsel %vm2380, %v3878, 0.0
        %3899 = vadd.xlane.f32.xlu0 %v3898
        %v3900 = vpop.xlane.xlu0 %3899
        %v3901 = vsel %vm2380, %v3880, 0.0
        %3902 = vadd.xlane.f32.xlu0 %v3901
        %v3903 = vpop.xlane.xlu0 %3902
        %v3904 = vsel %vm2380, %v3882, 0.0
        %3905 = vadd.xlane.f32.xlu0 %v3904
        %v3906 = vpop.xlane.xlu0 %3905
        %v3907 = vrcp.pop %v3885
        %v3908 = vrcp.pop %v3888
        %v3909 = vrcp.pop %v3891
        %v3910 = vrcp.pop %v3894
        %v3911 = vrcp.pop %v3897
        %v3912 = vrcp.pop %v3900
        %v3913 = vrcp.pop %v3903
        %v3914 = vrcp.pop %v3906
        %v3915 = vmul.f32 %v3868, %v3907
        %v3916 = vmul.f32 %v3870, %v3908
        %v3917 = vmul.f32 %v3872, %v3909
        %v3918 = vmul.f32 %v3874, %v3910
        %v3919 = vmul.f32 %v3876, %v3911
        %v3920 = vmul.f32 %v3878, %v3912
        %v3921 = vmul.f32 %v3880, %v3913
        %v3922 = vmul.f32 %v3882, %v3914
        %v3923 = vpack.c.bf16 %v3916, %v3915
        %v3924 = vpack.c.bf16 %v3918, %v3917
        %v3925 = vpack.c.bf16 %v3920, %v3919
        %v3926 = vpack.c.bf16 %v3922, %v3921
        %3931 = vrot.lane.b32.xlu0 %v3742, 96
        %v3932 = vpop.permute.xlu0 %3931
        %3933 = vrot.lane.b32.xlu0 %v3743, 96
        %v3934 = vpop.permute.xlu0 %3933
        %3935 = vrot.lane.b32.xlu0 %v3744, 96
        %v3936 = vpop.permute.xlu0 %3935
        %3937 = vrot.lane.b32.xlu0 %v3745, 96
        %v3938 = vpop.permute.xlu0 %3937
        %v3944 = vsel %vm2380, %v3923, 0
        %v3947 = vsel %vm2380, %v3924, 0
        %v3950 = vsel %vm2380, %v3925, 0
        %v3953 = vsel %vm2380, %v3926, 0
        %3955 = vmatprep.subr.bf16.mxu0 0
        %3956 = vmatpush1.bf16.msra.mxu0 %v3932
        %3957 = vmatprep.subr.bf16.mxu0 0
        %3958 = vmatpush1.bf16.msra.mxu0 %v3934
        %3959 = vmatprep.subr.bf16.mxu0 0
        %3960 = vmatpush1.bf16.msra.mxu0 %v3936
        %3961 = vmatprep.subr.bf16.mxu0 0
        %3962 = vmatpush1.bf16.msra.mxu0 %v3938
        %3963 = vmatprep.subr.bf16.mxu0 0
        %3964 = vmatpush1.bf16.msra.mxu0 0
        %3965 = vmatprep.subr.bf16.mxu0 0
        %3966 = vmatpush1.bf16.msra.mxu0 0
        %3967 = vmatprep.subr.bf16.mxu0 0
        %3968 = vmatpush1.bf16.msra.mxu0 0
        %3969 = vmatprep.subr.bf16.mxu0 0
        %3970 = vmatpush1.bf16.msra.mxu0 0
        %3971 = vmatprep.subr.bf16.mxu0 0
        %3972 = vmatpush1.bf16.msra.mxu0 0
        %3973 = vmatprep.subr.bf16.mxu0 0
        %3974 = vmatpush1.bf16.msra.mxu0 0
        %3975 = vmatprep.subr.bf16.mxu0 0
        %3976 = vmatpush1.bf16.msra.mxu0 0
        %3977 = vmatprep.subr.bf16.mxu0 0
        %3978 = vmatpush1.bf16.msra.mxu0 0
        %3979 = vmatprep.subr.bf16.mxu0 0
        %3980 = vmatpush1.bf16.msra.mxu0 0
        %3981 = vmatprep.subr.bf16.mxu0 0
        %3982 = vmatpush1.bf16.msra.mxu0 0
        %3983 = vmatprep.subr.bf16.mxu0 0
        %3984 = vmatpush1.bf16.msra.mxu0 0
        %3985 = vmatprep.subr.bf16.mxu0 0
        %3986 = vmatpush1.bf16.msra.mxu0 0
        %3987 = vmatprep.mubr.bf16.mxu0 0
        %3988 = vmatmul.mubr.bf16.gmra.mrb[0].mxu0 %v3944
        %v3989 = vpop.f32.mrb[0].mxu0
        %v3990 = vadd.f32 0.0, %v3989
        %v3991 = vpop.f32.mrb[0].mxu0
        %v3992 = vpop.f32.mrb[0].mxu0
        %v3993 = vadd.f32 0.0, %v3992
        %v3994 = vpop.f32.mrb[0].mxu0
        %3995 = vmatprep.mubr.bf16.mxu0 0
        %3996 = vmatmul.mubr.bf16.gmra.mrb[0].mxu0 %v3947
        %v3997 = vpop.f32.mrb[0].mxu0
        %v3998 = vadd.f32 0.0, %v3997
        %v3999 = vpop.f32.mrb[0].mxu0
        %v4000 = vpop.f32.mrb[0].mxu0
        %v4001 = vadd.f32 0.0, %v4000
        %v4002 = vpop.f32.mrb[0].mxu0
        %4003 = vmatprep.mubr.bf16.mxu0 0
        %4004 = vmatmul.mubr.bf16.gmra.mrb[0].mxu0 %v3950
        %v4005 = vpop.f32.mrb[0].mxu0
        %v4006 = vadd.f32 0.0, %v4005
        %v4007 = vpop.f32.mrb[0].mxu0
        %v4008 = vpop.f32.mrb[0].mxu0
        %v4009 = vadd.f32 0.0, %v4008
        %v4010 = vpop.f32.mrb[0].mxu0
        %4011 = vmatprep.mubr.bf16.mxu0 0
        %4012 = vmatmul.mubr.bf16.gmra.mrb[0].mxu0 %v3953
        %v4013 = vpop.f32.mrb[0].mxu0
        %v4014 = vadd.f32 0.0, %v4013
        %v4015 = vpop.f32.mrb[0].mxu0
        %v4016 = vpop.f32.mrb[0].mxu0
        %v4017 = vadd.f32 0.0, %v4016
        %v4018 = vpop.f32.mrb[0].mxu0
        %4019 = vdwg.mxu0
        %v4020 = vpack.c.bf16 %v3993, %v3990
        %v4021 = vpack.c.bf16 %v4001, %v3998
        %v4022 = vpack.c.bf16 %v4009, %v4006
        %v4023 = vpack.c.bf16 %v4017, %v4014
        %4028 = vrot.lane.b32.xlu0 %v3738, 112
        %v4029 = vpop.permute.xlu0 %4028
        %4030 = vrot.lane.b32.xlu0 %v3739, 112
        %v4031 = vpop.permute.xlu0 %4030
        %4032 = vrot.lane.b32.xlu0 %v3740, 112
        %v4033 = vpop.permute.xlu0 %4032
        %4034 = vrot.lane.b32.xlu0 %v3741, 112
        %v4035 = vpop.permute.xlu0 %4034
        %4036 = vrot.lane.b32.xlu0 %v3742, 112
        %v4037 = vpop.permute.xlu0 %4036
        %4038 = vrot.lane.b32.xlu0 %v3743, 112
        %v4039 = vpop.permute.xlu0 %4038
        %4040 = vrot.lane.b32.xlu0 %v3744, 112
        %v4041 = vpop.permute.xlu0 %4040
        %4042 = vrot.lane.b32.xlu0 %v3745, 112
        %v4043 = vpop.permute.xlu0 %4042
        %v4045 = vsel %vm2290, %v4029, 0
        %v4048 = vsel %vm2290, %v4031, 0
        %v4051 = vsel %vm2290, %v4033, 0
        %v4054 = vsel %vm2290, %v4035, 0
        %v4057 = vsel %vm2290, %v4037, 0
        %v4060 = vsel %vm2290, %v4039, 0
        %v4063 = vsel %vm2290, %v4041, 0
        %v4066 = vsel %vm2290, %v4043, 0
        %4068 = vmatprep.subr.bf16.mxu0 0
        %4069 = vmatpush1.bf16.xpose.msra.mxu0 %v4057
        %4070 = vmatprep.subr.bf16.mxu0 0
        %4071 = vmatpush1.bf16.xpose.msra.mxu0 %v4060
        %4072 = vmatprep.subr.bf16.mxu0 0
        %4073 = vmatpush1.bf16.xpose.msra.mxu0 %v4063
        %4074 = vmatprep.subr.bf16.mxu0 0
        %4075 = vmatpush1.bf16.xpose.msra.mxu0 %v4066
        %4076 = vmatprep.subr.bf16.mxu0 0
        %4077 = vmatpush1.bf16.xpose.msra.mxu0 0
        %4078 = vmatprep.subr.bf16.mxu0 0
        %4079 = vmatpush1.bf16.xpose.msra.mxu0 0
        %4080 = vmatprep.subr.bf16.mxu0 0
        %4081 = vmatpush1.bf16.xpose.msra.mxu0 0
        %4082 = vmatprep.subr.bf16.mxu0 0
        %4083 = vmatpush1.bf16.xpose.msra.mxu0 0
        %4084 = vmatprep.subr.bf16.mxu0 0
        %4085 = vmatpush1.bf16.xpose.msra.mxu0 0
        %4086 = vmatprep.subr.bf16.mxu0 0
        %4087 = vmatpush1.bf16.xpose.msra.mxu0 0
        %4088 = vmatprep.subr.bf16.mxu0 0
        %4089 = vmatpush1.bf16.xpose.msra.mxu0 0
        %4090 = vmatprep.subr.bf16.mxu0 0
        %4091 = vmatpush1.bf16.xpose.msra.mxu0 0
        %4092 = vmatprep.subr.bf16.mxu0 0
        %4093 = vmatpush1.bf16.xpose.msra.mxu0 0
        %4094 = vmatprep.subr.bf16.mxu0 0
        %4095 = vmatpush1.bf16.xpose.msra.mxu0 0
        %4096 = vmatprep.subr.bf16.mxu0 0
        %4097 = vmatpush1.bf16.xpose.msra.mxu0 0
        %4098 = vmatprep.subr.bf16.mxu0 0
        %4099 = vmatpush1.bf16.xpose.msra.mxu0 0
        %4100 = vmatprep.mubr.bf16.mxu0 0
        %4101 = vmatmul.mubr.bf16.gmra.mrb[0].mxu0 %v4045
        %v4102 = vpop.f32.mrb[0].mxu0
        %v4103 = vadd.f32 %v1837, %v4102
        %v4104 = vpop.f32.mrb[0].mxu0
        %v4105 = vpop.f32.mrb[0].mxu0
        %v4106 = vadd.f32 %v1838, %v4105
        %v4107 = vpop.f32.mrb[0].mxu0
        %4108 = vmatprep.mubr.bf16.mxu0 0
        %4109 = vmatmul.mubr.bf16.gmra.mrb[0].mxu0 %v4048
        %v4110 = vpop.f32.mrb[0].mxu0
        %v4111 = vadd.f32 %v1839, %v4110
        %v4112 = vpop.f32.mrb[0].mxu0
        %v4113 = vpop.f32.mrb[0].mxu0
        %v4114 = vadd.f32 %v1840, %v4113
        %v4115 = vpop.f32.mrb[0].mxu0
        %4116 = vmatprep.mubr.bf16.mxu0 0
        %4117 = vmatmul.mubr.bf16.gmra.mrb[0].mxu0 %v4051
        %v4118 = vpop.f32.mrb[0].mxu0
        %v4119 = vadd.f32 %v1841, %v4118
        %v4120 = vpop.f32.mrb[0].mxu0
        %v4121 = vpop.f32.mrb[0].mxu0
        %v4122 = vadd.f32 %v1842, %v4121
        %v4123 = vpop.f32.mrb[0].mxu0
        %4124 = vmatprep.mubr.bf16.mxu0 0
        %4125 = vmatmul.mubr.bf16.gmra.mrb[0].mxu0 %v4054
        %v4126 = vpop.f32.mrb[0].mxu0
        %v4127 = vadd.f32 %v1843, %v4126
        %v4128 = vpop.f32.mrb[0].mxu0
        %v4129 = vpop.f32.mrb[0].mxu0
        %v4130 = vadd.f32 %v1844, %v4129
        %v4131 = vpop.f32.mrb[0].mxu0
        %4132 = vdwg.mxu0
        %v4133 = vsel %vm2380, %v4103, -inf
        %4134 = vmax.xlane.f32.xlu0 %v4133
        %v4135 = vpop.xlane.xlu0 %4134
        %v4136 = vsel %vm2380, %v4106, -inf
        %4137 = vmax.xlane.f32.xlu0 %v4136
        %v4138 = vpop.xlane.xlu0 %4137
        %v4139 = vsel %vm2380, %v4111, -inf
        %4140 = vmax.xlane.f32.xlu0 %v4139
        %v4141 = vpop.xlane.xlu0 %4140
        %v4142 = vsel %vm2380, %v4114, -inf
        %4143 = vmax.xlane.f32.xlu0 %v4142
        %v4144 = vpop.xlane.xlu0 %4143
        %v4145 = vsel %vm2380, %v4119, -inf
        %4146 = vmax.xlane.f32.xlu0 %v4145
        %v4147 = vpop.xlane.xlu0 %4146
        %v4148 = vsel %vm2380, %v4122, -inf
        %4149 = vmax.xlane.f32.xlu0 %v4148
        %v4150 = vpop.xlane.xlu0 %4149
        %v4151 = vsel %vm2380, %v4127, -inf
        %4152 = vmax.xlane.f32.xlu0 %v4151
        %v4153 = vpop.xlane.xlu0 %4152
        %v4154 = vsel %vm2380, %v4130, -inf
        %4155 = vmax.xlane.f32.xlu0 %v4154
        %v4156 = vpop.xlane.xlu0 %4155
        %v4157 = vsub.f32 %v4103, %v4135
        %v4158 = vsub.f32 %v4106, %v4138
        %v4159 = vsub.f32 %v4111, %v4141
        %v4160 = vsub.f32 %v4114, %v4144
        %v4161 = vsub.f32 %v4119, %v4147
        %v4162 = vsub.f32 %v4122, %v4150
        %v4163 = vsub.f32 %v4127, %v4153
        %v4164 = vsub.f32 %v4130, %v4156
        %v4165 = vmul.f32 %v4157, 1.442695
        %v4166 = vpow.pop %v4165
        %v4167 = vmul.f32 %v4158, 1.442695
        %v4168 = vpow.pop %v4167
        %v4169 = vmul.f32 %v4159, 1.442695
        %v4170 = vpow.pop %v4169
        %v4171 = vmul.f32 %v4160, 1.442695
        %v4172 = vpow.pop %v4171
        %v4173 = vmul.f32 %v4161, 1.442695
        %v4174 = vpow.pop %v4173
        %v4175 = vmul.f32 %v4162, 1.442695
        %v4176 = vpow.pop %v4175
        %v4177 = vmul.f32 %v4163, 1.442695
        %v4178 = vpow.pop %v4177
        %v4179 = vmul.f32 %v4164, 1.442695
        %v4180 = vpow.pop %v4179
        %v4181 = vsel %vm2380, %v4166, 0.0
        %4182 = vadd.xlane.f32.xlu0 %v4181
        %v4183 = vpop.xlane.xlu0 %4182
        %v4184 = vsel %vm2380, %v4168, 0.0
        %4185 = vadd.xlane.f32.xlu0 %v4184
        %v4186 = vpop.xlane.xlu0 %4185
        %v4187 = vsel %vm2380, %v4170, 0.0
        %4188 = vadd.xlane.f32.xlu0 %v4187
        %v4189 = vpop.xlane.xlu0 %4188
        %v4190 = vsel %vm2380, %v4172, 0.0
        %4191 = vadd.xlane.f32.xlu0 %v4190
        %v4192 = vpop.xlane.xlu0 %4191
        %v4193 = vsel %vm2380, %v4174, 0.0
        %4194 = vadd.xlane.f32.xlu0 %v4193
        %v4195 = vpop.xlane.xlu0 %4194
        %v4196 = vsel %vm2380, %v4176, 0.0
        %4197 = vadd.xlane.f32.xlu0 %v4196
        %v4198 = vpop.xlane.xlu0 %4197
        %v4199 = vsel %vm2380, %v4178, 0.0
        %4200 = vadd.xlane.f32.xlu0 %v4199
        %v4201 = vpop.xlane.xlu0 %4200
        %v4202 = vsel %vm2380, %v4180, 0.0
        %4203 = vadd.xlane.f32.xlu0 %v4202
        %v4204 = vpop.xlane.xlu0 %4203
        %v4205 = vrcp.pop %v4183
        %v4206 = vrcp.pop %v4186
        %v4207 = vrcp.pop %v4189
        %v4208 = vrcp.pop %v4192
        %v4209 = vrcp.pop %v4195
        %v4210 = vrcp.pop %v4198
        %v4211 = vrcp.pop %v4201
        %v4212 = vrcp.pop %v4204
        %v4213 = vmul.f32 %v4166, %v4205
        %v4214 = vmul.f32 %v4168, %v4206
        %v4215 = vmul.f32 %v4170, %v4207
        %v4216 = vmul.f32 %v4172, %v4208
        %v4217 = vmul.f32 %v4174, %v4209
        %v4218 = vmul.f32 %v4176, %v4210
        %v4219 = vmul.f32 %v4178, %v4211
        %v4220 = vmul.f32 %v4180, %v4212
        %v4221 = vpack.c.bf16 %v4214, %v4213
        %v4222 = vpack.c.bf16 %v4216, %v4215
        %v4223 = vpack.c.bf16 %v4218, %v4217
        %v4224 = vpack.c.bf16 %v4220, %v4219
        %4225 = vrot.lane.b32.xlu0 %v3742, 80
        %v4226 = vpop.permute.xlu0 %4225
        %4227 = vrot.lane.b32.xlu0 %v3743, 80
        %v4228 = vpop.permute.xlu0 %4227
        %4229 = vrot.lane.b32.xlu0 %v3744, 80
        %v4230 = vpop.permute.xlu0 %4229
        %4231 = vrot.lane.b32.xlu0 %v3745, 80
        %v4232 = vpop.permute.xlu0 %4231
        %v4238 = vsel %vm2380, %v4221, 0
        %v4241 = vsel %vm2380, %v4222, 0
        %v4244 = vsel %vm2380, %v4223, 0
        %v4247 = vsel %vm2380, %v4224, 0
        %4249 = vmatprep.subr.bf16.mxu0 0
        %4250 = vmatpush1.bf16.msra.mxu0 %v4226
        %4251 = vmatprep.subr.bf16.mxu0 0
        %4252 = vmatpush1.bf16.msra.mxu0 %v4228
        %4253 = vmatprep.subr.bf16.mxu0 0
        %4254 = vmatpush1.bf16.msra.mxu0 %v4230
        %4255 = vmatprep.subr.bf16.mxu0 0
        %4256 = vmatpush1.bf16.msra.mxu0 %v4232
        %4257 = vmatprep.subr.bf16.mxu0 0
        %4258 = vmatpush1.bf16.msra.mxu0 0
        %4259 = vmatprep.subr.bf16.mxu0 0
        %4260 = vmatpush1.bf16.msra.mxu0 0
        %4261 = vmatprep.subr.bf16.mxu0 0
        %4262 = vmatpush1.bf16.msra.mxu0 0
        %4263 = vmatprep.subr.bf16.mxu0 0
        %4264 = vmatpush1.bf16.msra.mxu0 0
        %4265 = vmatprep.subr.bf16.mxu0 0
        %4266 = vmatpush1.bf16.msra.mxu0 0
        %4267 = vmatprep.subr.bf16.mxu0 0
        %4268 = vmatpush1.bf16.msra.mxu0 0
        %4269 = vmatprep.subr.bf16.mxu0 0
        %4270 = vmatpush1.bf16.msra.mxu0 0
        %4271 = vmatprep.subr.bf16.mxu0 0
        %4272 = vmatpush1.bf16.msra.mxu0 0
        %4273 = vmatprep.subr.bf16.mxu0 0
        %4274 = vmatpush1.bf16.msra.mxu0 0
        %4275 = vmatprep.subr.bf16.mxu0 0
        %4276 = vmatpush1.bf16.msra.mxu0 0
        %4277 = vmatprep.subr.bf16.mxu0 0
        %4278 = vmatpush1.bf16.msra.mxu0 0
        %4279 = vmatprep.subr.bf16.mxu0 0
        %4280 = vmatpush1.bf16.msra.mxu0 0
        %4281 = vmatprep.mubr.bf16.mxu0 0
        %4282 = vmatmul.mubr.bf16.gmra.mrb[0].mxu0 %v4238
        %v4283 = vpop.f32.mrb[0].mxu0
        %v4284 = vadd.f32 0.0, %v4283
        %v4285 = vpop.f32.mrb[0].mxu0
        %v4286 = vpop.f32.mrb[0].mxu0
        %v4287 = vadd.f32 0.0, %v4286
        %v4288 = vpop.f32.mrb[0].mxu0
        %4289 = vmatprep.mubr.bf16.mxu0 0
        %4290 = vmatmul.mubr.bf16.gmra.mrb[0].mxu0 %v4241
        %v4291 = vpop.f32.mrb[0].mxu0
        %v4292 = vadd.f32 0.0, %v4291
        %v4293 = vpop.f32.mrb[0].mxu0
        %v4294 = vpop.f32.mrb[0].mxu0
        %v4295 = vadd.f32 0.0, %v4294
        %v4296 = vpop.f32.mrb[0].mxu0
        %4297 = vmatprep.mubr.bf16.mxu0 0
        %4298 = vmatmul.mubr.bf16.gmra.mrb[0].mxu0 %v4244
        %v4299 = vpop.f32.mrb[0].mxu0
        %v4300 = vadd.f32 0.0, %v4299
        %v4301 = vpop.f32.mrb[0].mxu0
        %v4302 = vpop.f32.mrb[0].mxu0
        %v4303 = vadd.f32 0.0, %v4302
        %v4304 = vpop.f32.mrb[0].mxu0
        %4305 = vmatprep.mubr.bf16.mxu0 0
        %4306 = vmatmul.mubr.bf16.gmra.mrb[0].mxu0 %v4247
        %v4307 = vpop.f32.mrb[0].mxu0
        %v4308 = vadd.f32 0.0, %v4307
        %v4309 = vpop.f32.mrb[0].mxu0
        %v4310 = vpop.f32.mrb[0].mxu0
        %v4311 = vadd.f32 0.0, %v4310
        %v4312 = vpop.f32.mrb[0].mxu0
        %4313 = vdwg.mxu0
        %v4314 = vpack.c.bf16 %v4287, %v4284
        %v4315 = vpack.c.bf16 %v4295, %v4292
        %v4316 = vpack.c.bf16 %v4303, %v4300
        %v4317 = vpack.c.bf16 %v4311, %v4308
        %v4320 = vunpack.c.l.b16 %v3435
        %v4321 = vunpack.c.l.b16 %v3436
        %v4322 = vpack.c.b16 %v4321, %v4320
        %v4325 = vsel %vm2290, %v4314, 0
        %v4328 = vsel %vm2290, %v4315, 0
        %v4331 = vsel %vm2290, %v4316, 0
        %v4334 = vsel %vm2290, %v4317, 0
        %4336 = vmatprep.subr.bf16.mxu0 0
        %4337 = vmatpush1.bf16.msra.mxu0 %v4322
        %4338 = vmatprep.subr.bf16.mxu0 0
        %4339 = vmatpush1.bf16.msra.mxu0 0
        %4340 = vmatprep.subr.bf16.mxu0 0
        %4341 = vmatpush1.bf16.msra.mxu0 0
        %4342 = vmatprep.subr.bf16.mxu0 0
        %4343 = vmatpush1.bf16.msra.mxu0 0
        %4344 = vmatprep.subr.bf16.mxu0 0
        %4345 = vmatpush1.bf16.msra.mxu0 0
        %4346 = vmatprep.subr.bf16.mxu0 0
        %4347 = vmatpush1.bf16.msra.mxu0 0
        %4348 = vmatprep.subr.bf16.mxu0 0
        %4349 = vmatpush1.bf16.msra.mxu0 0
        %4350 = vmatprep.subr.bf16.mxu0 0
        %4351 = vmatpush1.bf16.msra.mxu0 0
        %4352 = vmatprep.subr.bf16.mxu0 0
        %4353 = vmatpush1.bf16.msra.mxu0 0
        %4354 = vmatprep.subr.bf16.mxu0 0
        %4355 = vmatpush1.bf16.msra.mxu0 0
        %4356 = vmatprep.subr.bf16.mxu0 0
        %4357 = vmatpush1.bf16.msra.mxu0 0
        %4358 = vmatprep.subr.bf16.mxu0 0
        %4359 = vmatpush1.bf16.msra.mxu0 0
        %4360 = vmatprep.subr.bf16.mxu0 0
        %4361 = vmatpush1.bf16.msra.mxu0 0
        %4362 = vmatprep.subr.bf16.mxu0 0
        %4363 = vmatpush1.bf16.msra.mxu0 0
        %4364 = vmatprep.subr.bf16.mxu0 0
        %4365 = vmatpush1.bf16.msra.mxu0 0
        %4366 = vmatprep.subr.bf16.mxu0 0
        %4367 = vmatpush1.bf16.msra.mxu0 0
        %4368 = vmatprep.mubr.bf16.mxu0 0
        %4369 = vmatmul.mubr.bf16.gmra.mrb[0].mxu0 %v4325
        %v4370 = vpop.f32.mrb[0].mxu0
        %v4371 = vadd.f32 0.0, %v4370
        %v4372 = vpop.f32.mrb[0].mxu0
        %v4373 = vpop.f32.mrb[0].mxu0
        %v4374 = vadd.f32 0.0, %v4373
        %v4375 = vpop.f32.mrb[0].mxu0
        %4376 = vmatprep.mubr.bf16.mxu0 0
        %4377 = vmatmul.mubr.bf16.gmra.mrb[0].mxu0 %v4328
        %v4378 = vpop.f32.mrb[0].mxu0
        %v4379 = vadd.f32 0.0, %v4378
        %v4380 = vpop.f32.mrb[0].mxu0
        %v4381 = vpop.f32.mrb[0].mxu0
        %v4382 = vadd.f32 0.0, %v4381
        %v4383 = vpop.f32.mrb[0].mxu0
        %4384 = vmatprep.mubr.bf16.mxu0 0
        %4385 = vmatmul.mubr.bf16.gmra.mrb[0].mxu0 %v4331
        %v4386 = vpop.f32.mrb[0].mxu0
        %v4387 = vadd.f32 0.0, %v4386
        %v4388 = vpop.f32.mrb[0].mxu0
        %v4389 = vpop.f32.mrb[0].mxu0
        %v4390 = vadd.f32 0.0, %v4389
        %v4391 = vpop.f32.mrb[0].mxu0
        %4392 = vmatprep.mubr.bf16.mxu0 0
        %4393 = vmatmul.mubr.bf16.gmra.mrb[0].mxu0 %v4334
        %v4394 = vpop.f32.mrb[0].mxu0
        %v4395 = vadd.f32 0.0, %v4394
        %v4396 = vpop.f32.mrb[0].mxu0
        %v4397 = vpop.f32.mrb[0].mxu0
        %v4398 = vadd.f32 0.0, %v4397
        %v4399 = vpop.f32.mrb[0].mxu0
        %4400 = vdwg.mxu0
        %v4403 = vunpack.c.l.b16 %v3433
        %v4404 = vunpack.c.l.b16 %v3434
        %v4405 = vpack.c.b16 %v4404, %v4403
        %v4408 = vsel %vm2290, %v4020, 0
        %v4411 = vsel %vm2290, %v4021, 0
        %v4414 = vsel %vm2290, %v4022, 0
        %v4417 = vsel %vm2290, %v4023, 0
        %4419 = vmatprep.subr.bf16.mxu0 0
        %4420 = vmatpush1.bf16.msra.mxu0 %v4405
        %4421 = vmatprep.subr.bf16.mxu0 0
        %4422 = vmatpush1.bf16.msra.mxu0 0
        %4423 = vmatprep.subr.bf16.mxu0 0
        %4424 = vmatpush1.bf16.msra.mxu0 0
        %4425 = vmatprep.subr.bf16.mxu0 0
        %4426 = vmatpush1.bf16.msra.mxu0 0
        %4427 = vmatprep.subr.bf16.mxu0 0
        %4428 = vmatpush1.bf16.msra.mxu0 0
        %4429 = vmatprep.subr.bf16.mxu0 0
        %4430 = vmatpush1.bf16.msra.mxu0 0
        %4431 = vmatprep.subr.bf16.mxu0 0
        %4432 = vmatpush1.bf16.msra.mxu0 0
        %4433 = vmatprep.subr.bf16.mxu0 0
        %4434 = vmatpush1.bf16.msra.mxu0 0
        %4435 = vmatprep.subr.bf16.mxu0 0
        %4436 = vmatpush1.bf16.msra.mxu0 0
        %4437 = vmatprep.subr.bf16.mxu0 0
        %4438 = vmatpush1.bf16.msra.mxu0 0
        %4439 = vmatprep.subr.bf16.mxu0 0
        %4440 = vmatpush1.bf16.msra.mxu0 0
        %4441 = vmatprep.subr.bf16.mxu0 0
        %4442 = vmatpush1.bf16.msra.mxu0 0
        %4443 = vmatprep.subr.bf16.mxu0 0
        %4444 = vmatpush1.bf16.msra.mxu0 0
        %4445 = vmatprep.subr.bf16.mxu0 0
        %4446 = vmatpush1.bf16.msra.mxu0 0
        %4447 = vmatprep.subr.bf16.mxu0 0
        %4448 = vmatpush1.bf16.msra.mxu0 0
        %4449 = vmatprep.subr.bf16.mxu0 0
        %4450 = vmatpush1.bf16.msra.mxu0 0
        %4451 = vmatprep.mubr.bf16.mxu0 0
        %4452 = vmatmul.mubr.bf16.gmra.mrb[0].mxu0 %v4408
        %v4453 = vpop.f32.mrb[0].mxu0
        %v4454 = vadd.f32 %v4371, %v4453
        %v4455 = vpop.f32.mrb[0].mxu0
        %v4456 = vpop.f32.mrb[0].mxu0
        %v4457 = vadd.f32 %v4374, %v4456
        %v4458 = vpop.f32.mrb[0].mxu0
        %4459 = vmatprep.mubr.bf16.mxu0 0
        %4460 = vmatmul.mubr.bf16.gmra.mrb[0].mxu0 %v4411
        %v4461 = vpop.f32.mrb[0].mxu0
        %v4462 = vadd.f32 %v4379, %v4461
        %v4463 = vpop.f32.mrb[0].mxu0
        %v4464 = vpop.f32.mrb[0].mxu0
        %v4465 = vadd.f32 %v4382, %v4464
        %v4466 = vpop.f32.mrb[0].mxu0
        %4467 = vmatprep.mubr.bf16.mxu0 0
        %4468 = vmatmul.mubr.bf16.gmra.mrb[0].mxu0 %v4414
        %v4469 = vpop.f32.mrb[0].mxu0
        %v4470 = vadd.f32 %v4387, %v4469
        %v4471 = vpop.f32.mrb[0].mxu0
        %v4472 = vpop.f32.mrb[0].mxu0
        %v4473 = vadd.f32 %v4390, %v4472
        %v4474 = vpop.f32.mrb[0].mxu0
        %4475 = vmatprep.mubr.bf16.mxu0 0
        %4476 = vmatmul.mubr.bf16.gmra.mrb[0].mxu0 %v4417
        %v4477 = vpop.f32.mrb[0].mxu0
        %v4478 = vadd.f32 %v4395, %v4477
        %v4479 = vpop.f32.mrb[0].mxu0
        %v4480 = vpop.f32.mrb[0].mxu0
        %v4481 = vadd.f32 %v4398, %v4480
        %v4482 = vpop.f32.mrb[0].mxu0
        %4483 = vdwg.mxu0
        %v4484 = vadd.f32 %v3415, %v4454
        %v4485 = vadd.f32 %v3416, %v4457
        %v4486 = vadd.f32 %v3417, %v4462
        %v4487 = vadd.f32 %v3418, %v4465
        %v4488 = vadd.f32 %v3419, %v4470
        %v4489 = vadd.f32 %v3420, %v4473
        %v4490 = vadd.f32 %v3421, %v4478
        %v4491 = vadd.f32 %v3422, %v4481
        %v4493 = vlaneseq
        %v4494 = vshrl.u32 %v4493, 7
        %v4495 = vsub.s32 0, %v4494
        %v4496 = vrot.slane %v3437, %v4495
        %v4498 = vadd.f32 %v4484, %v4496
        %v4499 = vadd.f32 %v4485, %v4496
        %v4500 = vadd.f32 %v4486, %v4496
        %v4501 = vadd.f32 %v4487, %v4496
        %v4502 = vadd.f32 %v4488, %v4496
        %v4503 = vadd.f32 %v4489, %v4496
        %v4504 = vadd.f32 %v4490, %v4496
        %v4505 = vadd.f32 %v4491, %v4496
        %v4506 = vsel %vm1845, %v4498, 0.0
        %4507 = vadd.xlane.f32.xlu0 %v4506
        %v4508 = vpop.xlane.xlu0 %4507
        %v4509 = vsel %vm1845, %v4499, 0.0
        %4510 = vadd.xlane.f32.xlu0 %v4509
        %v4511 = vpop.xlane.xlu0 %4510
        %v4512 = vsel %vm1845, %v4500, 0.0
        %4513 = vadd.xlane.f32.xlu0 %v4512
        %v4514 = vpop.xlane.xlu0 %4513
        %v4515 = vsel %vm1845, %v4501, 0.0
        %4516 = vadd.xlane.f32.xlu0 %v4515
        %v4517 = vpop.xlane.xlu0 %4516
        %v4518 = vsel %vm1845, %v4502, 0.0
        %4519 = vadd.xlane.f32.xlu0 %v4518
        %v4520 = vpop.xlane.xlu0 %4519
        %v4521 = vsel %vm1845, %v4503, 0.0
        %4522 = vadd.xlane.f32.xlu0 %v4521
        %v4523 = vpop.xlane.xlu0 %4522
        %v4524 = vsel %vm1845, %v4504, 0.0
        %4525 = vadd.xlane.f32.xlu0 %v4524
        %v4526 = vpop.xlane.xlu0 %4525
        %v4527 = vsel %vm1845, %v4505, 0.0
        %4528 = vadd.xlane.f32.xlu0 %v4527
        %v4529 = vpop.xlane.xlu0 %4528
        %v4530 = vmul.f32 %v4508, %v1870
        %v4531 = vmul.f32 %v4511, %v1870
        %v4532 = vmul.f32 %v4514, %v1870
        %v4533 = vmul.f32 %v4517, %v1870
        %v4534 = vmul.f32 %v4520, %v1870
        %v4535 = vmul.f32 %v4523, %v1870
        %v4536 = vmul.f32 %v4526, %v1870
        %v4537 = vmul.f32 %v4529, %v1870
        %v4538 = vsub.f32 %v4498, %v4530
        %v4539 = vsub.f32 %v4499, %v4531
        %v4540 = vsub.f32 %v4500, %v4532
        %v4541 = vsub.f32 %v4501, %v4533
        %v4542 = vsub.f32 %v4502, %v4534
        %v4543 = vsub.f32 %v4503, %v4535
        %v4544 = vsub.f32 %v4504, %v4536
        %v4545 = vsub.f32 %v4505, %v4537
        %v4546 = vmul.f32 %v4538, %v4538
        %v4547 = vmul.f32 %v4539, %v4539
        %v4548 = vmul.f32 %v4540, %v4540
        %v4549 = vmul.f32 %v4541, %v4541
        %v4550 = vmul.f32 %v4542, %v4542
        %v4551 = vmul.f32 %v4543, %v4543
        %v4552 = vmul.f32 %v4544, %v4544
        %v4553 = vmul.f32 %v4545, %v4545
        %v4554 = vsel %vm1845, %v4546, 0.0
        %4555 = vadd.xlane.f32.xlu0 %v4554
        %v4556 = vpop.xlane.xlu0 %4555
        %v4557 = vsel %vm1845, %v4547, 0.0
        %4558 = vadd.xlane.f32.xlu0 %v4557
        %v4559 = vpop.xlane.xlu0 %4558
        %v4560 = vsel %vm1845, %v4548, 0.0
        %4561 = vadd.xlane.f32.xlu0 %v4560
        %v4562 = vpop.xlane.xlu0 %4561
        %v4563 = vsel %vm1845, %v4549, 0.0
        %4564 = vadd.xlane.f32.xlu0 %v4563
        %v4565 = vpop.xlane.xlu0 %4564
        %v4566 = vsel %vm1845, %v4550, 0.0
        %4567 = vadd.xlane.f32.xlu0 %v4566
        %v4568 = vpop.xlane.xlu0 %4567
        %v4569 = vsel %vm1845, %v4551, 0.0
        %4570 = vadd.xlane.f32.xlu0 %v4569
        %v4571 = vpop.xlane.xlu0 %4570
        %v4572 = vsel %vm1845, %v4552, 0.0
        %4573 = vadd.xlane.f32.xlu0 %v4572
        %v4574 = vpop.xlane.xlu0 %4573
        %v4575 = vsel %vm1845, %v4553, 0.0
        %4576 = vadd.xlane.f32.xlu0 %v4575
        %v4577 = vpop.xlane.xlu0 %4576
        %v4578 = vmul.f32 %v4556, %v1870
        %v4579 = vmul.f32 %v4559, %v1870
        %v4580 = vmul.f32 %v4562, %v1870
        %v4581 = vmul.f32 %v4565, %v1870
        %v4582 = vmul.f32 %v4568, %v1870
        %v4583 = vmul.f32 %v4571, %v1870
        %v4584 = vmul.f32 %v4574, %v1870
        %v4585 = vmul.f32 %v4577, %v1870
        %v4586 = vadd.f32 %v4578, 1e-05
        %v4587 = vadd.f32 %v4579, 1e-05
        %v4588 = vadd.f32 %v4580, 1e-05
        %v4589 = vadd.f32 %v4581, 1e-05
        %v4590 = vadd.f32 %v4582, 1e-05
        %v4591 = vadd.f32 %v4583, 1e-05
        %v4592 = vadd.f32 %v4584, 1e-05
        %v4593 = vadd.f32 %v4585, 1e-05
        %v4594 = vrsqrt.pop %v4586
        %v4595 = vrsqrt.pop %v4587
        %v4596 = vrsqrt.pop %v4588
        %v4597 = vrsqrt.pop %v4589
        %v4598 = vrsqrt.pop %v4590
        %v4599 = vrsqrt.pop %v4591
        %v4600 = vrsqrt.pop %v4592
        %v4601 = vrsqrt.pop %v4593
        %v4602 = vmul.f32 %v4538, %v4594
        %v4603 = vmul.f32 %v4539, %v4595
        %v4604 = vmul.f32 %v4540, %v4596
        %v4605 = vmul.f32 %v4541, %v4597
        %v4606 = vmul.f32 %v4542, %v4598
        %v4607 = vmul.f32 %v4543, %v4599
        %v4608 = vmul.f32 %v4544, %v4600
        %v4609 = vmul.f32 %v4545, %v4601
        %v4610 = vpack.c.bf16 %v4603, %v4602
        %v4611 = vpack.c.bf16 %v4605, %v4604
        %v4612 = vpack.c.bf16 %v4607, %v4606
        %v4613 = vpack.c.bf16 %v4609, %v4608
        %v4615 = vlaneseq
        %v4616 = vshrl.u32 %v4615, 7
        %v4617 = vsub.s32 0, %v4616
        %v4618 = vrot.slane %v3442, %v4617
        %v4624 = vunpack.c.l.b16 %v3438
        %v4625 = vunpack.c.l.b16 %v3439
        %v4626 = vunpack.c.l.b16 %v3440
        %v4627 = vunpack.c.l.b16 %v3441
        %v4628 = vpack.c.b16 %v4625, %v4624
        %v4629 = vpack.c.b16 %v4627, %v4626
        %v4633 = vsel %vm1845, %v4610, 0
        %v4636 = vsel %vm1845, %v4611, 0
        %v4639 = vsel %vm1845, %v4612, 0
        %v4642 = vsel %vm1845, %v4613, 0
        %4644 = vmatprep.subr.bf16.mxu0 0
        %4645 = vmatpush1.bf16.msra.mxu0 %v4628
        %4646 = vmatprep.subr.bf16.mxu0 0
        %4647 = vmatpush1.bf16.msra.mxu0 %v4629
        %4648 = vmatprep.subr.bf16.mxu0 0
        %4649 = vmatpush1.bf16.msra.mxu0 0
        %4650 = vmatprep.subr.bf16.mxu0 0
        %4651 = vmatpush1.bf16.msra.mxu0 0
        %4652 = vmatprep.subr.bf16.mxu0 0
        %4653 = vmatpush1.bf16.msra.mxu0 0
        %4654 = vmatprep.subr.bf16.mxu0 0
        %4655 = vmatpush1.bf16.msra.mxu0 0
        %4656 = vmatprep.subr.bf16.mxu0 0
        %4657 = vmatpush1.bf16.msra.mxu0 0
        %4658 = vmatprep.subr.bf16.mxu0 0
        %4659 = vmatpush1.bf16.msra.mxu0 0
        %4660 = vmatprep.subr.bf16.mxu0 0
        %4661 = vmatpush1.bf16.msra.mxu0 0
        %4662 = vmatprep.subr.bf16.mxu0 0
        %4663 = vmatpush1.bf16.msra.mxu0 0
        %4664 = vmatprep.subr.bf16.mxu0 0
        %4665 = vmatpush1.bf16.msra.mxu0 0
        %4666 = vmatprep.subr.bf16.mxu0 0
        %4667 = vmatpush1.bf16.msra.mxu0 0
        %4668 = vmatprep.subr.bf16.mxu0 0
        %4669 = vmatpush1.bf16.msra.mxu0 0
        %4670 = vmatprep.subr.bf16.mxu0 0
        %4671 = vmatpush1.bf16.msra.mxu0 0
        %4672 = vmatprep.subr.bf16.mxu0 0
        %4673 = vmatpush1.bf16.msra.mxu0 0
        %4674 = vmatprep.subr.bf16.mxu0 0
        %4675 = vmatpush1.bf16.msra.mxu0 0
        %4676 = vmatprep.mubr.bf16.mxu0 0
        %4677 = vmatmul.mubr.bf16.gmra.mrb[0].mxu0 %v4633
        %v4678 = vpop.f32.mrb[0].mxu0
        %v4679 = vadd.f32 %v4618, %v4678
        %v4680 = vpop.f32.mrb[0].mxu0
        %v4681 = vpop.f32.mrb[0].mxu0
        %v4682 = vadd.f32 %v4618, %v4681
        %v4683 = vpop.f32.mrb[0].mxu0
        %4684 = vmatprep.mubr.bf16.mxu0 0
        %4685 = vmatmul.mubr.bf16.gmra.mrb[0].mxu0 %v4636
        %v4686 = vpop.f32.mrb[0].mxu0
        %v4687 = vadd.f32 %v4618, %v4686
        %v4688 = vpop.f32.mrb[0].mxu0
        %v4689 = vpop.f32.mrb[0].mxu0
        %v4690 = vadd.f32 %v4618, %v4689
        %v4691 = vpop.f32.mrb[0].mxu0
        %4692 = vmatprep.mubr.bf16.mxu0 0
        %4693 = vmatmul.mubr.bf16.gmra.mrb[0].mxu0 %v4639
        %v4694 = vpop.f32.mrb[0].mxu0
        %v4695 = vadd.f32 %v4618, %v4694
        %v4696 = vpop.f32.mrb[0].mxu0
        %v4697 = vpop.f32.mrb[0].mxu0
        %v4698 = vadd.f32 %v4618, %v4697
        %v4699 = vpop.f32.mrb[0].mxu0
        %4700 = vmatprep.mubr.bf16.mxu0 0
        %4701 = vmatmul.mubr.bf16.gmra.mrb[0].mxu0 %v4642
        %v4702 = vpop.f32.mrb[0].mxu0
        %v4703 = vadd.f32 %v4618, %v4702
        %v4704 = vpop.f32.mrb[0].mxu0
        %v4705 = vpop.f32.mrb[0].mxu0
        %v4706 = vadd.f32 %v4618, %v4705
        %v4707 = vpop.f32.mrb[0].mxu0
        %4708 = vdwg.mxu0
        %v4709 = vmul.f32 %v4679, 0.5
        %v4710 = vmul.f32 %v4682, 0.5
        %v4711 = vmul.f32 %v4687, 0.5
        %v4712 = vmul.f32 %v4690, 0.5
        %v4713 = vmul.f32 %v4695, 0.5
        %v4714 = vmul.f32 %v4698, 0.5
        %v4715 = vmul.f32 %v4703, 0.5
        %v4716 = vmul.f32 %v4706, 0.5
        %v4717 = vmul.f32 %v4679, %v3263
        %v4718 = vmul.f32 %v4682, %v3263
        %v4719 = vmul.f32 %v4687, %v3263
        %v4720 = vmul.f32 %v4690, %v3263
        %v4721 = vmul.f32 %v4695, %v3263
        %v4722 = vmul.f32 %v4698, %v3263
        %v4723 = vmul.f32 %v4703, %v3263
        %v4724 = vmul.f32 %v4706, %v3263
        %v4725 = verf.f32.pop %v4717
        %v4726 = verf.f32.pop %v4718
        %v4727 = verf.f32.pop %v4719
        %v4728 = verf.f32.pop %v4720
        %v4729 = verf.f32.pop %v4721
        %v4730 = verf.f32.pop %v4722
        %v4731 = verf.f32.pop %v4723
        %v4732 = verf.f32.pop %v4724
        %v4733 = vadd.f32 %v4725, 1.0
        %v4734 = vadd.f32 %v4726, 1.0
        %v4735 = vadd.f32 %v4727, 1.0
        %v4736 = vadd.f32 %v4728, 1.0
        %v4737 = vadd.f32 %v4729, 1.0
        %v4738 = vadd.f32 %v4730, 1.0
        %v4739 = vadd.f32 %v4731, 1.0
        %v4740 = vadd.f32 %v4732, 1.0
        %v4741 = vmul.f32 %v4709, %v4733
        %v4742 = vmul.f32 %v4710, %v4734
        %v4743 = vmul.f32 %v4711, %v4735
        %v4744 = vmul.f32 %v4712, %v4736
        %v4745 = vmul.f32 %v4713, %v4737
        %v4746 = vmul.f32 %v4714, %v4738
        %v4747 = vmul.f32 %v4715, %v4739
        %v4748 = vmul.f32 %v4716, %v4740
        %v4749 = vpack.c.bf16 %v4742, %v4741
        %v4750 = vpack.c.bf16 %v4744, %v4743
        %v4751 = vpack.c.bf16 %v4746, %v4745
        %v4752 = vpack.c.bf16 %v4748, %v4747
        %v4761 = vunpack.c.l.b16 %v3443
        %v4762 = vunpack.c.l.b16 %v3444
        %v4763 = vunpack.c.l.b16 %v3445
        %v4764 = vunpack.c.l.b16 %v3446
        %v4765 = vunpack.c.l.b16 %v3447
        %v4766 = vunpack.c.l.b16 %v3448
        %v4767 = vunpack.c.l.b16 %v3449
        %v4768 = vunpack.c.l.b16 %v3450
        %v4769 = vpack.c.b16 %v4762, %v4761
        %v4770 = vpack.c.b16 %v4764, %v4763
        %v4771 = vpack.c.b16 %v4766, %v4765
        %v4772 = vpack.c.b16 %v4768, %v4767
        %v4778 = vsel %vm2380, %v4749, 0
        %v4781 = vsel %vm2380, %v4750, 0
        %v4784 = vsel %vm2380, %v4751, 0
        %v4787 = vsel %vm2380, %v4752, 0
        %4789 = vmatprep.subr.bf16.mxu0 0
        %4790 = vmatpush1.bf16.msra.mxu0 %v4769
        %4791 = vmatprep.subr.bf16.mxu0 0
        %4792 = vmatpush1.bf16.msra.mxu0 %v4770
        %4793 = vmatprep.subr.bf16.mxu0 0
        %4794 = vmatpush1.bf16.msra.mxu0 %v4771
        %4795 = vmatprep.subr.bf16.mxu0 0
        %4796 = vmatpush1.bf16.msra.mxu0 %v4772
        %4797 = vmatprep.subr.bf16.mxu0 0
        %4798 = vmatpush1.bf16.msra.mxu0 0
        %4799 = vmatprep.subr.bf16.mxu0 0
        %4800 = vmatpush1.bf16.msra.mxu0 0
        %4801 = vmatprep.subr.bf16.mxu0 0
        %4802 = vmatpush1.bf16.msra.mxu0 0
        %4803 = vmatprep.subr.bf16.mxu0 0
        %4804 = vmatpush1.bf16.msra.mxu0 0
        %4805 = vmatprep.subr.bf16.mxu0 0
        %4806 = vmatpush1.bf16.msra.mxu0 0
        %4807 = vmatprep.subr.bf16.mxu0 0
        %4808 = vmatpush1.bf16.msra.mxu0 0
        %4809 = vmatprep.subr.bf16.mxu0 0
        %4810 = vmatpush1.bf16.msra.mxu0 0
        %4811 = vmatprep.subr.bf16.mxu0 0
        %4812 = vmatpush1.bf16.msra.mxu0 0
        %4813 = vmatprep.subr.bf16.mxu0 0
        %4814 = vmatpush1.bf16.msra.mxu0 0
        %4815 = vmatprep.subr.bf16.mxu0 0
        %4816 = vmatpush1.bf16.msra.mxu0 0
        %4817 = vmatprep.subr.bf16.mxu0 0
        %4818 = vmatpush1.bf16.msra.mxu0 0
        %4819 = vmatprep.subr.bf16.mxu0 0
        %4820 = vmatpush1.bf16.msra.mxu0 0
        %4821 = vmatprep.mubr.bf16.mxu0 0
        %4822 = vmatmul.mubr.bf16.gmra.mrb[0].mxu0 %v4778
        %v4823 = vpop.f32.mrb[0].mxu0
        %v4824 = vadd.f32 0.0, %v4823
        %v4825 = vpop.f32.mrb[0].mxu0
        %v4826 = vpop.f32.mrb[0].mxu0
        %v4827 = vadd.f32 0.0, %v4826
        %v4828 = vpop.f32.mrb[0].mxu0
        %4829 = vmatprep.mubr.bf16.mxu0 0
        %4830 = vmatmul.mubr.bf16.gmra.mrb[0].mxu0 %v4781
        %v4831 = vpop.f32.mrb[0].mxu0
        %v4832 = vadd.f32 0.0, %v4831
        %v4833 = vpop.f32.mrb[0].mxu0
        %v4834 = vpop.f32.mrb[0].mxu0
        %v4835 = vadd.f32 0.0, %v4834
        %v4836 = vpop.f32.mrb[0].mxu0
        %4837 = vmatprep.mubr.bf16.mxu0 0
        %4838 = vmatmul.mubr.bf16.gmra.mrb[0].mxu0 %v4784
        %v4839 = vpop.f32.mrb[0].mxu0
        %v4840 = vadd.f32 0.0, %v4839
        %v4841 = vpop.f32.mrb[0].mxu0
        %v4842 = vpop.f32.mrb[0].mxu0
        %v4843 = vadd.f32 0.0, %v4842
        %v4844 = vpop.f32.mrb[0].mxu0
        %4845 = vmatprep.mubr.bf16.mxu0 0
        %4846 = vmatmul.mubr.bf16.gmra.mrb[0].mxu0 %v4787
        %v4847 = vpop.f32.mrb[0].mxu0
        %v4848 = vadd.f32 0.0, %v4847
        %v4849 = vpop.f32.mrb[0].mxu0
        %v4850 = vpop.f32.mrb[0].mxu0
        %v4851 = vadd.f32 0.0, %v4850
        %v4852 = vpop.f32.mrb[0].mxu0
        %4853 = vdwg.mxu0
        %v4854 = vadd.f32 %v4498, %v4824
        %v4855 = vadd.f32 %v4499, %v4827
        %v4856 = vadd.f32 %v4500, %v4832
        %v4857 = vadd.f32 %v4501, %v4835
        %v4858 = vadd.f32 %v4502, %v4840
        %v4859 = vadd.f32 %v4503, %v4843
        %v4860 = vadd.f32 %v4504, %v4848
        %v4861 = vadd.f32 %v4505, %v4851
        %v4863 = vlaneseq
        %v4864 = vshrl.u32 %v4863, 7
        %v4865 = vsub.s32 0, %v4864
        %v4866 = vrot.slane %v3451, %v4865
        %v4868 = vadd.f32 %v4854, %v4866
        %v4869 = vadd.f32 %v4855, %v4866
        %v4870 = vadd.f32 %v4856, %v4866
        %v4871 = vadd.f32 %v4857, %v4866
        %v4872 = vadd.f32 %v4858, %v4866
        %v4873 = vadd.f32 %v4859, %v4866
        %v4874 = vadd.f32 %v4860, %v4866
        %v4875 = vadd.f32 %v4861, %v4866
        %v4876 = vld [vmem:[#allocation17] sm:$0x1]
        %v4877 = vld [vmem:[#allocation19] sm:$0x1]
        %v4878 = vsel %vm1845, %v4868, 0.0
        %4879 = vadd.xlane.f32.xlu0 %v4878
        %v4880 = vpop.xlane.xlu0 %4879
        %v4881 = vsel %vm1845, %v4869, 0.0
        %4882 = vadd.xlane.f32.xlu0 %v4881
        %v4883 = vpop.xlane.xlu0 %4882
        %v4884 = vsel %vm1845, %v4870, 0.0
        %4885 = vadd.xlane.f32.xlu0 %v4884
        %v4886 = vpop.xlane.xlu0 %4885
        %v4887 = vsel %vm1845, %v4871, 0.0
        %4888 = vadd.xlane.f32.xlu0 %v4887
        %v4889 = vpop.xlane.xlu0 %4888
        %v4890 = vsel %vm1845, %v4872, 0.0
        %4891 = vadd.xlane.f32.xlu0 %v4890
        %v4892 = vpop.xlane.xlu0 %4891
        %v4893 = vsel %vm1845, %v4873, 0.0
        %4894 = vadd.xlane.f32.xlu0 %v4893
        %v4895 = vpop.xlane.xlu0 %4894
        %v4896 = vsel %vm1845, %v4874, 0.0
        %4897 = vadd.xlane.f32.xlu0 %v4896
        %v4898 = vpop.xlane.xlu0 %4897
        %v4899 = vsel %vm1845, %v4875, 0.0
        %4900 = vadd.xlane.f32.xlu0 %v4899
        %v4901 = vpop.xlane.xlu0 %4900
        %v4902 = vmul.f32 %v4880, %v1870
        %v4903 = vmul.f32 %v4883, %v1870
        %v4904 = vmul.f32 %v4886, %v1870
        %v4905 = vmul.f32 %v4889, %v1870
        %v4906 = vmul.f32 %v4892, %v1870
        %v4907 = vmul.f32 %v4895, %v1870
        %v4908 = vmul.f32 %v4898, %v1870
        %v4909 = vmul.f32 %v4901, %v1870
        %v4910 = vsub.f32 %v4868, %v4902
        %v4911 = vsub.f32 %v4869, %v4903
        %v4912 = vsub.f32 %v4870, %v4904
        %v4913 = vsub.f32 %v4871, %v4905
        %v4914 = vsub.f32 %v4872, %v4906
        %v4915 = vsub.f32 %v4873, %v4907
        %v4916 = vsub.f32 %v4874, %v4908
        %v4917 = vsub.f32 %v4875, %v4909
        %v4918 = vmul.f32 %v4910, %v4910
        %v4919 = vmul.f32 %v4911, %v4911
        %v4920 = vmul.f32 %v4912, %v4912
        %v4921 = vmul.f32 %v4913, %v4913
        %v4922 = vmul.f32 %v4914, %v4914
        %v4923 = vmul.f32 %v4915, %v4915
        %v4924 = vmul.f32 %v4916, %v4916
        %v4925 = vmul.f32 %v4917, %v4917
        %v4926 = vsel %vm1845, %v4918, 0.0
        %4927 = vadd.xlane.f32.xlu0 %v4926
        %v4928 = vpop.xlane.xlu0 %4927
        %v4929 = vsel %vm1845, %v4919, 0.0
        %4930 = vadd.xlane.f32.xlu0 %v4929
        %v4931 = vpop.xlane.xlu0 %4930
        %v4932 = vsel %vm1845, %v4920, 0.0
        %4933 = vadd.xlane.f32.xlu0 %v4932
        %v4934 = vpop.xlane.xlu0 %4933
        %v4935 = vsel %vm1845, %v4921, 0.0
        %4936 = vadd.xlane.f32.xlu0 %v4935
        %v4937 = vpop.xlane.xlu0 %4936
        %v4938 = vsel %vm1845, %v4922, 0.0
        %4939 = vadd.xlane.f32.xlu0 %v4938
        %v4940 = vpop.xlane.xlu0 %4939
        %v4941 = vsel %vm1845, %v4923, 0.0
        %4942 = vadd.xlane.f32.xlu0 %v4941
        %v4943 = vpop.xlane.xlu0 %4942
        %v4944 = vsel %vm1845, %v4924, 0.0
        %4945 = vadd.xlane.f32.xlu0 %v4944
        %v4946 = vpop.xlane.xlu0 %4945
        %v4947 = vsel %vm1845, %v4925, 0.0
        %4948 = vadd.xlane.f32.xlu0 %v4947
        %v4949 = vpop.xlane.xlu0 %4948
        %v4950 = vmul.f32 %v4928, %v1870
        %v4951 = vmul.f32 %v4931, %v1870
        %v4952 = vmul.f32 %v4934, %v1870
        %v4953 = vmul.f32 %v4937, %v1870
        %v4954 = vmul.f32 %v4940, %v1870
        %v4955 = vmul.f32 %v4943, %v1870
        %v4956 = vmul.f32 %v4946, %v1870
        %v4957 = vmul.f32 %v4949, %v1870
        %v4958 = vadd.f32 %v4950, 1e-05
        %v4959 = vadd.f32 %v4951, 1e-05
        %v4960 = vadd.f32 %v4952, 1e-05
        %v4961 = vadd.f32 %v4953, 1e-05
        %v4962 = vadd.f32 %v4954, 1e-05
        %v4963 = vadd.f32 %v4955, 1e-05
        %v4964 = vadd.f32 %v4956, 1e-05
        %v4965 = vadd.f32 %v4957, 1e-05
        %v4966 = vrsqrt.pop %v4958
        %v4967 = vrsqrt.pop %v4959
        %v4968 = vrsqrt.pop %v4960
        %v4969 = vrsqrt.pop %v4961
        %v4970 = vrsqrt.pop %v4962
        %v4971 = vrsqrt.pop %v4963
        %v4972 = vrsqrt.pop %v4964
        %v4973 = vrsqrt.pop %v4965
        %v4974 = vmul.f32 %v4910, %v4966
        %v4975 = vmul.f32 %v4911, %v4967
        %v4976 = vmul.f32 %v4912, %v4968
        %v4977 = vmul.f32 %v4913, %v4969
        %v4978 = vmul.f32 %v4914, %v4970
        %v4979 = vmul.f32 %v4915, %v4971
        %v4980 = vmul.f32 %v4916, %v4972
        %v4981 = vmul.f32 %v4917, %v4973
        %v4983 = vlaneseq
        %v4984 = vshrl.u32 %v4983, 7
        %v4985 = vsub.s32 0, %v4984
        %v4986 = vrot.slane %v4876, %v4985
        %v4988 = vmul.f32 %v4974, %v4986
        %v4989 = vmul.f32 %v4975, %v4986
        %v4990 = vmul.f32 %v4976, %v4986
        %v4991 = vmul.f32 %v4977, %v4986
        %v4992 = vmul.f32 %v4978, %v4986
        %v4993 = vmul.f32 %v4979, %v4986
        %v4994 = vmul.f32 %v4980, %v4986
        %v4995 = vmul.f32 %v4981, %v4986
        %v4997 = vlaneseq
        %v4998 = vshrl.u32 %v4997, 7
        %v4999 = vsub.s32 0, %v4998
        %v5000 = vrot.slane %v4877, %v4999
        %v5002 = vadd.f32 %v4988, %v5000
        %v5003 = vadd.f32 %v4989, %v5000
        %v5004 = vadd.f32 %v4990, %v5000
        %v5005 = vadd.f32 %v4991, %v5000
        %v5006 = vadd.f32 %v4992, %v5000
        %v5007 = vadd.f32 %v4993, %v5000
        %v5008 = vadd.f32 %v4994, %v5000
        %v5009 = vadd.f32 %v4995, %v5000
        %v5010 = vld [vmem:[%s53] sm:$0xf]
        %v5011 = vld [vmem:[%s53 + $0x4] sm:$0xf]
        %v5012 = vld [vmem:[%s53 + $0x8] sm:$0xf]
        %v5013 = vld [vmem:[%s53 + $0xc] sm:$0xf]
        %v5014 = vld [vmem:[#allocation20] sm:$0x1]
        %v5015 = vld [vmem:[%s57] sm:$0xf]
        %v5016 = vld [vmem:[%s57 + $0x4] sm:$0xf]
        %v5017 = vld [vmem:[%s57 + $0x8] sm:$0xf]
        %v5018 = vld [vmem:[%s57 + $0xc] sm:$0xf]
        %v5019 = vld [vmem:[#allocation22] sm:$0x1]
        %v5020 = vld [vmem:[%s61] sm:$0xf]
        %v5021 = vld [vmem:[%s61 + $0x4] sm:$0xf]
        %v5022 = vld [vmem:[%s61 + $0x8] sm:$0xf]
        %v5023 = vld [vmem:[%s61 + $0xc] sm:$0xf]
        %v5024 = vld [vmem:[#allocation23] sm:$0x1]
        %v5025 = vld [vmem:[%s65] sm:$0xf]
        %v5026 = vld [vmem:[%s65 + $0x4] sm:$0xf]
        %v5027 = vld [vmem:[%s65 + $0x8] sm:$0xf]
        %v5028 = vld [vmem:[%s65 + $0xc] sm:$0xf]
        %v5029 = vld [vmem:[#allocation25] sm:$0x1]
        %v5030 = vld [vmem:[%s69] sm:$0xf]
        %v5031 = vld [vmem:[%s69 + $0x4] sm:$0xf]
        %v5032 = vld [vmem:[%s69 + $0x8] sm:$0xf]
        %v5033 = vld [vmem:[%s69 + $0xc] sm:$0xf]
        %v5034 = vld [vmem:[%s69 + $0x10] sm:$0xf]
        %v5035 = vld [vmem:[%s69 + $0x14] sm:$0xf]
        %v5036 = vld [vmem:[%s69 + $0x18] sm:$0xf]
        %v5037 = vld [vmem:[%s69 + $0x1c] sm:$0xf]
        %v5038 = vld [vmem:[#allocation26] sm:$0x1]
        %v5039 = vsel %vm1845, %v5002, 0.0
        %5040 = vadd.xlane.f32.xlu0 %v5039
        %v5041 = vpop.xlane.xlu0 %5040
        %v5042 = vsel %vm1845, %v5003, 0.0
        %5043 = vadd.xlane.f32.xlu0 %v5042
        %v5044 = vpop.xlane.xlu0 %5043
        %v5045 = vsel %vm1845, %v5004, 0.0
        %5046 = vadd.xlane.f32.xlu0 %v5045
        %v5047 = vpop.xlane.xlu0 %5046
        %v5048 = vsel %vm1845, %v5005, 0.0
        %5049 = vadd.xlane.f32.xlu0 %v5048
        %v5050 = vpop.xlane.xlu0 %5049
        %v5051 = vsel %vm1845, %v5006, 0.0
        %5052 = vadd.xlane.f32.xlu0 %v5051
        %v5053 = vpop.xlane.xlu0 %5052
        %v5054 = vsel %vm1845, %v5007, 0.0
        %5055 = vadd.xlane.f32.xlu0 %v5054
        %v5056 = vpop.xlane.xlu0 %5055
        %v5057 = vsel %vm1845, %v5008, 0.0
        %5058 = vadd.xlane.f32.xlu0 %v5057
        %v5059 = vpop.xlane.xlu0 %5058
        %v5060 = vsel %vm1845, %v5009, 0.0
        %5061 = vadd.xlane.f32.xlu0 %v5060
        %v5062 = vpop.xlane.xlu0 %5061
        %v5063 = vmul.f32 %v5041, %v1870
        %v5064 = vmul.f32 %v5044, %v1870
        %v5065 = vmul.f32 %v5047, %v1870
        %v5066 = vmul.f32 %v5050, %v1870
        %v5067 = vmul.f32 %v5053, %v1870
        %v5068 = vmul.f32 %v5056, %v1870
        %v5069 = vmul.f32 %v5059, %v1870
        %v5070 = vmul.f32 %v5062, %v1870
        %v5071 = vsub.f32 %v5002, %v5063
        %v5072 = vsub.f32 %v5003, %v5064
        %v5073 = vsub.f32 %v5004, %v5065
        %v5074 = vsub.f32 %v5005, %v5066
        %v5075 = vsub.f32 %v5006, %v5067
        %v5076 = vsub.f32 %v5007, %v5068
        %v5077 = vsub.f32 %v5008, %v5069
        %v5078 = vsub.f32 %v5009, %v5070
        %v5079 = vmul.f32 %v5071, %v5071
        %v5080 = vmul.f32 %v5072, %v5072
        %v5081 = vmul.f32 %v5073, %v5073
        %v5082 = vmul.f32 %v5074, %v5074
        %v5083 = vmul.f32 %v5075, %v5075
        %v5084 = vmul.f32 %v5076, %v5076
        %v5085 = vmul.f32 %v5077, %v5077
        %v5086 = vmul.f32 %v5078, %v5078
        %v5087 = vsel %vm1845, %v5079, 0.0
        %5088 = vadd.xlane.f32.xlu0 %v5087
        %v5089 = vpop.xlane.xlu0 %5088
        %v5090 = vsel %vm1845, %v5080, 0.0
        %5091 = vadd.xlane.f32.xlu0 %v5090
        %v5092 = vpop.xlane.xlu0 %5091
        %v5093 = vsel %vm1845, %v5081, 0.0
        %5094 = vadd.xlane.f32.xlu0 %v5093
        %v5095 = vpop.xlane.xlu0 %5094
        %v5096 = vsel %vm1845, %v5082, 0.0
        %5097 = vadd.xlane.f32.xlu0 %v5096
        %v5098 = vpop.xlane.xlu0 %5097
        %v5099 = vsel %vm1845, %v5083, 0.0
        %5100 = vadd.xlane.f32.xlu0 %v5099
        %v5101 = vpop.xlane.xlu0 %5100
        %v5102 = vsel %vm1845, %v5084, 0.0
        %5103 = vadd.xlane.f32.xlu0 %v5102
        %v5104 = vpop.xlane.xlu0 %5103
        %v5105 = vsel %vm1845, %v5085, 0.0
        %5106 = vadd.xlane.f32.xlu0 %v5105
        %v5107 = vpop.xlane.xlu0 %5106
        %v5108 = vsel %vm1845, %v5086, 0.0
        %5109 = vadd.xlane.f32.xlu0 %v5108
        %v5110 = vpop.xlane.xlu0 %5109
        %v5111 = vmul.f32 %v5089, %v1870
        %v5112 = vmul.f32 %v5092, %v1870
        %v5113 = vmul.f32 %v5095, %v1870
        %v5114 = vmul.f32 %v5098, %v1870
        %v5115 = vmul.f32 %v5101, %v1870
        %v5116 = vmul.f32 %v5104, %v1870
        %v5117 = vmul.f32 %v5107, %v1870
        %v5118 = vmul.f32 %v5110, %v1870
        %v5119 = vadd.f32 %v5111, 1e-05
        %v5120 = vadd.f32 %v5112, 1e-05
        %v5121 = vadd.f32 %v5113, 1e-05
        %v5122 = vadd.f32 %v5114, 1e-05
        %v5123 = vadd.f32 %v5115, 1e-05
        %v5124 = vadd.f32 %v5116, 1e-05
        %v5125 = vadd.f32 %v5117, 1e-05
        %v5126 = vadd.f32 %v5118, 1e-05
        %v5127 = vrsqrt.pop %v5119
        %v5128 = vrsqrt.pop %v5120
        %v5129 = vrsqrt.pop %v5121
        %v5130 = vrsqrt.pop %v5122
        %v5131 = vrsqrt.pop %v5123
        %v5132 = vrsqrt.pop %v5124
        %v5133 = vrsqrt.pop %v5125
        %v5134 = vrsqrt.pop %v5126
        %v5135 = vmul.f32 %v5071, %v5127
        %v5136 = vmul.f32 %v5072, %v5128
        %v5137 = vmul.f32 %v5073, %v5129
        %v5138 = vmul.f32 %v5074, %v5130
        %v5139 = vmul.f32 %v5075, %v5131
        %v5140 = vmul.f32 %v5076, %v5132
        %v5141 = vmul.f32 %v5077, %v5133
        %v5142 = vmul.f32 %v5078, %v5134
        %v5143 = vpack.c.bf16 %v5136, %v5135
        %v5144 = vpack.c.bf16 %v5138, %v5137
        %v5145 = vpack.c.bf16 %v5140, %v5139
        %v5146 = vpack.c.bf16 %v5142, %v5141
        %v5148 = vlaneseq
        %v5149 = vshrl.u32 %v5148, 7
        %v5150 = vsub.s32 0, %v5149
        %v5151 = vrot.slane %v5014, %v5150
        %v5157 = vunpack.c.l.b16 %v5010
        %v5158 = vunpack.c.l.b16 %v5011
        %v5159 = vunpack.c.l.b16 %v5012
        %v5160 = vunpack.c.l.b16 %v5013
        %v5161 = vpack.c.b16 %v5158, %v5157
        %v5162 = vpack.c.b16 %v5160, %v5159
        %v5166 = vsel %vm1845, %v5143, 0
        %v5169 = vsel %vm1845, %v5144, 0
        %v5172 = vsel %vm1845, %v5145, 0
        %v5175 = vsel %vm1845, %v5146, 0
        %5177 = vmatprep.subr.bf16.mxu0 0
        %5178 = vmatpush1.bf16.msra.mxu0 %v5161
        %5179 = vmatprep.subr.bf16.mxu0 0
        %5180 = vmatpush1.bf16.msra.mxu0 %v5162
        %5181 = vmatprep.subr.bf16.mxu0 0
        %5182 = vmatpush1.bf16.msra.mxu0 0
        %5183 = vmatprep.subr.bf16.mxu0 0
        %5184 = vmatpush1.bf16.msra.mxu0 0
        %5185 = vmatprep.subr.bf16.mxu0 0
        %5186 = vmatpush1.bf16.msra.mxu0 0
        %5187 = vmatprep.subr.bf16.mxu0 0
        %5188 = vmatpush1.bf16.msra.mxu0 0
        %5189 = vmatprep.subr.bf16.mxu0 0
        %5190 = vmatpush1.bf16.msra.mxu0 0
        %5191 = vmatprep.subr.bf16.mxu0 0
        %5192 = vmatpush1.bf16.msra.mxu0 0
        %5193 = vmatprep.subr.bf16.mxu0 0
        %5194 = vmatpush1.bf16.msra.mxu0 0
        %5195 = vmatprep.subr.bf16.mxu0 0
        %5196 = vmatpush1.bf16.msra.mxu0 0
        %5197 = vmatprep.subr.bf16.mxu0 0
        %5198 = vmatpush1.bf16.msra.mxu0 0
        %5199 = vmatprep.subr.bf16.mxu0 0
        %5200 = vmatpush1.bf16.msra.mxu0 0
        %5201 = vmatprep.subr.bf16.mxu0 0
        %5202 = vmatpush1.bf16.msra.mxu0 0
        %5203 = vmatprep.subr.bf16.mxu0 0
        %5204 = vmatpush1.bf16.msra.mxu0 0
        %5205 = vmatprep.subr.bf16.mxu0 0
        %5206 = vmatpush1.bf16.msra.mxu0 0
        %5207 = vmatprep.subr.bf16.mxu0 0
        %5208 = vmatpush1.bf16.msra.mxu0 0
        %5209 = vmatprep.mubr.bf16.mxu0 0
        %5210 = vmatmul.mubr.bf16.gmra.mrb[0].mxu0 %v5166
        %v5211 = vpop.f32.mrb[0].mxu0
        %v5212 = vadd.f32 %v5151, %v5211
        %v5213 = vpop.f32.mrb[0].mxu0
        %v5214 = vpop.f32.mrb[0].mxu0
        %v5215 = vadd.f32 %v5151, %v5214
        %v5216 = vpop.f32.mrb[0].mxu0
        %5217 = vmatprep.mubr.bf16.mxu0 0
        %5218 = vmatmul.mubr.bf16.gmra.mrb[0].mxu0 %v5169
        %v5219 = vpop.f32.mrb[0].mxu0
        %v5220 = vadd.f32 %v5151, %v5219
        %v5221 = vpop.f32.mrb[0].mxu0
        %v5222 = vpop.f32.mrb[0].mxu0
        %v5223 = vadd.f32 %v5151, %v5222
        %v5224 = vpop.f32.mrb[0].mxu0
        %5225 = vmatprep.mubr.bf16.mxu0 0
        %5226 = vmatmul.mubr.bf16.gmra.mrb[0].mxu0 %v5172
        %v5227 = vpop.f32.mrb[0].mxu0
        %v5228 = vadd.f32 %v5151, %v5227
        %v5229 = vpop.f32.mrb[0].mxu0
        %v5230 = vpop.f32.mrb[0].mxu0
        %v5231 = vadd.f32 %v5151, %v5230
        %v5232 = vpop.f32.mrb[0].mxu0
        %5233 = vmatprep.mubr.bf16.mxu0 0
        %5234 = vmatmul.mubr.bf16.gmra.mrb[0].mxu0 %v5175
        %v5235 = vpop.f32.mrb[0].mxu0
        %v5236 = vadd.f32 %v5151, %v5235
        %v5237 = vpop.f32.mrb[0].mxu0
        %v5238 = vpop.f32.mrb[0].mxu0
        %v5239 = vadd.f32 %v5151, %v5238
        %v5240 = vpop.f32.mrb[0].mxu0
        %5241 = vdwg.mxu0
        %v5243 = vlaneseq
        %v5244 = vshrl.u32 %v5243, 7
        %v5245 = vsub.s32 0, %v5244
        %v5246 = vrot.slane %v5019, %v5245
        %v5252 = vunpack.c.l.b16 %v5015
        %v5253 = vunpack.c.l.b16 %v5016
        %v5254 = vunpack.c.l.b16 %v5017
        %v5255 = vunpack.c.l.b16 %v5018
        %v5256 = vpack.c.b16 %v5253, %v5252
        %v5257 = vpack.c.b16 %v5255, %v5254
        %5260 = vmatprep.subr.bf16.mxu0 0
        %5261 = vmatpush1.bf16.msra.mxu0 %v5256
        %5262 = vmatprep.subr.bf16.mxu0 0
        %5263 = vmatpush1.bf16.msra.mxu0 %v5257
        %5264 = vmatprep.subr.bf16.mxu0 0
        %5265 = vmatpush1.bf16.msra.mxu0 0
        %5266 = vmatprep.subr.bf16.mxu0 0
        %5267 = vmatpush1.bf16.msra.mxu0 0
        %5268 = vmatprep.subr.bf16.mxu0 0
        %5269 = vmatpush1.bf16.msra.mxu0 0
        %5270 = vmatprep.subr.bf16.mxu0 0
        %5271 = vmatpush1.bf16.msra.mxu0 0
        %5272 = vmatprep.subr.bf16.mxu0 0
        %5273 = vmatpush1.bf16.msra.mxu0 0
        %5274 = vmatprep.subr.bf16.mxu0 0
        %5275 = vmatpush1.bf16.msra.mxu0 0
        %5276 = vmatprep.subr.bf16.mxu0 0
        %5277 = vmatpush1.bf16.msra.mxu0 0
        %5278 = vmatprep.subr.bf16.mxu0 0
        %5279 = vmatpush1.bf16.msra.mxu0 0
        %5280 = vmatprep.subr.bf16.mxu0 0
        %5281 = vmatpush1.bf16.msra.mxu0 0
        %5282 = vmatprep.subr.bf16.mxu0 0
        %5283 = vmatpush1.bf16.msra.mxu0 0
        %5284 = vmatprep.subr.bf16.mxu0 0
        %5285 = vmatpush1.bf16.msra.mxu0 0
        %5286 = vmatprep.subr.bf16.mxu0 0
        %5287 = vmatpush1.bf16.msra.mxu0 0
        %5288 = vmatprep.subr.bf16.mxu0 0
        %5289 = vmatpush1.bf16.msra.mxu0 0
        %5290 = vmatprep.subr.bf16.mxu0 0
        %5291 = vmatpush1.bf16.msra.mxu0 0
        %5292 = vmatprep.mubr.bf16.mxu0 0
        %5293 = vmatmul.mubr.bf16.gmra.mrb[0].mxu0 %v2206
        %v5294 = vpop.f32.mrb[0].mxu0
        %v5295 = vadd.f32 %v5246, %v5294
        %v5296 = vpop.f32.mrb[0].mxu0
        %v5297 = vpop.f32.mrb[0].mxu0
        %v5298 = vadd.f32 %v5246, %v5297
        %v5299 = vpop.f32.mrb[0].mxu0
        %5300 = vmatprep.mubr.bf16.mxu0 0
        %5301 = vmatmul.mubr.bf16.gmra.mrb[0].mxu0 %v2209
        %v5302 = vpop.f32.mrb[0].mxu0
        %v5303 = vadd.f32 %v5246, %v5302
        %v5304 = vpop.f32.mrb[0].mxu0
        %v5305 = vpop.f32.mrb[0].mxu0
        %v5306 = vadd.f32 %v5246, %v5305
        %v5307 = vpop.f32.mrb[0].mxu0
        %5308 = vmatprep.mubr.bf16.mxu0 0
        %5309 = vmatmul.mubr.bf16.gmra.mrb[0].mxu0 %v2212
        %v5310 = vpop.f32.mrb[0].mxu0
        %v5311 = vadd.f32 %v5246, %v5310
        %v5312 = vpop.f32.mrb[0].mxu0
        %v5313 = vpop.f32.mrb[0].mxu0
        %v5314 = vadd.f32 %v5246, %v5313
        %v5315 = vpop.f32.mrb[0].mxu0
        %5316 = vmatprep.mubr.bf16.mxu0 0
        %5317 = vmatmul.mubr.bf16.gmra.mrb[0].mxu0 %v2215
        %v5318 = vpop.f32.mrb[0].mxu0
        %v5319 = vadd.f32 %v5246, %v5318
        %v5320 = vpop.f32.mrb[0].mxu0
        %v5321 = vpop.f32.mrb[0].mxu0
        %v5322 = vadd.f32 %v5246, %v5321
        %v5323 = vpop.f32.mrb[0].mxu0
        %5324 = vdwg.mxu0
        %v5325 = vpack.c.bf16 %v5215, %v5212
        %v5326 = vpack.c.bf16 %v5223, %v5220
        %v5327 = vpack.c.bf16 %v5231, %v5228
        %v5328 = vpack.c.bf16 %v5239, %v5236
        %v5329 = vpack.c.bf16 %v5298, %v5295
        %v5330 = vpack.c.bf16 %v5306, %v5303
        %v5331 = vpack.c.bf16 %v5314, %v5311
        %v5332 = vpack.c.bf16 %v5322, %v5319
        %v5334 = vsel %vm2290, %v5325, 0
        %v5337 = vsel %vm2290, %v5326, 0
        %v5340 = vsel %vm2290, %v5327, 0
        %v5343 = vsel %vm2290, %v5328, 0
        %v5346 = vsel %vm2290, %v5329, 0
        %v5349 = vsel %vm2290, %v5330, 0
        %v5352 = vsel %vm2290, %v5331, 0
        %v5355 = vsel %vm2290, %v5332, 0
        %5357 = vmatprep.subr.bf16.mxu0 0
        %5358 = vmatpush1.bf16.xpose.msra.mxu0 %v5346
        %5359 = vmatprep.subr.bf16.mxu0 0
        %5360 = vmatpush1.bf16.xpose.msra.mxu0 %v5349
        %5361 = vmatprep.subr.bf16.mxu0 0
        %5362 = vmatpush1.bf16.xpose.msra.mxu0 %v5352
        %5363 = vmatprep.subr.bf16.mxu0 0
        %5364 = vmatpush1.bf16.xpose.msra.mxu0 %v5355
        %5365 = vmatprep.subr.bf16.mxu0 0
        %5366 = vmatpush1.bf16.xpose.msra.mxu0 0
        %5367 = vmatprep.subr.bf16.mxu0 0
        %5368 = vmatpush1.bf16.xpose.msra.mxu0 0
        %5369 = vmatprep.subr.bf16.mxu0 0
        %5370 = vmatpush1.bf16.xpose.msra.mxu0 0
        %5371 = vmatprep.subr.bf16.mxu0 0
        %5372 = vmatpush1.bf16.xpose.msra.mxu0 0
        %5373 = vmatprep.subr.bf16.mxu0 0
        %5374 = vmatpush1.bf16.xpose.msra.mxu0 0
        %5375 = vmatprep.subr.bf16.mxu0 0
        %5376 = vmatpush1.bf16.xpose.msra.mxu0 0
        %5377 = vmatprep.subr.bf16.mxu0 0
        %5378 = vmatpush1.bf16.xpose.msra.mxu0 0
        %5379 = vmatprep.subr.bf16.mxu0 0
        %5380 = vmatpush1.bf16.xpose.msra.mxu0 0
        %5381 = vmatprep.subr.bf16.mxu0 0
        %5382 = vmatpush1.bf16.xpose.msra.mxu0 0
        %5383 = vmatprep.subr.bf16.mxu0 0
        %5384 = vmatpush1.bf16.xpose.msra.mxu0 0
        %5385 = vmatprep.subr.bf16.mxu0 0
        %5386 = vmatpush1.bf16.xpose.msra.mxu0 0
        %5387 = vmatprep.subr.bf16.mxu0 0
        %5388 = vmatpush1.bf16.xpose.msra.mxu0 0
        %5389 = vmatprep.mubr.bf16.mxu0 0
        %5390 = vmatmul.mubr.bf16.gmra.mrb[0].mxu0 %v5334
        %v5391 = vpop.f32.mrb[0].mxu0
        %v5392 = vadd.f32 %v1829, %v5391
        %v5393 = vpop.f32.mrb[0].mxu0
        %v5394 = vpop.f32.mrb[0].mxu0
        %v5395 = vadd.f32 %v1830, %v5394
        %v5396 = vpop.f32.mrb[0].mxu0
        %5397 = vmatprep.mubr.bf16.mxu0 0
        %5398 = vmatmul.mubr.bf16.gmra.mrb[0].mxu0 %v5337
        %v5399 = vpop.f32.mrb[0].mxu0
        %v5400 = vadd.f32 %v1831, %v5399
        %v5401 = vpop.f32.mrb[0].mxu0
        %v5402 = vpop.f32.mrb[0].mxu0
        %v5403 = vadd.f32 %v1832, %v5402
        %v5404 = vpop.f32.mrb[0].mxu0
        %5405 = vmatprep.mubr.bf16.mxu0 0
        %5406 = vmatmul.mubr.bf16.gmra.mrb[0].mxu0 %v5340
        %v5407 = vpop.f32.mrb[0].mxu0
        %v5408 = vadd.f32 %v1833, %v5407
        %v5409 = vpop.f32.mrb[0].mxu0
        %v5410 = vpop.f32.mrb[0].mxu0
        %v5411 = vadd.f32 %v1834, %v5410
        %v5412 = vpop.f32.mrb[0].mxu0
        %5413 = vmatprep.mubr.bf16.mxu0 0
        %5414 = vmatmul.mubr.bf16.gmra.mrb[0].mxu0 %v5343
        %v5415 = vpop.f32.mrb[0].mxu0
        %v5416 = vadd.f32 %v1835, %v5415
        %v5417 = vpop.f32.mrb[0].mxu0
        %v5418 = vpop.f32.mrb[0].mxu0
        %v5419 = vadd.f32 %v1836, %v5418
        %v5420 = vpop.f32.mrb[0].mxu0
        %5421 = vdwg.mxu0
        %v5422 = vsel %vm2380, %v5392, -inf
        %5423 = vmax.xlane.f32.xlu0 %v5422
        %v5424 = vpop.xlane.xlu0 %5423
        %v5425 = vsel %vm2380, %v5395, -inf
        %5426 = vmax.xlane.f32.xlu0 %v5425
        %v5427 = vpop.xlane.xlu0 %5426
        %v5428 = vsel %vm2380, %v5400, -inf
        %5429 = vmax.xlane.f32.xlu0 %v5428
        %v5430 = vpop.xlane.xlu0 %5429
        %v5431 = vsel %vm2380, %v5403, -inf
        %5432 = vmax.xlane.f32.xlu0 %v5431
        %v5433 = vpop.xlane.xlu0 %5432
        %v5434 = vsel %vm2380, %v5408, -inf
        %5435 = vmax.xlane.f32.xlu0 %v5434
        %v5436 = vpop.xlane.xlu0 %5435
        %v5437 = vsel %vm2380, %v5411, -inf
        %5438 = vmax.xlane.f32.xlu0 %v5437
        %v5439 = vpop.xlane.xlu0 %5438
        %v5440 = vsel %vm2380, %v5416, -inf
        %5441 = vmax.xlane.f32.xlu0 %v5440
        %v5442 = vpop.xlane.xlu0 %5441
        %v5443 = vsel %vm2380, %v5419, -inf
        %5444 = vmax.xlane.f32.xlu0 %v5443
        %v5445 = vpop.xlane.xlu0 %5444
        %v5446 = vsub.f32 %v5392, %v5424
        %v5447 = vsub.f32 %v5395, %v5427
        %v5448 = vsub.f32 %v5400, %v5430
        %v5449 = vsub.f32 %v5403, %v5433
        %v5450 = vsub.f32 %v5408, %v5436
        %v5451 = vsub.f32 %v5411, %v5439
        %v5452 = vsub.f32 %v5416, %v5442
        %v5453 = vsub.f32 %v5419, %v5445
        %v5454 = vmul.f32 %v5446, 1.442695
        %v5455 = vpow.pop %v5454
        %v5456 = vmul.f32 %v5447, 1.442695
        %v5457 = vpow.pop %v5456
        %v5458 = vmul.f32 %v5448, 1.442695
        %v5459 = vpow.pop %v5458
        %v5460 = vmul.f32 %v5449, 1.442695
        %v5461 = vpow.pop %v5460
        %v5462 = vmul.f32 %v5450, 1.442695
        %v5463 = vpow.pop %v5462
        %v5464 = vmul.f32 %v5451, 1.442695
        %v5465 = vpow.pop %v5464
        %v5466 = vmul.f32 %v5452, 1.442695
        %v5467 = vpow.pop %v5466
        %v5468 = vmul.f32 %v5453, 1.442695
        %v5469 = vpow.pop %v5468
        %v5470 = vsel %vm2380, %v5455, 0.0
        %5471 = vadd.xlane.f32.xlu0 %v5470
        %v5472 = vpop.xlane.xlu0 %5471
        %v5473 = vsel %vm2380, %v5457, 0.0
        %5474 = vadd.xlane.f32.xlu0 %v5473
        %v5475 = vpop.xlane.xlu0 %5474
        %v5476 = vsel %vm2380, %v5459, 0.0
        %5477 = vadd.xlane.f32.xlu0 %v5476
        %v5478 = vpop.xlane.xlu0 %5477
        %v5479 = vsel %vm2380, %v5461, 0.0
        %5480 = vadd.xlane.f32.xlu0 %v5479
        %v5481 = vpop.xlane.xlu0 %5480
        %v5482 = vsel %vm2380, %v5463, 0.0
        %5483 = vadd.xlane.f32.xlu0 %v5482
        %v5484 = vpop.xlane.xlu0 %5483
        %v5485 = vsel %vm2380, %v5465, 0.0
        %5486 = vadd.xlane.f32.xlu0 %v5485
        %v5487 = vpop.xlane.xlu0 %5486
        %v5488 = vsel %vm2380, %v5467, 0.0
        %5489 = vadd.xlane.f32.xlu0 %v5488
        %v5490 = vpop.xlane.xlu0 %5489
        %v5491 = vsel %vm2380, %v5469, 0.0
        %5492 = vadd.xlane.f32.xlu0 %v5491
        %v5493 = vpop.xlane.xlu0 %5492
        %v5494 = vrcp.pop %v5472
        %v5495 = vrcp.pop %v5475
        %v5496 = vrcp.pop %v5478
        %v5497 = vrcp.pop %v5481
        %v5498 = vrcp.pop %v5484
        %v5499 = vrcp.pop %v5487
        %v5500 = vrcp.pop %v5490
        %v5501 = vrcp.pop %v5493
        %v5502 = vmul.f32 %v5455, %v5494
        %v5503 = vmul.f32 %v5457, %v5495
        %v5504 = vmul.f32 %v5459, %v5496
        %v5505 = vmul.f32 %v5461, %v5497
        %v5506 = vmul.f32 %v5463, %v5498
        %v5507 = vmul.f32 %v5465, %v5499
        %v5508 = vmul.f32 %v5467, %v5500
        %v5509 = vmul.f32 %v5469, %v5501
        %v5510 = vpack.c.bf16 %v5503, %v5502
        %v5511 = vpack.c.bf16 %v5505, %v5504
        %v5512 = vpack.c.bf16 %v5507, %v5506
        %v5513 = vpack.c.bf16 %v5509, %v5508
        %5518 = vrot.lane.b32.xlu0 %v5329, 96
        %v5519 = vpop.permute.xlu0 %5518
        %5520 = vrot.lane.b32.xlu0 %v5330, 96
        %v5521 = vpop.permute.xlu0 %5520
        %5522 = vrot.lane.b32.xlu0 %v5331, 96
        %v5523 = vpop.permute.xlu0 %5522
        %5524 = vrot.lane.b32.xlu0 %v5332, 96
        %v5525 = vpop.permute.xlu0 %5524
        %v5531 = vsel %vm2380, %v5510, 0
        %v5534 = vsel %vm2380, %v5511, 0
        %v5537 = vsel %vm2380, %v5512, 0
        %v5540 = vsel %vm2380, %v5513, 0
        %5542 = vmatprep.subr.bf16.mxu0 0
        %5543 = vmatpush1.bf16.msra.mxu0 %v5519
        %5544 = vmatprep.subr.bf16.mxu0 0
        %5545 = vmatpush1.bf16.msra.mxu0 %v5521
        %5546 = vmatprep.subr.bf16.mxu0 0
        %5547 = vmatpush1.bf16.msra.mxu0 %v5523
        %5548 = vmatprep.subr.bf16.mxu0 0
        %5549 = vmatpush1.bf16.msra.mxu0 %v5525
        %5550 = vmatprep.subr.bf16.mxu0 0
        %5551 = vmatpush1.bf16.msra.mxu0 0
        %5552 = vmatprep.subr.bf16.mxu0 0
        %5553 = vmatpush1.bf16.msra.mxu0 0
        %5554 = vmatprep.subr.bf16.mxu0 0
        %5555 = vmatpush1.bf16.msra.mxu0 0
        %5556 = vmatprep.subr.bf16.mxu0 0
        %5557 = vmatpush1.bf16.msra.mxu0 0
        %5558 = vmatprep.subr.bf16.mxu0 0
        %5559 = vmatpush1.bf16.msra.mxu0 0
        %5560 = vmatprep.subr.bf16.mxu0 0
        %5561 = vmatpush1.bf16.msra.mxu0 0
        %5562 = vmatprep.subr.bf16.mxu0 0
        %5563 = vmatpush1.bf16.msra.mxu0 0
        %5564 = vmatprep.subr.bf16.mxu0 0
        %5565 = vmatpush1.bf16.msra.mxu0 0
        %5566 = vmatprep.subr.bf16.mxu0 0
        %5567 = vmatpush1.bf16.msra.mxu0 0
        %5568 = vmatprep.subr.bf16.mxu0 0
        %5569 = vmatpush1.bf16.msra.mxu0 0
        %5570 = vmatprep.subr.bf16.mxu0 0
        %5571 = vmatpush1.bf16.msra.mxu0 0
        %5572 = vmatprep.subr.bf16.mxu0 0
        %5573 = vmatpush1.bf16.msra.mxu0 0
        %5574 = vmatprep.mubr.bf16.mxu0 0
        %5575 = vmatmul.mubr.bf16.gmra.mrb[0].mxu0 %v5531
        %v5576 = vpop.f32.mrb[0].mxu0
        %v5577 = vadd.f32 0.0, %v5576
        %v5578 = vpop.f32.mrb[0].mxu0
        %v5579 = vpop.f32.mrb[0].mxu0
        %v5580 = vadd.f32 0.0, %v5579
        %v5581 = vpop.f32.mrb[0].mxu0
        %5582 = vmatprep.mubr.bf16.mxu0 0
        %5583 = vmatmul.mubr.bf16.gmra.mrb[0].mxu0 %v5534
        %v5584 = vpop.f32.mrb[0].mxu0
        %v5585 = vadd.f32 0.0, %v5584
        %v5586 = vpop.f32.mrb[0].mxu0
        %v5587 = vpop.f32.mrb[0].mxu0
        %v5588 = vadd.f32 0.0, %v5587
        %v5589 = vpop.f32.mrb[0].mxu0
        %5590 = vmatprep.mubr.bf16.mxu0 0
        %5591 = vmatmul.mubr.bf16.gmra.mrb[0].mxu0 %v5537
        %v5592 = vpop.f32.mrb[0].mxu0
        %v5593 = vadd.f32 0.0, %v5592
        %v5594 = vpop.f32.mrb[0].mxu0
        %v5595 = vpop.f32.mrb[0].mxu0
        %v5596 = vadd.f32 0.0, %v5595
        %v5597 = vpop.f32.mrb[0].mxu0
        %5598 = vmatprep.mubr.bf16.mxu0 0
        %5599 = vmatmul.mubr.bf16.gmra.mrb[0].mxu0 %v5540
        %v5600 = vpop.f32.mrb[0].mxu0
        %v5601 = vadd.f32 0.0, %v5600
        %v5602 = vpop.f32.mrb[0].mxu0
        %v5603 = vpop.f32.mrb[0].mxu0
        %v5604 = vadd.f32 0.0, %v5603
        %v5605 = vpop.f32.mrb[0].mxu0
        %5606 = vdwg.mxu0
        %v5607 = vpack.c.bf16 %v5580, %v5577
        %v5608 = vpack.c.bf16 %v5588, %v5585
        %v5609 = vpack.c.bf16 %v5596, %v5593
        %v5610 = vpack.c.bf16 %v5604, %v5601
        %5615 = vrot.lane.b32.xlu0 %v5325, 112
        %v5616 = vpop.permute.xlu0 %5615
        %5617 = vrot.lane.b32.xlu0 %v5326, 112
        %v5618 = vpop.permute.xlu0 %5617
        %5619 = vrot.lane.b32.xlu0 %v5327, 112
        %v5620 = vpop.permute.xlu0 %5619
        %5621 = vrot.lane.b32.xlu0 %v5328, 112
        %v5622 = vpop.permute.xlu0 %5621
        %5623 = vrot.lane.b32.xlu0 %v5329, 112
        %v5624 = vpop.permute.xlu0 %5623
        %5625 = vrot.lane.b32.xlu0 %v5330, 112
        %v5626 = vpop.permute.xlu0 %5625
        %5627 = vrot.lane.b32.xlu0 %v5331, 112
        %v5628 = vpop.permute.xlu0 %5627
        %5629 = vrot.lane.b32.xlu0 %v5332, 112
        %v5630 = vpop.permute.xlu0 %5629
        %v5632 = vsel %vm2290, %v5616, 0
        %v5635 = vsel %vm2290, %v5618, 0
        %v5638 = vsel %vm2290, %v5620, 0
        %v5641 = vsel %vm2290, %v5622, 0
        %v5644 = vsel %vm2290, %v5624, 0
        %v5647 = vsel %vm2290, %v5626, 0
        %v5650 = vsel %vm2290, %v5628, 0
        %v5653 = vsel %vm2290, %v5630, 0
        %5655 = vmatprep.subr.bf16.mxu0 0
        %5656 = vmatpush1.bf16.xpose.msra.mxu0 %v5644
        %5657 = vmatprep.subr.bf16.mxu0 0
        %5658 = vmatpush1.bf16.xpose.msra.mxu0 %v5647
        %5659 = vmatprep.subr.bf16.mxu0 0
        %5660 = vmatpush1.bf16.xpose.msra.mxu0 %v5650
        %5661 = vmatprep.subr.bf16.mxu0 0
        %5662 = vmatpush1.bf16.xpose.msra.mxu0 %v5653
        %5663 = vmatprep.subr.bf16.mxu0 0
        %5664 = vmatpush1.bf16.xpose.msra.mxu0 0
        %5665 = vmatprep.subr.bf16.mxu0 0
        %5666 = vmatpush1.bf16.xpose.msra.mxu0 0
        %5667 = vmatprep.subr.bf16.mxu0 0
        %5668 = vmatpush1.bf16.xpose.msra.mxu0 0
        %5669 = vmatprep.subr.bf16.mxu0 0
        %5670 = vmatpush1.bf16.xpose.msra.mxu0 0
        %5671 = vmatprep.subr.bf16.mxu0 0
        %5672 = vmatpush1.bf16.xpose.msra.mxu0 0
        %5673 = vmatprep.subr.bf16.mxu0 0
        %5674 = vmatpush1.bf16.xpose.msra.mxu0 0
        %5675 = vmatprep.subr.bf16.mxu0 0
        %5676 = vmatpush1.bf16.xpose.msra.mxu0 0
        %5677 = vmatprep.subr.bf16.mxu0 0
        %5678 = vmatpush1.bf16.xpose.msra.mxu0 0
        %5679 = vmatprep.subr.bf16.mxu0 0
        %5680 = vmatpush1.bf16.xpose.msra.mxu0 0
        %5681 = vmatprep.subr.bf16.mxu0 0
        %5682 = vmatpush1.bf16.xpose.msra.mxu0 0
        %5683 = vmatprep.subr.bf16.mxu0 0
        %5684 = vmatpush1.bf16.xpose.msra.mxu0 0
        %5685 = vmatprep.subr.bf16.mxu0 0
        %5686 = vmatpush1.bf16.xpose.msra.mxu0 0
        %5687 = vmatprep.mubr.bf16.mxu0 0
        %5688 = vmatmul.mubr.bf16.gmra.mrb[0].mxu0 %v5632
        %v5689 = vpop.f32.mrb[0].mxu0
        %v5690 = vadd.f32 %v1829, %v5689
        %v5691 = vpop.f32.mrb[0].mxu0
        %v5692 = vpop.f32.mrb[0].mxu0
        %v5693 = vadd.f32 %v1830, %v5692
        %v5694 = vpop.f32.mrb[0].mxu0
        %5695 = vmatprep.mubr.bf16.mxu0 0
        %5696 = vmatmul.mubr.bf16.gmra.mrb[0].mxu0 %v5635
        %v5697 = vpop.f32.mrb[0].mxu0
        %v5698 = vadd.f32 %v1831, %v5697
        %v5699 = vpop.f32.mrb[0].mxu0
        %v5700 = vpop.f32.mrb[0].mxu0
        %v5701 = vadd.f32 %v1832, %v5700
        %v5702 = vpop.f32.mrb[0].mxu0
        %5703 = vmatprep.mubr.bf16.mxu0 0
        %5704 = vmatmul.mubr.bf16.gmra.mrb[0].mxu0 %v5638
        %v5705 = vpop.f32.mrb[0].mxu0
        %v5706 = vadd.f32 %v1833, %v5705
        %v5707 = vpop.f32.mrb[0].mxu0
        %v5708 = vpop.f32.mrb[0].mxu0
        %v5709 = vadd.f32 %v1834, %v5708
        %v5710 = vpop.f32.mrb[0].mxu0
        %5711 = vmatprep.mubr.bf16.mxu0 0
        %5712 = vmatmul.mubr.bf16.gmra.mrb[0].mxu0 %v5641
        %v5713 = vpop.f32.mrb[0].mxu0
        %v5714 = vadd.f32 %v1835, %v5713
        %v5715 = vpop.f32.mrb[0].mxu0
        %v5716 = vpop.f32.mrb[0].mxu0
        %v5717 = vadd.f32 %v1836, %v5716
        %v5718 = vpop.f32.mrb[0].mxu0
        %5719 = vdwg.mxu0
        %v5720 = vsel %vm2380, %v5690, -inf
        %5721 = vmax.xlane.f32.xlu0 %v5720
        %v5722 = vpop.xlane.xlu0 %5721
        %v5723 = vsel %vm2380, %v5693, -inf
        %5724 = vmax.xlane.f32.xlu0 %v5723
        %v5725 = vpop.xlane.xlu0 %5724
        %v5726 = vsel %vm2380, %v5698, -inf
        %5727 = vmax.xlane.f32.xlu0 %v5726
        %v5728 = vpop.xlane.xlu0 %5727
        %v5729 = vsel %vm2380, %v5701, -inf
        %5730 = vmax.xlane.f32.xlu0 %v5729
        %v5731 = vpop.xlane.xlu0 %5730
        %v5732 = vsel %vm2380, %v5706, -inf
        %5733 = vmax.xlane.f32.xlu0 %v5732
        %v5734 = vpop.xlane.xlu0 %5733
        %v5735 = vsel %vm2380, %v5709, -inf
        %5736 = vmax.xlane.f32.xlu0 %v5735
        %v5737 = vpop.xlane.xlu0 %5736
        %v5738 = vsel %vm2380, %v5714, -inf
        %5739 = vmax.xlane.f32.xlu0 %v5738
        %v5740 = vpop.xlane.xlu0 %5739
        %v5741 = vsel %vm2380, %v5717, -inf
        %5742 = vmax.xlane.f32.xlu0 %v5741
        %v5743 = vpop.xlane.xlu0 %5742
        %v5744 = vsub.f32 %v5690, %v5722
        %v5745 = vsub.f32 %v5693, %v5725
        %v5746 = vsub.f32 %v5698, %v5728
        %v5747 = vsub.f32 %v5701, %v5731
        %v5748 = vsub.f32 %v5706, %v5734
        %v5749 = vsub.f32 %v5709, %v5737
        %v5750 = vsub.f32 %v5714, %v5740
        %v5751 = vsub.f32 %v5717, %v5743
        %v5752 = vmul.f32 %v5744, 1.442695
        %v5753 = vpow.pop %v5752
        %v5754 = vmul.f32 %v5745, 1.442695
        %v5755 = vpow.pop %v5754
        %v5756 = vmul.f32 %v5746, 1.442695
        %v5757 = vpow.pop %v5756
        %v5758 = vmul.f32 %v5747, 1.442695
        %v5759 = vpow.pop %v5758
        %v5760 = vmul.f32 %v5748, 1.442695
        %v5761 = vpow.pop %v5760
        %v5762 = vmul.f32 %v5749, 1.442695
        %v5763 = vpow.pop %v5762
        %v5764 = vmul.f32 %v5750, 1.442695
        %v5765 = vpow.pop %v5764
        %v5766 = vmul.f32 %v5751, 1.442695
        %v5767 = vpow.pop %v5766
        %v5768 = vsel %vm2380, %v5753, 0.0
        %5769 = vadd.xlane.f32.xlu0 %v5768
        %v5770 = vpop.xlane.xlu0 %5769
        %v5771 = vsel %vm2380, %v5755, 0.0
        %5772 = vadd.xlane.f32.xlu0 %v5771
        %v5773 = vpop.xlane.xlu0 %5772
        %v5774 = vsel %vm2380, %v5757, 0.0
        %5775 = vadd.xlane.f32.xlu0 %v5774
        %v5776 = vpop.xlane.xlu0 %5775
        %v5777 = vsel %vm2380, %v5759, 0.0
        %5778 = vadd.xlane.f32.xlu0 %v5777
        %v5779 = vpop.xlane.xlu0 %5778
        %v5780 = vsel %vm2380, %v5761, 0.0
        %5781 = vadd.xlane.f32.xlu0 %v5780
        %v5782 = vpop.xlane.xlu0 %5781
        %v5783 = vsel %vm2380, %v5763, 0.0
        %5784 = vadd.xlane.f32.xlu0 %v5783
        %v5785 = vpop.xlane.xlu0 %5784
        %v5786 = vsel %vm2380, %v5765, 0.0
        %5787 = vadd.xlane.f32.xlu0 %v5786
        %v5788 = vpop.xlane.xlu0 %5787
        %v5789 = vsel %vm2380, %v5767, 0.0
        %5790 = vadd.xlane.f32.xlu0 %v5789
        %v5791 = vpop.xlane.xlu0 %5790
        %v5792 = vrcp.pop %v5770
        %v5793 = vrcp.pop %v5773
        %v5794 = vrcp.pop %v5776
        %v5795 = vrcp.pop %v5779
        %v5796 = vrcp.pop %v5782
        %v5797 = vrcp.pop %v5785
        %v5798 = vrcp.pop %v5788
        %v5799 = vrcp.pop %v5791
        %v5800 = vmul.f32 %v5753, %v5792
        %v5801 = vmul.f32 %v5755, %v5793
        %v5802 = vmul.f32 %v5757, %v5794
        %v5803 = vmul.f32 %v5759, %v5795
        %v5804 = vmul.f32 %v5761, %v5796
        %v5805 = vmul.f32 %v5763, %v5797
        %v5806 = vmul.f32 %v5765, %v5798
        %v5807 = vmul.f32 %v5767, %v5799
        %v5808 = vpack.c.bf16 %v5801, %v5800
        %v5809 = vpack.c.bf16 %v5803, %v5802
        %v5810 = vpack.c.bf16 %v5805, %v5804
        %v5811 = vpack.c.bf16 %v5807, %v5806
        %5812 = vrot.lane.b32.xlu0 %v5329, 80
        %v5813 = vpop.permute.xlu0 %5812
        %5814 = vrot.lane.b32.xlu0 %v5330, 80
        %v5815 = vpop.permute.xlu0 %5814
        %5816 = vrot.lane.b32.xlu0 %v5331, 80
        %v5817 = vpop.permute.xlu0 %5816
        %5818 = vrot.lane.b32.xlu0 %v5332, 80
        %v5819 = vpop.permute.xlu0 %5818
        %v5825 = vsel %vm2380, %v5808, 0
        %v5828 = vsel %vm2380, %v5809, 0
        %v5831 = vsel %vm2380, %v5810, 0
        %v5834 = vsel %vm2380, %v5811, 0
        %5836 = vmatprep.subr.bf16.mxu0 0
        %5837 = vmatpush1.bf16.msra.mxu0 %v5813
        %5838 = vmatprep.subr.bf16.mxu0 0
        %5839 = vmatpush1.bf16.msra.mxu0 %v5815
        %5840 = vmatprep.subr.bf16.mxu0 0
        %5841 = vmatpush1.bf16.msra.mxu0 %v5817
        %5842 = vmatprep.subr.bf16.mxu0 0
        %5843 = vmatpush1.bf16.msra.mxu0 %v5819
        %5844 = vmatprep.subr.bf16.mxu0 0
        %5845 = vmatpush1.bf16.msra.mxu0 0
        %5846 = vmatprep.subr.bf16.mxu0 0
        %5847 = vmatpush1.bf16.msra.mxu0 0
        %5848 = vmatprep.subr.bf16.mxu0 0
        %5849 = vmatpush1.bf16.msra.mxu0 0
        %5850 = vmatprep.subr.bf16.mxu0 0
        %5851 = vmatpush1.bf16.msra.mxu0 0
        %5852 = vmatprep.subr.bf16.mxu0 0
        %5853 = vmatpush1.bf16.msra.mxu0 0
        %5854 = vmatprep.subr.bf16.mxu0 0
        %5855 = vmatpush1.bf16.msra.mxu0 0
        %5856 = vmatprep.subr.bf16.mxu0 0
        %5857 = vmatpush1.bf16.msra.mxu0 0
        %5858 = vmatprep.subr.bf16.mxu0 0
        %5859 = vmatpush1.bf16.msra.mxu0 0
        %5860 = vmatprep.subr.bf16.mxu0 0
        %5861 = vmatpush1.bf16.msra.mxu0 0
        %5862 = vmatprep.subr.bf16.mxu0 0
        %5863 = vmatpush1.bf16.msra.mxu0 0
        %5864 = vmatprep.subr.bf16.mxu0 0
        %5865 = vmatpush1.bf16.msra.mxu0 0
        %5866 = vmatprep.subr.bf16.mxu0 0
        %5867 = vmatpush1.bf16.msra.mxu0 0
        %5868 = vmatprep.mubr.bf16.mxu0 0
        %5869 = vmatmul.mubr.bf16.gmra.mrb[0].mxu0 %v5825
        %v5870 = vpop.f32.mrb[0].mxu0
        %v5871 = vadd.f32 0.0, %v5870
        %v5872 = vpop.f32.mrb[0].mxu0
        %v5873 = vpop.f32.mrb[0].mxu0
        %v5874 = vadd.f32 0.0, %v5873
        %v5875 = vpop.f32.mrb[0].mxu0
        %5876 = vmatprep.mubr.bf16.mxu0 0
        %5877 = vmatmul.mubr.bf16.gmra.mrb[0].mxu0 %v5828
        %v5878 = vpop.f32.mrb[0].mxu0
        %v5879 = vadd.f32 0.0, %v5878
        %v5880 = vpop.f32.mrb[0].mxu0
        %v5881 = vpop.f32.mrb[0].mxu0
        %v5882 = vadd.f32 0.0, %v5881
        %v5883 = vpop.f32.mrb[0].mxu0
        %5884 = vmatprep.mubr.bf16.mxu0 0
        %5885 = vmatmul.mubr.bf16.gmra.mrb[0].mxu0 %v5831
        %v5886 = vpop.f32.mrb[0].mxu0
        %v5887 = vadd.f32 0.0, %v5886
        %v5888 = vpop.f32.mrb[0].mxu0
        %v5889 = vpop.f32.mrb[0].mxu0
        %v5890 = vadd.f32 0.0, %v5889
        %v5891 = vpop.f32.mrb[0].mxu0
        %5892 = vmatprep.mubr.bf16.mxu0 0
        %5893 = vmatmul.mubr.bf16.gmra.mrb[0].mxu0 %v5834
        %v5894 = vpop.f32.mrb[0].mxu0
        %v5895 = vadd.f32 0.0, %v5894
        %v5896 = vpop.f32.mrb[0].mxu0
        %v5897 = vpop.f32.mrb[0].mxu0
        %v5898 = vadd.f32 0.0, %v5897
        %v5899 = vpop.f32.mrb[0].mxu0
        %5900 = vdwg.mxu0
        %v5901 = vpack.c.bf16 %v5874, %v5871
        %v5902 = vpack.c.bf16 %v5882, %v5879
        %v5903 = vpack.c.bf16 %v5890, %v5887
        %v5904 = vpack.c.bf16 %v5898, %v5895
        %v5907 = vunpack.c.l.b16 %v5022
        %v5908 = vunpack.c.l.b16 %v5023
        %v5909 = vpack.c.b16 %v5908, %v5907
        %v5912 = vsel %vm2290, %v5901, 0
        %v5915 = vsel %vm2290, %v5902, 0
        %v5918 = vsel %vm2290, %v5903, 0
        %v5921 = vsel %vm2290, %v5904, 0
        %5923 = vmatprep.subr.bf16.mxu0 0
        %5924 = vmatpush1.bf16.msra.mxu0 %v5909
        %5925 = vmatprep.subr.bf16.mxu0 0
        %5926 = vmatpush1.bf16.msra.mxu0 0
        %5927 = vmatprep.subr.bf16.mxu0 0
        %5928 = vmatpush1.bf16.msra.mxu0 0
        %5929 = vmatprep.subr.bf16.mxu0 0
        %5930 = vmatpush1.bf16.msra.mxu0 0
        %5931 = vmatprep.subr.bf16.mxu0 0
        %5932 = vmatpush1.bf16.msra.mxu0 0
        %5933 = vmatprep.subr.bf16.mxu0 0
        %5934 = vmatpush1.bf16.msra.mxu0 0
        %5935 = vmatprep.subr.bf16.mxu0 0
        %5936 = vmatpush1.bf16.msra.mxu0 0
        %5937 = vmatprep.subr.bf16.mxu0 0
        %5938 = vmatpush1.bf16.msra.mxu0 0
        %5939 = vmatprep.subr.bf16.mxu0 0
        %5940 = vmatpush1.bf16.msra.mxu0 0
        %5941 = vmatprep.subr.bf16.mxu0 0
        %5942 = vmatpush1.bf16.msra.mxu0 0
        %5943 = vmatprep.subr.bf16.mxu0 0
        %5944 = vmatpush1.bf16.msra.mxu0 0
        %5945 = vmatprep.subr.bf16.mxu0 0
        %5946 = vmatpush1.bf16.msra.mxu0 0
        %5947 = vmatprep.subr.bf16.mxu0 0
        %5948 = vmatpush1.bf16.msra.mxu0 0
        %5949 = vmatprep.subr.bf16.mxu0 0
        %5950 = vmatpush1.bf16.msra.mxu0 0
        %5951 = vmatprep.subr.bf16.mxu0 0
        %5952 = vmatpush1.bf16.msra.mxu0 0
        %5953 = vmatprep.subr.bf16.mxu0 0
        %5954 = vmatpush1.bf16.msra.mxu0 0
        %5955 = vmatprep.mubr.bf16.mxu0 0
        %5956 = vmatmul.mubr.bf16.gmra.mrb[0].mxu0 %v5912
        %v5957 = vpop.f32.mrb[0].mxu0
        %v5958 = vadd.f32 0.0, %v5957
        %v5959 = vpop.f32.mrb[0].mxu0
        %v5960 = vpop.f32.mrb[0].mxu0
        %v5961 = vadd.f32 0.0, %v5960
        %v5962 = vpop.f32.mrb[0].mxu0
        %5963 = vmatprep.mubr.bf16.mxu0 0
        %5964 = vmatmul.mubr.bf16.gmra.mrb[0].mxu0 %v5915
        %v5965 = vpop.f32.mrb[0].mxu0
        %v5966 = vadd.f32 0.0, %v5965
        %v5967 = vpop.f32.mrb[0].mxu0
        %v5968 = vpop.f32.mrb[0].mxu0
        %v5969 = vadd.f32 0.0, %v5968
        %v5970 = vpop.f32.mrb[0].mxu0
        %5971 = vmatprep.mubr.bf16.mxu0 0
        %5972 = vmatmul.mubr.bf16.gmra.mrb[0].mxu0 %v5918
        %v5973 = vpop.f32.mrb[0].mxu0
        %v5974 = vadd.f32 0.0, %v5973
        %v5975 = vpop.f32.mrb[0].mxu0
        %v5976 = vpop.f32.mrb[0].mxu0
        %v5977 = vadd.f32 0.0, %v5976
        %v5978 = vpop.f32.mrb[0].mxu0
        %5979 = vmatprep.mubr.bf16.mxu0 0
        %5980 = vmatmul.mubr.bf16.gmra.mrb[0].mxu0 %v5921
        %v5981 = vpop.f32.mrb[0].mxu0
        %v5982 = vadd.f32 0.0, %v5981
        %v5983 = vpop.f32.mrb[0].mxu0
        %v5984 = vpop.f32.mrb[0].mxu0
        %v5985 = vadd.f32 0.0, %v5984
        %v5986 = vpop.f32.mrb[0].mxu0
        %5987 = vdwg.mxu0
        %v5990 = vunpack.c.l.b16 %v5020
        %v5991 = vunpack.c.l.b16 %v5021
        %v5992 = vpack.c.b16 %v5991, %v5990
        %v5995 = vsel %vm2290, %v5607, 0
        %v5998 = vsel %vm2290, %v5608, 0
        %v6001 = vsel %vm2290, %v5609, 0
        %v6004 = vsel %vm2290, %v5610, 0
        %6006 = vmatprep.subr.bf16.mxu0 0
        %6007 = vmatpush1.bf16.msra.mxu0 %v5992
        %6008 = vmatprep.subr.bf16.mxu0 0
        %6009 = vmatpush1.bf16.msra.mxu0 0
        %6010 = vmatprep.subr.bf16.mxu0 0
        %6011 = vmatpush1.bf16.msra.mxu0 0
        %6012 = vmatprep.subr.bf16.mxu0 0
        %6013 = vmatpush1.bf16.msra.mxu0 0
        %6014 = vmatprep.subr.bf16.mxu0 0
        %6015 = vmatpush1.bf16.msra.mxu0 0
        %6016 = vmatprep.subr.bf16.mxu0 0
        %6017 = vmatpush1.bf16.msra.mxu0 0
        %6018 = vmatprep.subr.bf16.mxu0 0
        %6019 = vmatpush1.bf16.msra.mxu0 0
        %6020 = vmatprep.subr.bf16.mxu0 0
        %6021 = vmatpush1.bf16.msra.mxu0 0
        %6022 = vmatprep.subr.bf16.mxu0 0
        %6023 = vmatpush1.bf16.msra.mxu0 0
        %6024 = vmatprep.subr.bf16.mxu0 0
        %6025 = vmatpush1.bf16.msra.mxu0 0
        %6026 = vmatprep.subr.bf16.mxu0 0
        %6027 = vmatpush1.bf16.msra.mxu0 0
        %6028 = vmatprep.subr.bf16.mxu0 0
        %6029 = vmatpush1.bf16.msra.mxu0 0
        %6030 = vmatprep.subr.bf16.mxu0 0
        %6031 = vmatpush1.bf16.msra.mxu0 0
        %6032 = vmatprep.subr.bf16.mxu0 0
        %6033 = vmatpush1.bf16.msra.mxu0 0
        %6034 = vmatprep.subr.bf16.mxu0 0
        %6035 = vmatpush1.bf16.msra.mxu0 0
        %6036 = vmatprep.subr.bf16.mxu0 0
        %6037 = vmatpush1.bf16.msra.mxu0 0
        %6038 = vmatprep.mubr.bf16.mxu0 0
        %6039 = vmatmul.mubr.bf16.gmra.mrb[0].mxu0 %v5995
        %v6040 = vpop.f32.mrb[0].mxu0
        %v6041 = vadd.f32 %v5958, %v6040
        %v6042 = vpop.f32.mrb[0].mxu0
        %v6043 = vpop.f32.mrb[0].mxu0
        %v6044 = vadd.f32 %v5961, %v6043
        %v6045 = vpop.f32.mrb[0].mxu0
        %6046 = vmatprep.mubr.bf16.mxu0 0
        %6047 = vmatmul.mubr.bf16.gmra.mrb[0].mxu0 %v5998
        %v6048 = vpop.f32.mrb[0].mxu0
        %v6049 = vadd.f32 %v5966, %v6048
        %v6050 = vpop.f32.mrb[0].mxu0
        %v6051 = vpop.f32.mrb[0].mxu0
        %v6052 = vadd.f32 %v5969, %v6051
        %v6053 = vpop.f32.mrb[0].mxu0
        %6054 = vmatprep.mubr.bf16.mxu0 0
        %6055 = vmatmul.mubr.bf16.gmra.mrb[0].mxu0 %v6001
        %v6056 = vpop.f32.mrb[0].mxu0
        %v6057 = vadd.f32 %v5974, %v6056
        %v6058 = vpop.f32.mrb[0].mxu0
        %v6059 = vpop.f32.mrb[0].mxu0
        %v6060 = vadd.f32 %v5977, %v6059
        %v6061 = vpop.f32.mrb[0].mxu0
        %6062 = vmatprep.mubr.bf16.mxu0 0
        %6063 = vmatmul.mubr.bf16.gmra.mrb[0].mxu0 %v6004
        %v6064 = vpop.f32.mrb[0].mxu0
        %v6065 = vadd.f32 %v5982, %v6064
        %v6066 = vpop.f32.mrb[0].mxu0
        %v6067 = vpop.f32.mrb[0].mxu0
        %v6068 = vadd.f32 %v5985, %v6067
        %v6069 = vpop.f32.mrb[0].mxu0
        %6070 = vdwg.mxu0
        %v6071 = vadd.f32 %v5002, %v6041
        %v6072 = vadd.f32 %v5003, %v6044
        %v6073 = vadd.f32 %v5004, %v6049
        %v6074 = vadd.f32 %v5005, %v6052
        %v6075 = vadd.f32 %v5006, %v6057
        %v6076 = vadd.f32 %v5007, %v6060
        %v6077 = vadd.f32 %v5008, %v6065
        %v6078 = vadd.f32 %v5009, %v6068
        %v6080 = vlaneseq
        %v6081 = vshrl.u32 %v6080, 7
        %v6082 = vsub.s32 0, %v6081
        %v6083 = vrot.slane %v5024, %v6082
        %v6085 = vadd.f32 %v6071, %v6083
        %v6086 = vadd.f32 %v6072, %v6083
        %v6087 = vadd.f32 %v6073, %v6083
        %v6088 = vadd.f32 %v6074, %v6083
        %v6089 = vadd.f32 %v6075, %v6083
        %v6090 = vadd.f32 %v6076, %v6083
        %v6091 = vadd.f32 %v6077, %v6083
        %v6092 = vadd.f32 %v6078, %v6083
        %v6093 = vsel %vm1845, %v6085, 0.0
        %6094 = vadd.xlane.f32.xlu0 %v6093
        %v6095 = vpop.xlane.xlu0 %6094
        %v6096 = vsel %vm1845, %v6086, 0.0
        %6097 = vadd.xlane.f32.xlu0 %v6096
        %v6098 = vpop.xlane.xlu0 %6097
        %v6099 = vsel %vm1845, %v6087, 0.0
        %6100 = vadd.xlane.f32.xlu0 %v6099
        %v6101 = vpop.xlane.xlu0 %6100
        %v6102 = vsel %vm1845, %v6088, 0.0
        %6103 = vadd.xlane.f32.xlu0 %v6102
        %v6104 = vpop.xlane.xlu0 %6103
        %v6105 = vsel %vm1845, %v6089, 0.0
        %6106 = vadd.xlane.f32.xlu0 %v6105
        %v6107 = vpop.xlane.xlu0 %6106
        %v6108 = vsel %vm1845, %v6090, 0.0
        %6109 = vadd.xlane.f32.xlu0 %v6108
        %v6110 = vpop.xlane.xlu0 %6109
        %v6111 = vsel %vm1845, %v6091, 0.0
        %6112 = vadd.xlane.f32.xlu0 %v6111
        %v6113 = vpop.xlane.xlu0 %6112
        %v6114 = vsel %vm1845, %v6092, 0.0
        %6115 = vadd.xlane.f32.xlu0 %v6114
        %v6116 = vpop.xlane.xlu0 %6115
        %v6117 = vmul.f32 %v6095, %v1870
        %v6118 = vmul.f32 %v6098, %v1870
        %v6119 = vmul.f32 %v6101, %v1870
        %v6120 = vmul.f32 %v6104, %v1870
        %v6121 = vmul.f32 %v6107, %v1870
        %v6122 = vmul.f32 %v6110, %v1870
        %v6123 = vmul.f32 %v6113, %v1870
        %v6124 = vmul.f32 %v6116, %v1870
        %v6125 = vsub.f32 %v6085, %v6117
        %v6126 = vsub.f32 %v6086, %v6118
        %v6127 = vsub.f32 %v6087, %v6119
        %v6128 = vsub.f32 %v6088, %v6120
        %v6129 = vsub.f32 %v6089, %v6121
        %v6130 = vsub.f32 %v6090, %v6122
        %v6131 = vsub.f32 %v6091, %v6123
        %v6132 = vsub.f32 %v6092, %v6124
        %v6133 = vmul.f32 %v6125, %v6125
        %v6134 = vmul.f32 %v6126, %v6126
        %v6135 = vmul.f32 %v6127, %v6127
        %v6136 = vmul.f32 %v6128, %v6128
        %v6137 = vmul.f32 %v6129, %v6129
        %v6138 = vmul.f32 %v6130, %v6130
        %v6139 = vmul.f32 %v6131, %v6131
        %v6140 = vmul.f32 %v6132, %v6132
        %v6141 = vsel %vm1845, %v6133, 0.0
        %6142 = vadd.xlane.f32.xlu0 %v6141
        %v6143 = vpop.xlane.xlu0 %6142
        %v6144 = vsel %vm1845, %v6134, 0.0
        %6145 = vadd.xlane.f32.xlu0 %v6144
        %v6146 = vpop.xlane.xlu0 %6145
        %v6147 = vsel %vm1845, %v6135, 0.0
        %6148 = vadd.xlane.f32.xlu0 %v6147
        %v6149 = vpop.xlane.xlu0 %6148
        %v6150 = vsel %vm1845, %v6136, 0.0
        %6151 = vadd.xlane.f32.xlu0 %v6150
        %v6152 = vpop.xlane.xlu0 %6151
        %v6153 = vsel %vm1845, %v6137, 0.0
        %6154 = vadd.xlane.f32.xlu0 %v6153
        %v6155 = vpop.xlane.xlu0 %6154
        %v6156 = vsel %vm1845, %v6138, 0.0
        %6157 = vadd.xlane.f32.xlu0 %v6156
        %v6158 = vpop.xlane.xlu0 %6157
        %v6159 = vsel %vm1845, %v6139, 0.0
        %6160 = vadd.xlane.f32.xlu0 %v6159
        %v6161 = vpop.xlane.xlu0 %6160
        %v6162 = vsel %vm1845, %v6140, 0.0
        %6163 = vadd.xlane.f32.xlu0 %v6162
        %v6164 = vpop.xlane.xlu0 %6163
        %v6165 = vmul.f32 %v6143, %v1870
        %v6166 = vmul.f32 %v6146, %v1870
        %v6167 = vmul.f32 %v6149, %v1870
        %v6168 = vmul.f32 %v6152, %v1870
        %v6169 = vmul.f32 %v6155, %v1870
        %v6170 = vmul.f32 %v6158, %v1870
        %v6171 = vmul.f32 %v6161, %v1870
        %v6172 = vmul.f32 %v6164, %v1870
        %v6173 = vadd.f32 %v6165, 1e-05
        %v6174 = vadd.f32 %v6166, 1e-05
        %v6175 = vadd.f32 %v6167, 1e-05
        %v6176 = vadd.f32 %v6168, 1e-05
        %v6177 = vadd.f32 %v6169, 1e-05
        %v6178 = vadd.f32 %v6170, 1e-05
        %v6179 = vadd.f32 %v6171, 1e-05
        %v6180 = vadd.f32 %v6172, 1e-05
        %v6181 = vrsqrt.pop %v6173
        %v6182 = vrsqrt.pop %v6174
        %v6183 = vrsqrt.pop %v6175
        %v6184 = vrsqrt.pop %v6176
        %v6185 = vrsqrt.pop %v6177
        %v6186 = vrsqrt.pop %v6178
        %v6187 = vrsqrt.pop %v6179
        %v6188 = vrsqrt.pop %v6180
        %v6189 = vmul.f32 %v6125, %v6181
        %v6190 = vmul.f32 %v6126, %v6182
        %v6191 = vmul.f32 %v6127, %v6183
        %v6192 = vmul.f32 %v6128, %v6184
        %v6193 = vmul.f32 %v6129, %v6185
        %v6194 = vmul.f32 %v6130, %v6186
        %v6195 = vmul.f32 %v6131, %v6187
        %v6196 = vmul.f32 %v6132, %v6188
        %v6197 = vpack.c.bf16 %v6190, %v6189
        %v6198 = vpack.c.bf16 %v6192, %v6191
        %v6199 = vpack.c.bf16 %v6194, %v6193
        %v6200 = vpack.c.bf16 %v6196, %v6195
        %v6202 = vlaneseq
        %v6203 = vshrl.u32 %v6202, 7
        %v6204 = vsub.s32 0, %v6203
        %v6205 = vrot.slane %v5029, %v6204
        %v6211 = vunpack.c.l.b16 %v5025
        %v6212 = vunpack.c.l.b16 %v5026
        %v6213 = vunpack.c.l.b16 %v5027
        %v6214 = vunpack.c.l.b16 %v5028
        %v6215 = vpack.c.b16 %v6212, %v6211
        %v6216 = vpack.c.b16 %v6214, %v6213
        %v6220 = vsel %vm1845, %v6197, 0
        %v6223 = vsel %vm1845, %v6198, 0
        %v6226 = vsel %vm1845, %v6199, 0
        %v6229 = vsel %vm1845, %v6200, 0
        %6231 = vmatprep.subr.bf16.mxu0 0
        %6232 = vmatpush1.bf16.msra.mxu0 %v6215
        %6233 = vmatprep.subr.bf16.mxu0 0
        %6234 = vmatpush1.bf16.msra.mxu0 %v6216
        %6235 = vmatprep.subr.bf16.mxu0 0
        %6236 = vmatpush1.bf16.msra.mxu0 0
        %6237 = vmatprep.subr.bf16.mxu0 0
        %6238 = vmatpush1.bf16.msra.mxu0 0
        %6239 = vmatprep.subr.bf16.mxu0 0
        %6240 = vmatpush1.bf16.msra.mxu0 0
        %6241 = vmatprep.subr.bf16.mxu0 0
        %6242 = vmatpush1.bf16.msra.mxu0 0
        %6243 = vmatprep.subr.bf16.mxu0 0
        %6244 = vmatpush1.bf16.msra.mxu0 0
        %6245 = vmatprep.subr.bf16.mxu0 0
        %6246 = vmatpush1.bf16.msra.mxu0 0
        %6247 = vmatprep.subr.bf16.mxu0 0
        %6248 = vmatpush1.bf16.msra.mxu0 0
        %6249 = vmatprep.subr.bf16.mxu0 0
        %6250 = vmatpush1.bf16.msra.mxu0 0
        %6251 = vmatprep.subr.bf16.mxu0 0
        %6252 = vmatpush1.bf16.msra.mxu0 0
        %6253 = vmatprep.subr.bf16.mxu0 0
        %6254 = vmatpush1.bf16.msra.mxu0 0
        %6255 = vmatprep.subr.bf16.mxu0 0
        %6256 = vmatpush1.bf16.msra.mxu0 0
        %6257 = vmatprep.subr.bf16.mxu0 0
        %6258 = vmatpush1.bf16.msra.mxu0 0
        %6259 = vmatprep.subr.bf16.mxu0 0
        %6260 = vmatpush1.bf16.msra.mxu0 0
        %6261 = vmatprep.subr.bf16.mxu0 0
        %6262 = vmatpush1.bf16.msra.mxu0 0
        %6263 = vmatprep.mubr.bf16.mxu0 0
        %6264 = vmatmul.mubr.bf16.gmra.mrb[0].mxu0 %v6220
        %v6265 = vpop.f32.mrb[0].mxu0
        %v6266 = vadd.f32 %v6205, %v6265
        %v6267 = vpop.f32.mrb[0].mxu0
        %v6268 = vpop.f32.mrb[0].mxu0
        %v6269 = vadd.f32 %v6205, %v6268
        %v6270 = vpop.f32.mrb[0].mxu0
        %6271 = vmatprep.mubr.bf16.mxu0 0
        %6272 = vmatmul.mubr.bf16.gmra.mrb[0].mxu0 %v6223
        %v6273 = vpop.f32.mrb[0].mxu0
        %v6274 = vadd.f32 %v6205, %v6273
        %v6275 = vpop.f32.mrb[0].mxu0
        %v6276 = vpop.f32.mrb[0].mxu0
        %v6277 = vadd.f32 %v6205, %v6276
        %v6278 = vpop.f32.mrb[0].mxu0
        %6279 = vmatprep.mubr.bf16.mxu0 0
        %6280 = vmatmul.mubr.bf16.gmra.mrb[0].mxu0 %v6226
        %v6281 = vpop.f32.mrb[0].mxu0
        %v6282 = vadd.f32 %v6205, %v6281
        %v6283 = vpop.f32.mrb[0].mxu0
        %v6284 = vpop.f32.mrb[0].mxu0
        %v6285 = vadd.f32 %v6205, %v6284
        %v6286 = vpop.f32.mrb[0].mxu0
        %6287 = vmatprep.mubr.bf16.mxu0 0
        %6288 = vmatmul.mubr.bf16.gmra.mrb[0].mxu0 %v6229
        %v6289 = vpop.f32.mrb[0].mxu0
        %v6290 = vadd.f32 %v6205, %v6289
        %v6291 = vpop.f32.mrb[0].mxu0
        %v6292 = vpop.f32.mrb[0].mxu0
        %v6293 = vadd.f32 %v6205, %v6292
        %v6294 = vpop.f32.mrb[0].mxu0
        %6295 = vdwg.mxu0
        %v6296 = vmul.f32 %v6266, 0.5
        %v6297 = vmul.f32 %v6269, 0.5
        %v6298 = vmul.f32 %v6274, 0.5
        %v6299 = vmul.f32 %v6277, 0.5
        %v6300 = vmul.f32 %v6282, 0.5
        %v6301 = vmul.f32 %v6285, 0.5
        %v6302 = vmul.f32 %v6290, 0.5
        %v6303 = vmul.f32 %v6293, 0.5
        %v6304 = vmul.f32 %v6266, %v3263
        %v6305 = vmul.f32 %v6269, %v3263
        %v6306 = vmul.f32 %v6274, %v3263
        %v6307 = vmul.f32 %v6277, %v3263
        %v6308 = vmul.f32 %v6282, %v3263
        %v6309 = vmul.f32 %v6285, %v3263
        %v6310 = vmul.f32 %v6290, %v3263
        %v6311 = vmul.f32 %v6293, %v3263
        %v6312 = verf.f32.pop %v6304
        %v6313 = verf.f32.pop %v6305
        %v6314 = verf.f32.pop %v6306
        %v6315 = verf.f32.pop %v6307
        %v6316 = verf.f32.pop %v6308
        %v6317 = verf.f32.pop %v6309
        %v6318 = verf.f32.pop %v6310
        %v6319 = verf.f32.pop %v6311
        %v6320 = vadd.f32 %v6312, 1.0
        %v6321 = vadd.f32 %v6313, 1.0
        %v6322 = vadd.f32 %v6314, 1.0
        %v6323 = vadd.f32 %v6315, 1.0
        %v6324 = vadd.f32 %v6316, 1.0
        %v6325 = vadd.f32 %v6317, 1.0
        %v6326 = vadd.f32 %v6318, 1.0
        %v6327 = vadd.f32 %v6319, 1.0
        %v6328 = vmul.f32 %v6296, %v6320
        %v6329 = vmul.f32 %v6297, %v6321
        %v6330 = vmul.f32 %v6298, %v6322
        %v6331 = vmul.f32 %v6299, %v6323
        %v6332 = vmul.f32 %v6300, %v6324
        %v6333 = vmul.f32 %v6301, %v6325
        %v6334 = vmul.f32 %v6302, %v6326
        %v6335 = vmul.f32 %v6303, %v6327
        %v6336 = vpack.c.bf16 %v6329, %v6328
        %v6337 = vpack.c.bf16 %v6331, %v6330
        %v6338 = vpack.c.bf16 %v6333, %v6332
        %v6339 = vpack.c.bf16 %v6335, %v6334
        %v6348 = vunpack.c.l.b16 %v5030
        %v6349 = vunpack.c.l.b16 %v5031
        %v6350 = vunpack.c.l.b16 %v5032
        %v6351 = vunpack.c.l.b16 %v5033
        %v6352 = vunpack.c.l.b16 %v5034
        %v6353 = vunpack.c.l.b16 %v5035
        %v6354 = vunpack.c.l.b16 %v5036
        %v6355 = vunpack.c.l.b16 %v5037
        %v6356 = vpack.c.b16 %v6349, %v6348
        %v6357 = vpack.c.b16 %v6351, %v6350
        %v6358 = vpack.c.b16 %v6353, %v6352
        %v6359 = vpack.c.b16 %v6355, %v6354
        %v6365 = vsel %vm2380, %v6336, 0
        %v6368 = vsel %vm2380, %v6337, 0
        %v6371 = vsel %vm2380, %v6338, 0
        %v6374 = vsel %vm2380, %v6339, 0
        %6376 = vmatprep.subr.bf16.mxu0 0
        %6377 = vmatpush1.bf16.msra.mxu0 %v6356
        %6378 = vmatprep.subr.bf16.mxu0 0
        %6379 = vmatpush1.bf16.msra.mxu0 %v6357
        %6380 = vmatprep.subr.bf16.mxu0 0
        %6381 = vmatpush1.bf16.msra.mxu0 %v6358
        %6382 = vmatprep.subr.bf16.mxu0 0
        %6383 = vmatpush1.bf16.msra.mxu0 %v6359
        %6384 = vmatprep.subr.bf16.mxu0 0
        %6385 = vmatpush1.bf16.msra.mxu0 0
        %6386 = vmatprep.subr.bf16.mxu0 0
        %6387 = vmatpush1.bf16.msra.mxu0 0
        %6388 = vmatprep.subr.bf16.mxu0 0
        %6389 = vmatpush1.bf16.msra.mxu0 0
        %6390 = vmatprep.subr.bf16.mxu0 0
        %6391 = vmatpush1.bf16.msra.mxu0 0
        %6392 = vmatprep.subr.bf16.mxu0 0
        %6393 = vmatpush1.bf16.msra.mxu0 0
        %6394 = vmatprep.subr.bf16.mxu0 0
        %6395 = vmatpush1.bf16.msra.mxu0 0
        %6396 = vmatprep.subr.bf16.mxu0 0
        %6397 = vmatpush1.bf16.msra.mxu0 0
        %6398 = vmatprep.subr.bf16.mxu0 0
        %6399 = vmatpush1.bf16.msra.mxu0 0
        %6400 = vmatprep.subr.bf16.mxu0 0
        %6401 = vmatpush1.bf16.msra.mxu0 0
        %6402 = vmatprep.subr.bf16.mxu0 0
        %6403 = vmatpush1.bf16.msra.mxu0 0
        %6404 = vmatprep.subr.bf16.mxu0 0
        %6405 = vmatpush1.bf16.msra.mxu0 0
        %6406 = vmatprep.subr.bf16.mxu0 0
        %6407 = vmatpush1.bf16.msra.mxu0 0
        %6408 = vmatprep.mubr.bf16.mxu0 0
        %6409 = vmatmul.mubr.bf16.gmra.mrb[0].mxu0 %v6365
        %v6410 = vpop.f32.mrb[0].mxu0
        %v6411 = vadd.f32 0.0, %v6410
        %v6412 = vpop.f32.mrb[0].mxu0
        %v6413 = vpop.f32.mrb[0].mxu0
        %v6414 = vadd.f32 0.0, %v6413
        %v6415 = vpop.f32.mrb[0].mxu0
        %6416 = vmatprep.mubr.bf16.mxu0 0
        %6417 = vmatmul.mubr.bf16.gmra.mrb[0].mxu0 %v6368
        %v6418 = vpop.f32.mrb[0].mxu0
        %v6419 = vadd.f32 0.0, %v6418
        %v6420 = vpop.f32.mrb[0].mxu0
        %v6421 = vpop.f32.mrb[0].mxu0
        %v6422 = vadd.f32 0.0, %v6421
        %v6423 = vpop.f32.mrb[0].mxu0
        %6424 = vmatprep.mubr.bf16.mxu0 0
        %6425 = vmatmul.mubr.bf16.gmra.mrb[0].mxu0 %v6371
        %v6426 = vpop.f32.mrb[0].mxu0
        %v6427 = vadd.f32 0.0, %v6426
        %v6428 = vpop.f32.mrb[0].mxu0
        %v6429 = vpop.f32.mrb[0].mxu0
        %v6430 = vadd.f32 0.0, %v6429
        %v6431 = vpop.f32.mrb[0].mxu0
        %6432 = vmatprep.mubr.bf16.mxu0 0
        %6433 = vmatmul.mubr.bf16.gmra.mrb[0].mxu0 %v6374
        %v6434 = vpop.f32.mrb[0].mxu0
        %v6435 = vadd.f32 0.0, %v6434
        %v6436 = vpop.f32.mrb[0].mxu0
        %v6437 = vpop.f32.mrb[0].mxu0
        %v6438 = vadd.f32 0.0, %v6437
        %v6439 = vpop.f32.mrb[0].mxu0
        %6440 = vdwg.mxu0
        %v6441 = vadd.f32 %v6085, %v6411
        %v6442 = vadd.f32 %v6086, %v6414
        %v6443 = vadd.f32 %v6087, %v6419
        %v6444 = vadd.f32 %v6088, %v6422
        %v6445 = vadd.f32 %v6089, %v6427
        %v6446 = vadd.f32 %v6090, %v6430
        %v6447 = vadd.f32 %v6091, %v6435
        %v6448 = vadd.f32 %v6092, %v6438
        %v6450 = vlaneseq
        %v6451 = vshrl.u32 %v6450, 7
        %v6452 = vsub.s32 0, %v6451
        %v6453 = vrot.slane %v5038, %v6452
        %v6455 = vadd.f32 %v6441, %v6453
        %v6456 = vadd.f32 %v6442, %v6453
        %v6457 = vadd.f32 %v6443, %v6453
        %v6458 = vadd.f32 %v6444, %v6453
        %v6459 = vadd.f32 %v6445, %v6453
        %v6460 = vadd.f32 %v6446, %v6453
        %v6461 = vadd.f32 %v6447, %v6453
        %v6462 = vadd.f32 %v6448, %v6453
        %v6463 = vld [vmem:[%s73] sm:$0xf]
        %v6464 = vld [vmem:[%s73 + $0x4] sm:$0xf]
        %v6465 = vld [vmem:[%s73 + $0x8] sm:$0xf]
        %v6466 = vld [vmem:[%s73 + $0xc] sm:$0xf]
        %v6467 = vld [vmem:[#allocation28] sm:$0x1]
        %v6468 = vld [vmem:[%s77] sm:$0xf]
        %v6469 = vld [vmem:[%s77 + $0x4] sm:$0xf]
        %v6470 = vld [vmem:[%s77 + $0x8] sm:$0xf]
        %v6471 = vld [vmem:[%s77 + $0xc] sm:$0xf]
        %v6472 = vld [vmem:[#allocation29] sm:$0x1]
        %v6473 = vld [vmem:[#allocation31] sm:$0xf]
        %v6474 = vld [vmem:[#allocation31 + $0x4] sm:$0xf]
        %v6475 = vld [vmem:[#allocation31 + $0x8] sm:$0xf]
        %v6476 = vld [vmem:[#allocation31 + $0xc] sm:$0xf]
        %v6477 = vld [vmem:[#allocation32] sm:$0x1]
        %v6478 = vld [vmem:[%s85] sm:$0xf]
        %v6479 = vld [vmem:[%s85 + $0x4] sm:$0xf]
        %v6480 = vld [vmem:[%s85 + $0x8] sm:$0xf]
        %v6481 = vld [vmem:[%s85 + $0xc] sm:$0xf]
        %v6482 = vld [vmem:[#allocation34] sm:$0x1]
        %v6483 = vld [vmem:[%s89] sm:$0xf]
        %v6484 = vld [vmem:[%s89 + $0x4] sm:$0xf]
        %v6485 = vld [vmem:[%s89 + $0x8] sm:$0xf]
        %v6486 = vld [vmem:[%s89 + $0xc] sm:$0xf]
        %v6487 = vld [vmem:[%s89 + $0x10] sm:$0xf]
        %v6488 = vld [vmem:[%s89 + $0x14] sm:$0xf]
        %v6489 = vld [vmem:[%s89 + $0x18] sm:$0xf]
        %v6490 = vld [vmem:[%s89 + $0x1c] sm:$0xf]
        %v6491 = vld [vmem:[#allocation35] sm:$0x1]
        %v6492 = vsel %vm1845, %v6455, 0.0
        %6493 = vadd.xlane.f32.xlu0 %v6492
        %v6494 = vpop.xlane.xlu0 %6493
        %v6495 = vsel %vm1845, %v6456, 0.0
        %6496 = vadd.xlane.f32.xlu0 %v6495
        %v6497 = vpop.xlane.xlu0 %6496
        %v6498 = vsel %vm1845, %v6457, 0.0
        %6499 = vadd.xlane.f32.xlu0 %v6498
        %v6500 = vpop.xlane.xlu0 %6499
        %v6501 = vsel %vm1845, %v6458, 0.0
        %6502 = vadd.xlane.f32.xlu0 %v6501
        %v6503 = vpop.xlane.xlu0 %6502
        %v6504 = vsel %vm1845, %v6459, 0.0
        %6505 = vadd.xlane.f32.xlu0 %v6504
        %v6506 = vpop.xlane.xlu0 %6505
        %v6507 = vsel %vm1845, %v6460, 0.0
        %6508 = vadd.xlane.f32.xlu0 %v6507
        %v6509 = vpop.xlane.xlu0 %6508
        %v6510 = vsel %vm1845, %v6461, 0.0
        %6511 = vadd.xlane.f32.xlu0 %v6510
        %v6512 = vpop.xlane.xlu0 %6511
        %v6513 = vsel %vm1845, %v6462, 0.0
        %6514 = vadd.xlane.f32.xlu0 %v6513
        %v6515 = vpop.xlane.xlu0 %6514
        %v6516 = vmul.f32 %v6494, %v1870
        %v6517 = vmul.f32 %v6497, %v1870
        %v6518 = vmul.f32 %v6500, %v1870
        %v6519 = vmul.f32 %v6503, %v1870
        %v6520 = vmul.f32 %v6506, %v1870
        %v6521 = vmul.f32 %v6509, %v1870
        %v6522 = vmul.f32 %v6512, %v1870
        %v6523 = vmul.f32 %v6515, %v1870
        %v6524 = vsub.f32 %v6455, %v6516
        %v6525 = vsub.f32 %v6456, %v6517
        %v6526 = vsub.f32 %v6457, %v6518
        %v6527 = vsub.f32 %v6458, %v6519
        %v6528 = vsub.f32 %v6459, %v6520
        %v6529 = vsub.f32 %v6460, %v6521
        %v6530 = vsub.f32 %v6461, %v6522
        %v6531 = vsub.f32 %v6462, %v6523
        %v6532 = vmul.f32 %v6524, %v6524
        %v6533 = vmul.f32 %v6525, %v6525
        %v6534 = vmul.f32 %v6526, %v6526
        %v6535 = vmul.f32 %v6527, %v6527
        %v6536 = vmul.f32 %v6528, %v6528
        %v6537 = vmul.f32 %v6529, %v6529
        %v6538 = vmul.f32 %v6530, %v6530
        %v6539 = vmul.f32 %v6531, %v6531
        %v6540 = vsel %vm1845, %v6532, 0.0
        %6541 = vadd.xlane.f32.xlu0 %v6540
        %v6542 = vpop.xlane.xlu0 %6541
        %v6543 = vsel %vm1845, %v6533, 0.0
        %6544 = vadd.xlane.f32.xlu0 %v6543
        %v6545 = vpop.xlane.xlu0 %6544
        %v6546 = vsel %vm1845, %v6534, 0.0
        %6547 = vadd.xlane.f32.xlu0 %v6546
        %v6548 = vpop.xlane.xlu0 %6547
        %v6549 = vsel %vm1845, %v6535, 0.0
        %6550 = vadd.xlane.f32.xlu0 %v6549
        %v6551 = vpop.xlane.xlu0 %6550
        %v6552 = vsel %vm1845, %v6536, 0.0
        %6553 = vadd.xlane.f32.xlu0 %v6552
        %v6554 = vpop.xlane.xlu0 %6553
        %v6555 = vsel %vm1845, %v6537, 0.0
        %6556 = vadd.xlane.f32.xlu0 %v6555
        %v6557 = vpop.xlane.xlu0 %6556
        %v6558 = vsel %vm1845, %v6538, 0.0
        %6559 = vadd.xlane.f32.xlu0 %v6558
        %v6560 = vpop.xlane.xlu0 %6559
        %v6561 = vsel %vm1845, %v6539, 0.0
        %6562 = vadd.xlane.f32.xlu0 %v6561
        %v6563 = vpop.xlane.xlu0 %6562
        %v6564 = vmul.f32 %v6542, %v1870
        %v6565 = vmul.f32 %v6545, %v1870
        %v6566 = vmul.f32 %v6548, %v1870
        %v6567 = vmul.f32 %v6551, %v1870
        %v6568 = vmul.f32 %v6554, %v1870
        %v6569 = vmul.f32 %v6557, %v1870
        %v6570 = vmul.f32 %v6560, %v1870
        %v6571 = vmul.f32 %v6563, %v1870
        %v6572 = vadd.f32 %v6564, 1e-05
        %v6573 = vadd.f32 %v6565, 1e-05
        %v6574 = vadd.f32 %v6566, 1e-05
        %v6575 = vadd.f32 %v6567, 1e-05
        %v6576 = vadd.f32 %v6568, 1e-05
        %v6577 = vadd.f32 %v6569, 1e-05
        %v6578 = vadd.f32 %v6570, 1e-05
        %v6579 = vadd.f32 %v6571, 1e-05
        %v6580 = vrsqrt.pop %v6572
        %v6581 = vrsqrt.pop %v6573
        %v6582 = vrsqrt.pop %v6574
        %v6583 = vrsqrt.pop %v6575
        %v6584 = vrsqrt.pop %v6576
        %v6585 = vrsqrt.pop %v6577
        %v6586 = vrsqrt.pop %v6578
        %v6587 = vrsqrt.pop %v6579
        %v6588 = vmul.f32 %v6524, %v6580
        %v6589 = vmul.f32 %v6525, %v6581
        %v6590 = vmul.f32 %v6526, %v6582
        %v6591 = vmul.f32 %v6527, %v6583
        %v6592 = vmul.f32 %v6528, %v6584
        %v6593 = vmul.f32 %v6529, %v6585
        %v6594 = vmul.f32 %v6530, %v6586
        %v6595 = vmul.f32 %v6531, %v6587
        %v6596 = vpack.c.bf16 %v6589, %v6588
        %v6597 = vpack.c.bf16 %v6591, %v6590
        %v6598 = vpack.c.bf16 %v6593, %v6592
        %v6599 = vpack.c.bf16 %v6595, %v6594
        %v6601 = vlaneseq
        %v6602 = vshrl.u32 %v6601, 7
        %v6603 = vsub.s32 0, %v6602
        %v6604 = vrot.slane %v6467, %v6603
        %v6610 = vunpack.c.l.b16 %v6463
        %v6611 = vunpack.c.l.b16 %v6464
        %v6612 = vunpack.c.l.b16 %v6465
        %v6613 = vunpack.c.l.b16 %v6466
        %v6614 = vpack.c.b16 %v6611, %v6610
        %v6615 = vpack.c.b16 %v6613, %v6612
        %v6619 = vsel %vm1845, %v6596, 0
        %v6622 = vsel %vm1845, %v6597, 0
        %v6625 = vsel %vm1845, %v6598, 0
        %v6628 = vsel %vm1845, %v6599, 0
        %6630 = vmatprep.subr.bf16.mxu0 0
        %6631 = vmatpush1.bf16.msra.mxu0 %v6614
        %6632 = vmatprep.subr.bf16.mxu0 0
        %6633 = vmatpush1.bf16.msra.mxu0 %v6615
        %6634 = vmatprep.subr.bf16.mxu0 0
        %6635 = vmatpush1.bf16.msra.mxu0 0
        %6636 = vmatprep.subr.bf16.mxu0 0
        %6637 = vmatpush1.bf16.msra.mxu0 0
        %6638 = vmatprep.subr.bf16.mxu0 0
        %6639 = vmatpush1.bf16.msra.mxu0 0
        %6640 = vmatprep.subr.bf16.mxu0 0
        %6641 = vmatpush1.bf16.msra.mxu0 0
        %6642 = vmatprep.subr.bf16.mxu0 0
        %6643 = vmatpush1.bf16.msra.mxu0 0
        %6644 = vmatprep.subr.bf16.mxu0 0
        %6645 = vmatpush1.bf16.msra.mxu0 0
        %6646 = vmatprep.subr.bf16.mxu0 0
        %6647 = vmatpush1.bf16.msra.mxu0 0
        %6648 = vmatprep.subr.bf16.mxu0 0
        %6649 = vmatpush1.bf16.msra.mxu0 0
        %6650 = vmatprep.subr.bf16.mxu0 0
        %6651 = vmatpush1.bf16.msra.mxu0 0
        %6652 = vmatprep.subr.bf16.mxu0 0
        %6653 = vmatpush1.bf16.msra.mxu0 0
        %6654 = vmatprep.subr.bf16.mxu0 0
        %6655 = vmatpush1.bf16.msra.mxu0 0
        %6656 = vmatprep.subr.bf16.mxu0 0
        %6657 = vmatpush1.bf16.msra.mxu0 0
        %6658 = vmatprep.subr.bf16.mxu0 0
        %6659 = vmatpush1.bf16.msra.mxu0 0
        %6660 = vmatprep.subr.bf16.mxu0 0
        %6661 = vmatpush1.bf16.msra.mxu0 0
        %6662 = vmatprep.mubr.bf16.mxu0 0
        %6663 = vmatmul.mubr.bf16.gmra.mrb[0].mxu0 %v6619
        %v6664 = vpop.f32.mrb[0].mxu0
        %v6665 = vadd.f32 %v6604, %v6664
        %v6666 = vpop.f32.mrb[0].mxu0
        %v6667 = vpop.f32.mrb[0].mxu0
        %v6668 = vadd.f32 %v6604, %v6667
        %v6669 = vpop.f32.mrb[0].mxu0
        %6670 = vmatprep.mubr.bf16.mxu0 0
        %6671 = vmatmul.mubr.bf16.gmra.mrb[0].mxu0 %v6622
        %v6672 = vpop.f32.mrb[0].mxu0
        %v6673 = vadd.f32 %v6604, %v6672
        %v6674 = vpop.f32.mrb[0].mxu0
        %v6675 = vpop.f32.mrb[0].mxu0
        %v6676 = vadd.f32 %v6604, %v6675
        %v6677 = vpop.f32.mrb[0].mxu0
        %6678 = vmatprep.mubr.bf16.mxu0 0
        %6679 = vmatmul.mubr.bf16.gmra.mrb[0].mxu0 %v6625
        %v6680 = vpop.f32.mrb[0].mxu0
        %v6681 = vadd.f32 %v6604, %v6680
        %v6682 = vpop.f32.mrb[0].mxu0
        %v6683 = vpop.f32.mrb[0].mxu0
        %v6684 = vadd.f32 %v6604, %v6683
        %v6685 = vpop.f32.mrb[0].mxu0
        %6686 = vmatprep.mubr.bf16.mxu0 0
        %6687 = vmatmul.mubr.bf16.gmra.mrb[0].mxu0 %v6628
        %v6688 = vpop.f32.mrb[0].mxu0
        %v6689 = vadd.f32 %v6604, %v6688
        %v6690 = vpop.f32.mrb[0].mxu0
        %v6691 = vpop.f32.mrb[0].mxu0
        %v6692 = vadd.f32 %v6604, %v6691
        %v6693 = vpop.f32.mrb[0].mxu0
        %6694 = vdwg.mxu0
        %v6696 = vlaneseq
        %v6697 = vshrl.u32 %v6696, 7
        %v6698 = vsub.s32 0, %v6697
        %v6699 = vrot.slane %v6472, %v6698
        %v6705 = vunpack.c.l.b16 %v6468
        %v6706 = vunpack.c.l.b16 %v6469
        %v6707 = vunpack.c.l.b16 %v6470
        %v6708 = vunpack.c.l.b16 %v6471
        %v6709 = vpack.c.b16 %v6706, %v6705
        %v6710 = vpack.c.b16 %v6708, %v6707
        %6713 = vmatprep.subr.bf16.mxu0 0
        %6714 = vmatpush1.bf16.msra.mxu0 %v6709
        %6715 = vmatprep.subr.bf16.mxu0 0
        %6716 = vmatpush1.bf16.msra.mxu0 %v6710
        %6717 = vmatprep.subr.bf16.mxu0 0
        %6718 = vmatpush1.bf16.msra.mxu0 0
        %6719 = vmatprep.subr.bf16.mxu0 0
        %6720 = vmatpush1.bf16.msra.mxu0 0
        %6721 = vmatprep.subr.bf16.mxu0 0
        %6722 = vmatpush1.bf16.msra.mxu0 0
        %6723 = vmatprep.subr.bf16.mxu0 0
        %6724 = vmatpush1.bf16.msra.mxu0 0
        %6725 = vmatprep.subr.bf16.mxu0 0
        %6726 = vmatpush1.bf16.msra.mxu0 0
        %6727 = vmatprep.subr.bf16.mxu0 0
        %6728 = vmatpush1.bf16.msra.mxu0 0
        %6729 = vmatprep.subr.bf16.mxu0 0
        %6730 = vmatpush1.bf16.msra.mxu0 0
        %6731 = vmatprep.subr.bf16.mxu0 0
        %6732 = vmatpush1.bf16.msra.mxu0 0
        %6733 = vmatprep.subr.bf16.mxu0 0
        %6734 = vmatpush1.bf16.msra.mxu0 0
        %6735 = vmatprep.subr.bf16.mxu0 0
        %6736 = vmatpush1.bf16.msra.mxu0 0
        %6737 = vmatprep.subr.bf16.mxu0 0
        %6738 = vmatpush1.bf16.msra.mxu0 0
        %6739 = vmatprep.subr.bf16.mxu0 0
        %6740 = vmatpush1.bf16.msra.mxu0 0
        %6741 = vmatprep.subr.bf16.mxu0 0
        %6742 = vmatpush1.bf16.msra.mxu0 0
        %6743 = vmatprep.subr.bf16.mxu0 0
        %6744 = vmatpush1.bf16.msra.mxu0 0
        %6745 = vmatprep.mubr.bf16.mxu0 0
        %6746 = vmatmul.mubr.bf16.gmra.mrb[0].mxu0 %v2206
        %v6747 = vpop.f32.mrb[0].mxu0
        %v6748 = vadd.f32 %v6699, %v6747
        %v6749 = vpop.f32.mrb[0].mxu0
        %v6750 = vpop.f32.mrb[0].mxu0
        %v6751 = vadd.f32 %v6699, %v6750
        %v6752 = vpop.f32.mrb[0].mxu0
        %6753 = vmatprep.mubr.bf16.mxu0 0
        %6754 = vmatmul.mubr.bf16.gmra.mrb[0].mxu0 %v2209
        %v6755 = vpop.f32.mrb[0].mxu0
        %v6756 = vadd.f32 %v6699, %v6755
        %v6757 = vpop.f32.mrb[0].mxu0
        %v6758 = vpop.f32.mrb[0].mxu0
        %v6759 = vadd.f32 %v6699, %v6758
        %v6760 = vpop.f32.mrb[0].mxu0
        %6761 = vmatprep.mubr.bf16.mxu0 0
        %6762 = vmatmul.mubr.bf16.gmra.mrb[0].mxu0 %v2212
        %v6763 = vpop.f32.mrb[0].mxu0
        %v6764 = vadd.f32 %v6699, %v6763
        %v6765 = vpop.f32.mrb[0].mxu0
        %v6766 = vpop.f32.mrb[0].mxu0
        %v6767 = vadd.f32 %v6699, %v6766
        %v6768 = vpop.f32.mrb[0].mxu0
        %6769 = vmatprep.mubr.bf16.mxu0 0
        %6770 = vmatmul.mubr.bf16.gmra.mrb[0].mxu0 %v2215
        %v6771 = vpop.f32.mrb[0].mxu0
        %v6772 = vadd.f32 %v6699, %v6771
        %v6773 = vpop.f32.mrb[0].mxu0
        %v6774 = vpop.f32.mrb[0].mxu0
        %v6775 = vadd.f32 %v6699, %v6774
        %v6776 = vpop.f32.mrb[0].mxu0
        %6777 = vdwg.mxu0
        %v6778 = vpack.c.bf16 %v6668, %v6665
        %v6779 = vpack.c.bf16 %v6676, %v6673
        %v6780 = vpack.c.bf16 %v6684, %v6681
        %v6781 = vpack.c.bf16 %v6692, %v6689
        %v6782 = vpack.c.bf16 %v6751, %v6748
        %v6783 = vpack.c.bf16 %v6759, %v6756
        %v6784 = vpack.c.bf16 %v6767, %v6764
        %v6785 = vpack.c.bf16 %v6775, %v6772
        %v6787 = vsel %vm2290, %v6778, 0
        %v6790 = vsel %vm2290, %v6779, 0
        %v6793 = vsel %vm2290, %v6780, 0
        %v6796 = vsel %vm2290, %v6781, 0
        %v6799 = vsel %vm2290, %v6782, 0
        %v6802 = vsel %vm2290, %v6783, 0
        %v6805 = vsel %vm2290, %v6784, 0
        %v6808 = vsel %vm2290, %v6785, 0
        %6810 = vmatprep.subr.bf16.mxu0 0
        %6811 = vmatpush1.bf16.xpose.msra.mxu0 %v6799
        %6812 = vmatprep.subr.bf16.mxu0 0
        %6813 = vmatpush1.bf16.xpose.msra.mxu0 %v6802
        %6814 = vmatprep.subr.bf16.mxu0 0
        %6815 = vmatpush1.bf16.xpose.msra.mxu0 %v6805
        %6816 = vmatprep.subr.bf16.mxu0 0
        %6817 = vmatpush1.bf16.xpose.msra.mxu0 %v6808
        %6818 = vmatprep.subr.bf16.mxu0 0
        %6819 = vmatpush1.bf16.xpose.msra.mxu0 0
        %6820 = vmatprep.subr.bf16.mxu0 0
        %6821 = vmatpush1.bf16.xpose.msra.mxu0 0
        %6822 = vmatprep.subr.bf16.mxu0 0
        %6823 = vmatpush1.bf16.xpose.msra.mxu0 0
        %6824 = vmatprep.subr.bf16.mxu0 0
        %6825 = vmatpush1.bf16.xpose.msra.mxu0 0
        %6826 = vmatprep.subr.bf16.mxu0 0
        %6827 = vmatpush1.bf16.xpose.msra.mxu0 0
        %6828 = vmatprep.subr.bf16.mxu0 0
        %6829 = vmatpush1.bf16.xpose.msra.mxu0 0
        %6830 = vmatprep.subr.bf16.mxu0 0
        %6831 = vmatpush1.bf16.xpose.msra.mxu0 0
        %6832 = vmatprep.subr.bf16.mxu0 0
        %6833 = vmatpush1.bf16.xpose.msra.mxu0 0
        %6834 = vmatprep.subr.bf16.mxu0 0
        %6835 = vmatpush1.bf16.xpose.msra.mxu0 0
        %6836 = vmatprep.subr.bf16.mxu0 0
        %6837 = vmatpush1.bf16.xpose.msra.mxu0 0
        %6838 = vmatprep.subr.bf16.mxu0 0
        %6839 = vmatpush1.bf16.xpose.msra.mxu0 0
        %6840 = vmatprep.subr.bf16.mxu0 0
        %6841 = vmatpush1.bf16.xpose.msra.mxu0 0
        %6842 = vmatprep.mubr.bf16.mxu0 0
        %6843 = vmatmul.mubr.bf16.gmra.mrb[0].mxu0 %v6787
        %v6844 = vpop.f32.mrb[0].mxu0
        %v6845 = vadd.f32 %v1837, %v6844
        %v6846 = vpop.f32.mrb[0].mxu0
        %v6847 = vpop.f32.mrb[0].mxu0
        %v6848 = vadd.f32 %v1838, %v6847
        %v6849 = vpop.f32.mrb[0].mxu0
        %6850 = vmatprep.mubr.bf16.mxu0 0
        %6851 = vmatmul.mubr.bf16.gmra.mrb[0].mxu0 %v6790
        %v6852 = vpop.f32.mrb[0].mxu0
        %v6853 = vadd.f32 %v1839, %v6852
        %v6854 = vpop.f32.mrb[0].mxu0
        %v6855 = vpop.f32.mrb[0].mxu0
        %v6856 = vadd.f32 %v1840, %v6855
        %v6857 = vpop.f32.mrb[0].mxu0
        %6858 = vmatprep.mubr.bf16.mxu0 0
        %6859 = vmatmul.mubr.bf16.gmra.mrb[0].mxu0 %v6793
        %v6860 = vpop.f32.mrb[0].mxu0
        %v6861 = vadd.f32 %v1841, %v6860
        %v6862 = vpop.f32.mrb[0].mxu0
        %v6863 = vpop.f32.mrb[0].mxu0
        %v6864 = vadd.f32 %v1842, %v6863
        %v6865 = vpop.f32.mrb[0].mxu0
        %6866 = vmatprep.mubr.bf16.mxu0 0
        %6867 = vmatmul.mubr.bf16.gmra.mrb[0].mxu0 %v6796
        %v6868 = vpop.f32.mrb[0].mxu0
        %v6869 = vadd.f32 %v1843, %v6868
        %v6870 = vpop.f32.mrb[0].mxu0
        %v6871 = vpop.f32.mrb[0].mxu0
        %v6872 = vadd.f32 %v1844, %v6871
        %v6873 = vpop.f32.mrb[0].mxu0
        %6874 = vdwg.mxu0
        %v6875 = vsel %vm2380, %v6845, -inf
        %6876 = vmax.xlane.f32.xlu0 %v6875
        %v6877 = vpop.xlane.xlu0 %6876
        %v6878 = vsel %vm2380, %v6848, -inf
        %6879 = vmax.xlane.f32.xlu0 %v6878
        %v6880 = vpop.xlane.xlu0 %6879
        %v6881 = vsel %vm2380, %v6853, -inf
        %6882 = vmax.xlane.f32.xlu0 %v6881
        %v6883 = vpop.xlane.xlu0 %6882
        %v6884 = vsel %vm2380, %v6856, -inf
        %6885 = vmax.xlane.f32.xlu0 %v6884
        %v6886 = vpop.xlane.xlu0 %6885
        %v6887 = vsel %vm2380, %v6861, -inf
        %6888 = vmax.xlane.f32.xlu0 %v6887
        %v6889 = vpop.xlane.xlu0 %6888
        %v6890 = vsel %vm2380, %v6864, -inf
        %6891 = vmax.xlane.f32.xlu0 %v6890
        %v6892 = vpop.xlane.xlu0 %6891
        %v6893 = vsel %vm2380, %v6869, -inf
        %6894 = vmax.xlane.f32.xlu0 %v6893
        %v6895 = vpop.xlane.xlu0 %6894
        %v6896 = vsel %vm2380, %v6872, -inf
        %6897 = vmax.xlane.f32.xlu0 %v6896
        %v6898 = vpop.xlane.xlu0 %6897
        %v6899 = vsub.f32 %v6845, %v6877
        %v6900 = vsub.f32 %v6848, %v6880
        %v6901 = vsub.f32 %v6853, %v6883
        %v6902 = vsub.f32 %v6856, %v6886
        %v6903 = vsub.f32 %v6861, %v6889
        %v6904 = vsub.f32 %v6864, %v6892
        %v6905 = vsub.f32 %v6869, %v6895
        %v6906 = vsub.f32 %v6872, %v6898
        %v6907 = vmul.f32 %v6899, 1.442695
        %v6908 = vpow.pop %v6907
        %v6909 = vmul.f32 %v6900, 1.442695
        %v6910 = vpow.pop %v6909
        %v6911 = vmul.f32 %v6901, 1.442695
        %v6912 = vpow.pop %v6911
        %v6913 = vmul.f32 %v6902, 1.442695
        %v6914 = vpow.pop %v6913
        %v6915 = vmul.f32 %v6903, 1.442695
        %v6916 = vpow.pop %v6915
        %v6917 = vmul.f32 %v6904, 1.442695
        %v6918 = vpow.pop %v6917
        %v6919 = vmul.f32 %v6905, 1.442695
        %v6920 = vpow.pop %v6919
        %v6921 = vmul.f32 %v6906, 1.442695
        %v6922 = vpow.pop %v6921
        %v6923 = vsel %vm2380, %v6908, 0.0
        %6924 = vadd.xlane.f32.xlu0 %v6923
        %v6925 = vpop.xlane.xlu0 %6924
        %v6926 = vsel %vm2380, %v6910, 0.0
        %6927 = vadd.xlane.f32.xlu0 %v6926
        %v6928 = vpop.xlane.xlu0 %6927
        %v6929 = vsel %vm2380, %v6912, 0.0
        %6930 = vadd.xlane.f32.xlu0 %v6929
        %v6931 = vpop.xlane.xlu0 %6930
        %v6932 = vsel %vm2380, %v6914, 0.0
        %6933 = vadd.xlane.f32.xlu0 %v6932
        %v6934 = vpop.xlane.xlu0 %6933
        %v6935 = vsel %vm2380, %v6916, 0.0
        %6936 = vadd.xlane.f32.xlu0 %v6935
        %v6937 = vpop.xlane.xlu0 %6936
        %v6938 = vsel %vm2380, %v6918, 0.0
        %6939 = vadd.xlane.f32.xlu0 %v6938
        %v6940 = vpop.xlane.xlu0 %6939
        %v6941 = vsel %vm2380, %v6920, 0.0
        %6942 = vadd.xlane.f32.xlu0 %v6941
        %v6943 = vpop.xlane.xlu0 %6942
        %v6944 = vsel %vm2380, %v6922, 0.0
        %6945 = vadd.xlane.f32.xlu0 %v6944
        %v6946 = vpop.xlane.xlu0 %6945
        %v6947 = vrcp.pop %v6925
        %v6948 = vrcp.pop %v6928
        %v6949 = vrcp.pop %v6931
        %v6950 = vrcp.pop %v6934
        %v6951 = vrcp.pop %v6937
        %v6952 = vrcp.pop %v6940
        %v6953 = vrcp.pop %v6943
        %v6954 = vrcp.pop %v6946
        %v6955 = vmul.f32 %v6908, %v6947
        %v6956 = vmul.f32 %v6910, %v6948
        %v6957 = vmul.f32 %v6912, %v6949
        %v6958 = vmul.f32 %v6914, %v6950
        %v6959 = vmul.f32 %v6916, %v6951
        %v6960 = vmul.f32 %v6918, %v6952
        %v6961 = vmul.f32 %v6920, %v6953
        %v6962 = vmul.f32 %v6922, %v6954
        %v6963 = vpack.c.bf16 %v6956, %v6955
        %v6964 = vpack.c.bf16 %v6958, %v6957
        %v6965 = vpack.c.bf16 %v6960, %v6959
        %v6966 = vpack.c.bf16 %v6962, %v6961
        %6971 = vrot.lane.b32.xlu0 %v6782, 96
        %v6972 = vpop.permute.xlu0 %6971
        %6973 = vrot.lane.b32.xlu0 %v6783, 96
        %v6974 = vpop.permute.xlu0 %6973
        %6975 = vrot.lane.b32.xlu0 %v6784, 96
        %v6976 = vpop.permute.xlu0 %6975
        %6977 = vrot.lane.b32.xlu0 %v6785, 96
        %v6978 = vpop.permute.xlu0 %6977
        %v6984 = vsel %vm2380, %v6963, 0
        %v6987 = vsel %vm2380, %v6964, 0
        %v6990 = vsel %vm2380, %v6965, 0
        %v6993 = vsel %vm2380, %v6966, 0
        %6995 = vmatprep.subr.bf16.mxu0 0
        %6996 = vmatpush1.bf16.msra.mxu0 %v6972
        %6997 = vmatprep.subr.bf16.mxu0 0
        %6998 = vmatpush1.bf16.msra.mxu0 %v6974
        %6999 = vmatprep.subr.bf16.mxu0 0
        %7000 = vmatpush1.bf16.msra.mxu0 %v6976
        %7001 = vmatprep.subr.bf16.mxu0 0
        %7002 = vmatpush1.bf16.msra.mxu0 %v6978
        %7003 = vmatprep.subr.bf16.mxu0 0
        %7004 = vmatpush1.bf16.msra.mxu0 0
        %7005 = vmatprep.subr.bf16.mxu0 0
        %7006 = vmatpush1.bf16.msra.mxu0 0
        %7007 = vmatprep.subr.bf16.mxu0 0
        %7008 = vmatpush1.bf16.msra.mxu0 0
        %7009 = vmatprep.subr.bf16.mxu0 0
        %7010 = vmatpush1.bf16.msra.mxu0 0
        %7011 = vmatprep.subr.bf16.mxu0 0
        %7012 = vmatpush1.bf16.msra.mxu0 0
        %7013 = vmatprep.subr.bf16.mxu0 0
        %7014 = vmatpush1.bf16.msra.mxu0 0
        %7015 = vmatprep.subr.bf16.mxu0 0
        %7016 = vmatpush1.bf16.msra.mxu0 0
        %7017 = vmatprep.subr.bf16.mxu0 0
        %7018 = vmatpush1.bf16.msra.mxu0 0
        %7019 = vmatprep.subr.bf16.mxu0 0
        %7020 = vmatpush1.bf16.msra.mxu0 0
        %7021 = vmatprep.subr.bf16.mxu0 0
        %7022 = vmatpush1.bf16.msra.mxu0 0
        %7023 = vmatprep.subr.bf16.mxu0 0
        %7024 = vmatpush1.bf16.msra.mxu0 0
        %7025 = vmatprep.subr.bf16.mxu0 0
        %7026 = vmatpush1.bf16.msra.mxu0 0
        %7027 = vmatprep.mubr.bf16.mxu0 0
        %7028 = vmatmul.mubr.bf16.gmra.mrb[0].mxu0 %v6984
        %v7029 = vpop.f32.mrb[0].mxu0
        %v7030 = vadd.f32 0.0, %v7029
        %v7031 = vpop.f32.mrb[0].mxu0
        %v7032 = vpop.f32.mrb[0].mxu0
        %v7033 = vadd.f32 0.0, %v7032
        %v7034 = vpop.f32.mrb[0].mxu0
        %7035 = vmatprep.mubr.bf16.mxu0 0
        %7036 = vmatmul.mubr.bf16.gmra.mrb[0].mxu0 %v6987
        %v7037 = vpop.f32.mrb[0].mxu0
        %v7038 = vadd.f32 0.0, %v7037
        %v7039 = vpop.f32.mrb[0].mxu0
        %v7040 = vpop.f32.mrb[0].mxu0
        %v7041 = vadd.f32 0.0, %v7040
        %v7042 = vpop.f32.mrb[0].mxu0
        %7043 = vmatprep.mubr.bf16.mxu0 0
        %7044 = vmatmul.mubr.bf16.gmra.mrb[0].mxu0 %v6990
        %v7045 = vpop.f32.mrb[0].mxu0
        %v7046 = vadd.f32 0.0, %v7045
        %v7047 = vpop.f32.mrb[0].mxu0
        %v7048 = vpop.f32.mrb[0].mxu0
        %v7049 = vadd.f32 0.0, %v7048
        %v7050 = vpop.f32.mrb[0].mxu0
        %7051 = vmatprep.mubr.bf16.mxu0 0
        %7052 = vmatmul.mubr.bf16.gmra.mrb[0].mxu0 %v6993
        %v7053 = vpop.f32.mrb[0].mxu0
        %v7054 = vadd.f32 0.0, %v7053
        %v7055 = vpop.f32.mrb[0].mxu0
        %v7056 = vpop.f32.mrb[0].mxu0
        %v7057 = vadd.f32 0.0, %v7056
        %v7058 = vpop.f32.mrb[0].mxu0
        %7059 = vdwg.mxu0
        %v7060 = vpack.c.bf16 %v7033, %v7030
        %v7061 = vpack.c.bf16 %v7041, %v7038
        %v7062 = vpack.c.bf16 %v7049, %v7046
        %v7063 = vpack.c.bf16 %v7057, %v7054
        %7068 = vrot.lane.b32.xlu0 %v6778, 112
        %v7069 = vpop.permute.xlu0 %7068
        %7070 = vrot.lane.b32.xlu0 %v6779, 112
        %v7071 = vpop.permute.xlu0 %7070
        %7072 = vrot.lane.b32.xlu0 %v6780, 112
        %v7073 = vpop.permute.xlu0 %7072
        %7074 = vrot.lane.b32.xlu0 %v6781, 112
        %v7075 = vpop.permute.xlu0 %7074
        %7076 = vrot.lane.b32.xlu0 %v6782, 112
        %v7077 = vpop.permute.xlu0 %7076
        %7078 = vrot.lane.b32.xlu0 %v6783, 112
        %v7079 = vpop.permute.xlu0 %7078
        %7080 = vrot.lane.b32.xlu0 %v6784, 112
        %v7081 = vpop.permute.xlu0 %7080
        %7082 = vrot.lane.b32.xlu0 %v6785, 112
        %v7083 = vpop.permute.xlu0 %7082
        %v7085 = vsel %vm2290, %v7069, 0
        %v7088 = vsel %vm2290, %v7071, 0
        %v7091 = vsel %vm2290, %v7073, 0
        %v7094 = vsel %vm2290, %v7075, 0
        %v7097 = vsel %vm2290, %v7077, 0
        %v7100 = vsel %vm2290, %v7079, 0
        %v7103 = vsel %vm2290, %v7081, 0
        %v7106 = vsel %vm2290, %v7083, 0
        %7108 = vmatprep.subr.bf16.mxu0 0
        %7109 = vmatpush1.bf16.xpose.msra.mxu0 %v7097
        %7110 = vmatprep.subr.bf16.mxu0 0
        %7111 = vmatpush1.bf16.xpose.msra.mxu0 %v7100
        %7112 = vmatprep.subr.bf16.mxu0 0
        %7113 = vmatpush1.bf16.xpose.msra.mxu0 %v7103
        %7114 = vmatprep.subr.bf16.mxu0 0
        %7115 = vmatpush1.bf16.xpose.msra.mxu0 %v7106
        %7116 = vmatprep.subr.bf16.mxu0 0
        %7117 = vmatpush1.bf16.xpose.msra.mxu0 0
        %7118 = vmatprep.subr.bf16.mxu0 0
        %7119 = vmatpush1.bf16.xpose.msra.mxu0 0
        %7120 = vmatprep.subr.bf16.mxu0 0
        %7121 = vmatpush1.bf16.xpose.msra.mxu0 0
        %7122 = vmatprep.subr.bf16.mxu0 0
        %7123 = vmatpush1.bf16.xpose.msra.mxu0 0
        %7124 = vmatprep.subr.bf16.mxu0 0
        %7125 = vmatpush1.bf16.xpose.msra.mxu0 0
        %7126 = vmatprep.subr.bf16.mxu0 0
        %7127 = vmatpush1.bf16.xpose.msra.mxu0 0
        %7128 = vmatprep.subr.bf16.mxu0 0
        %7129 = vmatpush1.bf16.xpose.msra.mxu0 0
        %7130 = vmatprep.subr.bf16.mxu0 0
        %7131 = vmatpush1.bf16.xpose.msra.mxu0 0
        %7132 = vmatprep.subr.bf16.mxu0 0
        %7133 = vmatpush1.bf16.xpose.msra.mxu0 0
        %7134 = vmatprep.subr.bf16.mxu0 0
        %7135 = vmatpush1.bf16.xpose.msra.mxu0 0
        %7136 = vmatprep.subr.bf16.mxu0 0
        %7137 = vmatpush1.bf16.xpose.msra.mxu0 0
        %7138 = vmatprep.subr.bf16.mxu0 0
        %7139 = vmatpush1.bf16.xpose.msra.mxu0 0
        %7140 = vmatprep.mubr.bf16.mxu0 0
        %7141 = vmatmul.mubr.bf16.gmra.mrb[0].mxu0 %v7085
        %v7142 = vpop.f32.mrb[0].mxu0
        %v7143 = vadd.f32 %v1837, %v7142
        %v7144 = vpop.f32.mrb[0].mxu0
        %v7145 = vpop.f32.mrb[0].mxu0
        %v7146 = vadd.f32 %v1838, %v7145
        %v7147 = vpop.f32.mrb[0].mxu0
        %7148 = vmatprep.mubr.bf16.mxu0 0
        %7149 = vmatmul.mubr.bf16.gmra.mrb[0].mxu0 %v7088
        %v7150 = vpop.f32.mrb[0].mxu0
        %v7151 = vadd.f32 %v1839, %v7150
        %v7152 = vpop.f32.mrb[0].mxu0
        %v7153 = vpop.f32.mrb[0].mxu0
        %v7154 = vadd.f32 %v1840, %v7153
        %v7155 = vpop.f32.mrb[0].mxu0
        %7156 = vmatprep.mubr.bf16.mxu0 0
        %7157 = vmatmul.mubr.bf16.gmra.mrb[0].mxu0 %v7091
        %v7158 = vpop.f32.mrb[0].mxu0
        %v7159 = vadd.f32 %v1841, %v7158
        %v7160 = vpop.f32.mrb[0].mxu0
        %v7161 = vpop.f32.mrb[0].mxu0
        %v7162 = vadd.f32 %v1842, %v7161
        %v7163 = vpop.f32.mrb[0].mxu0
        %7164 = vmatprep.mubr.bf16.mxu0 0
        %7165 = vmatmul.mubr.bf16.gmra.mrb[0].mxu0 %v7094
        %v7166 = vpop.f32.mrb[0].mxu0
        %v7167 = vadd.f32 %v1843, %v7166
        %v7168 = vpop.f32.mrb[0].mxu0
        %v7169 = vpop.f32.mrb[0].mxu0
        %v7170 = vadd.f32 %v1844, %v7169
        %v7171 = vpop.f32.mrb[0].mxu0
        %7172 = vdwg.mxu0
        %v7173 = vsel %vm2380, %v7143, -inf
        %7174 = vmax.xlane.f32.xlu0 %v7173
        %v7175 = vpop.xlane.xlu0 %7174
        %v7176 = vsel %vm2380, %v7146, -inf
        %7177 = vmax.xlane.f32.xlu0 %v7176
        %v7178 = vpop.xlane.xlu0 %7177
        %v7179 = vsel %vm2380, %v7151, -inf
        %7180 = vmax.xlane.f32.xlu0 %v7179
        %v7181 = vpop.xlane.xlu0 %7180
        %v7182 = vsel %vm2380, %v7154, -inf
        %7183 = vmax.xlane.f32.xlu0 %v7182
        %v7184 = vpop.xlane.xlu0 %7183
        %v7185 = vsel %vm2380, %v7159, -inf
        %7186 = vmax.xlane.f32.xlu0 %v7185
        %v7187 = vpop.xlane.xlu0 %7186
        %v7188 = vsel %vm2380, %v7162, -inf
        %7189 = vmax.xlane.f32.xlu0 %v7188
        %v7190 = vpop.xlane.xlu0 %7189
        %v7191 = vsel %vm2380, %v7167, -inf
        %7192 = vmax.xlane.f32.xlu0 %v7191
        %v7193 = vpop.xlane.xlu0 %7192
        %v7194 = vsel %vm2380, %v7170, -inf
        %7195 = vmax.xlane.f32.xlu0 %v7194
        %v7196 = vpop.xlane.xlu0 %7195
        %v7197 = vsub.f32 %v7143, %v7175
        %v7198 = vsub.f32 %v7146, %v7178
        %v7199 = vsub.f32 %v7151, %v7181
        %v7200 = vsub.f32 %v7154, %v7184
        %v7201 = vsub.f32 %v7159, %v7187
        %v7202 = vsub.f32 %v7162, %v7190
        %v7203 = vsub.f32 %v7167, %v7193
        %v7204 = vsub.f32 %v7170, %v7196
        %v7205 = vmul.f32 %v7197, 1.442695
        %v7206 = vpow.pop %v7205
        %v7207 = vmul.f32 %v7198, 1.442695
        %v7208 = vpow.pop %v7207
        %v7209 = vmul.f32 %v7199, 1.442695
        %v7210 = vpow.pop %v7209
        %v7211 = vmul.f32 %v7200, 1.442695
        %v7212 = vpow.pop %v7211
        %v7213 = vmul.f32 %v7201, 1.442695
        %v7214 = vpow.pop %v7213
        %v7215 = vmul.f32 %v7202, 1.442695
        %v7216 = vpow.pop %v7215
        %v7217 = vmul.f32 %v7203, 1.442695
        %v7218 = vpow.pop %v7217
        %v7219 = vmul.f32 %v7204, 1.442695
        %v7220 = vpow.pop %v7219
        %v7221 = vsel %vm2380, %v7206, 0.0
        %7222 = vadd.xlane.f32.xlu0 %v7221
        %v7223 = vpop.xlane.xlu0 %7222
        %v7224 = vsel %vm2380, %v7208, 0.0
        %7225 = vadd.xlane.f32.xlu0 %v7224
        %v7226 = vpop.xlane.xlu0 %7225
        %v7227 = vsel %vm2380, %v7210, 0.0
        %7228 = vadd.xlane.f32.xlu0 %v7227
        %v7229 = vpop.xlane.xlu0 %7228
        %v7230 = vsel %vm2380, %v7212, 0.0
        %7231 = vadd.xlane.f32.xlu0 %v7230
        %v7232 = vpop.xlane.xlu0 %7231
        %v7233 = vsel %vm2380, %v7214, 0.0
        %7234 = vadd.xlane.f32.xlu0 %v7233
        %v7235 = vpop.xlane.xlu0 %7234
        %v7236 = vsel %vm2380, %v7216, 0.0
        %7237 = vadd.xlane.f32.xlu0 %v7236
        %v7238 = vpop.xlane.xlu0 %7237
        %v7239 = vsel %vm2380, %v7218, 0.0
        %7240 = vadd.xlane.f32.xlu0 %v7239
        %v7241 = vpop.xlane.xlu0 %7240
        %v7242 = vsel %vm2380, %v7220, 0.0
        %7243 = vadd.xlane.f32.xlu0 %v7242
        %v7244 = vpop.xlane.xlu0 %7243
        %v7245 = vrcp.pop %v7223
        %v7246 = vrcp.pop %v7226
        %v7247 = vrcp.pop %v7229
        %v7248 = vrcp.pop %v7232
        %v7249 = vrcp.pop %v7235
        %v7250 = vrcp.pop %v7238
        %v7251 = vrcp.pop %v7241
        %v7252 = vrcp.pop %v7244
        %v7253 = vmul.f32 %v7206, %v7245
        %v7254 = vmul.f32 %v7208, %v7246
        %v7255 = vmul.f32 %v7210, %v7247
        %v7256 = vmul.f32 %v7212, %v7248
        %v7257 = vmul.f32 %v7214, %v7249
        %v7258 = vmul.f32 %v7216, %v7250
        %v7259 = vmul.f32 %v7218, %v7251
        %v7260 = vmul.f32 %v7220, %v7252
        %v7261 = vpack.c.bf16 %v7254, %v7253
        %v7262 = vpack.c.bf16 %v7256, %v7255
        %v7263 = vpack.c.bf16 %v7258, %v7257
        %v7264 = vpack.c.bf16 %v7260, %v7259
        %7265 = vrot.lane.b32.xlu0 %v6782, 80
        %v7266 = vpop.permute.xlu0 %7265
        %7267 = vrot.lane.b32.xlu0 %v6783, 80
        %v7268 = vpop.permute.xlu0 %7267
        %7269 = vrot.lane.b32.xlu0 %v6784, 80
        %v7270 = vpop.permute.xlu0 %7269
        %7271 = vrot.lane.b32.xlu0 %v6785, 80
        %v7272 = vpop.permute.xlu0 %7271
        %v7278 = vsel %vm2380, %v7261, 0
        %v7281 = vsel %vm2380, %v7262, 0
        %v7284 = vsel %vm2380, %v7263, 0
        %v7287 = vsel %vm2380, %v7264, 0
        %7289 = vmatprep.subr.bf16.mxu0 0
        %7290 = vmatpush1.bf16.msra.mxu0 %v7266
        %7291 = vmatprep.subr.bf16.mxu0 0
        %7292 = vmatpush1.bf16.msra.mxu0 %v7268
        %7293 = vmatprep.subr.bf16.mxu0 0
        %7294 = vmatpush1.bf16.msra.mxu0 %v7270
        %7295 = vmatprep.subr.bf16.mxu0 0
        %7296 = vmatpush1.bf16.msra.mxu0 %v7272
        %7297 = vmatprep.subr.bf16.mxu0 0
        %7298 = vmatpush1.bf16.msra.mxu0 0
        %7299 = vmatprep.subr.bf16.mxu0 0
        %7300 = vmatpush1.bf16.msra.mxu0 0
        %7301 = vmatprep.subr.bf16.mxu0 0
        %7302 = vmatpush1.bf16.msra.mxu0 0
        %7303 = vmatprep.subr.bf16.mxu0 0
        %7304 = vmatpush1.bf16.msra.mxu0 0
        %7305 = vmatprep.subr.bf16.mxu0 0
        %7306 = vmatpush1.bf16.msra.mxu0 0
        %7307 = vmatprep.subr.bf16.mxu0 0
        %7308 = vmatpush1.bf16.msra.mxu0 0
        %7309 = vmatprep.subr.bf16.mxu0 0
        %7310 = vmatpush1.bf16.msra.mxu0 0
        %7311 = vmatprep.subr.bf16.mxu0 0
        %7312 = vmatpush1.bf16.msra.mxu0 0
        %7313 = vmatprep.subr.bf16.mxu0 0
        %7314 = vmatpush1.bf16.msra.mxu0 0
        %7315 = vmatprep.subr.bf16.mxu0 0
        %7316 = vmatpush1.bf16.msra.mxu0 0
        %7317 = vmatprep.subr.bf16.mxu0 0
        %7318 = vmatpush1.bf16.msra.mxu0 0
        %7319 = vmatprep.subr.bf16.mxu0 0
        %7320 = vmatpush1.bf16.msra.mxu0 0
        %7321 = vmatprep.mubr.bf16.mxu0 0
        %7322 = vmatmul.mubr.bf16.gmra.mrb[0].mxu0 %v7278
        %v7323 = vpop.f32.mrb[0].mxu0
        %v7324 = vadd.f32 0.0, %v7323
        %v7325 = vpop.f32.mrb[0].mxu0
        %v7326 = vpop.f32.mrb[0].mxu0
        %v7327 = vadd.f32 0.0, %v7326
        %v7328 = vpop.f32.mrb[0].mxu0
        %7329 = vmatprep.mubr.bf16.mxu0 0
        %7330 = vmatmul.mubr.bf16.gmra.mrb[0].mxu0 %v7281
        %v7331 = vpop.f32.mrb[0].mxu0
        %v7332 = vadd.f32 0.0, %v7331
        %v7333 = vpop.f32.mrb[0].mxu0
        %v7334 = vpop.f32.mrb[0].mxu0
        %v7335 = vadd.f32 0.0, %v7334
        %v7336 = vpop.f32.mrb[0].mxu0
        %7337 = vmatprep.mubr.bf16.mxu0 0
        %7338 = vmatmul.mubr.bf16.gmra.mrb[0].mxu0 %v7284
        %v7339 = vpop.f32.mrb[0].mxu0
        %v7340 = vadd.f32 0.0, %v7339
        %v7341 = vpop.f32.mrb[0].mxu0
        %v7342 = vpop.f32.mrb[0].mxu0
        %v7343 = vadd.f32 0.0, %v7342
        %v7344 = vpop.f32.mrb[0].mxu0
        %7345 = vmatprep.mubr.bf16.mxu0 0
        %7346 = vmatmul.mubr.bf16.gmra.mrb[0].mxu0 %v7287
        %v7347 = vpop.f32.mrb[0].mxu0
        %v7348 = vadd.f32 0.0, %v7347
        %v7349 = vpop.f32.mrb[0].mxu0
        %v7350 = vpop.f32.mrb[0].mxu0
        %v7351 = vadd.f32 0.0, %v7350
        %v7352 = vpop.f32.mrb[0].mxu0
        %7353 = vdwg.mxu0
        %v7354 = vpack.c.bf16 %v7327, %v7324
        %v7355 = vpack.c.bf16 %v7335, %v7332
        %v7356 = vpack.c.bf16 %v7343, %v7340
        %v7357 = vpack.c.bf16 %v7351, %v7348
        %v7360 = vunpack.c.l.b16 %v6475
        %v7361 = vunpack.c.l.b16 %v6476
        %v7362 = vpack.c.b16 %v7361, %v7360
        %v7365 = vsel %vm2290, %v7354, 0
        %v7368 = vsel %vm2290, %v7355, 0
        %v7371 = vsel %vm2290, %v7356, 0
        %v7374 = vsel %vm2290, %v7357, 0
        %7376 = vmatprep.subr.bf16.mxu0 0
        %7377 = vmatpush1.bf16.msra.mxu0 %v7362
        %7378 = vmatprep.subr.bf16.mxu0 0
        %7379 = vmatpush1.bf16.msra.mxu0 0
        %7380 = vmatprep.subr.bf16.mxu0 0
        %7381 = vmatpush1.bf16.msra.mxu0 0
        %7382 = vmatprep.subr.bf16.mxu0 0
        %7383 = vmatpush1.bf16.msra.mxu0 0
        %7384 = vmatprep.subr.bf16.mxu0 0
        %7385 = vmatpush1.bf16.msra.mxu0 0
        %7386 = vmatprep.subr.bf16.mxu0 0
        %7387 = vmatpush1.bf16.msra.mxu0 0
        %7388 = vmatprep.subr.bf16.mxu0 0
        %7389 = vmatpush1.bf16.msra.mxu0 0
        %7390 = vmatprep.subr.bf16.mxu0 0
        %7391 = vmatpush1.bf16.msra.mxu0 0
        %7392 = vmatprep.subr.bf16.mxu0 0
        %7393 = vmatpush1.bf16.msra.mxu0 0
        %7394 = vmatprep.subr.bf16.mxu0 0
        %7395 = vmatpush1.bf16.msra.mxu0 0
        %7396 = vmatprep.subr.bf16.mxu0 0
        %7397 = vmatpush1.bf16.msra.mxu0 0
        %7398 = vmatprep.subr.bf16.mxu0 0
        %7399 = vmatpush1.bf16.msra.mxu0 0
        %7400 = vmatprep.subr.bf16.mxu0 0
        %7401 = vmatpush1.bf16.msra.mxu0 0
        %7402 = vmatprep.subr.bf16.mxu0 0
        %7403 = vmatpush1.bf16.msra.mxu0 0
        %7404 = vmatprep.subr.bf16.mxu0 0
        %7405 = vmatpush1.bf16.msra.mxu0 0
        %7406 = vmatprep.subr.bf16.mxu0 0
        %7407 = vmatpush1.bf16.msra.mxu0 0
        %7408 = vmatprep.mubr.bf16.mxu0 0
        %7409 = vmatmul.mubr.bf16.gmra.mrb[0].mxu0 %v7365
        %v7410 = vpop.f32.mrb[0].mxu0
        %v7411 = vadd.f32 0.0, %v7410
        %v7412 = vpop.f32.mrb[0].mxu0
        %v7413 = vpop.f32.mrb[0].mxu0
        %v7414 = vadd.f32 0.0, %v7413
        %v7415 = vpop.f32.mrb[0].mxu0
        %7416 = vmatprep.mubr.bf16.mxu0 0
        %7417 = vmatmul.mubr.bf16.gmra.mrb[0].mxu0 %v7368
        %v7418 = vpop.f32.mrb[0].mxu0
        %v7419 = vadd.f32 0.0, %v7418
        %v7420 = vpop.f32.mrb[0].mxu0
        %v7421 = vpop.f32.mrb[0].mxu0
        %v7422 = vadd.f32 0.0, %v7421
        %v7423 = vpop.f32.mrb[0].mxu0
        %7424 = vmatprep.mubr.bf16.mxu0 0
        %7425 = vmatmul.mubr.bf16.gmra.mrb[0].mxu0 %v7371
        %v7426 = vpop.f32.mrb[0].mxu0
        %v7427 = vadd.f32 0.0, %v7426
        %v7428 = vpop.f32.mrb[0].mxu0
        %v7429 = vpop.f32.mrb[0].mxu0
        %v7430 = vadd.f32 0.0, %v7429
        %v7431 = vpop.f32.mrb[0].mxu0
        %7432 = vmatprep.mubr.bf16.mxu0 0
        %7433 = vmatmul.mubr.bf16.gmra.mrb[0].mxu0 %v7374
        %v7434 = vpop.f32.mrb[0].mxu0
        %v7435 = vadd.f32 0.0, %v7434
        %v7436 = vpop.f32.mrb[0].mxu0
        %v7437 = vpop.f32.mrb[0].mxu0
        %v7438 = vadd.f32 0.0, %v7437
        %v7439 = vpop.f32.mrb[0].mxu0
        %7440 = vdwg.mxu0
        %v7443 = vunpack.c.l.b16 %v6473
        %v7444 = vunpack.c.l.b16 %v6474
        %v7445 = vpack.c.b16 %v7444, %v7443
        %v7448 = vsel %vm2290, %v7060, 0
        %v7451 = vsel %vm2290, %v7061, 0
        %v7454 = vsel %vm2290, %v7062, 0
        %v7457 = vsel %vm2290, %v7063, 0
        %7459 = vmatprep.subr.bf16.mxu0 0
        %7460 = vmatpush1.bf16.msra.mxu0 %v7445
        %7461 = vmatprep.subr.bf16.mxu0 0
        %7462 = vmatpush1.bf16.msra.mxu0 0
        %7463 = vmatprep.subr.bf16.mxu0 0
        %7464 = vmatpush1.bf16.msra.mxu0 0
        %7465 = vmatprep.subr.bf16.mxu0 0
        %7466 = vmatpush1.bf16.msra.mxu0 0
        %7467 = vmatprep.subr.bf16.mxu0 0
        %7468 = vmatpush1.bf16.msra.mxu0 0
        %7469 = vmatprep.subr.bf16.mxu0 0
        %7470 = vmatpush1.bf16.msra.mxu0 0
        %7471 = vmatprep.subr.bf16.mxu0 0
        %7472 = vmatpush1.bf16.msra.mxu0 0
        %7473 = vmatprep.subr.bf16.mxu0 0
        %7474 = vmatpush1.bf16.msra.mxu0 0
        %7475 = vmatprep.subr.bf16.mxu0 0
        %7476 = vmatpush1.bf16.msra.mxu0 0
        %7477 = vmatprep.subr.bf16.mxu0 0
        %7478 = vmatpush1.bf16.msra.mxu0 0
        %7479 = vmatprep.subr.bf16.mxu0 0
        %7480 = vmatpush1.bf16.msra.mxu0 0
        %7481 = vmatprep.subr.bf16.mxu0 0
        %7482 = vmatpush1.bf16.msra.mxu0 0
        %7483 = vmatprep.subr.bf16.mxu0 0
        %7484 = vmatpush1.bf16.msra.mxu0 0
        %7485 = vmatprep.subr.bf16.mxu0 0
        %7486 = vmatpush1.bf16.msra.mxu0 0
        %7487 = vmatprep.subr.bf16.mxu0 0
        %7488 = vmatpush1.bf16.msra.mxu0 0
        %7489 = vmatprep.subr.bf16.mxu0 0
        %7490 = vmatpush1.bf16.msra.mxu0 0
        %7491 = vmatprep.mubr.bf16.mxu0 0
        %7492 = vmatmul.mubr.bf16.gmra.mrb[0].mxu0 %v7448
        %v7493 = vpop.f32.mrb[0].mxu0
        %v7494 = vadd.f32 %v7411, %v7493
        %v7495 = vpop.f32.mrb[0].mxu0
        %v7496 = vpop.f32.mrb[0].mxu0
        %v7497 = vadd.f32 %v7414, %v7496
        %v7498 = vpop.f32.mrb[0].mxu0
        %7499 = vmatprep.mubr.bf16.mxu0 0
        %7500 = vmatmul.mubr.bf16.gmra.mrb[0].mxu0 %v7451
        %v7501 = vpop.f32.mrb[0].mxu0
        %v7502 = vadd.f32 %v7419, %v7501
        %v7503 = vpop.f32.mrb[0].mxu0
        %v7504 = vpop.f32.mrb[0].mxu0
        %v7505 = vadd.f32 %v7422, %v7504
        %v7506 = vpop.f32.mrb[0].mxu0
        %7507 = vmatprep.mubr.bf16.mxu0 0
        %7508 = vmatmul.mubr.bf16.gmra.mrb[0].mxu0 %v7454
        %v7509 = vpop.f32.mrb[0].mxu0
        %v7510 = vadd.f32 %v7427, %v7509
        %v7511 = vpop.f32.mrb[0].mxu0
        %v7512 = vpop.f32.mrb[0].mxu0
        %v7513 = vadd.f32 %v7430, %v7512
        %v7514 = vpop.f32.mrb[0].mxu0
        %7515 = vmatprep.mubr.bf16.mxu0 0
        %7516 = vmatmul.mubr.bf16.gmra.mrb[0].mxu0 %v7457
        %v7517 = vpop.f32.mrb[0].mxu0
        %v7518 = vadd.f32 %v7435, %v7517
        %v7519 = vpop.f32.mrb[0].mxu0
        %v7520 = vpop.f32.mrb[0].mxu0
        %v7521 = vadd.f32 %v7438, %v7520
        %v7522 = vpop.f32.mrb[0].mxu0
        %7523 = vdwg.mxu0
        %v7524 = vadd.f32 %v6455, %v7494
        %v7525 = vadd.f32 %v6456, %v7497
        %v7526 = vadd.f32 %v6457, %v7502
        %v7527 = vadd.f32 %v6458, %v7505
        %v7528 = vadd.f32 %v6459, %v7510
        %v7529 = vadd.f32 %v6460, %v7513
        %v7530 = vadd.f32 %v6461, %v7518
        %v7531 = vadd.f32 %v6462, %v7521
        %v7533 = vlaneseq
        %v7534 = vshrl.u32 %v7533, 7
        %v7535 = vsub.s32 0, %v7534
        %v7536 = vrot.slane %v6477, %v7535
        %v7538 = vadd.f32 %v7524, %v7536
        %v7539 = vadd.f32 %v7525, %v7536
        %v7540 = vadd.f32 %v7526, %v7536
        %v7541 = vadd.f32 %v7527, %v7536
        %v7542 = vadd.f32 %v7528, %v7536
        %v7543 = vadd.f32 %v7529, %v7536
        %v7544 = vadd.f32 %v7530, %v7536
        %v7545 = vadd.f32 %v7531, %v7536
        %v7546 = vsel %vm1845, %v7538, 0.0
        %7547 = vadd.xlane.f32.xlu0 %v7546
        %v7548 = vpop.xlane.xlu0 %7547
        %v7549 = vsel %vm1845, %v7539, 0.0
        %7550 = vadd.xlane.f32.xlu0 %v7549
        %v7551 = vpop.xlane.xlu0 %7550
        %v7552 = vsel %vm1845, %v7540, 0.0
        %7553 = vadd.xlane.f32.xlu0 %v7552
        %v7554 = vpop.xlane.xlu0 %7553
        %v7555 = vsel %vm1845, %v7541, 0.0
        %7556 = vadd.xlane.f32.xlu0 %v7555
        %v7557 = vpop.xlane.xlu0 %7556
        %v7558 = vsel %vm1845, %v7542, 0.0
        %7559 = vadd.xlane.f32.xlu0 %v7558
        %v7560 = vpop.xlane.xlu0 %7559
        %v7561 = vsel %vm1845, %v7543, 0.0
        %7562 = vadd.xlane.f32.xlu0 %v7561
        %v7563 = vpop.xlane.xlu0 %7562
        %v7564 = vsel %vm1845, %v7544, 0.0
        %7565 = vadd.xlane.f32.xlu0 %v7564
        %v7566 = vpop.xlane.xlu0 %7565
        %v7567 = vsel %vm1845, %v7545, 0.0
        %7568 = vadd.xlane.f32.xlu0 %v7567
        %v7569 = vpop.xlane.xlu0 %7568
        %v7570 = vmul.f32 %v7548, %v1870
        %v7571 = vmul.f32 %v7551, %v1870
        %v7572 = vmul.f32 %v7554, %v1870
        %v7573 = vmul.f32 %v7557, %v1870
        %v7574 = vmul.f32 %v7560, %v1870
        %v7575 = vmul.f32 %v7563, %v1870
        %v7576 = vmul.f32 %v7566, %v1870
        %v7577 = vmul.f32 %v7569, %v1870
        %v7578 = vsub.f32 %v7538, %v7570
        %v7579 = vsub.f32 %v7539, %v7571
        %v7580 = vsub.f32 %v7540, %v7572
        %v7581 = vsub.f32 %v7541, %v7573
        %v7582 = vsub.f32 %v7542, %v7574
        %v7583 = vsub.f32 %v7543, %v7575
        %v7584 = vsub.f32 %v7544, %v7576
        %v7585 = vsub.f32 %v7545, %v7577
        %v7586 = vmul.f32 %v7578, %v7578
        %v7587 = vmul.f32 %v7579, %v7579
        %v7588 = vmul.f32 %v7580, %v7580
        %v7589 = vmul.f32 %v7581, %v7581
        %v7590 = vmul.f32 %v7582, %v7582
        %v7591 = vmul.f32 %v7583, %v7583
        %v7592 = vmul.f32 %v7584, %v7584
        %v7593 = vmul.f32 %v7585, %v7585
        %v7594 = vsel %vm1845, %v7586, 0.0
        %7595 = vadd.xlane.f32.xlu0 %v7594
        %v7596 = vpop.xlane.xlu0 %7595
        %v7597 = vsel %vm1845, %v7587, 0.0
        %7598 = vadd.xlane.f32.xlu0 %v7597
        %v7599 = vpop.xlane.xlu0 %7598
        %v7600 = vsel %vm1845, %v7588, 0.0
        %7601 = vadd.xlane.f32.xlu0 %v7600
        %v7602 = vpop.xlane.xlu0 %7601
        %v7603 = vsel %vm1845, %v7589, 0.0
        %7604 = vadd.xlane.f32.xlu0 %v7603
        %v7605 = vpop.xlane.xlu0 %7604
        %v7606 = vsel %vm1845, %v7590, 0.0
        %7607 = vadd.xlane.f32.xlu0 %v7606
        %v7608 = vpop.xlane.xlu0 %7607
        %v7609 = vsel %vm1845, %v7591, 0.0
        %7610 = vadd.xlane.f32.xlu0 %v7609
        %v7611 = vpop.xlane.xlu0 %7610
        %v7612 = vsel %vm1845, %v7592, 0.0
        %7613 = vadd.xlane.f32.xlu0 %v7612
        %v7614 = vpop.xlane.xlu0 %7613
        %v7615 = vsel %vm1845, %v7593, 0.0
        %7616 = vadd.xlane.f32.xlu0 %v7615
        %v7617 = vpop.xlane.xlu0 %7616
        %v7618 = vmul.f32 %v7596, %v1870
        %v7619 = vmul.f32 %v7599, %v1870
        %v7620 = vmul.f32 %v7602, %v1870
        %v7621 = vmul.f32 %v7605, %v1870
        %v7622 = vmul.f32 %v7608, %v1870
        %v7623 = vmul.f32 %v7611, %v1870
        %v7624 = vmul.f32 %v7614, %v1870
        %v7625 = vmul.f32 %v7617, %v1870
        %v7626 = vadd.f32 %v7618, 1e-05
        %v7627 = vadd.f32 %v7619, 1e-05
        %v7628 = vadd.f32 %v7620, 1e-05
        %v7629 = vadd.f32 %v7621, 1e-05
        %v7630 = vadd.f32 %v7622, 1e-05
        %v7631 = vadd.f32 %v7623, 1e-05
        %v7632 = vadd.f32 %v7624, 1e-05
        %v7633 = vadd.f32 %v7625, 1e-05
        %v7634 = vrsqrt.pop %v7626
        %v7635 = vrsqrt.pop %v7627
        %v7636 = vrsqrt.pop %v7628
        %v7637 = vrsqrt.pop %v7629
        %v7638 = vrsqrt.pop %v7630
        %v7639 = vrsqrt.pop %v7631
        %v7640 = vrsqrt.pop %v7632
        %v7641 = vrsqrt.pop %v7633
        %v7642 = vmul.f32 %v7578, %v7634
        %v7643 = vmul.f32 %v7579, %v7635
        %v7644 = vmul.f32 %v7580, %v7636
        %v7645 = vmul.f32 %v7581, %v7637
        %v7646 = vmul.f32 %v7582, %v7638
        %v7647 = vmul.f32 %v7583, %v7639
        %v7648 = vmul.f32 %v7584, %v7640
        %v7649 = vmul.f32 %v7585, %v7641
        %v7650 = vpack.c.bf16 %v7643, %v7642
        %v7651 = vpack.c.bf16 %v7645, %v7644
        %v7652 = vpack.c.bf16 %v7647, %v7646
        %v7653 = vpack.c.bf16 %v7649, %v7648
        %v7655 = vlaneseq
        %v7656 = vshrl.u32 %v7655, 7
        %v7657 = vsub.s32 0, %v7656
        %v7658 = vrot.slane %v6482, %v7657
        %v7664 = vunpack.c.l.b16 %v6478
        %v7665 = vunpack.c.l.b16 %v6479
        %v7666 = vunpack.c.l.b16 %v6480
        %v7667 = vunpack.c.l.b16 %v6481
        %v7668 = vpack.c.b16 %v7665, %v7664
        %v7669 = vpack.c.b16 %v7667, %v7666
        %v7673 = vsel %vm1845, %v7650, 0
        %v7676 = vsel %vm1845, %v7651, 0
        %v7679 = vsel %vm1845, %v7652, 0
        %v7682 = vsel %vm1845, %v7653, 0
        %7684 = vmatprep.subr.bf16.mxu0 0
        %7685 = vmatpush1.bf16.msra.mxu0 %v7668
        %7686 = vmatprep.subr.bf16.mxu0 0
        %7687 = vmatpush1.bf16.msra.mxu0 %v7669
        %7688 = vmatprep.subr.bf16.mxu0 0
        %7689 = vmatpush1.bf16.msra.mxu0 0
        %7690 = vmatprep.subr.bf16.mxu0 0
        %7691 = vmatpush1.bf16.msra.mxu0 0
        %7692 = vmatprep.subr.bf16.mxu0 0
        %7693 = vmatpush1.bf16.msra.mxu0 0
        %7694 = vmatprep.subr.bf16.mxu0 0
        %7695 = vmatpush1.bf16.msra.mxu0 0
        %7696 = vmatprep.subr.bf16.mxu0 0
        %7697 = vmatpush1.bf16.msra.mxu0 0
        %7698 = vmatprep.subr.bf16.mxu0 0
        %7699 = vmatpush1.bf16.msra.mxu0 0
        %7700 = vmatprep.subr.bf16.mxu0 0
        %7701 = vmatpush1.bf16.msra.mxu0 0
        %7702 = vmatprep.subr.bf16.mxu0 0
        %7703 = vmatpush1.bf16.msra.mxu0 0
        %7704 = vmatprep.subr.bf16.mxu0 0
        %7705 = vmatpush1.bf16.msra.mxu0 0
        %7706 = vmatprep.subr.bf16.mxu0 0
        %7707 = vmatpush1.bf16.msra.mxu0 0
        %7708 = vmatprep.subr.bf16.mxu0 0
        %7709 = vmatpush1.bf16.msra.mxu0 0
        %7710 = vmatprep.subr.bf16.mxu0 0
        %7711 = vmatpush1.bf16.msra.mxu0 0
        %7712 = vmatprep.subr.bf16.mxu0 0
        %7713 = vmatpush1.bf16.msra.mxu0 0
        %7714 = vmatprep.subr.bf16.mxu0 0
        %7715 = vmatpush1.bf16.msra.mxu0 0
        %7716 = vmatprep.mubr.bf16.mxu0 0
        %7717 = vmatmul.mubr.bf16.gmra.mrb[0].mxu0 %v7673
        %v7718 = vpop.f32.mrb[0].mxu0
        %v7719 = vadd.f32 %v7658, %v7718
        %v7720 = vpop.f32.mrb[0].mxu0
        %v7721 = vpop.f32.mrb[0].mxu0
        %v7722 = vadd.f32 %v7658, %v7721
        %v7723 = vpop.f32.mrb[0].mxu0
        %7724 = vmatprep.mubr.bf16.mxu0 0
        %7725 = vmatmul.mubr.bf16.gmra.mrb[0].mxu0 %v7676
        %v7726 = vpop.f32.mrb[0].mxu0
        %v7727 = vadd.f32 %v7658, %v7726
        %v7728 = vpop.f32.mrb[0].mxu0
        %v7729 = vpop.f32.mrb[0].mxu0
        %v7730 = vadd.f32 %v7658, %v7729
        %v7731 = vpop.f32.mrb[0].mxu0
        %7732 = vmatprep.mubr.bf16.mxu0 0
        %7733 = vmatmul.mubr.bf16.gmra.mrb[0].mxu0 %v7679
        %v7734 = vpop.f32.mrb[0].mxu0
        %v7735 = vadd.f32 %v7658, %v7734
        %v7736 = vpop.f32.mrb[0].mxu0
        %v7737 = vpop.f32.mrb[0].mxu0
        %v7738 = vadd.f32 %v7658, %v7737
        %v7739 = vpop.f32.mrb[0].mxu0
        %7740 = vmatprep.mubr.bf16.mxu0 0
        %7741 = vmatmul.mubr.bf16.gmra.mrb[0].mxu0 %v7682
        %v7742 = vpop.f32.mrb[0].mxu0
        %v7743 = vadd.f32 %v7658, %v7742
        %v7744 = vpop.f32.mrb[0].mxu0
        %v7745 = vpop.f32.mrb[0].mxu0
        %v7746 = vadd.f32 %v7658, %v7745
        %v7747 = vpop.f32.mrb[0].mxu0
        %7748 = vdwg.mxu0
        %v7749 = vmul.f32 %v7719, 0.5
        %v7750 = vmul.f32 %v7722, 0.5
        %v7751 = vmul.f32 %v7727, 0.5
        %v7752 = vmul.f32 %v7730, 0.5
        %v7753 = vmul.f32 %v7735, 0.5
        %v7754 = vmul.f32 %v7738, 0.5
        %v7755 = vmul.f32 %v7743, 0.5
        %v7756 = vmul.f32 %v7746, 0.5
        %v7757 = vmul.f32 %v7719, %v3263
        %v7758 = vmul.f32 %v7722, %v3263
        %v7759 = vmul.f32 %v7727, %v3263
        %v7760 = vmul.f32 %v7730, %v3263
        %v7761 = vmul.f32 %v7735, %v3263
        %v7762 = vmul.f32 %v7738, %v3263
        %v7763 = vmul.f32 %v7743, %v3263
        %v7764 = vmul.f32 %v7746, %v3263
        %v7765 = verf.f32.pop %v7757
        %v7766 = verf.f32.pop %v7758
        %v7767 = verf.f32.pop %v7759
        %v7768 = verf.f32.pop %v7760
        %v7769 = verf.f32.pop %v7761
        %v7770 = verf.f32.pop %v7762
        %v7771 = verf.f32.pop %v7763
        %v7772 = verf.f32.pop %v7764
        %v7773 = vadd.f32 %v7765, 1.0
        %v7774 = vadd.f32 %v7766, 1.0
        %v7775 = vadd.f32 %v7767, 1.0
        %v7776 = vadd.f32 %v7768, 1.0
        %v7777 = vadd.f32 %v7769, 1.0
        %v7778 = vadd.f32 %v7770, 1.0
        %v7779 = vadd.f32 %v7771, 1.0
        %v7780 = vadd.f32 %v7772, 1.0
        %v7781 = vmul.f32 %v7749, %v7773
        %v7782 = vmul.f32 %v7750, %v7774
        %v7783 = vmul.f32 %v7751, %v7775
        %v7784 = vmul.f32 %v7752, %v7776
        %v7785 = vmul.f32 %v7753, %v7777
        %v7786 = vmul.f32 %v7754, %v7778
        %v7787 = vmul.f32 %v7755, %v7779
        %v7788 = vmul.f32 %v7756, %v7780
        %v7789 = vpack.c.bf16 %v7782, %v7781
        %v7790 = vpack.c.bf16 %v7784, %v7783
        %v7791 = vpack.c.bf16 %v7786, %v7785
        %v7792 = vpack.c.bf16 %v7788, %v7787
        %v7801 = vunpack.c.l.b16 %v6483
        %v7802 = vunpack.c.l.b16 %v6484
        %v7803 = vunpack.c.l.b16 %v6485
        %v7804 = vunpack.c.l.b16 %v6486
        %v7805 = vunpack.c.l.b16 %v6487
        %v7806 = vunpack.c.l.b16 %v6488
        %v7807 = vunpack.c.l.b16 %v6489
        %v7808 = vunpack.c.l.b16 %v6490
        %v7809 = vpack.c.b16 %v7802, %v7801
        %v7810 = vpack.c.b16 %v7804, %v7803
        %v7811 = vpack.c.b16 %v7806, %v7805
        %v7812 = vpack.c.b16 %v7808, %v7807
        %v7818 = vsel %vm2380, %v7789, 0
        %v7821 = vsel %vm2380, %v7790, 0
        %v7824 = vsel %vm2380, %v7791, 0
        %v7827 = vsel %vm2380, %v7792, 0
        %7829 = vmatprep.subr.bf16.mxu0 0
        %7830 = vmatpush1.bf16.msra.mxu0 %v7809
        %7831 = vmatprep.subr.bf16.mxu0 0
        %7832 = vmatpush1.bf16.msra.mxu0 %v7810
        %7833 = vmatprep.subr.bf16.mxu0 0
        %7834 = vmatpush1.bf16.msra.mxu0 %v7811
        %7835 = vmatprep.subr.bf16.mxu0 0
        %7836 = vmatpush1.bf16.msra.mxu0 %v7812
        %7837 = vmatprep.subr.bf16.mxu0 0
        %7838 = vmatpush1.bf16.msra.mxu0 0
        %7839 = vmatprep.subr.bf16.mxu0 0
        %7840 = vmatpush1.bf16.msra.mxu0 0
        %7841 = vmatprep.subr.bf16.mxu0 0
        %7842 = vmatpush1.bf16.msra.mxu0 0
        %7843 = vmatprep.subr.bf16.mxu0 0
        %7844 = vmatpush1.bf16.msra.mxu0 0
        %7845 = vmatprep.subr.bf16.mxu0 0
        %7846 = vmatpush1.bf16.msra.mxu0 0
        %7847 = vmatprep.subr.bf16.mxu0 0
        %7848 = vmatpush1.bf16.msra.mxu0 0
        %7849 = vmatprep.subr.bf16.mxu0 0
        %7850 = vmatpush1.bf16.msra.mxu0 0
        %7851 = vmatprep.subr.bf16.mxu0 0
        %7852 = vmatpush1.bf16.msra.mxu0 0
        %7853 = vmatprep.subr.bf16.mxu0 0
        %7854 = vmatpush1.bf16.msra.mxu0 0
        %7855 = vmatprep.subr.bf16.mxu0 0
        %7856 = vmatpush1.bf16.msra.mxu0 0
        %7857 = vmatprep.subr.bf16.mxu0 0
        %7858 = vmatpush1.bf16.msra.mxu0 0
        %7859 = vmatprep.subr.bf16.mxu0 0
        %7860 = vmatpush1.bf16.msra.mxu0 0
        %7861 = vmatprep.mubr.bf16.mxu0 0
        %7862 = vmatmul.mubr.bf16.gmra.mrb[0].mxu0 %v7818
        %v7863 = vpop.f32.mrb[0].mxu0
        %v7864 = vadd.f32 0.0, %v7863
        %v7865 = vpop.f32.mrb[0].mxu0
        %v7866 = vpop.f32.mrb[0].mxu0
        %v7867 = vadd.f32 0.0, %v7866
        %v7868 = vpop.f32.mrb[0].mxu0
        %7869 = vmatprep.mubr.bf16.mxu0 0
        %7870 = vmatmul.mubr.bf16.gmra.mrb[0].mxu0 %v7821
        %v7871 = vpop.f32.mrb[0].mxu0
        %v7872 = vadd.f32 0.0, %v7871
        %v7873 = vpop.f32.mrb[0].mxu0
        %v7874 = vpop.f32.mrb[0].mxu0
        %v7875 = vadd.f32 0.0, %v7874
        %v7876 = vpop.f32.mrb[0].mxu0
        %7877 = vmatprep.mubr.bf16.mxu0 0
        %7878 = vmatmul.mubr.bf16.gmra.mrb[0].mxu0 %v7824
        %v7879 = vpop.f32.mrb[0].mxu0
        %v7880 = vadd.f32 0.0, %v7879
        %v7881 = vpop.f32.mrb[0].mxu0
        %v7882 = vpop.f32.mrb[0].mxu0
        %v7883 = vadd.f32 0.0, %v7882
        %v7884 = vpop.f32.mrb[0].mxu0
        %7885 = vmatprep.mubr.bf16.mxu0 0
        %7886 = vmatmul.mubr.bf16.gmra.mrb[0].mxu0 %v7827
        %v7887 = vpop.f32.mrb[0].mxu0
        %v7888 = vadd.f32 0.0, %v7887
        %v7889 = vpop.f32.mrb[0].mxu0
        %v7890 = vpop.f32.mrb[0].mxu0
        %v7891 = vadd.f32 0.0, %v7890
        %v7892 = vpop.f32.mrb[0].mxu0
        %7893 = vdwg.mxu0
        %v7894 = vadd.f32 %v7538, %v7864
        %v7895 = vadd.f32 %v7539, %v7867
        %v7896 = vadd.f32 %v7540, %v7872
        %v7897 = vadd.f32 %v7541, %v7875
        %v7898 = vadd.f32 %v7542, %v7880
        %v7899 = vadd.f32 %v7543, %v7883
        %v7900 = vadd.f32 %v7544, %v7888
        %v7901 = vadd.f32 %v7545, %v7891
        %v7903 = vlaneseq
        %v7904 = vshrl.u32 %v7903, 7
        %v7905 = vsub.s32 0, %v7904
        %v7906 = vrot.slane %v6491, %v7905
        %v7908 = vadd.f32 %v7894, %v7906
        %v7909 = vadd.f32 %v7895, %v7906
        %v7910 = vadd.f32 %v7896, %v7906
        %v7911 = vadd.f32 %v7897, %v7906
        %v7912 = vadd.f32 %v7898, %v7906
        %v7913 = vadd.f32 %v7899, %v7906
        %v7914 = vadd.f32 %v7900, %v7906
        %v7915 = vadd.f32 %v7901, %v7906
        %v7916 = vld [vmem:[#allocation37] sm:$0x1]
        %v7917 = vld [vmem:[#allocation38] sm:$0x1]
        %v7918 = vsel %vm1845, %v7908, 0.0
        %7919 = vadd.xlane.f32.xlu0 %v7918
        %v7920 = vpop.xlane.xlu0 %7919
        %v7921 = vsel %vm1845, %v7909, 0.0
        %7922 = vadd.xlane.f32.xlu0 %v7921
        %v7923 = vpop.xlane.xlu0 %7922
        %v7924 = vsel %vm1845, %v7910, 0.0
        %7925 = vadd.xlane.f32.xlu0 %v7924
        %v7926 = vpop.xlane.xlu0 %7925
        %v7927 = vsel %vm1845, %v7911, 0.0
        %7928 = vadd.xlane.f32.xlu0 %v7927
        %v7929 = vpop.xlane.xlu0 %7928
        %v7930 = vsel %vm1845, %v7912, 0.0
        %7931 = vadd.xlane.f32.xlu0 %v7930
        %v7932 = vpop.xlane.xlu0 %7931
        %v7933 = vsel %vm1845, %v7913, 0.0
        %7934 = vadd.xlane.f32.xlu0 %v7933
        %v7935 = vpop.xlane.xlu0 %7934
        %v7936 = vsel %vm1845, %v7914, 0.0
        %7937 = vadd.xlane.f32.xlu0 %v7936
        %v7938 = vpop.xlane.xlu0 %7937
        %v7939 = vsel %vm1845, %v7915, 0.0
        %7940 = vadd.xlane.f32.xlu0 %v7939
        %v7941 = vpop.xlane.xlu0 %7940
        %v7942 = vmul.f32 %v7920, %v1870
        %v7943 = vmul.f32 %v7923, %v1870
        %v7944 = vmul.f32 %v7926, %v1870
        %v7945 = vmul.f32 %v7929, %v1870
        %v7946 = vmul.f32 %v7932, %v1870
        %v7947 = vmul.f32 %v7935, %v1870
        %v7948 = vmul.f32 %v7938, %v1870
        %v7949 = vmul.f32 %v7941, %v1870
        %v7950 = vsub.f32 %v7908, %v7942
        %v7951 = vsub.f32 %v7909, %v7943
        %v7952 = vsub.f32 %v7910, %v7944
        %v7953 = vsub.f32 %v7911, %v7945
        %v7954 = vsub.f32 %v7912, %v7946
        %v7955 = vsub.f32 %v7913, %v7947
        %v7956 = vsub.f32 %v7914, %v7948
        %v7957 = vsub.f32 %v7915, %v7949
        %v7958 = vmul.f32 %v7950, %v7950
        %v7959 = vmul.f32 %v7951, %v7951
        %v7960 = vmul.f32 %v7952, %v7952
        %v7961 = vmul.f32 %v7953, %v7953
        %v7962 = vmul.f32 %v7954, %v7954
        %v7963 = vmul.f32 %v7955, %v7955
        %v7964 = vmul.f32 %v7956, %v7956
        %v7965 = vmul.f32 %v7957, %v7957
        %v7966 = vsel %vm1845, %v7958, 0.0
        %7967 = vadd.xlane.f32.xlu0 %v7966
        %v7968 = vpop.xlane.xlu0 %7967
        %v7969 = vsel %vm1845, %v7959, 0.0
        %7970 = vadd.xlane.f32.xlu0 %v7969
        %v7971 = vpop.xlane.xlu0 %7970
        %v7972 = vsel %vm1845, %v7960, 0.0
        %7973 = vadd.xlane.f32.xlu0 %v7972
        %v7974 = vpop.xlane.xlu0 %7973
        %v7975 = vsel %vm1845, %v7961, 0.0
        %7976 = vadd.xlane.f32.xlu0 %v7975
        %v7977 = vpop.xlane.xlu0 %7976
        %v7978 = vsel %vm1845, %v7962, 0.0
        %7979 = vadd.xlane.f32.xlu0 %v7978
        %v7980 = vpop.xlane.xlu0 %7979
        %v7981 = vsel %vm1845, %v7963, 0.0
        %7982 = vadd.xlane.f32.xlu0 %v7981
        %v7983 = vpop.xlane.xlu0 %7982
        %v7984 = vsel %vm1845, %v7964, 0.0
        %7985 = vadd.xlane.f32.xlu0 %v7984
        %v7986 = vpop.xlane.xlu0 %7985
        %v7987 = vsel %vm1845, %v7965, 0.0
        %7988 = vadd.xlane.f32.xlu0 %v7987
        %v7989 = vpop.xlane.xlu0 %7988
        %v7990 = vmul.f32 %v7968, %v1870
        %v7991 = vmul.f32 %v7971, %v1870
        %v7992 = vmul.f32 %v7974, %v1870
        %v7993 = vmul.f32 %v7977, %v1870
        %v7994 = vmul.f32 %v7980, %v1870
        %v7995 = vmul.f32 %v7983, %v1870
        %v7996 = vmul.f32 %v7986, %v1870
        %v7997 = vmul.f32 %v7989, %v1870
        %v7998 = vadd.f32 %v7990, 1e-05
        %v7999 = vadd.f32 %v7991, 1e-05
        %v8000 = vadd.f32 %v7992, 1e-05
        %v8001 = vadd.f32 %v7993, 1e-05
        %v8002 = vadd.f32 %v7994, 1e-05
        %v8003 = vadd.f32 %v7995, 1e-05
        %v8004 = vadd.f32 %v7996, 1e-05
        %v8005 = vadd.f32 %v7997, 1e-05
        %v8006 = vrsqrt.pop %v7998
        %v8007 = vrsqrt.pop %v7999
        %v8008 = vrsqrt.pop %v8000
        %v8009 = vrsqrt.pop %v8001
        %v8010 = vrsqrt.pop %v8002
        %v8011 = vrsqrt.pop %v8003
        %v8012 = vrsqrt.pop %v8004
        %v8013 = vrsqrt.pop %v8005
        %v8014 = vmul.f32 %v7950, %v8006
        %v8015 = vmul.f32 %v7951, %v8007
        %v8016 = vmul.f32 %v7952, %v8008
        %v8017 = vmul.f32 %v7953, %v8009
        %v8018 = vmul.f32 %v7954, %v8010
        %v8019 = vmul.f32 %v7955, %v8011
        %v8020 = vmul.f32 %v7956, %v8012
        %v8021 = vmul.f32 %v7957, %v8013
        %v8023 = vlaneseq
        %v8024 = vshrl.u32 %v8023, 7
        %v8025 = vsub.s32 0, %v8024
        %v8026 = vrot.slane %v7916, %v8025
        %v8028 = vmul.f32 %v8014, %v8026
        %v8029 = vmul.f32 %v8015, %v8026
        %v8030 = vmul.f32 %v8016, %v8026
        %v8031 = vmul.f32 %v8017, %v8026
        %v8032 = vmul.f32 %v8018, %v8026
        %v8033 = vmul.f32 %v8019, %v8026
        %v8034 = vmul.f32 %v8020, %v8026
        %v8035 = vmul.f32 %v8021, %v8026
        %v8037 = vlaneseq
        %v8038 = vshrl.u32 %v8037, 7
        %v8039 = vsub.s32 0, %v8038
        %v8040 = vrot.slane %v7917, %v8039
        %v8042 = vadd.f32 %v8028, %v8040
        %v8043 = vadd.f32 %v8029, %v8040
        %v8044 = vadd.f32 %v8030, %v8040
        %v8045 = vadd.f32 %v8031, %v8040
        %v8046 = vadd.f32 %v8032, %v8040
        %v8047 = vadd.f32 %v8033, %v8040
        %v8048 = vadd.f32 %v8034, %v8040
        %v8049 = vadd.f32 %v8035, %v8040
        %v8050 = vld [vmem:[%s97] sm:$0xf]
        %v8051 = vld [vmem:[%s97 + $0x4] sm:$0xf]
        %v8052 = vld [vmem:[%s97 + $0x8] sm:$0xf]
        %v8053 = vld [vmem:[%s97 + $0xc] sm:$0xf]
        %v8054 = vld [vmem:[%s99] sm:$0x1]
        %v8055 = vsel %vm1845, %v8042, 0.0
        %8056 = vadd.xlane.f32.xlu0 %v8055
        %v8057 = vpop.xlane.xlu0 %8056
        %v8058 = vsel %vm1845, %v8043, 0.0
        %8059 = vadd.xlane.f32.xlu0 %v8058
        %v8060 = vpop.xlane.xlu0 %8059
        %v8061 = vsel %vm1845, %v8044, 0.0
        %8062 = vadd.xlane.f32.xlu0 %v8061
        %v8063 = vpop.xlane.xlu0 %8062
        %v8064 = vsel %vm1845, %v8045, 0.0
        %8065 = vadd.xlane.f32.xlu0 %v8064
        %v8066 = vpop.xlane.xlu0 %8065
        %v8067 = vsel %vm1845, %v8046, 0.0
        %8068 = vadd.xlane.f32.xlu0 %v8067
        %v8069 = vpop.xlane.xlu0 %8068
        %v8070 = vsel %vm1845, %v8047, 0.0
        %8071 = vadd.xlane.f32.xlu0 %v8070
        %v8072 = vpop.xlane.xlu0 %8071
        %v8073 = vsel %vm1845, %v8048, 0.0
        %8074 = vadd.xlane.f32.xlu0 %v8073
        %v8075 = vpop.xlane.xlu0 %8074
        %v8076 = vsel %vm1845, %v8049, 0.0
        %8077 = vadd.xlane.f32.xlu0 %v8076
        %v8078 = vpop.xlane.xlu0 %8077
        %v8079 = vmul.f32 %v8057, %v1870
        %v8080 = vmul.f32 %v8060, %v1870
        %v8081 = vmul.f32 %v8063, %v1870
        %v8082 = vmul.f32 %v8066, %v1870
        %v8083 = vmul.f32 %v8069, %v1870
        %v8084 = vmul.f32 %v8072, %v1870
        %v8085 = vmul.f32 %v8075, %v1870
        %v8086 = vmul.f32 %v8078, %v1870
        %v8087 = vsub.f32 %v8042, %v8079
        %v8088 = vsub.f32 %v8043, %v8080
        %v8089 = vsub.f32 %v8044, %v8081
        %v8090 = vsub.f32 %v8045, %v8082
        %v8091 = vsub.f32 %v8046, %v8083
        %v8092 = vsub.f32 %v8047, %v8084
        %v8093 = vsub.f32 %v8048, %v8085
        %v8094 = vsub.f32 %v8049, %v8086
        %v8095 = vmul.f32 %v8087, %v8087
        %v8096 = vmul.f32 %v8088, %v8088
        %v8097 = vmul.f32 %v8089, %v8089
        %v8098 = vmul.f32 %v8090, %v8090
        %v8099 = vmul.f32 %v8091, %v8091
        %v8100 = vmul.f32 %v8092, %v8092
        %v8101 = vmul.f32 %v8093, %v8093
        %v8102 = vmul.f32 %v8094, %v8094
        %v8103 = vsel %vm1845, %v8095, 0.0
        %8104 = vadd.xlane.f32.xlu0 %v8103
        %v8105 = vpop.xlane.xlu0 %8104
        %v8106 = vsel %vm1845, %v8096, 0.0
        %8107 = vadd.xlane.f32.xlu0 %v8106
        %v8108 = vpop.xlane.xlu0 %8107
        %v8109 = vsel %vm1845, %v8097, 0.0
        %8110 = vadd.xlane.f32.xlu0 %v8109
        %v8111 = vpop.xlane.xlu0 %8110
        %v8112 = vsel %vm1845, %v8098, 0.0
        %8113 = vadd.xlane.f32.xlu0 %v8112
        %v8114 = vpop.xlane.xlu0 %8113
        %v8115 = vsel %vm1845, %v8099, 0.0
        %8116 = vadd.xlane.f32.xlu0 %v8115
        %v8117 = vpop.xlane.xlu0 %8116
        %v8118 = vsel %vm1845, %v8100, 0.0
        %8119 = vadd.xlane.f32.xlu0 %v8118
        %v8120 = vpop.xlane.xlu0 %8119
        %v8121 = vsel %vm1845, %v8101, 0.0
        %8122 = vadd.xlane.f32.xlu0 %v8121
        %v8123 = vpop.xlane.xlu0 %8122
        %v8124 = vsel %vm1845, %v8102, 0.0
        %8125 = vadd.xlane.f32.xlu0 %v8124
        %v8126 = vpop.xlane.xlu0 %8125
        %v8127 = vmul.f32 %v8105, %v1870
        %v8128 = vmul.f32 %v8108, %v1870
        %v8129 = vmul.f32 %v8111, %v1870
        %v8130 = vmul.f32 %v8114, %v1870
        %v8131 = vmul.f32 %v8117, %v1870
        %v8132 = vmul.f32 %v8120, %v1870
        %v8133 = vmul.f32 %v8123, %v1870
        %v8134 = vmul.f32 %v8126, %v1870
        %v8135 = vadd.f32 %v8127, 1e-05
        %v8136 = vadd.f32 %v8128, 1e-05
        %v8137 = vadd.f32 %v8129, 1e-05
        %v8138 = vadd.f32 %v8130, 1e-05
        %v8139 = vadd.f32 %v8131, 1e-05
        %v8140 = vadd.f32 %v8132, 1e-05
        %v8141 = vadd.f32 %v8133, 1e-05
        %v8142 = vadd.f32 %v8134, 1e-05
        %v8143 = vrsqrt.pop %v8135
        %v8144 = vrsqrt.pop %v8136
        %v8145 = vrsqrt.pop %v8137
        %v8146 = vrsqrt.pop %v8138
        %v8147 = vrsqrt.pop %v8139
        %v8148 = vrsqrt.pop %v8140
        %v8149 = vrsqrt.pop %v8141
        %v8150 = vrsqrt.pop %v8142
        %v8151 = vmul.f32 %v8087, %v8143
        %v8152 = vmul.f32 %v8088, %v8144
        %v8153 = vmul.f32 %v8089, %v8145
        %v8154 = vmul.f32 %v8090, %v8146
        %v8155 = vmul.f32 %v8091, %v8147
        %v8156 = vmul.f32 %v8092, %v8148
        %v8157 = vmul.f32 %v8093, %v8149
        %v8158 = vmul.f32 %v8094, %v8150
        %v8159 = vpack.c.bf16 %v8152, %v8151
        %v8160 = vpack.c.bf16 %v8154, %v8153
        %v8161 = vpack.c.bf16 %v8156, %v8155
        %v8162 = vpack.c.bf16 %v8158, %v8157
        %v8164 = vlaneseq
        %v8165 = vshrl.u32 %v8164, 7
        %v8166 = vsub.s32 0, %v8165
        %v8167 = vrot.slane %v8054, %v8166
        %v8173 = vunpack.c.l.b16 %v8050
        %v8174 = vunpack.c.l.b16 %v8051
        %v8175 = vunpack.c.l.b16 %v8052
        %v8176 = vunpack.c.l.b16 %v8053
        %v8177 = vpack.c.b16 %v8174, %v8173
        %v8178 = vpack.c.b16 %v8176, %v8175
        %v8182 = vsel %vm1845, %v8159, 0
        %v8185 = vsel %vm1845, %v8160, 0
        %v8188 = vsel %vm1845, %v8161, 0
        %v8191 = vsel %vm1845, %v8162, 0
        %8193 = vmatprep.subr.bf16.mxu0 0
        %8194 = vmatpush1.bf16.msra.mxu0 %v8177
        %8195 = vmatprep.subr.bf16.mxu0 0
        %8196 = vmatpush1.bf16.msra.mxu0 %v8178
        %8197 = vmatprep.subr.bf16.mxu0 0
        %8198 = vmatpush1.bf16.msra.mxu0 0
        %8199 = vmatprep.subr.bf16.mxu0 0
        %8200 = vmatpush1.bf16.msra.mxu0 0
        %8201 = vmatprep.subr.bf16.mxu0 0
        %8202 = vmatpush1.bf16.msra.mxu0 0
        %8203 = vmatprep.subr.bf16.mxu0 0
        %8204 = vmatpush1.bf16.msra.mxu0 0
        %8205 = vmatprep.subr.bf16.mxu0 0
        %8206 = vmatpush1.bf16.msra.mxu0 0
        %8207 = vmatprep.subr.bf16.mxu0 0
        %8208 = vmatpush1.bf16.msra.mxu0 0
        %8209 = vmatprep.subr.bf16.mxu0 0
        %8210 = vmatpush1.bf16.msra.mxu0 0
        %8211 = vmatprep.subr.bf16.mxu0 0
        %8212 = vmatpush1.bf16.msra.mxu0 0
        %8213 = vmatprep.subr.bf16.mxu0 0
        %8214 = vmatpush1.bf16.msra.mxu0 0
        %8215 = vmatprep.subr.bf16.mxu0 0
        %8216 = vmatpush1.bf16.msra.mxu0 0
        %8217 = vmatprep.subr.bf16.mxu0 0
        %8218 = vmatpush1.bf16.msra.mxu0 0
        %8219 = vmatprep.subr.bf16.mxu0 0
        %8220 = vmatpush1.bf16.msra.mxu0 0
        %8221 = vmatprep.subr.bf16.mxu0 0
        %8222 = vmatpush1.bf16.msra.mxu0 0
        %8223 = vmatprep.subr.bf16.mxu0 0
        %8224 = vmatpush1.bf16.msra.mxu0 0
        %8225 = vmatprep.mubr.bf16.mxu0 0
        %8226 = vmatmul.mubr.bf16.gmra.mrb[0].mxu0 %v8182
        %v8227 = vpop.f32.mrb[0].mxu0
        %v8228 = vadd.f32 %v8167, %v8227
        %v8229 = vpop.f32.mrb[0].mxu0
        %v8230 = vpop.f32.mrb[0].mxu0
        %v8231 = vadd.f32 %v8167, %v8230
        %v8232 = vpop.f32.mrb[0].mxu0
        %8233 = vmatprep.mubr.bf16.mxu0 0
        %8234 = vmatmul.mubr.bf16.gmra.mrb[0].mxu0 %v8185
        %v8235 = vpop.f32.mrb[0].mxu0
        %v8236 = vadd.f32 %v8167, %v8235
        %v8237 = vpop.f32.mrb[0].mxu0
        %v8238 = vpop.f32.mrb[0].mxu0
        %v8239 = vadd.f32 %v8167, %v8238
        %v8240 = vpop.f32.mrb[0].mxu0
        %8241 = vmatprep.mubr.bf16.mxu0 0
        %8242 = vmatmul.mubr.bf16.gmra.mrb[0].mxu0 %v8188
        %v8243 = vpop.f32.mrb[0].mxu0
        %v8244 = vadd.f32 %v8167, %v8243
        %v8245 = vpop.f32.mrb[0].mxu0
        %v8246 = vpop.f32.mrb[0].mxu0
        %v8247 = vadd.f32 %v8167, %v8246
        %v8248 = vpop.f32.mrb[0].mxu0
        %8249 = vmatprep.mubr.bf16.mxu0 0
        %8250 = vmatmul.mubr.bf16.gmra.mrb[0].mxu0 %v8191
        %v8251 = vpop.f32.mrb[0].mxu0
        %v8252 = vadd.f32 %v8167, %v8251
        %v8253 = vpop.f32.mrb[0].mxu0
        %v8254 = vpop.f32.mrb[0].mxu0
        %v8255 = vadd.f32 %v8167, %v8254
        %v8256 = vpop.f32.mrb[0].mxu0
        %8257 = vdwg.mxu0
        %8258 = vst.msk [vmem:[%s1801] sm:$0xff] %vm1845, %v8228
        %8259 = vst.msk [vmem:[%s1801 + $0x8] sm:$0xff] %vm1845, %v8231
        %8260 = vst.msk [vmem:[%s1801 + $0x10] sm:$0xff] %vm1845, %v8236
        %8261 = vst.msk [vmem:[%s1801 + $0x18] sm:$0xff] %vm1845, %v8239
        %8262 = vst.msk [vmem:[%s1801 + $0x20] sm:$0xff] %vm1845, %v8244
        %8263 = vst.msk [vmem:[%s1801 + $0x28] sm:$0xff] %vm1845, %v8247
        %8264 = vst.msk [vmem:[%s1801 + $0x30] sm:$0xff] %vm1845, %v8252
        %8265 = vst.msk [vmem:[%s1801 + $0x38] sm:$0xff] %vm1845, %v8255
        %s8266 = sand.u32 %s1196, 1
        %s8267 = scalar_lea.sflag [#allocation4], %s8266
        %s8268 = sand.u32 %s1196, 1
        %s8269 = smul.addr %s8268, 64
        %s8270 = scalar_lea.vmem [#allocation40], %s8269
        // Predicated region
        $region317: #{_lambda_.1} parent=219 // pred_check
          %p8271 = pneg %p1206
        $region318: #{_lambda_.1} parent=219 // pred_check_branch
          %8273 = sbr.rel (%p8271) target = $region320
        $region319: #{_lambda_.1} parent=219 // pred_region
          %s8275 = ssub.s32 1024, 1024
          %8276 = vsyncadd %s8267, %s8275
          %s8277 = smul.addr %s128, 8
          %s8278 = smul.addr %s8277, 128
          %s8279 = scalar_lea.hbm %s101, %s8278
          %s8280 = sshll.u32 %s8270, 4
          %s8281 = int_to_ptr.vmem [resolvable:$true] %s8280
          %8286 = dma.vmem_to_hbm [thread:$0]  %s8281, 1024, %s8279, %s8267, 128, 128, 8
        $region320: #{_lambda_.1} parent=219 // pred_fallthru
          _
      $region220: #{_lambda_.1} parent=5 // pred_fallthru
        _
      %p8287 = scmp.le.s32.totalorder 2, %s123
      // Predicated region
      $region321: #{_lambda_.1} parent=5 // pred_check
        %p8288 = pneg %p8287
      $region322: #{_lambda_.1} parent=5 // pred_check_branch
        %8290 = sbr.rel (%p8288) target = $region324
      $region323: #{_lambda_.1} parent=5 // pred_region
        %s8291 = ssub.s32 %s123, 2
        // Predicated region
        $region325: #{_lambda_.1} parent=323 // pred_check
          %p8292 = pneg %p1212
        $region326: #{_lambda_.1} parent=323 // pred_check_branch
          %8294 = sbr.rel (%p8292) target = $region328
        $region327: #{_lambda_.1} parent=323 // pred_region
          %s8295 = sand.u32 %s1197, 1
          %s8296 = scalar_lea.sflag [#allocation4], %s8295
          %s8297 = sand.u32 %s1197, 1
          %s8298 = smul.addr %s8297, 64
          %s8299 = scalar_lea.vmem [#allocation40], %s8298
          %8300 = dma.done %s8296, 1024
        $region328: #{_lambda_.1} parent=323 // pred_fallthru
          _
      $region324: #{_lambda_.1} parent=5 // pred_fallthru
        _
    $region6: #{_lambda_.1} parent=1 // loop_footer
      %s127 = sadd.s32 1, %s123
    $region7: #{_lambda_.1} parent=1 // loop_footer_branch
      %122 = sbr.rel target = $region3
    $region8: #{_lambda_.1} parent=1 // loop_exit
      _
    %8301 = vsyncpa [#allocation3], 1
    %s8302 = scalar_lea.sflag [#allocation3], 1
    %8303 = vsyncpa %s8302, 1
    %8304 = vsyncpa [#allocation6], 1
    %8305 = vsyncpa [#allocation9], 1
    %8306 = vsyncpa [#allocation12], 1
    %8307 = vsyncpa [#allocation15], 1
    %8308 = vsyncpa [#allocation18], 1
    %8309 = vsyncpa [#allocation21], 1
    %8310 = vsyncpa [#allocation24], 1
    %8311 = vsyncpa [#allocation27], 1
    %8312 = vsyncpa [#allocation30], 1
    %8313 = vsyncpa [#allocation33], 1
    %8314 = vsyncpa [#allocation36], 1
    %8315 = vsyncpa [#allocation39], 1
    %8316 = vsyncpa [#allocation4], 1
    %s8317 = scalar_lea.sflag [#allocation4], 1
    %8318 = vsyncpa %s8317, 1

</llo_original>
